<compile_context>
chip_gen: v7x
topology: tpu7x:2x2x1
jax: 0.10.0
libtpu: 0.0.40
codegen_flags: <defaults>
</compile_context>

<pallas_src>
import jax
import jax.numpy as jnp
from jax.experimental import pallas as pl
from jax.experimental.pallas import tpu as pltpu


def _round_up(x, m):
    return (x + m - 1) // m * m


def _make_fused_kernel(h, w, p, cp, base, g_rows):
    """Fused conv1_1(+norm)+ReLU -> conv1_2+ReLU for BOTH branches + MSE partials.

    Spatial layout: images / feature maps are row-flattened over a zero-padded
    (h+2, p) grid with pitch p (a multiple of 8, >= w+2).  Tap (kh, kw) of a 3x3
    conv is the row slice [off + kh*p + kw : ... + h*p] of the flattened grid, so
    each tap is one MXU matmul.  Output rows whose column index is >= w are
    wrap-around junk and are masked to zero.
    """
    hp = h * p
    hp2 = 2 * hp
    off = base - p - 1                 # >= 0; base is 8-aligned by construction
    tail = g_rows - base - hp          # halo rows after the interior (8-aligned)

    def kernel(lhs_ref, w1_ref, b1_ref, w2_ref, b2_ref, out_ref, g_scr):
        # Column-validity mask generated in-kernel (iota + compare on the VPU).
        rows = jax.lax.broadcasted_iota(jnp.int32, (hp2, 1), 0)
        mask2 = (rows % p < w).astype(jnp.float32)        # (2*hp, 1)
        mask = mask2[:hp]                                 # (hp, 1)

        # conv1_1 (+ folded 1/std) for BOTH branches: ONE K=27 im2col matmul,
        # bf16 operands, f32 accumulation.
        f = jnp.dot(lhs_ref[...], w1_ref[...], preferred_element_type=jnp.float32)
        f = jnp.maximum(f + b1_ref[...], 0.0) * mask2     # junk columns -> 0

        # Zero only the halo rows of the two padded feature grids; the interior
        # [base, base+hp) is fully overwritten (with masked data) right below.
        zero_head = jnp.zeros((base, cp), jnp.float32)
        zero_tail = jnp.zeros((tail, cp), jnp.float32)
        g_scr[0, 0:base, :] = zero_head
        g_scr[1, 0:base, :] = zero_head
        g_scr[0, base + hp:g_rows, :] = zero_tail
        g_scr[1, base + hp:g_rows, :] = zero_tail

        # Scatter the masked conv1 features into the zero-padded grids (VMEM only).
        g_scr[0, base:base + hp, :] = f[:hp]              # SR branch
        g_scr[1, base:base + hp, :] = f[hp:]              # HR branch

        # conv1_2 + ReLU: 9 shifted-window MXU matmuls per branch, bf16 operands,
        # f32 accumulators held as values (no feature-map scratch).
        acc_sr = jnp.zeros((hp, cp), jnp.float32)
        acc_hr = jnp.zeros((hp, cp), jnp.float32)
        for kh in range(3):
            for kw in range(3):
                d = off + kh * p + kw
                wtap = w2_ref[kh * 3 + kw]
                acc_sr = acc_sr + jnp.dot(
                    g_scr[0, d:d + hp, :].astype(jnp.bfloat16), wtap,
                    preferred_element_type=jnp.float32)
                acc_hr = acc_hr + jnp.dot(
                    g_scr[1, d:d + hp, :].astype(jnp.bfloat16), wtap,
                    preferred_element_type=jnp.float32)

        b2 = b2_ref[...]
        diff = (jnp.maximum(acc_sr + b2, 0.0) - jnp.maximum(acc_hr + b2, 0.0)) * mask

        # Lane-dense per-image partial sums (sublane reduce only); cross-lane and
        # cross-batch reduction + mean divide happen in the JAX wrapper.
        out_ref[...] = jnp.sum(diff * diff, axis=0, keepdims=True).reshape(1, 1, cp)

    return kernel


class ContentLossPallas:
    """Mirrors ContentLoss.forward: Normalize -> VGG19[:'features.3'] -> mse_loss."""

    def __init__(self, key, feature_model_normalize_mean, feature_model_normalize_std,
                 hidden_channels=16, lane_channels=128):
        c, cp = hidden_channels, lane_channels
        k1, k2 = jax.random.split(key)
        # Truncated VGG19 block: conv1_1 (3->c), ReLU, conv1_2 (c->c), ReLU.
        # TODO(synk): deterministic random stand-ins for the pretrained weights.
        w1 = jax.random.normal(k1, (3, 3, 3, c), jnp.float32) * 0.1
        b1 = jnp.zeros((c,), jnp.float32)
        w2 = jax.random.normal(k2, (3, 3, c, c), jnp.float32) * 0.1
        b2 = jnp.zeros((c,), jnp.float32)

        mean = jnp.asarray(feature_model_normalize_mean, jnp.float32)
        std = jnp.asarray(feature_model_normalize_std, jnp.float32)

        # Fold Normalize's 1/std into conv1's input-channel weights.  The mean
        # subtraction is fused into the pad/flatten/im2col glue pass in __call__,
        # which keeps the zero-padding semantics of the original model exact.
        w1 = w1 * (1.0 / std)[None, None, :, None]

        # Zero-pad the output-channel dim to a lane-dense width; padded channels stay
        # exactly 0 through both convs in both branches, so the MSE is unchanged.
        w1p = jnp.zeros((3, 3, 3, cp), jnp.float32).at[..., :c].set(w1)
        b1p = jnp.zeros((1, cp), jnp.float32).at[:, :c].set(b1)
        w2p = jnp.zeros((3, 3, cp, cp), jnp.float32).at[:, :, :c, :c].set(w2)
        b2p = jnp.zeros((1, cp), jnp.float32).at[:, :c].set(b2)

        self.c_true = c
        self.cp = cp
        self.w1 = w1p.reshape(27, cp).astype(jnp.bfloat16)     # (tap*cin, cout) im2col RHS
        self.b1 = b1p                                          # f32
        self.w2 = w2p.reshape(9, cp, cp).astype(jnp.bfloat16)  # (tap, cin, cout)
        self.b2 = b2p                                          # f32
        self.mean = mean.reshape(1, 1, 1, 3)

    def __call__(self, sr_nchw, hr_nchw):
        n, cin, h, w = sr_nchw.shape
        p = _round_up(w + 2, 8)          # padded row pitch: keeps kh*p tap offsets aligned
        q = h + 2
        hp = h * p
        off = (-(p + 1)) % 8             # makes the interior scatter store 8-row aligned
        base = off + p + 1
        g_rows = _round_up(off + 2 * p + 2 + hp, 8)
        cp = self.cp

        def prep(x_nchw):
            # NCHW -> NHWC, subtract mean (other half of Normalize), zero-pad to the
            # (q, p) grid, row-flatten, and build the cheap 3-channel, 9-tap im2col
            # LHS (K=27).  Plain-JAX layout glue fused by XLA; junk columns (col>=w)
            # carry wrap-around values and are masked to zero inside the kernel.
            x = jnp.transpose(x_nchw, (0, 2, 3, 1)) - self.mean           # (n,h,w,3)
            xpad = jnp.pad(x, ((0, 0), (1, 1), (1, p - w - 1), (0, 0)))   # (n,q,p,3)
            xf = xpad.reshape(n, q * p, cin)
            xf = jnp.pad(xf, ((0, 0), (0, 2), (0, 0)))                    # tap overrun
            cols = [xf[:, kh * p + kw: kh * p + kw + hp, :]
                    for kh in range(3) for kw in range(3)]
            return jnp.concatenate(cols, axis=-1).astype(jnp.bfloat16)    # (n, hp, 27)

        # Stack the SR and HR branches along M so conv1 is one matmul per image and
        # the diff is formed in-register (no feature scratch in HBM or VMEM).
        lhs = jnp.concatenate([prep(sr_nchw), prep(hr_nchw)], axis=1)     # (n, 2*hp, 27)

        kernel = _make_fused_kernel(h, w, p, cp, base, g_rows)

        partials = pl.pallas_call(
            kernel,
            out_shape=jax.ShapeDtypeStruct((n, 1, cp), jnp.float32),
            grid=(n,),
            in_specs=[
                pl.BlockSpec((None, 2 * hp, 27), lambda i: (i, 0, 0)),  # stacked im2col LHS
                pl.BlockSpec((27, cp), lambda i: (0, 0)),               # conv1 weights (bf16)
                pl.BlockSpec((1, cp), lambda i: (0, 0)),                # conv1 bias
                pl.BlockSpec((9, cp, cp), lambda i: (0, 0, 0)),         # conv2 weights (bf16)
                pl.BlockSpec((1, cp), lambda i: (0, 0)),                # conv2 bias
            ],
            out_specs=pl.BlockSpec((1, 1, cp), lambda i: (i, 0, 0)),
            scratch_shapes=[
                pltpu.VMEM((2, g_rows, cp), jnp.float32),   # padded conv1 feature grids
            ],
            # Each step writes its own output block -> batch axis is truly parallel
            # (lets v7x use both TensorCores); final reduce happens below in JAX.
            compiler_params=pltpu.CompilerParams(
                dimension_semantics=("parallel",),
                vmem_limit_bytes=32 * 1024 * 1024,
            ),
        )(lhs, self.w1, self.b1, self.w2, self.b2)

        inv_count = 1.0 / float(n * h * w * self.c_true)    # true (unpadded) element count
        return jnp.sum(partials) * inv_count


if __name__ == "__main__":
    key = jax.random.PRNGKey(0)
    k_weights, k_sr, k_hr = jax.random.split(key, 3)

    content_loss = ContentLossPallas(
        k_weights,
        feature_model_normalize_mean=[0.485, 0.456, 0.406],
        feature_model_normalize_std=[0.229, 0.224, 0.225],
        hidden_channels=16,
    )

    # PyTorch NCHW convention: (batch=2, C=3, 16, 16)
    sr_tensor = jax.random.uniform(k_sr, (2, 3, 16, 16), jnp.float32)
    hr_tensor = jax.random.uniform(k_hr, (2, 3, 16, 16), jnp.float32)

    loss = content_loss(sr_tensor, hr_tensor)
    jax.block_until_ready(loss)
    print("KERNEL_OK")
</pallas_src>

<mosaic_0001>
module attributes {stable_mosaic.version = 11 : i64} {
  func.func @kernel(%arg0: i32, %arg1: memref<1x768x27xbf16, #tpu.memory_space<vmem>>, %arg2: memref<27x128xbf16, #tpu.memory_space<vmem>>, %arg3: memref<1x128xf32, #tpu.memory_space<vmem>>, %arg4: memref<9x128x128xbf16, #tpu.memory_space<vmem>>, %arg5: memref<1x128xf32, #tpu.memory_space<vmem>>, %arg6: memref<1x1x128xf32, #tpu.memory_space<vmem>>, %arg7: memref<2x448x128xf32, #tpu.memory_space<vmem>>) attributes {dimension_semantics = [#tpu.dimension_semantics<parallel>], iteration_bounds = array<i64: 2>, scalar_prefetch = 0 : i64, scratch_operands = 1 : i64, tpu.core_type = #tpu.core_type<tc>, window_params = [{transform_indices = @transform_0, window_bounds = array<i64: 1, 768, 27>}, {pipeline_mode = #tpu.pipeline_mode<synchronous>, transform_indices = @transform_1, window_bounds = array<i64: 27, 128>}, {pipeline_mode = #tpu.pipeline_mode<synchronous>, transform_indices = @transform_2, window_bounds = array<i64: 1, 128>}, {pipeline_mode = #tpu.pipeline_mode<synchronous>, transform_indices = @transform_3, window_bounds = array<i64: 9, 128, 128>}, {pipeline_mode = #tpu.pipeline_mode<synchronous>, transform_indices = @transform_4, window_bounds = array<i64: 1, 128>}, {transform_indices = @transform_5, window_bounds = array<i64: 1, 1, 128>}]} {
    %0 = tpu.iota {dimensions = array<i32: 0>} : vector<768x1xi32>
    %c24_i32 = arith.constant 24 : i32
    %c0_i32 = arith.constant 0 : i32
    %1 = arith.cmpi eq, %c24_i32, %c0_i32 : i32
    %c1_i32 = arith.constant 1 : i32
    %2 = arith.select %1, %c1_i32, %c24_i32 : i32
    %3 = vector.broadcast %2 : i32 to vector<768x1xi32>
    %4 = arith.remsi %0, %3 : vector<768x1xi32>
    %c0_i32_0 = arith.constant 0 : i32
    %5 = vector.broadcast %c0_i32_0 : i32 to vector<768x1xi32>
    %6 = arith.cmpi ne, %4, %5 : vector<768x1xi32>
    %c0_i32_1 = arith.constant 0 : i32
    %7 = vector.broadcast %c0_i32_1 : i32 to vector<768x1xi32>
    %8 = arith.cmpi slt, %4, %7 : vector<768x1xi32>
    %c0_i32_2 = arith.constant 0 : i32
    %9 = arith.cmpi slt, %2, %c0_i32_2 : i32
    %10 = vector.broadcast %9 : i1 to vector<768x1xi1>
    %11 = vector.broadcast %10 : vector<768x1xi1> to vector<768x1xi1>
    %12 = arith.xori %8, %11 : vector<768x1xi1>
    %13 = arith.andi %12, %6 : vector<768x1xi1>
    %14 = vector.broadcast %2 : i32 to vector<768x1xi32>
    %15 = arith.addi %4, %14 : vector<768x1xi32>
    %16 = arith.select %13, %15, %4 : vector<768x1xi1>, vector<768x1xi32>
    %c16_i32 = arith.constant 16 : i32
    %17 = vector.broadcast %c16_i32 : i32 to vector<768x1xi32>
    %18 = arith.cmpi slt, %16, %17 : vector<768x1xi32>
    %19 = arith.extui %18 : vector<768x1xi1> to vector<768x1xi32>
    %20 = arith.sitofp %19 : vector<768x1xi32> to vector<768x1xf32>
    %21 = vector.extract_strided_slice %20 {offsets = [0, 0], sizes = [384, 1], strides = [1, 1]} : vector<768x1xf32> to vector<384x1xf32>
    %c0 = arith.constant 0 : index
    %c0_3 = arith.constant 0 : index
    %c0_4 = arith.constant 0 : index
    %22 = vector.load %arg1[%c0, %c0_3, %c0_4] : memref<1x768x27xbf16, #tpu.memory_space<vmem>>, vector<1x768x27xbf16>
    %23 = vector.shape_cast %22 : vector<1x768x27xbf16> to vector<768x27xbf16>
    %c0_5 = arith.constant 0 : index
    %c0_6 = arith.constant 0 : index
    %24 = vector.load %arg2[%c0_5, %c0_6] : memref<27x128xbf16, #tpu.memory_space<vmem>>, vector<27x128xbf16>
    %cst = arith.constant dense<0.000000e+00> : vector<768x128xf32>
    %25 = tpu.matmul %23, %24, %cst {dimension_numbers = #tpu.dot_dimension_numbers<[1], [0], [0], [1], [0, 0, 1, 1], [], []>} : vector<768x27xbf16>, vector<27x128xbf16>, vector<768x128xf32> -> vector<768x128xf32>
    %c0_7 = arith.constant 0 : index
    %c0_8 = arith.constant 0 : index
    %26 = vector.load %arg3[%c0_7, %c0_8] : memref<1x128xf32, #tpu.memory_space<vmem>>, vector<1x128xf32>
    %27 = vector.broadcast %26 : vector<1x128xf32> to vector<768x128xf32>
    %28 = arith.addf %25, %27 : vector<768x128xf32>
    %cst_9 = arith.constant 0.000000e+00 : f32
    %29 = vector.broadcast %cst_9 : f32 to vector<768x128xf32>
    %30 = arith.maximumf %28, %29 : vector<768x128xf32>
    %31 = vector.broadcast %20 : vector<768x1xf32> to vector<768x128xf32>
    %32 = arith.mulf %30, %31 : vector<768x128xf32>
    %cst_10 = arith.constant 0.000000e+00 : f32
    %33 = vector.broadcast %cst_10 : f32 to vector<32x128xf32>
    %cst_11 = arith.constant 0.000000e+00 : f32
    %34 = vector.broadcast %cst_11 : f32 to vector<32x128xf32>
    %c0_12 = arith.constant 0 : index
    %c0_13 = arith.constant 0 : index
    %c0_14 = arith.constant 0 : index
    %35 = vector.load %arg7[%c0_12, %c0_13, %c0_14] : memref<2x448x128xf32, #tpu.memory_space<vmem>>, vector<1x32x128xf32>
    %36 = vector.shape_cast %35 : vector<1x32x128xf32> to vector<32x128xf32>
    %37 = vector.shape_cast %33 : vector<32x128xf32> to vector<1x32x128xf32>
    tpu.vector_store %arg7[%c0_12, %c0_13, %c0_14], %37 {strides = array<i32>} : memref<2x448x128xf32, #tpu.memory_space<vmem>>, vector<1x32x128xf32>,
    %c1 = arith.constant 1 : index
    %c0_15 = arith.constant 0 : index
    %c0_16 = arith.constant 0 : index
    %38 = vector.load %arg7[%c1, %c0_15, %c0_16] : memref<2x448x128xf32, #tpu.memory_space<vmem>>, vector<1x32x128xf32>
    %39 = vector.shape_cast %38 : vector<1x32x128xf32> to vector<32x128xf32>
    %40 = vector.shape_cast %33 : vector<32x128xf32> to vector<1x32x128xf32>
    tpu.vector_store %arg7[%c1, %c0_15, %c0_16], %40 {strides = array<i32>} : memref<2x448x128xf32, #tpu.memory_space<vmem>>, vector<1x32x128xf32>,
    %c0_17 = arith.constant 0 : index
    %c416 = arith.constant 416 : index
    %c0_18 = arith.constant 0 : index
    %41 = vector.load %arg7[%c0_17, %c416, %c0_18] : memref<2x448x128xf32, #tpu.memory_space<vmem>>, vector<1x32x128xf32>
    %42 = vector.shape_cast %41 : vector<1x32x128xf32> to vector<32x128xf32>
    %43 = vector.shape_cast %34 : vector<32x128xf32> to vector<1x32x128xf32>
    tpu.vector_store %arg7[%c0_17, %c416, %c0_18], %43 {strides = array<i32>} : memref<2x448x128xf32, #tpu.memory_space<vmem>>, vector<1x32x128xf32>,
    %c1_19 = arith.constant 1 : index
    %c416_20 = arith.constant 416 : index
    %c0_21 = arith.constant 0 : index
    %44 = vector.load %arg7[%c1_19, %c416_20, %c0_21] : memref<2x448x128xf32, #tpu.memory_space<vmem>>, vector<1x32x128xf32>
    %45 = vector.shape_cast %44 : vector<1x32x128xf32> to vector<32x128xf32>
    %46 = vector.shape_cast %34 : vector<32x128xf32> to vector<1x32x128xf32>
    tpu.vector_store %arg7[%c1_19, %c416_20, %c0_21], %46 {strides = array<i32>} : memref<2x448x128xf32, #tpu.memory_space<vmem>>, vector<1x32x128xf32>,
    %47 = vector.extract_strided_slice %32 {offsets = [0, 0], sizes = [384, 128], strides = [1, 1]} : vector<768x128xf32> to vector<384x128xf32>
    %c0_22 = arith.constant 0 : index
    %c32 = arith.constant 32 : index
    %c0_23 = arith.constant 0 : index
    %48 = vector.load %arg7[%c0_22, %c32, %c0_23] : memref<2x448x128xf32, #tpu.memory_space<vmem>>, vector<1x384x128xf32>
    %49 = vector.shape_cast %48 : vector<1x384x128xf32> to vector<384x128xf32>
    %50 = vector.shape_cast %47 : vector<384x128xf32> to vector<1x384x128xf32>
    tpu.vector_store %arg7[%c0_22, %c32, %c0_23], %50 {strides = array<i32>} : memref<2x448x128xf32, #tpu.memory_space<vmem>>, vector<1x384x128xf32>,
    %51 = vector.extract_strided_slice %32 {offsets = [384, 0], sizes = [384, 128], strides = [1, 1]} : vector<768x128xf32> to vector<384x128xf32>
    %c1_24 = arith.constant 1 : index
    %c32_25 = arith.constant 32 : index
    %c0_26 = arith.constant 0 : index
    %52 = vector.load %arg7[%c1_24, %c32_25, %c0_26] : memref<2x448x128xf32, #tpu.memory_space<vmem>>, vector<1x384x128xf32>
    %53 = vector.shape_cast %52 : vector<1x384x128xf32> to vector<384x128xf32>
    %54 = vector.shape_cast %51 : vector<384x128xf32> to vector<1x384x128xf32>
    tpu.vector_store %arg7[%c1_24, %c32_25, %c0_26], %54 {strides = array<i32>} : memref<2x448x128xf32, #tpu.memory_space<vmem>>, vector<1x384x128xf32>,
    %cst_27 = arith.constant 0.000000e+00 : f32
    %55 = vector.broadcast %cst_27 : f32 to vector<384x128xf32>
    %cst_28 = arith.constant 0.000000e+00 : f32
    %56 = vector.broadcast %cst_28 : f32 to vector<384x128xf32>
    %c0_29 = arith.constant 0 : index
    %c0_30 = arith.constant 0 : index
    %c0_31 = arith.constant 0 : index
    %57 = vector.load %arg4[%c0_29, %c0_30, %c0_31] : memref<9x128x128xbf16, #tpu.memory_space<vmem>>, vector<1x128x128xbf16>
    %58 = vector.shape_cast %57 : vector<1x128x128xbf16> to vector<128x128xbf16>
    %c0_32 = arith.constant 0 : index
    %c7 = arith.constant 7 : index
    %c0_33 = arith.constant 0 : index
    %59 = vector.load %arg7[%c0_32, %c7, %c0_33] : memref<2x448x128xf32, #tpu.memory_space<vmem>>, vector<1x384x128xf32>
    %60 = vector.shape_cast %59 : vector<1x384x128xf32> to vector<384x128xf32>
    %61 = arith.truncf %60 : vector<384x128xf32> to vector<384x128xbf16>
    %cst_34 = arith.constant dense<0.000000e+00> : vector<384x128xf32>
    %62 = tpu.matmul %61, %58, %cst_34 {dimension_numbers = #tpu.dot_dimension_numbers<[1], [0], [0], [1], [0, 0, 1, 1], [], []>} : vector<384x128xbf16>, vector<128x128xbf16>, vector<384x128xf32> -> vector<384x128xf32>
    %63 = arith.addf %55, %62 : vector<384x128xf32>
    %c1_35 = arith.constant 1 : index
    %c7_36 = arith.constant 7 : index
    %c0_37 = arith.constant 0 : index
    %64 = vector.load %arg7[%c1_35, %c7_36, %c0_37] : memref<2x448x128xf32, #tpu.memory_space<vmem>>, vector<1x384x128xf32>
    %65 = vector.shape_cast %64 : vector<1x384x128xf32> to vector<384x128xf32>
    %66 = arith.truncf %65 : vector<384x128xf32> to vector<384x128xbf16>
    %cst_38 = arith.constant dense<0.000000e+00> : vector<384x128xf32>
    %67 = tpu.matmul %66, %58, %cst_38 {dimension_numbers = #tpu.dot_dimension_numbers<[1], [0], [0], [1], [0, 0, 1, 1], [], []>} : vector<384x128xbf16>, vector<128x128xbf16>, vector<384x128xf32> -> vector<384x128xf32>
    %68 = arith.addf %56, %67 : vector<384x128xf32>
    %c1_39 = arith.constant 1 : index
    %c0_40 = arith.constant 0 : index
    %c0_41 = arith.constant 0 : index
    %69 = vector.load %arg4[%c1_39, %c0_40, %c0_41] : memref<9x128x128xbf16, #tpu.memory_space<vmem>>, vector<1x128x128xbf16>
    %70 = vector.shape_cast %69 : vector<1x128x128xbf16> to vector<128x128xbf16>
    %c0_42 = arith.constant 0 : index
    %c8 = arith.constant 8 : index
    %c0_43 = arith.constant 0 : index
    %71 = vector.load %arg7[%c0_42, %c8, %c0_43] : memref<2x448x128xf32, #tpu.memory_space<vmem>>, vector<1x384x128xf32>
    %72 = vector.shape_cast %71 : vector<1x384x128xf32> to vector<384x128xf32>
    %73 = arith.truncf %72 : vector<384x128xf32> to vector<384x128xbf16>
    %cst_44 = arith.constant dense<0.000000e+00> : vector<384x128xf32>
    %74 = tpu.matmul %73, %70, %cst_44 {dimension_numbers = #tpu.dot_dimension_numbers<[1], [0], [0], [1], [0, 0, 1, 1], [], []>} : vector<384x128xbf16>, vector<128x128xbf16>, vector<384x128xf32> -> vector<384x128xf32>
    %75 = arith.addf %63, %74 : vector<384x128xf32>
    %c1_45 = arith.constant 1 : index
    %c8_46 = arith.constant 8 : index
    %c0_47 = arith.constant 0 : index
    %76 = vector.load %arg7[%c1_45, %c8_46, %c0_47] : memref<2x448x128xf32, #tpu.memory_space<vmem>>, vector<1x384x128xf32>
    %77 = vector.shape_cast %76 : vector<1x384x128xf32> to vector<384x128xf32>
    %78 = arith.truncf %77 : vector<384x128xf32> to vector<384x128xbf16>
    %cst_48 = arith.constant dense<0.000000e+00> : vector<384x128xf32>
    %79 = tpu.matmul %78, %70, %cst_48 {dimension_numbers = #tpu.dot_dimension_numbers<[1], [0], [0], [1], [0, 0, 1, 1], [], []>} : vector<384x128xbf16>, vector<128x128xbf16>, vector<384x128xf32> -> vector<384x128xf32>
    %80 = arith.addf %68, %79 : vector<384x128xf32>
    %c2 = arith.constant 2 : index
    %c0_49 = arith.constant 0 : index
    %c0_50 = arith.constant 0 : index
    %81 = vector.load %arg4[%c2, %c0_49, %c0_50] : memref<9x128x128xbf16, #tpu.memory_space<vmem>>, vector<1x128x128xbf16>
    %82 = vector.shape_cast %81 : vector<1x128x128xbf16> to vector<128x128xbf16>
    %c0_51 = arith.constant 0 : index
    %c9 = arith.constant 9 : index
    %c0_52 = arith.constant 0 : index
    %83 = vector.load %arg7[%c0_51, %c9, %c0_52] : memref<2x448x128xf32, #tpu.memory_space<vmem>>, vector<1x384x128xf32>
    %84 = vector.shape_cast %83 : vector<1x384x128xf32> to vector<384x128xf32>
    %85 = arith.truncf %84 : vector<384x128xf32> to vector<384x128xbf16>
    %cst_53 = arith.constant dense<0.000000e+00> : vector<384x128xf32>
    %86 = tpu.matmul %85, %82, %cst_53 {dimension_numbers = #tpu.dot_dimension_numbers<[1], [0], [0], [1], [0, 0, 1, 1], [], []>} : vector<384x128xbf16>, vector<128x128xbf16>, vector<384x128xf32> -> vector<384x128xf32>
    %87 = arith.addf %75, %86 : vector<384x128xf32>
    %c1_54 = arith.constant 1 : index
    %c9_55 = arith.constant 9 : index
    %c0_56 = arith.constant 0 : index
    %88 = vector.load %arg7[%c1_54, %c9_55, %c0_56] : memref<2x448x128xf32, #tpu.memory_space<vmem>>, vector<1x384x128xf32>
    %89 = vector.shape_cast %88 : vector<1x384x128xf32> to vector<384x128xf32>
    %90 = arith.truncf %89 : vector<384x128xf32> to vector<384x128xbf16>
    %cst_57 = arith.constant dense<0.000000e+00> : vector<384x128xf32>
    %91 = tpu.matmul %90, %82, %cst_57 {dimension_numbers = #tpu.dot_dimension_numbers<[1], [0], [0], [1], [0, 0, 1, 1], [], []>} : vector<384x128xbf16>, vector<128x128xbf16>, vector<384x128xf32> -> vector<384x128xf32>
    %92 = arith.addf %80, %91 : vector<384x128xf32>
    %c3 = arith.constant 3 : index
    %c0_58 = arith.constant 0 : index
    %c0_59 = arith.constant 0 : index
    %93 = vector.load %arg4[%c3, %c0_58, %c0_59] : memref<9x128x128xbf16, #tpu.memory_space<vmem>>, vector<1x128x128xbf16>
    %94 = vector.shape_cast %93 : vector<1x128x128xbf16> to vector<128x128xbf16>
    %c0_60 = arith.constant 0 : index
    %c31 = arith.constant 31 : index
    %c0_61 = arith.constant 0 : index
    %95 = vector.load %arg7[%c0_60, %c31, %c0_61] : memref<2x448x128xf32, #tpu.memory_space<vmem>>, vector<1x384x128xf32>
    %96 = vector.shape_cast %95 : vector<1x384x128xf32> to vector<384x128xf32>
    %97 = arith.truncf %96 : vector<384x128xf32> to vector<384x128xbf16>
    %cst_62 = arith.constant dense<0.000000e+00> : vector<384x128xf32>
    %98 = tpu.matmul %97, %94, %cst_62 {dimension_numbers = #tpu.dot_dimension_numbers<[1], [0], [0], [1], [0, 0, 1, 1], [], []>} : vector<384x128xbf16>, vector<128x128xbf16>, vector<384x128xf32> -> vector<384x128xf32>
    %99 = arith.addf %87, %98 : vector<384x128xf32>
    %c1_63 = arith.constant 1 : index
    %c31_64 = arith.constant 31 : index
    %c0_65 = arith.constant 0 : index
    %100 = vector.load %arg7[%c1_63, %c31_64, %c0_65] : memref<2x448x128xf32, #tpu.memory_space<vmem>>, vector<1x384x128xf32>
    %101 = vector.shape_cast %100 : vector<1x384x128xf32> to vector<384x128xf32>
    %102 = arith.truncf %101 : vector<384x128xf32> to vector<384x128xbf16>
    %cst_66 = arith.constant dense<0.000000e+00> : vector<384x128xf32>
    %103 = tpu.matmul %102, %94, %cst_66 {dimension_numbers = #tpu.dot_dimension_numbers<[1], [0], [0], [1], [0, 0, 1, 1], [], []>} : vector<384x128xbf16>, vector<128x128xbf16>, vector<384x128xf32> -> vector<384x128xf32>
    %104 = arith.addf %92, %103 : vector<384x128xf32>
    %c4 = arith.constant 4 : index
    %c0_67 = arith.constant 0 : index
    %c0_68 = arith.constant 0 : index
    %105 = vector.load %arg4[%c4, %c0_67, %c0_68] : memref<9x128x128xbf16, #tpu.memory_space<vmem>>, vector<1x128x128xbf16>
    %106 = vector.shape_cast %105 : vector<1x128x128xbf16> to vector<128x128xbf16>
    %c0_69 = arith.constant 0 : index
    %c32_70 = arith.constant 32 : index
    %c0_71 = arith.constant 0 : index
    %107 = vector.load %arg7[%c0_69, %c32_70, %c0_71] : memref<2x448x128xf32, #tpu.memory_space<vmem>>, vector<1x384x128xf32>
    %108 = vector.shape_cast %107 : vector<1x384x128xf32> to vector<384x128xf32>
    %109 = arith.truncf %108 : vector<384x128xf32> to vector<384x128xbf16>
    %cst_72 = arith.constant dense<0.000000e+00> : vector<384x128xf32>
    %110 = tpu.matmul %109, %106, %cst_72 {dimension_numbers = #tpu.dot_dimension_numbers<[1], [0], [0], [1], [0, 0, 1, 1], [], []>} : vector<384x128xbf16>, vector<128x128xbf16>, vector<384x128xf32> -> vector<384x128xf32>
    %111 = arith.addf %99, %110 : vector<384x128xf32>
    %c1_73 = arith.constant 1 : index
    %c32_74 = arith.constant 32 : index
    %c0_75 = arith.constant 0 : index
    %112 = vector.load %arg7[%c1_73, %c32_74, %c0_75] : memref<2x448x128xf32, #tpu.memory_space<vmem>>, vector<1x384x128xf32>
    %113 = vector.shape_cast %112 : vector<1x384x128xf32> to vector<384x128xf32>
    %114 = arith.truncf %113 : vector<384x128xf32> to vector<384x128xbf16>
    %cst_76 = arith.constant dense<0.000000e+00> : vector<384x128xf32>
    %115 = tpu.matmul %114, %106, %cst_76 {dimension_numbers = #tpu.dot_dimension_numbers<[1], [0], [0], [1], [0, 0, 1, 1], [], []>} : vector<384x128xbf16>, vector<128x128xbf16>, vector<384x128xf32> -> vector<384x128xf32>
    %116 = arith.addf %104, %115 : vector<384x128xf32>
    %c5 = arith.constant 5 : index
    %c0_77 = arith.constant 0 : index
    %c0_78 = arith.constant 0 : index
    %117 = vector.load %arg4[%c5, %c0_77, %c0_78] : memref<9x128x128xbf16, #tpu.memory_space<vmem>>, vector<1x128x128xbf16>
    %118 = vector.shape_cast %117 : vector<1x128x128xbf16> to vector<128x128xbf16>
    %c0_79 = arith.constant 0 : index
    %c33 = arith.constant 33 : index
    %c0_80 = arith.constant 0 : index
    %119 = vector.load %arg7[%c0_79, %c33, %c0_80] : memref<2x448x128xf32, #tpu.memory_space<vmem>>, vector<1x384x128xf32>
    %120 = vector.shape_cast %119 : vector<1x384x128xf32> to vector<384x128xf32>
    %121 = arith.truncf %120 : vector<384x128xf32> to vector<384x128xbf16>
    %cst_81 = arith.constant dense<0.000000e+00> : vector<384x128xf32>
    %122 = tpu.matmul %121, %118, %cst_81 {dimension_numbers = #tpu.dot_dimension_numbers<[1], [0], [0], [1], [0, 0, 1, 1], [], []>} : vector<384x128xbf16>, vector<128x128xbf16>, vector<384x128xf32> -> vector<384x128xf32>
    %123 = arith.addf %111, %122 : vector<384x128xf32>
    %c1_82 = arith.constant 1 : index
    %c33_83 = arith.constant 33 : index
    %c0_84 = arith.constant 0 : index
    %124 = vector.load %arg7[%c1_82, %c33_83, %c0_84] : memref<2x448x128xf32, #tpu.memory_space<vmem>>, vector<1x384x128xf32>
    %125 = vector.shape_cast %124 : vector<1x384x128xf32> to vector<384x128xf32>
    %126 = arith.truncf %125 : vector<384x128xf32> to vector<384x128xbf16>
    %cst_85 = arith.constant dense<0.000000e+00> : vector<384x128xf32>
    %127 = tpu.matmul %126, %118, %cst_85 {dimension_numbers = #tpu.dot_dimension_numbers<[1], [0], [0], [1], [0, 0, 1, 1], [], []>} : vector<384x128xbf16>, vector<128x128xbf16>, vector<384x128xf32> -> vector<384x128xf32>
    %128 = arith.addf %116, %127 : vector<384x128xf32>
    %c6 = arith.constant 6 : index
    %c0_86 = arith.constant 0 : index
    %c0_87 = arith.constant 0 : index
    %129 = vector.load %arg4[%c6, %c0_86, %c0_87] : memref<9x128x128xbf16, #tpu.memory_space<vmem>>, vector<1x128x128xbf16>
    %130 = vector.shape_cast %129 : vector<1x128x128xbf16> to vector<128x128xbf16>
    %c0_88 = arith.constant 0 : index
    %c55 = arith.constant 55 : index
    %c0_89 = arith.constant 0 : index
    %131 = vector.load %arg7[%c0_88, %c55, %c0_89] : memref<2x448x128xf32, #tpu.memory_space<vmem>>, vector<1x384x128xf32>
    %132 = vector.shape_cast %131 : vector<1x384x128xf32> to vector<384x128xf32>
    %133 = arith.truncf %132 : vector<384x128xf32> to vector<384x128xbf16>
    %cst_90 = arith.constant dense<0.000000e+00> : vector<384x128xf32>
    %134 = tpu.matmul %133, %130, %cst_90 {dimension_numbers = #tpu.dot_dimension_numbers<[1], [0], [0], [1], [0, 0, 1, 1], [], []>} : vector<384x128xbf16>, vector<128x128xbf16>, vector<384x128xf32> -> vector<384x128xf32>
    %135 = arith.addf %123, %134 : vector<384x128xf32>
    %c1_91 = arith.constant 1 : index
    %c55_92 = arith.constant 55 : index
    %c0_93 = arith.constant 0 : index
    %136 = vector.load %arg7[%c1_91, %c55_92, %c0_93] : memref<2x448x128xf32, #tpu.memory_space<vmem>>, vector<1x384x128xf32>
    %137 = vector.shape_cast %136 : vector<1x384x128xf32> to vector<384x128xf32>
    %138 = arith.truncf %137 : vector<384x128xf32> to vector<384x128xbf16>
    %cst_94 = arith.constant dense<0.000000e+00> : vector<384x128xf32>
    %139 = tpu.matmul %138, %130, %cst_94 {dimension_numbers = #tpu.dot_dimension_numbers<[1], [0], [0], [1], [0, 0, 1, 1], [], []>} : vector<384x128xbf16>, vector<128x128xbf16>, vector<384x128xf32> -> vector<384x128xf32>
    %140 = arith.addf %128, %139 : vector<384x128xf32>
    %c7_95 = arith.constant 7 : index
    %c0_96 = arith.constant 0 : index
    %c0_97 = arith.constant 0 : index
    %141 = vector.load %arg4[%c7_95, %c0_96, %c0_97] : memref<9x128x128xbf16, #tpu.memory_space<vmem>>, vector<1x128x128xbf16>
    %142 = vector.shape_cast %141 : vector<1x128x128xbf16> to vector<128x128xbf16>
    %c0_98 = arith.constant 0 : index
    %c56 = arith.constant 56 : index
    %c0_99 = arith.constant 0 : index
    %143 = vector.load %arg7[%c0_98, %c56, %c0_99] : memref<2x448x128xf32, #tpu.memory_space<vmem>>, vector<1x384x128xf32>
    %144 = vector.shape_cast %143 : vector<1x384x128xf32> to vector<384x128xf32>
    %145 = arith.truncf %144 : vector<384x128xf32> to vector<384x128xbf16>
    %cst_100 = arith.constant dense<0.000000e+00> : vector<384x128xf32>
    %146 = tpu.matmul %145, %142, %cst_100 {dimension_numbers = #tpu.dot_dimension_numbers<[1], [0], [0], [1], [0, 0, 1, 1], [], []>} : vector<384x128xbf16>, vector<128x128xbf16>, vector<384x128xf32> -> vector<384x128xf32>
    %147 = arith.addf %135, %146 : vector<384x128xf32>
    %c1_101 = arith.constant 1 : index
    %c56_102 = arith.constant 56 : index
    %c0_103 = arith.constant 0 : index
    %148 = vector.load %arg7[%c1_101, %c56_102, %c0_103] : memref<2x448x128xf32, #tpu.memory_space<vmem>>, vector<1x384x128xf32>
    %149 = vector.shape_cast %148 : vector<1x384x128xf32> to vector<384x128xf32>
    %150 = arith.truncf %149 : vector<384x128xf32> to vector<384x128xbf16>
    %cst_104 = arith.constant dense<0.000000e+00> : vector<384x128xf32>
    %151 = tpu.matmul %150, %142, %cst_104 {dimension_numbers = #tpu.dot_dimension_numbers<[1], [0], [0], [1], [0, 0, 1, 1], [], []>} : vector<384x128xbf16>, vector<128x128xbf16>, vector<384x128xf32> -> vector<384x128xf32>
    %152 = arith.addf %140, %151 : vector<384x128xf32>
    %c8_105 = arith.constant 8 : index
    %c0_106 = arith.constant 0 : index
    %c0_107 = arith.constant 0 : index
    %153 = vector.load %arg4[%c8_105, %c0_106, %c0_107] : memref<9x128x128xbf16, #tpu.memory_space<vmem>>, vector<1x128x128xbf16>
    %154 = vector.shape_cast %153 : vector<1x128x128xbf16> to vector<128x128xbf16>
    %c0_108 = arith.constant 0 : index
    %c57 = arith.constant 57 : index
    %c0_109 = arith.constant 0 : index
    %155 = vector.load %arg7[%c0_108, %c57, %c0_109] : memref<2x448x128xf32, #tpu.memory_space<vmem>>, vector<1x384x128xf32>
    %156 = vector.shape_cast %155 : vector<1x384x128xf32> to vector<384x128xf32>
    %157 = arith.truncf %156 : vector<384x128xf32> to vector<384x128xbf16>
    %cst_110 = arith.constant dense<0.000000e+00> : vector<384x128xf32>
    %158 = tpu.matmul %157, %154, %cst_110 {dimension_numbers = #tpu.dot_dimension_numbers<[1], [0], [0], [1], [0, 0, 1, 1], [], []>} : vector<384x128xbf16>, vector<128x128xbf16>, vector<384x128xf32> -> vector<384x128xf32>
    %159 = arith.addf %147, %158 : vector<384x128xf32>
    %c1_111 = arith.constant 1 : index
    %c57_112 = arith.constant 57 : index
    %c0_113 = arith.constant 0 : index
    %160 = vector.load %arg7[%c1_111, %c57_112, %c0_113] : memref<2x448x128xf32, #tpu.memory_space<vmem>>, vector<1x384x128xf32>
    %161 = vector.shape_cast %160 : vector<1x384x128xf32> to vector<384x128xf32>
    %162 = arith.truncf %161 : vector<384x128xf32> to vector<384x128xbf16>
    %cst_114 = arith.constant dense<0.000000e+00> : vector<384x128xf32>
    %163 = tpu.matmul %162, %154, %cst_114 {dimension_numbers = #tpu.dot_dimension_numbers<[1], [0], [0], [1], [0, 0, 1, 1], [], []>} : vector<384x128xbf16>, vector<128x128xbf16>, vector<384x128xf32> -> vector<384x128xf32>
    %164 = arith.addf %152, %163 : vector<384x128xf32>
    %c0_115 = arith.constant 0 : index
    %c0_116 = arith.constant 0 : index
    %165 = vector.load %arg5[%c0_115, %c0_116] : memref<1x128xf32, #tpu.memory_space<vmem>>, vector<1x128xf32>
    %166 = vector.broadcast %165 : vector<1x128xf32> to vector<384x128xf32>
    %167 = arith.addf %159, %166 : vector<384x128xf32>
    %cst_117 = arith.constant 0.000000e+00 : f32
    %168 = vector.broadcast %cst_117 : f32 to vector<384x128xf32>
    %169 = arith.maximumf %167, %168 : vector<384x128xf32>
    %170 = vector.broadcast %165 : vector<1x128xf32> to vector<384x128xf32>
    %171 = arith.addf %164, %170 : vector<384x128xf32>
    %cst_118 = arith.constant 0.000000e+00 : f32
    %172 = vector.broadcast %cst_118 : f32 to vector<384x128xf32>
    %173 = arith.maximumf %171, %172 : vector<384x128xf32>
    %174 = arith.subf %169, %173 : vector<384x128xf32>
    %175 = vector.broadcast %21 : vector<384x1xf32> to vector<384x128xf32>
    %176 = arith.mulf %174, %175 : vector<384x128xf32>
    %177 = arith.mulf %176, %176 : vector<384x128xf32>
    %cst_119 = arith.constant dense<0.000000e+00> : vector<128xf32>
    %178 = vector.multi_reduction <add>, %177, %cst_119 [0] : vector<384x128xf32> to vector<128xf32>
    %179 = vector.shape_cast %178 : vector<128xf32> to vector<1x128xf32>
    %180 = vector.shape_cast %179 : vector<1x128xf32> to vector<1x1x128xf32>
    %c0_120 = arith.constant 0 : index
    %c0_121 = arith.constant 0 : index
    %c0_122 = arith.constant 0 : index
    %181 = vector.load %arg6[%c0_120, %c0_121, %c0_122] : memref<1x1x128xf32, #tpu.memory_space<vmem>>, vector<1x1x128xf32>
    tpu.vector_store %arg6[%c0_120, %c0_121, %c0_122], %180 {strides = array<i32>} : memref<1x1x128xf32, #tpu.memory_space<vmem>>, vector<1x1x128xf32>,
    return
  }
  func.func @transform_0(%arg0: i32) -> (i32, i32, i32) {
    %c0_i32 = arith.constant 0 : i32
    %c0_i32_0 = arith.constant 0 : i32
    %c0_i32_1 = arith.constant 0 : i32
    return %arg0, %c0_i32, %c0_i32_0 : i32, i32, i32
  }
  func.func @transform_1(%arg0: i32) -> (i32, i32) {
    %c0_i32 = arith.constant 0 : i32
    %c0_i32_0 = arith.constant 0 : i32
    %c0_i32_1 = arith.constant 0 : i32
    return %c0_i32, %c0_i32_0 : i32, i32
  }
  func.func @transform_2(%arg0: i32) -> (i32, i32) {
    %c0_i32 = arith.constant 0 : i32
    %c0_i32_0 = arith.constant 0 : i32
    %c0_i32_1 = arith.constant 0 : i32
    return %c0_i32, %c0_i32_0 : i32, i32
  }
  func.func @transform_3(%arg0: i32) -> (i32, i32, i32) {
    %c0_i32 = arith.constant 0 : i32
    %c0_i32_0 = arith.constant 0 : i32
    %c0_i32_1 = arith.constant 0 : i32
    %c0_i32_2 = arith.constant 0 : i32
    return %c0_i32, %c0_i32_0, %c0_i32_1 : i32, i32, i32
  }
  func.func @transform_4(%arg0: i32) -> (i32, i32) {
    %c0_i32 = arith.constant 0 : i32
    %c0_i32_0 = arith.constant 0 : i32
    %c0_i32_1 = arith.constant 0 : i32
    return %c0_i32, %c0_i32_0 : i32, i32
  }
  func.func @transform_5(%arg0: i32) -> (i32, i32, i32) {
    %c0_i32 = arith.constant 0 : i32
    %c0_i32_0 = arith.constant 0 : i32
    %c0_i32_1 = arith.constant 0 : i32
    return %arg0, %c0_i32, %c0_i32_0 : i32, i32, i32
  }
}

</mosaic_0001>

<llo_original>
// kernel: tpu_custom_call.1
$region0: #{tpu_custom_call.1}
  #allocation0 [shape = 'u32[]', space=smem, size = 0x4, offset = 0x4, fixed_abs, tag = 'smem constant byte address 0x4 - core index']
  #allocation1 [shape = 'u32[144,128]{1,0:T(1,128)}', space=vmem, size = 0x12000, scoped, tag = 'internal scratch']
  #allocation2 [shape = 'f32[2,448,128]{2,1,0:T(8,128)}', space=vmem, size = 0x70000, scoped, tag = 'scratch operand']
  %s0 = inlined_call_operand.vmem [shape: bf16[2,768,27], index: 0, kind: input, shape index: {}]
  %s1 = inlined_call_operand.vmem [shape: bf16[27,128], index: 1, kind: input, shape index: {}]
  %s2 = inlined_call_operand.vmem [shape: f32[1,128], index: 2, kind: input, shape index: {}]
  %s3 = inlined_call_operand.vmem [shape: bf16[9,128,128], index: 3, kind: input, shape index: {}]
  %s4 = inlined_call_operand.vmem [shape: f32[1,128], index: 4, kind: input, shape index: {}]
  %s5 = inlined_call_operand.hbm [shape: f32[2,1,128], index: 5, kind: output, shape index: {}]
  %s6 = sld [smem:[#allocation0]]
  $region53: #{tpu_custom_call.1} parent=0
    _
  %s8 = ssub.s32 1, %s6
  %s9 = scalar_select 0, %s8, %s6
  $region1: #{tpu_custom_call.1} parent=0
    #allocation3 [shape = 'u8[1024]{0}', space=vmem, size = 0x400, scoped, tag = 'output window, operand 0']
    #allocation4 [shape = 's32[2]{0}', space=sflag, size = 0x8, scoped, tag = 'scoped memory for tpu_custom_call.1']
    %10 = vsyncpa [#allocation4], 0
    %s11 = scalar_lea.sflag [#allocation4], 1
    %12 = vsyncpa %s11, 0
    loop: start=0, step=1, limit=4
    $region2: #{tpu_custom_call.1} parent=1 // loop_pre_header
      _
    $region3: #{tpu_custom_call.1} parent=1 // loop_header
      %s14 = sphi 0, %s18
      %p15 = scmp.ge.s32.totalorder %s14, 4
      %s24 = sphi 0, %s26
      %s27 = sphi 0, %s24
      %s28 = sphi 0, %s27
      %s44 = sphi 0, %s28
      %s48 = sphi 0, %s48
      %s50 = sphi 0, %s48
      %s51 = sphi 0, %s50
      %s65 = sphi 0, %s51
      %s69 = sphi 0, %s69
      %s71 = sphi 0, %s69
      %s72 = sphi 0, %s71
      %s86 = sphi 0, %s72
      %s90 = sphi 0, %s90
      %s92 = sphi 0, %s90
      %s93 = sphi 0, %s92
      %s107 = sphi 0, %s93
      %s111 = sphi 0, %s111
      %s113 = sphi 0, %s111
      %s114 = sphi 0, %s113
      %s128 = sphi 0, %s114
      %s134 = sphi 0, %s136
      %s137 = sphi 0, %s134
      %s138 = sphi 0, %s137
      %s154 = sphi 0, %s138
    $region4: #{tpu_custom_call.1} parent=1 // loop_header_branch
      %17 = sbr.rel (%p15) target = $region8
    $region5: #{tpu_custom_call.1} parent=1 // loop_body
      %s19 = ssub.s32 %s14, 1
      %s20 = ssub.s32 %s14, 2
      %s21 = sadd.s32 %s14, 1
      %s22 = ssub.s32 %s14, %s21
      %p23 = scmp.eq.s32.totalorder %s22, 0
      %s25 = sadd.s32 %s24, 1
      %s26 = scalar_select %p23, %s24, %s25
      %p29 = pneg %p23
      %p30 = scmp.eq.s32.totalorder %s14, 1
      %p31 = por %p29, %p30
      %p32 = scmp.ne.s32.totalorder %s24, %s27
      %p33 = scmp.eq.s32.totalorder %s14, 0
      %p34 = por %p32, %p33
      %p35 = scmp.ne.s32.totalorder %s24, %s27
      %p36 = scmp.eq.s32.totalorder %s19, 1
      %p37 = por %p35, %p36
      %p38 = scmp.ne.s32.totalorder %s27, %s28
      %p39 = scmp.eq.s32.totalorder %s19, 0
      %p40 = por %p38, %p39
      %p41 = scmp.ne.s32.totalorder %s27, %s28
      %p42 = scmp.eq.s32.totalorder %s20, 1
      %p43 = por %p41, %p42
      %p45 = scmp.ne.s32.totalorder %s28, %s44
      %p46 = scmp.eq.s32.totalorder %s20, 0
      %p47 = por %p45, %p46
      %s49 = sadd.s32 %s48, 1
      %p52 = scmp.eq.s32.totalorder %s14, 1
      %p53 = scmp.ne.s32.totalorder %s48, %s50
      %p54 = scmp.eq.s32.totalorder %s14, 0
      %p55 = por %p53, %p54
      %p56 = scmp.ne.s32.totalorder %s48, %s50
      %p57 = scmp.eq.s32.totalorder %s19, 1
      %p58 = por %p56, %p57
      %p59 = scmp.ne.s32.totalorder %s50, %s51
      %p60 = scmp.eq.s32.totalorder %s19, 0
      %p61 = por %p59, %p60
      %p62 = scmp.ne.s32.totalorder %s50, %s51
      %p63 = scmp.eq.s32.totalorder %s20, 1
      %p64 = por %p62, %p63
      %p66 = scmp.ne.s32.totalorder %s51, %s65
      %p67 = scmp.eq.s32.totalorder %s20, 0
      %p68 = por %p66, %p67
      %s70 = sadd.s32 %s69, 1
      %p73 = scmp.eq.s32.totalorder %s14, 1
      %p74 = scmp.ne.s32.totalorder %s69, %s71
      %p75 = scmp.eq.s32.totalorder %s14, 0
      %p76 = por %p74, %p75
      %p77 = scmp.ne.s32.totalorder %s69, %s71
      %p78 = scmp.eq.s32.totalorder %s19, 1
      %p79 = por %p77, %p78
      %p80 = scmp.ne.s32.totalorder %s71, %s72
      %p81 = scmp.eq.s32.totalorder %s19, 0
      %p82 = por %p80, %p81
      %p83 = scmp.ne.s32.totalorder %s71, %s72
      %p84 = scmp.eq.s32.totalorder %s20, 1
      %p85 = por %p83, %p84
      %p87 = scmp.ne.s32.totalorder %s72, %s86
      %p88 = scmp.eq.s32.totalorder %s20, 0
      %p89 = por %p87, %p88
      %s91 = sadd.s32 %s90, 1
      %p94 = scmp.eq.s32.totalorder %s14, 1
      %p95 = scmp.ne.s32.totalorder %s90, %s92
      %p96 = scmp.eq.s32.totalorder %s14, 0
      %p97 = por %p95, %p96
      %p98 = scmp.ne.s32.totalorder %s90, %s92
      %p99 = scmp.eq.s32.totalorder %s19, 1
      %p100 = por %p98, %p99
      %p101 = scmp.ne.s32.totalorder %s92, %s93
      %p102 = scmp.eq.s32.totalorder %s19, 0
      %p103 = por %p101, %p102
      %p104 = scmp.ne.s32.totalorder %s92, %s93
      %p105 = scmp.eq.s32.totalorder %s20, 1
      %p106 = por %p104, %p105
      %p108 = scmp.ne.s32.totalorder %s93, %s107
      %p109 = scmp.eq.s32.totalorder %s20, 0
      %p110 = por %p108, %p109
      %s112 = sadd.s32 %s111, 1
      %p115 = scmp.eq.s32.totalorder %s14, 1
      %p116 = scmp.ne.s32.totalorder %s111, %s113
      %p117 = scmp.eq.s32.totalorder %s14, 0
      %p118 = por %p116, %p117
      %p119 = scmp.ne.s32.totalorder %s111, %s113
      %p120 = scmp.eq.s32.totalorder %s19, 1
      %p121 = por %p119, %p120
      %p122 = scmp.ne.s32.totalorder %s113, %s114
      %p123 = scmp.eq.s32.totalorder %s19, 0
      %p124 = por %p122, %p123
      %p125 = scmp.ne.s32.totalorder %s113, %s114
      %p126 = scmp.eq.s32.totalorder %s20, 1
      %p127 = por %p125, %p126
      %p129 = scmp.ne.s32.totalorder %s114, %s128
      %p130 = scmp.eq.s32.totalorder %s20, 0
      %p131 = por %p129, %p130
      %s132 = ssub.s32 %s14, %s21
      %p133 = scmp.eq.s32.totalorder %s132, 0
      %s135 = sadd.s32 %s134, 1
      %s136 = scalar_select %p133, %s134, %s135
      %p139 = pneg %p133
      %p140 = scmp.eq.s32.totalorder %s14, 1
      %p141 = por %p139, %p140
      %p142 = scmp.ne.s32.totalorder %s134, %s137
      %p143 = scmp.eq.s32.totalorder %s14, 0
      %p144 = por %p142, %p143
      %p145 = scmp.ne.s32.totalorder %s134, %s137
      %p146 = scmp.eq.s32.totalorder %s19, 1
      %p147 = por %p145, %p146
      %p148 = scmp.ne.s32.totalorder %s137, %s138
      %p149 = scmp.eq.s32.totalorder %s19, 0
      %p150 = por %p148, %p149
      %p151 = scmp.ne.s32.totalorder %s137, %s138
      %p152 = scmp.eq.s32.totalorder %s20, 1
      %p153 = por %p151, %p152
      %p155 = scmp.ne.s32.totalorder %s138, %s154
      %p156 = scmp.eq.s32.totalorder %s20, 0
      %p157 = por %p155, %p156
      %p158 = scmp.le.s32.totalorder 1, %s14
      %p159 = scmp.lt.s32.totalorder %s14, 3
      %p160 = pnand %p158, %p159
      %p161 = pneg %p160
      // Predicated region
      $region9: #{tpu_custom_call.1} parent=5 // pred_check
        _
      $region10: #{tpu_custom_call.1} parent=5 // pred_check_branch
        %163 = sbr.rel (%p160) target = $region12
      $region11: #{tpu_custom_call.1} parent=5 // pred_region
        %s164 = ssub.s32 %s14, 1
        // Predicated region
        $region13: #{tpu_custom_call.1} parent=11 // pred_check
          %p165 = pneg %p61
        $region14: #{tpu_custom_call.1} parent=11 // pred_check_branch
          %167 = sbr.rel (%p165) target = $region16
        $region15: #{tpu_custom_call.1} parent=11 // pred_region
          _
        $region16: #{tpu_custom_call.1} parent=11 // pred_fallthru
          _
        // Predicated region
        $region17: #{tpu_custom_call.1} parent=11 // pred_check
          %p168 = pneg %p82
        $region18: #{tpu_custom_call.1} parent=11 // pred_check_branch
          %170 = sbr.rel (%p168) target = $region20
        $region19: #{tpu_custom_call.1} parent=11 // pred_region
          _
        $region20: #{tpu_custom_call.1} parent=11 // pred_fallthru
          _
        // Predicated region
        $region21: #{tpu_custom_call.1} parent=11 // pred_check
          %p171 = pneg %p103
        $region22: #{tpu_custom_call.1} parent=11 // pred_check_branch
          %173 = sbr.rel (%p171) target = $region24
        $region23: #{tpu_custom_call.1} parent=11 // pred_region
          _
        $region24: #{tpu_custom_call.1} parent=11 // pred_fallthru
          _
        // Predicated region
        $region25: #{tpu_custom_call.1} parent=11 // pred_check
          %p174 = pneg %p124
        $region26: #{tpu_custom_call.1} parent=11 // pred_check_branch
          %176 = sbr.rel (%p174) target = $region28
        $region27: #{tpu_custom_call.1} parent=11 // pred_region
          _
        $region28: #{tpu_custom_call.1} parent=11 // pred_fallthru
          _
      $region12: #{tpu_custom_call.1} parent=5 // pred_fallthru
        _
      %p177 = scmp.lt.s32.totalorder %s14, 2
      // Predicated region
      $region29: #{tpu_custom_call.1} parent=5 // pred_check
        %p178 = pneg %p177
      $region30: #{tpu_custom_call.1} parent=5 // pred_check_branch
        %180 = sbr.rel (%p178) target = $region32
      $region31: #{tpu_custom_call.1} parent=5 // pred_region
        // Predicated region
        $region33: #{tpu_custom_call.1} parent=31 // pred_check
          %p181 = pneg %p34
        $region34: #{tpu_custom_call.1} parent=31 // pred_check_branch
          %183 = sbr.rel (%p181) target = $region36
        $region35: #{tpu_custom_call.1} parent=31 // pred_region
          %p184 = scmp.lt.s32.totalorder %s14, 1
          %s185 = scalar_select %p184, %s14, 1
          %s186 = smul.addr %s185, 96
          %s187 = smul.addr %s186, 4
          %s188 = scalar_lea.vmem %s0, %s187
        $region36: #{tpu_custom_call.1} parent=31 // pred_fallthru
          _
      $region32: #{tpu_custom_call.1} parent=5 // pred_fallthru
        _
      %p189 = scmp.le.s32.totalorder 1, %s14
      %p190 = scmp.lt.s32.totalorder %s14, 3
      %p191 = pnand %p189, %p190
      %p192 = pneg %p191
      // Predicated region
      $region37: #{tpu_custom_call.1} parent=5 // pred_check
        _
      $region38: #{tpu_custom_call.1} parent=5 // pred_check_branch
        %194 = sbr.rel (%p191) target = $region40
      $region39: #{tpu_custom_call.1} parent=5 // pred_region
        %s195 = ssub.s32 %s14, 1
        %p196 = scmp.lt.s32.totalorder %s19, 1
        %s197 = scalar_select %p196, %s19, 1
        %s198 = smul.addr %s197, 96
        %s199 = smul.addr %s198, 4
        %s200 = scalar_lea.vmem %s0, %s199
        %p201 = pneg %p40
        %p202 = pneg %p37
        %p203 = pneg %p61
        %p204 = pneg %p58
        %p205 = pneg %p82
        %p206 = pneg %p79
        %p207 = pneg %p103
        %p208 = pneg %p100
        %p209 = pneg %p124
        %p210 = pneg %p121
        %p211 = pneg %p150
        %p212 = pneg %p147
        %s213 = sand.u32 %s137, 1
        %s214 = scalar_lea.sflag [#allocation4], %s213
        %s215 = sand.u32 %s137, 1
        %s216 = scalar_lea.vmem [#allocation3], %s215
        %p217 = scmp.lt.s32.totalorder %s19, 1
        %s218 = scalar_select %p217, %s19, 1
        %s219 = smul.addr %s218, 96
        %s220 = smul.addr %s219, 4
        %s221 = scalar_lea.vmem %s0, %s220
        %v223 = vlaneseq
        %v224 = vshrl.u32 %v223, 7
        %v225 = vadd.s32 %v224, 8
        %v226 = vadd.s32 %v224, 16
        %v227 = vadd.s32 %v224, 24
        %v228 = vadd.s32 %v224, 32
        %v229 = vadd.s32 %v224, 40
        %v230 = vadd.s32 %v224, 48
        %v231 = vadd.s32 %v224, 56
        %v232 = vadd.s32 %v224, 64
        %v233 = vadd.s32 %v224, 72
        %v234 = vadd.s32 %v224, 80
        %v235 = vadd.s32 %v224, 88
        %v236 = vadd.s32 %v224, 96
        %v237 = vadd.s32 %v224, 104
        %v238 = vadd.s32 %v224, 112
        %v239 = vadd.s32 %v224, 120
        %v240 = vadd.s32 %v224, 128
        %v241 = vadd.s32 %v224, 136
        %v242 = vadd.s32 %v224, 144
        %v243 = vadd.s32 %v224, 152
        %v244 = vadd.s32 %v224, 160
        %v245 = vadd.s32 %v224, 168
        %v246 = vadd.s32 %v224, 176
        %v247 = vadd.s32 %v224, 184
        %v248 = vadd.s32 %v224, 192
        %v249 = vadd.s32 %v224, 200
        %v250 = vadd.s32 %v224, 208
        %v251 = vadd.s32 %v224, 216
        %v252 = vadd.s32 %v224, 224
        %v253 = vadd.s32 %v224, 232
        %v254 = vadd.s32 %v224, 240
        %v255 = vadd.s32 %v224, 248
        %v256 = vadd.s32 %v224, 256
        %v257 = vadd.s32 %v224, 264
        %v258 = vadd.s32 %v224, 272
        %v259 = vadd.s32 %v224, 280
        %v260 = vadd.s32 %v224, 288
        %v261 = vadd.s32 %v224, 296
        %v262 = vadd.s32 %v224, 304
        %v263 = vadd.s32 %v224, 312
        %v264 = vadd.s32 %v224, 320
        %v265 = vadd.s32 %v224, 328
        %v266 = vadd.s32 %v224, 336
        %v267 = vadd.s32 %v224, 344
        %v268 = vadd.s32 %v224, 352
        %v269 = vadd.s32 %v224, 360
        %v270 = vadd.s32 %v224, 368
        %v271 = vadd.s32 %v224, 376
        %v272 = vadd.s32 %v224, 384
        %v273 = vadd.s32 %v224, 392
        %v274 = vadd.s32 %v224, 400
        %v275 = vadd.s32 %v224, 408
        %v276 = vadd.s32 %v224, 416
        %v277 = vadd.s32 %v224, 424
        %v278 = vadd.s32 %v224, 432
        %v279 = vadd.s32 %v224, 440
        %v280 = vadd.s32 %v224, 448
        %v281 = vadd.s32 %v224, 456
        %v282 = vadd.s32 %v224, 464
        %v283 = vadd.s32 %v224, 472
        %v284 = vadd.s32 %v224, 480
        %v285 = vadd.s32 %v224, 488
        %v286 = vadd.s32 %v224, 496
        %v287 = vadd.s32 %v224, 504
        %v288 = vadd.s32 %v224, 512
        %v289 = vadd.s32 %v224, 520
        %v290 = vadd.s32 %v224, 528
        %v291 = vadd.s32 %v224, 536
        %v292 = vadd.s32 %v224, 544
        %v293 = vadd.s32 %v224, 552
        %v294 = vadd.s32 %v224, 560
        %v295 = vadd.s32 %v224, 568
        %v296 = vadd.s32 %v224, 576
        %v297 = vadd.s32 %v224, 584
        %v298 = vadd.s32 %v224, 592
        %v299 = vadd.s32 %v224, 600
        %v300 = vadd.s32 %v224, 608
        %v301 = vadd.s32 %v224, 616
        %v302 = vadd.s32 %v224, 624
        %v303 = vadd.s32 %v224, 632
        %v304 = vadd.s32 %v224, 640
        %v305 = vadd.s32 %v224, 648
        %v306 = vadd.s32 %v224, 656
        %v307 = vadd.s32 %v224, 664
        %v308 = vadd.s32 %v224, 672
        %v309 = vadd.s32 %v224, 680
        %v310 = vadd.s32 %v224, 688
        %v311 = vadd.s32 %v224, 696
        %v312 = vadd.s32 %v224, 704
        %v313 = vadd.s32 %v224, 712
        %v314 = vadd.s32 %v224, 720
        %v315 = vadd.s32 %v224, 728
        %v316 = vadd.s32 %v224, 736
        %v317 = vadd.s32 %v224, 744
        %v318 = vadd.s32 %v224, 752
        %v319 = vadd.s32 %v224, 760
        %vm320 = vcmp.lt.s32.totalorder %v224, 0
        %v321 = vsub.s32 0, %v224
        %v322 = vsel %vm320, %v321, %v224
        %v323 = vmul.u32.u64.compose %v322, 2863311531
        %v324 = vextract.low.u32 %v323
        %v325 = vextract.high.u32 %v323
        %v326 = vshrl.u32 %v325, 4
        %v327 = vmul.u32 %v326, 24
        %v328 = vsub.s32 %v322, %v327
        %v329 = vsub.s32 0, %v328
        %v330 = vsel %vm320, %v329, %v328
        %vm331 = vcmp.lt.s32.totalorder %v225, 0
        %v332 = vsub.s32 0, %v225
        %v333 = vsel %vm331, %v332, %v225
        %v334 = vmul.u32.u64.compose %v333, 2863311531
        %v335 = vextract.low.u32 %v334
        %v336 = vextract.high.u32 %v334
        %v337 = vshrl.u32 %v336, 4
        %v338 = vmul.u32 %v337, 24
        %v339 = vsub.s32 %v333, %v338
        %v340 = vsub.s32 0, %v339
        %v341 = vsel %vm331, %v340, %v339
        %vm342 = vcmp.lt.s32.totalorder %v226, 0
        %v343 = vsub.s32 0, %v226
        %v344 = vsel %vm342, %v343, %v226
        %v345 = vmul.u32.u64.compose %v344, 2863311531
        %v346 = vextract.low.u32 %v345
        %v347 = vextract.high.u32 %v345
        %v348 = vshrl.u32 %v347, 4
        %v349 = vmul.u32 %v348, 24
        %v350 = vsub.s32 %v344, %v349
        %v351 = vsub.s32 0, %v350
        %v352 = vsel %vm342, %v351, %v350
        %vm353 = vcmp.lt.s32.totalorder %v227, 0
        %v354 = vsub.s32 0, %v227
        %v355 = vsel %vm353, %v354, %v227
        %v356 = vmul.u32.u64.compose %v355, 2863311531
        %v357 = vextract.low.u32 %v356
        %v358 = vextract.high.u32 %v356
        %v359 = vshrl.u32 %v358, 4
        %v360 = vmul.u32 %v359, 24
        %v361 = vsub.s32 %v355, %v360
        %v362 = vsub.s32 0, %v361
        %v363 = vsel %vm353, %v362, %v361
        %vm364 = vcmp.lt.s32.totalorder %v228, 0
        %v365 = vsub.s32 0, %v228
        %v366 = vsel %vm364, %v365, %v228
        %v367 = vmul.u32.u64.compose %v366, 2863311531
        %v368 = vextract.low.u32 %v367
        %v369 = vextract.high.u32 %v367
        %v370 = vshrl.u32 %v369, 4
        %v371 = vmul.u32 %v370, 24
        %v372 = vsub.s32 %v366, %v371
        %v373 = vsub.s32 0, %v372
        %v374 = vsel %vm364, %v373, %v372
        %vm375 = vcmp.lt.s32.totalorder %v229, 0
        %v376 = vsub.s32 0, %v229
        %v377 = vsel %vm375, %v376, %v229
        %v378 = vmul.u32.u64.compose %v377, 2863311531
        %v379 = vextract.low.u32 %v378
        %v380 = vextract.high.u32 %v378
        %v381 = vshrl.u32 %v380, 4
        %v382 = vmul.u32 %v381, 24
        %v383 = vsub.s32 %v377, %v382
        %v384 = vsub.s32 0, %v383
        %v385 = vsel %vm375, %v384, %v383
        %vm386 = vcmp.lt.s32.totalorder %v230, 0
        %v387 = vsub.s32 0, %v230
        %v388 = vsel %vm386, %v387, %v230
        %v389 = vmul.u32.u64.compose %v388, 2863311531
        %v390 = vextract.low.u32 %v389
        %v391 = vextract.high.u32 %v389
        %v392 = vshrl.u32 %v391, 4
        %v393 = vmul.u32 %v392, 24
        %v394 = vsub.s32 %v388, %v393
        %v395 = vsub.s32 0, %v394
        %v396 = vsel %vm386, %v395, %v394
        %vm397 = vcmp.lt.s32.totalorder %v231, 0
        %v398 = vsub.s32 0, %v231
        %v399 = vsel %vm397, %v398, %v231
        %v400 = vmul.u32.u64.compose %v399, 2863311531
        %v401 = vextract.low.u32 %v400
        %v402 = vextract.high.u32 %v400
        %v403 = vshrl.u32 %v402, 4
        %v404 = vmul.u32 %v403, 24
        %v405 = vsub.s32 %v399, %v404
        %v406 = vsub.s32 0, %v405
        %v407 = vsel %vm397, %v406, %v405
        %vm408 = vcmp.lt.s32.totalorder %v232, 0
        %v409 = vsub.s32 0, %v232
        %v410 = vsel %vm408, %v409, %v232
        %v411 = vmul.u32.u64.compose %v410, 2863311531
        %v412 = vextract.low.u32 %v411
        %v413 = vextract.high.u32 %v411
        %v414 = vshrl.u32 %v413, 4
        %v415 = vmul.u32 %v414, 24
        %v416 = vsub.s32 %v410, %v415
        %v417 = vsub.s32 0, %v416
        %v418 = vsel %vm408, %v417, %v416
        %vm419 = vcmp.lt.s32.totalorder %v233, 0
        %v420 = vsub.s32 0, %v233
        %v421 = vsel %vm419, %v420, %v233
        %v422 = vmul.u32.u64.compose %v421, 2863311531
        %v423 = vextract.low.u32 %v422
        %v424 = vextract.high.u32 %v422
        %v425 = vshrl.u32 %v424, 4
        %v426 = vmul.u32 %v425, 24
        %v427 = vsub.s32 %v421, %v426
        %v428 = vsub.s32 0, %v427
        %v429 = vsel %vm419, %v428, %v427
        %vm430 = vcmp.lt.s32.totalorder %v234, 0
        %v431 = vsub.s32 0, %v234
        %v432 = vsel %vm430, %v431, %v234
        %v433 = vmul.u32.u64.compose %v432, 2863311531
        %v434 = vextract.low.u32 %v433
        %v435 = vextract.high.u32 %v433
        %v436 = vshrl.u32 %v435, 4
        %v437 = vmul.u32 %v436, 24
        %v438 = vsub.s32 %v432, %v437
        %v439 = vsub.s32 0, %v438
        %v440 = vsel %vm430, %v439, %v438
        %vm441 = vcmp.lt.s32.totalorder %v235, 0
        %v442 = vsub.s32 0, %v235
        %v443 = vsel %vm441, %v442, %v235
        %v444 = vmul.u32.u64.compose %v443, 2863311531
        %v445 = vextract.low.u32 %v444
        %v446 = vextract.high.u32 %v444
        %v447 = vshrl.u32 %v446, 4
        %v448 = vmul.u32 %v447, 24
        %v449 = vsub.s32 %v443, %v448
        %v450 = vsub.s32 0, %v449
        %v451 = vsel %vm441, %v450, %v449
        %vm452 = vcmp.lt.s32.totalorder %v236, 0
        %v453 = vsub.s32 0, %v236
        %v454 = vsel %vm452, %v453, %v236
        %v455 = vmul.u32.u64.compose %v454, 2863311531
        %v456 = vextract.low.u32 %v455
        %v457 = vextract.high.u32 %v455
        %v458 = vshrl.u32 %v457, 4
        %v459 = vmul.u32 %v458, 24
        %v460 = vsub.s32 %v454, %v459
        %v461 = vsub.s32 0, %v460
        %v462 = vsel %vm452, %v461, %v460
        %vm463 = vcmp.lt.s32.totalorder %v237, 0
        %v464 = vsub.s32 0, %v237
        %v465 = vsel %vm463, %v464, %v237
        %v466 = vmul.u32.u64.compose %v465, 2863311531
        %v467 = vextract.low.u32 %v466
        %v468 = vextract.high.u32 %v466
        %v469 = vshrl.u32 %v468, 4
        %v470 = vmul.u32 %v469, 24
        %v471 = vsub.s32 %v465, %v470
        %v472 = vsub.s32 0, %v471
        %v473 = vsel %vm463, %v472, %v471
        %vm474 = vcmp.lt.s32.totalorder %v238, 0
        %v475 = vsub.s32 0, %v238
        %v476 = vsel %vm474, %v475, %v238
        %v477 = vmul.u32.u64.compose %v476, 2863311531
        %v478 = vextract.low.u32 %v477
        %v479 = vextract.high.u32 %v477
        %v480 = vshrl.u32 %v479, 4
        %v481 = vmul.u32 %v480, 24
        %v482 = vsub.s32 %v476, %v481
        %v483 = vsub.s32 0, %v482
        %v484 = vsel %vm474, %v483, %v482
        %vm485 = vcmp.lt.s32.totalorder %v239, 0
        %v486 = vsub.s32 0, %v239
        %v487 = vsel %vm485, %v486, %v239
        %v488 = vmul.u32.u64.compose %v487, 2863311531
        %v489 = vextract.low.u32 %v488
        %v490 = vextract.high.u32 %v488
        %v491 = vshrl.u32 %v490, 4
        %v492 = vmul.u32 %v491, 24
        %v493 = vsub.s32 %v487, %v492
        %v494 = vsub.s32 0, %v493
        %v495 = vsel %vm485, %v494, %v493
        %vm496 = vcmp.lt.s32.totalorder %v240, 0
        %v497 = vsub.s32 0, %v240
        %v498 = vsel %vm496, %v497, %v240
        %v499 = vmul.u32.u64.compose %v498, 2863311531
        %v500 = vextract.low.u32 %v499
        %v501 = vextract.high.u32 %v499
        %v502 = vshrl.u32 %v501, 4
        %v503 = vmul.u32 %v502, 24
        %v504 = vsub.s32 %v498, %v503
        %v505 = vsub.s32 0, %v504
        %v506 = vsel %vm496, %v505, %v504
        %vm507 = vcmp.lt.s32.totalorder %v241, 0
        %v508 = vsub.s32 0, %v241
        %v509 = vsel %vm507, %v508, %v241
        %v510 = vmul.u32.u64.compose %v509, 2863311531
        %v511 = vextract.low.u32 %v510
        %v512 = vextract.high.u32 %v510
        %v513 = vshrl.u32 %v512, 4
        %v514 = vmul.u32 %v513, 24
        %v515 = vsub.s32 %v509, %v514
        %v516 = vsub.s32 0, %v515
        %v517 = vsel %vm507, %v516, %v515
        %vm518 = vcmp.lt.s32.totalorder %v242, 0
        %v519 = vsub.s32 0, %v242
        %v520 = vsel %vm518, %v519, %v242
        %v521 = vmul.u32.u64.compose %v520, 2863311531
        %v522 = vextract.low.u32 %v521
        %v523 = vextract.high.u32 %v521
        %v524 = vshrl.u32 %v523, 4
        %v525 = vmul.u32 %v524, 24
        %v526 = vsub.s32 %v520, %v525
        %v527 = vsub.s32 0, %v526
        %v528 = vsel %vm518, %v527, %v526
        %vm529 = vcmp.lt.s32.totalorder %v243, 0
        %v530 = vsub.s32 0, %v243
        %v531 = vsel %vm529, %v530, %v243
        %v532 = vmul.u32.u64.compose %v531, 2863311531
        %v533 = vextract.low.u32 %v532
        %v534 = vextract.high.u32 %v532
        %v535 = vshrl.u32 %v534, 4
        %v536 = vmul.u32 %v535, 24
        %v537 = vsub.s32 %v531, %v536
        %v538 = vsub.s32 0, %v537
        %v539 = vsel %vm529, %v538, %v537
        %vm540 = vcmp.lt.s32.totalorder %v244, 0
        %v541 = vsub.s32 0, %v244
        %v542 = vsel %vm540, %v541, %v244
        %v543 = vmul.u32.u64.compose %v542, 2863311531
        %v544 = vextract.low.u32 %v543
        %v545 = vextract.high.u32 %v543
        %v546 = vshrl.u32 %v545, 4
        %v547 = vmul.u32 %v546, 24
        %v548 = vsub.s32 %v542, %v547
        %v549 = vsub.s32 0, %v548
        %v550 = vsel %vm540, %v549, %v548
        %vm551 = vcmp.lt.s32.totalorder %v245, 0
        %v552 = vsub.s32 0, %v245
        %v553 = vsel %vm551, %v552, %v245
        %v554 = vmul.u32.u64.compose %v553, 2863311531
        %v555 = vextract.low.u32 %v554
        %v556 = vextract.high.u32 %v554
        %v557 = vshrl.u32 %v556, 4
        %v558 = vmul.u32 %v557, 24
        %v559 = vsub.s32 %v553, %v558
        %v560 = vsub.s32 0, %v559
        %v561 = vsel %vm551, %v560, %v559
        %vm562 = vcmp.lt.s32.totalorder %v246, 0
        %v563 = vsub.s32 0, %v246
        %v564 = vsel %vm562, %v563, %v246
        %v565 = vmul.u32.u64.compose %v564, 2863311531
        %v566 = vextract.low.u32 %v565
        %v567 = vextract.high.u32 %v565
        %v568 = vshrl.u32 %v567, 4
        %v569 = vmul.u32 %v568, 24
        %v570 = vsub.s32 %v564, %v569
        %v571 = vsub.s32 0, %v570
        %v572 = vsel %vm562, %v571, %v570
        %vm573 = vcmp.lt.s32.totalorder %v247, 0
        %v574 = vsub.s32 0, %v247
        %v575 = vsel %vm573, %v574, %v247
        %v576 = vmul.u32.u64.compose %v575, 2863311531
        %v577 = vextract.low.u32 %v576
        %v578 = vextract.high.u32 %v576
        %v579 = vshrl.u32 %v578, 4
        %v580 = vmul.u32 %v579, 24
        %v581 = vsub.s32 %v575, %v580
        %v582 = vsub.s32 0, %v581
        %v583 = vsel %vm573, %v582, %v581
        %vm584 = vcmp.lt.s32.totalorder %v248, 0
        %v585 = vsub.s32 0, %v248
        %v586 = vsel %vm584, %v585, %v248
        %v587 = vmul.u32.u64.compose %v586, 2863311531
        %v588 = vextract.low.u32 %v587
        %v589 = vextract.high.u32 %v587
        %v590 = vshrl.u32 %v589, 4
        %v591 = vmul.u32 %v590, 24
        %v592 = vsub.s32 %v586, %v591
        %v593 = vsub.s32 0, %v592
        %v594 = vsel %vm584, %v593, %v592
        %vm595 = vcmp.lt.s32.totalorder %v249, 0
        %v596 = vsub.s32 0, %v249
        %v597 = vsel %vm595, %v596, %v249
        %v598 = vmul.u32.u64.compose %v597, 2863311531
        %v599 = vextract.low.u32 %v598
        %v600 = vextract.high.u32 %v598
        %v601 = vshrl.u32 %v600, 4
        %v602 = vmul.u32 %v601, 24
        %v603 = vsub.s32 %v597, %v602
        %v604 = vsub.s32 0, %v603
        %v605 = vsel %vm595, %v604, %v603
        %vm606 = vcmp.lt.s32.totalorder %v250, 0
        %v607 = vsub.s32 0, %v250
        %v608 = vsel %vm606, %v607, %v250
        %v609 = vmul.u32.u64.compose %v608, 2863311531
        %v610 = vextract.low.u32 %v609
        %v611 = vextract.high.u32 %v609
        %v612 = vshrl.u32 %v611, 4
        %v613 = vmul.u32 %v612, 24
        %v614 = vsub.s32 %v608, %v613
        %v615 = vsub.s32 0, %v614
        %v616 = vsel %vm606, %v615, %v614
        %vm617 = vcmp.lt.s32.totalorder %v251, 0
        %v618 = vsub.s32 0, %v251
        %v619 = vsel %vm617, %v618, %v251
        %v620 = vmul.u32.u64.compose %v619, 2863311531
        %v621 = vextract.low.u32 %v620
        %v622 = vextract.high.u32 %v620
        %v623 = vshrl.u32 %v622, 4
        %v624 = vmul.u32 %v623, 24
        %v625 = vsub.s32 %v619, %v624
        %v626 = vsub.s32 0, %v625
        %v627 = vsel %vm617, %v626, %v625
        %vm628 = vcmp.lt.s32.totalorder %v252, 0
        %v629 = vsub.s32 0, %v252
        %v630 = vsel %vm628, %v629, %v252
        %v631 = vmul.u32.u64.compose %v630, 2863311531
        %v632 = vextract.low.u32 %v631
        %v633 = vextract.high.u32 %v631
        %v634 = vshrl.u32 %v633, 4
        %v635 = vmul.u32 %v634, 24
        %v636 = vsub.s32 %v630, %v635
        %v637 = vsub.s32 0, %v636
        %v638 = vsel %vm628, %v637, %v636
        %vm639 = vcmp.lt.s32.totalorder %v253, 0
        %v640 = vsub.s32 0, %v253
        %v641 = vsel %vm639, %v640, %v253
        %v642 = vmul.u32.u64.compose %v641, 2863311531
        %v643 = vextract.low.u32 %v642
        %v644 = vextract.high.u32 %v642
        %v645 = vshrl.u32 %v644, 4
        %v646 = vmul.u32 %v645, 24
        %v647 = vsub.s32 %v641, %v646
        %v648 = vsub.s32 0, %v647
        %v649 = vsel %vm639, %v648, %v647
        %vm650 = vcmp.lt.s32.totalorder %v254, 0
        %v651 = vsub.s32 0, %v254
        %v652 = vsel %vm650, %v651, %v254
        %v653 = vmul.u32.u64.compose %v652, 2863311531
        %v654 = vextract.low.u32 %v653
        %v655 = vextract.high.u32 %v653
        %v656 = vshrl.u32 %v655, 4
        %v657 = vmul.u32 %v656, 24
        %v658 = vsub.s32 %v652, %v657
        %v659 = vsub.s32 0, %v658
        %v660 = vsel %vm650, %v659, %v658
        %vm661 = vcmp.lt.s32.totalorder %v255, 0
        %v662 = vsub.s32 0, %v255
        %v663 = vsel %vm661, %v662, %v255
        %v664 = vmul.u32.u64.compose %v663, 2863311531
        %v665 = vextract.low.u32 %v664
        %v666 = vextract.high.u32 %v664
        %v667 = vshrl.u32 %v666, 4
        %v668 = vmul.u32 %v667, 24
        %v669 = vsub.s32 %v663, %v668
        %v670 = vsub.s32 0, %v669
        %v671 = vsel %vm661, %v670, %v669
        %vm672 = vcmp.lt.s32.totalorder %v256, 0
        %v673 = vsub.s32 0, %v256
        %v674 = vsel %vm672, %v673, %v256
        %v675 = vmul.u32.u64.compose %v674, 2863311531
        %v676 = vextract.low.u32 %v675
        %v677 = vextract.high.u32 %v675
        %v678 = vshrl.u32 %v677, 4
        %v679 = vmul.u32 %v678, 24
        %v680 = vsub.s32 %v674, %v679
        %v681 = vsub.s32 0, %v680
        %v682 = vsel %vm672, %v681, %v680
        %vm683 = vcmp.lt.s32.totalorder %v257, 0
        %v684 = vsub.s32 0, %v257
        %v685 = vsel %vm683, %v684, %v257
        %v686 = vmul.u32.u64.compose %v685, 2863311531
        %v687 = vextract.low.u32 %v686
        %v688 = vextract.high.u32 %v686
        %v689 = vshrl.u32 %v688, 4
        %v690 = vmul.u32 %v689, 24
        %v691 = vsub.s32 %v685, %v690
        %v692 = vsub.s32 0, %v691
        %v693 = vsel %vm683, %v692, %v691
        %vm694 = vcmp.lt.s32.totalorder %v258, 0
        %v695 = vsub.s32 0, %v258
        %v696 = vsel %vm694, %v695, %v258
        %v697 = vmul.u32.u64.compose %v696, 2863311531
        %v698 = vextract.low.u32 %v697
        %v699 = vextract.high.u32 %v697
        %v700 = vshrl.u32 %v699, 4
        %v701 = vmul.u32 %v700, 24
        %v702 = vsub.s32 %v696, %v701
        %v703 = vsub.s32 0, %v702
        %v704 = vsel %vm694, %v703, %v702
        %vm705 = vcmp.lt.s32.totalorder %v259, 0
        %v706 = vsub.s32 0, %v259
        %v707 = vsel %vm705, %v706, %v259
        %v708 = vmul.u32.u64.compose %v707, 2863311531
        %v709 = vextract.low.u32 %v708
        %v710 = vextract.high.u32 %v708
        %v711 = vshrl.u32 %v710, 4
        %v712 = vmul.u32 %v711, 24
        %v713 = vsub.s32 %v707, %v712
        %v714 = vsub.s32 0, %v713
        %v715 = vsel %vm705, %v714, %v713
        %vm716 = vcmp.lt.s32.totalorder %v260, 0
        %v717 = vsub.s32 0, %v260
        %v718 = vsel %vm716, %v717, %v260
        %v719 = vmul.u32.u64.compose %v718, 2863311531
        %v720 = vextract.low.u32 %v719
        %v721 = vextract.high.u32 %v719
        %v722 = vshrl.u32 %v721, 4
        %v723 = vmul.u32 %v722, 24
        %v724 = vsub.s32 %v718, %v723
        %v725 = vsub.s32 0, %v724
        %v726 = vsel %vm716, %v725, %v724
        %vm727 = vcmp.lt.s32.totalorder %v261, 0
        %v728 = vsub.s32 0, %v261
        %v729 = vsel %vm727, %v728, %v261
        %v730 = vmul.u32.u64.compose %v729, 2863311531
        %v731 = vextract.low.u32 %v730
        %v732 = vextract.high.u32 %v730
        %v733 = vshrl.u32 %v732, 4
        %v734 = vmul.u32 %v733, 24
        %v735 = vsub.s32 %v729, %v734
        %v736 = vsub.s32 0, %v735
        %v737 = vsel %vm727, %v736, %v735
        %vm738 = vcmp.lt.s32.totalorder %v262, 0
        %v739 = vsub.s32 0, %v262
        %v740 = vsel %vm738, %v739, %v262
        %v741 = vmul.u32.u64.compose %v740, 2863311531
        %v742 = vextract.low.u32 %v741
        %v743 = vextract.high.u32 %v741
        %v744 = vshrl.u32 %v743, 4
        %v745 = vmul.u32 %v744, 24
        %v746 = vsub.s32 %v740, %v745
        %v747 = vsub.s32 0, %v746
        %v748 = vsel %vm738, %v747, %v746
        %vm749 = vcmp.lt.s32.totalorder %v263, 0
        %v750 = vsub.s32 0, %v263
        %v751 = vsel %vm749, %v750, %v263
        %v752 = vmul.u32.u64.compose %v751, 2863311531
        %v753 = vextract.low.u32 %v752
        %v754 = vextract.high.u32 %v752
        %v755 = vshrl.u32 %v754, 4
        %v756 = vmul.u32 %v755, 24
        %v757 = vsub.s32 %v751, %v756
        %v758 = vsub.s32 0, %v757
        %v759 = vsel %vm749, %v758, %v757
        %vm760 = vcmp.lt.s32.totalorder %v264, 0
        %v761 = vsub.s32 0, %v264
        %v762 = vsel %vm760, %v761, %v264
        %v763 = vmul.u32.u64.compose %v762, 2863311531
        %v764 = vextract.low.u32 %v763
        %v765 = vextract.high.u32 %v763
        %v766 = vshrl.u32 %v765, 4
        %v767 = vmul.u32 %v766, 24
        %v768 = vsub.s32 %v762, %v767
        %v769 = vsub.s32 0, %v768
        %v770 = vsel %vm760, %v769, %v768
        %vm771 = vcmp.lt.s32.totalorder %v265, 0
        %v772 = vsub.s32 0, %v265
        %v773 = vsel %vm771, %v772, %v265
        %v774 = vmul.u32.u64.compose %v773, 2863311531
        %v775 = vextract.low.u32 %v774
        %v776 = vextract.high.u32 %v774
        %v777 = vshrl.u32 %v776, 4
        %v778 = vmul.u32 %v777, 24
        %v779 = vsub.s32 %v773, %v778
        %v780 = vsub.s32 0, %v779
        %v781 = vsel %vm771, %v780, %v779
        %vm782 = vcmp.lt.s32.totalorder %v266, 0
        %v783 = vsub.s32 0, %v266
        %v784 = vsel %vm782, %v783, %v266
        %v785 = vmul.u32.u64.compose %v784, 2863311531
        %v786 = vextract.low.u32 %v785
        %v787 = vextract.high.u32 %v785
        %v788 = vshrl.u32 %v787, 4
        %v789 = vmul.u32 %v788, 24
        %v790 = vsub.s32 %v784, %v789
        %v791 = vsub.s32 0, %v790
        %v792 = vsel %vm782, %v791, %v790
        %vm793 = vcmp.lt.s32.totalorder %v267, 0
        %v794 = vsub.s32 0, %v267
        %v795 = vsel %vm793, %v794, %v267
        %v796 = vmul.u32.u64.compose %v795, 2863311531
        %v797 = vextract.low.u32 %v796
        %v798 = vextract.high.u32 %v796
        %v799 = vshrl.u32 %v798, 4
        %v800 = vmul.u32 %v799, 24
        %v801 = vsub.s32 %v795, %v800
        %v802 = vsub.s32 0, %v801
        %v803 = vsel %vm793, %v802, %v801
        %vm804 = vcmp.lt.s32.totalorder %v268, 0
        %v805 = vsub.s32 0, %v268
        %v806 = vsel %vm804, %v805, %v268
        %v807 = vmul.u32.u64.compose %v806, 2863311531
        %v808 = vextract.low.u32 %v807
        %v809 = vextract.high.u32 %v807
        %v810 = vshrl.u32 %v809, 4
        %v811 = vmul.u32 %v810, 24
        %v812 = vsub.s32 %v806, %v811
        %v813 = vsub.s32 0, %v812
        %v814 = vsel %vm804, %v813, %v812
        %vm815 = vcmp.lt.s32.totalorder %v269, 0
        %v816 = vsub.s32 0, %v269
        %v817 = vsel %vm815, %v816, %v269
        %v818 = vmul.u32.u64.compose %v817, 2863311531
        %v819 = vextract.low.u32 %v818
        %v820 = vextract.high.u32 %v818
        %v821 = vshrl.u32 %v820, 4
        %v822 = vmul.u32 %v821, 24
        %v823 = vsub.s32 %v817, %v822
        %v824 = vsub.s32 0, %v823
        %v825 = vsel %vm815, %v824, %v823
        %vm826 = vcmp.lt.s32.totalorder %v270, 0
        %v827 = vsub.s32 0, %v270
        %v828 = vsel %vm826, %v827, %v270
        %v829 = vmul.u32.u64.compose %v828, 2863311531
        %v830 = vextract.low.u32 %v829
        %v831 = vextract.high.u32 %v829
        %v832 = vshrl.u32 %v831, 4
        %v833 = vmul.u32 %v832, 24
        %v834 = vsub.s32 %v828, %v833
        %v835 = vsub.s32 0, %v834
        %v836 = vsel %vm826, %v835, %v834
        %vm837 = vcmp.lt.s32.totalorder %v271, 0
        %v838 = vsub.s32 0, %v271
        %v839 = vsel %vm837, %v838, %v271
        %v840 = vmul.u32.u64.compose %v839, 2863311531
        %v841 = vextract.low.u32 %v840
        %v842 = vextract.high.u32 %v840
        %v843 = vshrl.u32 %v842, 4
        %v844 = vmul.u32 %v843, 24
        %v845 = vsub.s32 %v839, %v844
        %v846 = vsub.s32 0, %v845
        %v847 = vsel %vm837, %v846, %v845
        %vm848 = vcmp.lt.s32.totalorder %v272, 0
        %v849 = vsub.s32 0, %v272
        %v850 = vsel %vm848, %v849, %v272
        %v851 = vmul.u32.u64.compose %v850, 2863311531
        %v852 = vextract.low.u32 %v851
        %v853 = vextract.high.u32 %v851
        %v854 = vshrl.u32 %v853, 4
        %v855 = vmul.u32 %v854, 24
        %v856 = vsub.s32 %v850, %v855
        %v857 = vsub.s32 0, %v856
        %v858 = vsel %vm848, %v857, %v856
        %vm859 = vcmp.lt.s32.totalorder %v273, 0
        %v860 = vsub.s32 0, %v273
        %v861 = vsel %vm859, %v860, %v273
        %v862 = vmul.u32.u64.compose %v861, 2863311531
        %v863 = vextract.low.u32 %v862
        %v864 = vextract.high.u32 %v862
        %v865 = vshrl.u32 %v864, 4
        %v866 = vmul.u32 %v865, 24
        %v867 = vsub.s32 %v861, %v866
        %v868 = vsub.s32 0, %v867
        %v869 = vsel %vm859, %v868, %v867
        %vm870 = vcmp.lt.s32.totalorder %v274, 0
        %v871 = vsub.s32 0, %v274
        %v872 = vsel %vm870, %v871, %v274
        %v873 = vmul.u32.u64.compose %v872, 2863311531
        %v874 = vextract.low.u32 %v873
        %v875 = vextract.high.u32 %v873
        %v876 = vshrl.u32 %v875, 4
        %v877 = vmul.u32 %v876, 24
        %v878 = vsub.s32 %v872, %v877
        %v879 = vsub.s32 0, %v878
        %v880 = vsel %vm870, %v879, %v878
        %vm881 = vcmp.lt.s32.totalorder %v275, 0
        %v882 = vsub.s32 0, %v275
        %v883 = vsel %vm881, %v882, %v275
        %v884 = vmul.u32.u64.compose %v883, 2863311531
        %v885 = vextract.low.u32 %v884
        %v886 = vextract.high.u32 %v884
        %v887 = vshrl.u32 %v886, 4
        %v888 = vmul.u32 %v887, 24
        %v889 = vsub.s32 %v883, %v888
        %v890 = vsub.s32 0, %v889
        %v891 = vsel %vm881, %v890, %v889
        %vm892 = vcmp.lt.s32.totalorder %v276, 0
        %v893 = vsub.s32 0, %v276
        %v894 = vsel %vm892, %v893, %v276
        %v895 = vmul.u32.u64.compose %v894, 2863311531
        %v896 = vextract.low.u32 %v895
        %v897 = vextract.high.u32 %v895
        %v898 = vshrl.u32 %v897, 4
        %v899 = vmul.u32 %v898, 24
        %v900 = vsub.s32 %v894, %v899
        %v901 = vsub.s32 0, %v900
        %v902 = vsel %vm892, %v901, %v900
        %vm903 = vcmp.lt.s32.totalorder %v277, 0
        %v904 = vsub.s32 0, %v277
        %v905 = vsel %vm903, %v904, %v277
        %v906 = vmul.u32.u64.compose %v905, 2863311531
        %v907 = vextract.low.u32 %v906
        %v908 = vextract.high.u32 %v906
        %v909 = vshrl.u32 %v908, 4
        %v910 = vmul.u32 %v909, 24
        %v911 = vsub.s32 %v905, %v910
        %v912 = vsub.s32 0, %v911
        %v913 = vsel %vm903, %v912, %v911
        %vm914 = vcmp.lt.s32.totalorder %v278, 0
        %v915 = vsub.s32 0, %v278
        %v916 = vsel %vm914, %v915, %v278
        %v917 = vmul.u32.u64.compose %v916, 2863311531
        %v918 = vextract.low.u32 %v917
        %v919 = vextract.high.u32 %v917
        %v920 = vshrl.u32 %v919, 4
        %v921 = vmul.u32 %v920, 24
        %v922 = vsub.s32 %v916, %v921
        %v923 = vsub.s32 0, %v922
        %v924 = vsel %vm914, %v923, %v922
        %vm925 = vcmp.lt.s32.totalorder %v279, 0
        %v926 = vsub.s32 0, %v279
        %v927 = vsel %vm925, %v926, %v279
        %v928 = vmul.u32.u64.compose %v927, 2863311531
        %v929 = vextract.low.u32 %v928
        %v930 = vextract.high.u32 %v928
        %v931 = vshrl.u32 %v930, 4
        %v932 = vmul.u32 %v931, 24
        %v933 = vsub.s32 %v927, %v932
        %v934 = vsub.s32 0, %v933
        %v935 = vsel %vm925, %v934, %v933
        %vm936 = vcmp.lt.s32.totalorder %v280, 0
        %v937 = vsub.s32 0, %v280
        %v938 = vsel %vm936, %v937, %v280
        %v939 = vmul.u32.u64.compose %v938, 2863311531
        %v940 = vextract.low.u32 %v939
        %v941 = vextract.high.u32 %v939
        %v942 = vshrl.u32 %v941, 4
        %v943 = vmul.u32 %v942, 24
        %v944 = vsub.s32 %v938, %v943
        %v945 = vsub.s32 0, %v944
        %v946 = vsel %vm936, %v945, %v944
        %vm947 = vcmp.lt.s32.totalorder %v281, 0
        %v948 = vsub.s32 0, %v281
        %v949 = vsel %vm947, %v948, %v281
        %v950 = vmul.u32.u64.compose %v949, 2863311531
        %v951 = vextract.low.u32 %v950
        %v952 = vextract.high.u32 %v950
        %v953 = vshrl.u32 %v952, 4
        %v954 = vmul.u32 %v953, 24
        %v955 = vsub.s32 %v949, %v954
        %v956 = vsub.s32 0, %v955
        %v957 = vsel %vm947, %v956, %v955
        %vm958 = vcmp.lt.s32.totalorder %v282, 0
        %v959 = vsub.s32 0, %v282
        %v960 = vsel %vm958, %v959, %v282
        %v961 = vmul.u32.u64.compose %v960, 2863311531
        %v962 = vextract.low.u32 %v961
        %v963 = vextract.high.u32 %v961
        %v964 = vshrl.u32 %v963, 4
        %v965 = vmul.u32 %v964, 24
        %v966 = vsub.s32 %v960, %v965
        %v967 = vsub.s32 0, %v966
        %v968 = vsel %vm958, %v967, %v966
        %vm969 = vcmp.lt.s32.totalorder %v283, 0
        %v970 = vsub.s32 0, %v283
        %v971 = vsel %vm969, %v970, %v283
        %v972 = vmul.u32.u64.compose %v971, 2863311531
        %v973 = vextract.low.u32 %v972
        %v974 = vextract.high.u32 %v972
        %v975 = vshrl.u32 %v974, 4
        %v976 = vmul.u32 %v975, 24
        %v977 = vsub.s32 %v971, %v976
        %v978 = vsub.s32 0, %v977
        %v979 = vsel %vm969, %v978, %v977
        %vm980 = vcmp.lt.s32.totalorder %v284, 0
        %v981 = vsub.s32 0, %v284
        %v982 = vsel %vm980, %v981, %v284
        %v983 = vmul.u32.u64.compose %v982, 2863311531
        %v984 = vextract.low.u32 %v983
        %v985 = vextract.high.u32 %v983
        %v986 = vshrl.u32 %v985, 4
        %v987 = vmul.u32 %v986, 24
        %v988 = vsub.s32 %v982, %v987
        %v989 = vsub.s32 0, %v988
        %v990 = vsel %vm980, %v989, %v988
        %vm991 = vcmp.lt.s32.totalorder %v285, 0
        %v992 = vsub.s32 0, %v285
        %v993 = vsel %vm991, %v992, %v285
        %v994 = vmul.u32.u64.compose %v993, 2863311531
        %v995 = vextract.low.u32 %v994
        %v996 = vextract.high.u32 %v994
        %v997 = vshrl.u32 %v996, 4
        %v998 = vmul.u32 %v997, 24
        %v999 = vsub.s32 %v993, %v998
        %v1000 = vsub.s32 0, %v999
        %v1001 = vsel %vm991, %v1000, %v999
        %vm1002 = vcmp.lt.s32.totalorder %v286, 0
        %v1003 = vsub.s32 0, %v286
        %v1004 = vsel %vm1002, %v1003, %v286
        %v1005 = vmul.u32.u64.compose %v1004, 2863311531
        %v1006 = vextract.low.u32 %v1005
        %v1007 = vextract.high.u32 %v1005
        %v1008 = vshrl.u32 %v1007, 4
        %v1009 = vmul.u32 %v1008, 24
        %v1010 = vsub.s32 %v1004, %v1009
        %v1011 = vsub.s32 0, %v1010
        %v1012 = vsel %vm1002, %v1011, %v1010
        %vm1013 = vcmp.lt.s32.totalorder %v287, 0
        %v1014 = vsub.s32 0, %v287
        %v1015 = vsel %vm1013, %v1014, %v287
        %v1016 = vmul.u32.u64.compose %v1015, 2863311531
        %v1017 = vextract.low.u32 %v1016
        %v1018 = vextract.high.u32 %v1016
        %v1019 = vshrl.u32 %v1018, 4
        %v1020 = vmul.u32 %v1019, 24
        %v1021 = vsub.s32 %v1015, %v1020
        %v1022 = vsub.s32 0, %v1021
        %v1023 = vsel %vm1013, %v1022, %v1021
        %vm1024 = vcmp.lt.s32.totalorder %v288, 0
        %v1025 = vsub.s32 0, %v288
        %v1026 = vsel %vm1024, %v1025, %v288
        %v1027 = vmul.u32.u64.compose %v1026, 2863311531
        %v1028 = vextract.low.u32 %v1027
        %v1029 = vextract.high.u32 %v1027
        %v1030 = vshrl.u32 %v1029, 4
        %v1031 = vmul.u32 %v1030, 24
        %v1032 = vsub.s32 %v1026, %v1031
        %v1033 = vsub.s32 0, %v1032
        %v1034 = vsel %vm1024, %v1033, %v1032
        %vm1035 = vcmp.lt.s32.totalorder %v289, 0
        %v1036 = vsub.s32 0, %v289
        %v1037 = vsel %vm1035, %v1036, %v289
        %v1038 = vmul.u32.u64.compose %v1037, 2863311531
        %v1039 = vextract.low.u32 %v1038
        %v1040 = vextract.high.u32 %v1038
        %v1041 = vshrl.u32 %v1040, 4
        %v1042 = vmul.u32 %v1041, 24
        %v1043 = vsub.s32 %v1037, %v1042
        %v1044 = vsub.s32 0, %v1043
        %v1045 = vsel %vm1035, %v1044, %v1043
        %vm1046 = vcmp.lt.s32.totalorder %v290, 0
        %v1047 = vsub.s32 0, %v290
        %v1048 = vsel %vm1046, %v1047, %v290
        %v1049 = vmul.u32.u64.compose %v1048, 2863311531
        %v1050 = vextract.low.u32 %v1049
        %v1051 = vextract.high.u32 %v1049
        %v1052 = vshrl.u32 %v1051, 4
        %v1053 = vmul.u32 %v1052, 24
        %v1054 = vsub.s32 %v1048, %v1053
        %v1055 = vsub.s32 0, %v1054
        %v1056 = vsel %vm1046, %v1055, %v1054
        %vm1057 = vcmp.lt.s32.totalorder %v291, 0
        %v1058 = vsub.s32 0, %v291
        %v1059 = vsel %vm1057, %v1058, %v291
        %v1060 = vmul.u32.u64.compose %v1059, 2863311531
        %v1061 = vextract.low.u32 %v1060
        %v1062 = vextract.high.u32 %v1060
        %v1063 = vshrl.u32 %v1062, 4
        %v1064 = vmul.u32 %v1063, 24
        %v1065 = vsub.s32 %v1059, %v1064
        %v1066 = vsub.s32 0, %v1065
        %v1067 = vsel %vm1057, %v1066, %v1065
        %vm1068 = vcmp.lt.s32.totalorder %v292, 0
        %v1069 = vsub.s32 0, %v292
        %v1070 = vsel %vm1068, %v1069, %v292
        %v1071 = vmul.u32.u64.compose %v1070, 2863311531
        %v1072 = vextract.low.u32 %v1071
        %v1073 = vextract.high.u32 %v1071
        %v1074 = vshrl.u32 %v1073, 4
        %v1075 = vmul.u32 %v1074, 24
        %v1076 = vsub.s32 %v1070, %v1075
        %v1077 = vsub.s32 0, %v1076
        %v1078 = vsel %vm1068, %v1077, %v1076
        %vm1079 = vcmp.lt.s32.totalorder %v293, 0
        %v1080 = vsub.s32 0, %v293
        %v1081 = vsel %vm1079, %v1080, %v293
        %v1082 = vmul.u32.u64.compose %v1081, 2863311531
        %v1083 = vextract.low.u32 %v1082
        %v1084 = vextract.high.u32 %v1082
        %v1085 = vshrl.u32 %v1084, 4
        %v1086 = vmul.u32 %v1085, 24
        %v1087 = vsub.s32 %v1081, %v1086
        %v1088 = vsub.s32 0, %v1087
        %v1089 = vsel %vm1079, %v1088, %v1087
        %vm1090 = vcmp.lt.s32.totalorder %v294, 0
        %v1091 = vsub.s32 0, %v294
        %v1092 = vsel %vm1090, %v1091, %v294
        %v1093 = vmul.u32.u64.compose %v1092, 2863311531
        %v1094 = vextract.low.u32 %v1093
        %v1095 = vextract.high.u32 %v1093
        %v1096 = vshrl.u32 %v1095, 4
        %v1097 = vmul.u32 %v1096, 24
        %v1098 = vsub.s32 %v1092, %v1097
        %v1099 = vsub.s32 0, %v1098
        %v1100 = vsel %vm1090, %v1099, %v1098
        %vm1101 = vcmp.lt.s32.totalorder %v295, 0
        %v1102 = vsub.s32 0, %v295
        %v1103 = vsel %vm1101, %v1102, %v295
        %v1104 = vmul.u32.u64.compose %v1103, 2863311531
        %v1105 = vextract.low.u32 %v1104
        %v1106 = vextract.high.u32 %v1104
        %v1107 = vshrl.u32 %v1106, 4
        %v1108 = vmul.u32 %v1107, 24
        %v1109 = vsub.s32 %v1103, %v1108
        %v1110 = vsub.s32 0, %v1109
        %v1111 = vsel %vm1101, %v1110, %v1109
        %vm1112 = vcmp.lt.s32.totalorder %v296, 0
        %v1113 = vsub.s32 0, %v296
        %v1114 = vsel %vm1112, %v1113, %v296
        %v1115 = vmul.u32.u64.compose %v1114, 2863311531
        %v1116 = vextract.low.u32 %v1115
        %v1117 = vextract.high.u32 %v1115
        %v1118 = vshrl.u32 %v1117, 4
        %v1119 = vmul.u32 %v1118, 24
        %v1120 = vsub.s32 %v1114, %v1119
        %v1121 = vsub.s32 0, %v1120
        %v1122 = vsel %vm1112, %v1121, %v1120
        %vm1123 = vcmp.lt.s32.totalorder %v297, 0
        %v1124 = vsub.s32 0, %v297
        %v1125 = vsel %vm1123, %v1124, %v297
        %v1126 = vmul.u32.u64.compose %v1125, 2863311531
        %v1127 = vextract.low.u32 %v1126
        %v1128 = vextract.high.u32 %v1126
        %v1129 = vshrl.u32 %v1128, 4
        %v1130 = vmul.u32 %v1129, 24
        %v1131 = vsub.s32 %v1125, %v1130
        %v1132 = vsub.s32 0, %v1131
        %v1133 = vsel %vm1123, %v1132, %v1131
        %vm1134 = vcmp.lt.s32.totalorder %v298, 0
        %v1135 = vsub.s32 0, %v298
        %v1136 = vsel %vm1134, %v1135, %v298
        %v1137 = vmul.u32.u64.compose %v1136, 2863311531
        %v1138 = vextract.low.u32 %v1137
        %v1139 = vextract.high.u32 %v1137
        %v1140 = vshrl.u32 %v1139, 4
        %v1141 = vmul.u32 %v1140, 24
        %v1142 = vsub.s32 %v1136, %v1141
        %v1143 = vsub.s32 0, %v1142
        %v1144 = vsel %vm1134, %v1143, %v1142
        %vm1145 = vcmp.lt.s32.totalorder %v299, 0
        %v1146 = vsub.s32 0, %v299
        %v1147 = vsel %vm1145, %v1146, %v299
        %v1148 = vmul.u32.u64.compose %v1147, 2863311531
        %v1149 = vextract.low.u32 %v1148
        %v1150 = vextract.high.u32 %v1148
        %v1151 = vshrl.u32 %v1150, 4
        %v1152 = vmul.u32 %v1151, 24
        %v1153 = vsub.s32 %v1147, %v1152
        %v1154 = vsub.s32 0, %v1153
        %v1155 = vsel %vm1145, %v1154, %v1153
        %vm1156 = vcmp.lt.s32.totalorder %v300, 0
        %v1157 = vsub.s32 0, %v300
        %v1158 = vsel %vm1156, %v1157, %v300
        %v1159 = vmul.u32.u64.compose %v1158, 2863311531
        %v1160 = vextract.low.u32 %v1159
        %v1161 = vextract.high.u32 %v1159
        %v1162 = vshrl.u32 %v1161, 4
        %v1163 = vmul.u32 %v1162, 24
        %v1164 = vsub.s32 %v1158, %v1163
        %v1165 = vsub.s32 0, %v1164
        %v1166 = vsel %vm1156, %v1165, %v1164
        %vm1167 = vcmp.lt.s32.totalorder %v301, 0
        %v1168 = vsub.s32 0, %v301
        %v1169 = vsel %vm1167, %v1168, %v301
        %v1170 = vmul.u32.u64.compose %v1169, 2863311531
        %v1171 = vextract.low.u32 %v1170
        %v1172 = vextract.high.u32 %v1170
        %v1173 = vshrl.u32 %v1172, 4
        %v1174 = vmul.u32 %v1173, 24
        %v1175 = vsub.s32 %v1169, %v1174
        %v1176 = vsub.s32 0, %v1175
        %v1177 = vsel %vm1167, %v1176, %v1175
        %vm1178 = vcmp.lt.s32.totalorder %v302, 0
        %v1179 = vsub.s32 0, %v302
        %v1180 = vsel %vm1178, %v1179, %v302
        %v1181 = vmul.u32.u64.compose %v1180, 2863311531
        %v1182 = vextract.low.u32 %v1181
        %v1183 = vextract.high.u32 %v1181
        %v1184 = vshrl.u32 %v1183, 4
        %v1185 = vmul.u32 %v1184, 24
        %v1186 = vsub.s32 %v1180, %v1185
        %v1187 = vsub.s32 0, %v1186
        %v1188 = vsel %vm1178, %v1187, %v1186
        %vm1189 = vcmp.lt.s32.totalorder %v303, 0
        %v1190 = vsub.s32 0, %v303
        %v1191 = vsel %vm1189, %v1190, %v303
        %v1192 = vmul.u32.u64.compose %v1191, 2863311531
        %v1193 = vextract.low.u32 %v1192
        %v1194 = vextract.high.u32 %v1192
        %v1195 = vshrl.u32 %v1194, 4
        %v1196 = vmul.u32 %v1195, 24
        %v1197 = vsub.s32 %v1191, %v1196
        %v1198 = vsub.s32 0, %v1197
        %v1199 = vsel %vm1189, %v1198, %v1197
        %vm1200 = vcmp.lt.s32.totalorder %v304, 0
        %v1201 = vsub.s32 0, %v304
        %v1202 = vsel %vm1200, %v1201, %v304
        %v1203 = vmul.u32.u64.compose %v1202, 2863311531
        %v1204 = vextract.low.u32 %v1203
        %v1205 = vextract.high.u32 %v1203
        %v1206 = vshrl.u32 %v1205, 4
        %v1207 = vmul.u32 %v1206, 24
        %v1208 = vsub.s32 %v1202, %v1207
        %v1209 = vsub.s32 0, %v1208
        %v1210 = vsel %vm1200, %v1209, %v1208
        %vm1211 = vcmp.lt.s32.totalorder %v305, 0
        %v1212 = vsub.s32 0, %v305
        %v1213 = vsel %vm1211, %v1212, %v305
        %v1214 = vmul.u32.u64.compose %v1213, 2863311531
        %v1215 = vextract.low.u32 %v1214
        %v1216 = vextract.high.u32 %v1214
        %v1217 = vshrl.u32 %v1216, 4
        %v1218 = vmul.u32 %v1217, 24
        %v1219 = vsub.s32 %v1213, %v1218
        %v1220 = vsub.s32 0, %v1219
        %v1221 = vsel %vm1211, %v1220, %v1219
        %vm1222 = vcmp.lt.s32.totalorder %v306, 0
        %v1223 = vsub.s32 0, %v306
        %v1224 = vsel %vm1222, %v1223, %v306
        %v1225 = vmul.u32.u64.compose %v1224, 2863311531
        %v1226 = vextract.low.u32 %v1225
        %v1227 = vextract.high.u32 %v1225
        %v1228 = vshrl.u32 %v1227, 4
        %v1229 = vmul.u32 %v1228, 24
        %v1230 = vsub.s32 %v1224, %v1229
        %v1231 = vsub.s32 0, %v1230
        %v1232 = vsel %vm1222, %v1231, %v1230
        %vm1233 = vcmp.lt.s32.totalorder %v307, 0
        %v1234 = vsub.s32 0, %v307
        %v1235 = vsel %vm1233, %v1234, %v307
        %v1236 = vmul.u32.u64.compose %v1235, 2863311531
        %v1237 = vextract.low.u32 %v1236
        %v1238 = vextract.high.u32 %v1236
        %v1239 = vshrl.u32 %v1238, 4
        %v1240 = vmul.u32 %v1239, 24
        %v1241 = vsub.s32 %v1235, %v1240
        %v1242 = vsub.s32 0, %v1241
        %v1243 = vsel %vm1233, %v1242, %v1241
        %vm1244 = vcmp.lt.s32.totalorder %v308, 0
        %v1245 = vsub.s32 0, %v308
        %v1246 = vsel %vm1244, %v1245, %v308
        %v1247 = vmul.u32.u64.compose %v1246, 2863311531
        %v1248 = vextract.low.u32 %v1247
        %v1249 = vextract.high.u32 %v1247
        %v1250 = vshrl.u32 %v1249, 4
        %v1251 = vmul.u32 %v1250, 24
        %v1252 = vsub.s32 %v1246, %v1251
        %v1253 = vsub.s32 0, %v1252
        %v1254 = vsel %vm1244, %v1253, %v1252
        %vm1255 = vcmp.lt.s32.totalorder %v309, 0
        %v1256 = vsub.s32 0, %v309
        %v1257 = vsel %vm1255, %v1256, %v309
        %v1258 = vmul.u32.u64.compose %v1257, 2863311531
        %v1259 = vextract.low.u32 %v1258
        %v1260 = vextract.high.u32 %v1258
        %v1261 = vshrl.u32 %v1260, 4
        %v1262 = vmul.u32 %v1261, 24
        %v1263 = vsub.s32 %v1257, %v1262
        %v1264 = vsub.s32 0, %v1263
        %v1265 = vsel %vm1255, %v1264, %v1263
        %vm1266 = vcmp.lt.s32.totalorder %v310, 0
        %v1267 = vsub.s32 0, %v310
        %v1268 = vsel %vm1266, %v1267, %v310
        %v1269 = vmul.u32.u64.compose %v1268, 2863311531
        %v1270 = vextract.low.u32 %v1269
        %v1271 = vextract.high.u32 %v1269
        %v1272 = vshrl.u32 %v1271, 4
        %v1273 = vmul.u32 %v1272, 24
        %v1274 = vsub.s32 %v1268, %v1273
        %v1275 = vsub.s32 0, %v1274
        %v1276 = vsel %vm1266, %v1275, %v1274
        %vm1277 = vcmp.lt.s32.totalorder %v311, 0
        %v1278 = vsub.s32 0, %v311
        %v1279 = vsel %vm1277, %v1278, %v311
        %v1280 = vmul.u32.u64.compose %v1279, 2863311531
        %v1281 = vextract.low.u32 %v1280
        %v1282 = vextract.high.u32 %v1280
        %v1283 = vshrl.u32 %v1282, 4
        %v1284 = vmul.u32 %v1283, 24
        %v1285 = vsub.s32 %v1279, %v1284
        %v1286 = vsub.s32 0, %v1285
        %v1287 = vsel %vm1277, %v1286, %v1285
        %vm1288 = vcmp.lt.s32.totalorder %v312, 0
        %v1289 = vsub.s32 0, %v312
        %v1290 = vsel %vm1288, %v1289, %v312
        %v1291 = vmul.u32.u64.compose %v1290, 2863311531
        %v1292 = vextract.low.u32 %v1291
        %v1293 = vextract.high.u32 %v1291
        %v1294 = vshrl.u32 %v1293, 4
        %v1295 = vmul.u32 %v1294, 24
        %v1296 = vsub.s32 %v1290, %v1295
        %v1297 = vsub.s32 0, %v1296
        %v1298 = vsel %vm1288, %v1297, %v1296
        %vm1299 = vcmp.lt.s32.totalorder %v313, 0
        %v1300 = vsub.s32 0, %v313
        %v1301 = vsel %vm1299, %v1300, %v313
        %v1302 = vmul.u32.u64.compose %v1301, 2863311531
        %v1303 = vextract.low.u32 %v1302
        %v1304 = vextract.high.u32 %v1302
        %v1305 = vshrl.u32 %v1304, 4
        %v1306 = vmul.u32 %v1305, 24
        %v1307 = vsub.s32 %v1301, %v1306
        %v1308 = vsub.s32 0, %v1307
        %v1309 = vsel %vm1299, %v1308, %v1307
        %vm1310 = vcmp.lt.s32.totalorder %v314, 0
        %v1311 = vsub.s32 0, %v314
        %v1312 = vsel %vm1310, %v1311, %v314
        %v1313 = vmul.u32.u64.compose %v1312, 2863311531
        %v1314 = vextract.low.u32 %v1313
        %v1315 = vextract.high.u32 %v1313
        %v1316 = vshrl.u32 %v1315, 4
        %v1317 = vmul.u32 %v1316, 24
        %v1318 = vsub.s32 %v1312, %v1317
        %v1319 = vsub.s32 0, %v1318
        %v1320 = vsel %vm1310, %v1319, %v1318
        %vm1321 = vcmp.lt.s32.totalorder %v315, 0
        %v1322 = vsub.s32 0, %v315
        %v1323 = vsel %vm1321, %v1322, %v315
        %v1324 = vmul.u32.u64.compose %v1323, 2863311531
        %v1325 = vextract.low.u32 %v1324
        %v1326 = vextract.high.u32 %v1324
        %v1327 = vshrl.u32 %v1326, 4
        %v1328 = vmul.u32 %v1327, 24
        %v1329 = vsub.s32 %v1323, %v1328
        %v1330 = vsub.s32 0, %v1329
        %v1331 = vsel %vm1321, %v1330, %v1329
        %vm1332 = vcmp.lt.s32.totalorder %v316, 0
        %v1333 = vsub.s32 0, %v316
        %v1334 = vsel %vm1332, %v1333, %v316
        %v1335 = vmul.u32.u64.compose %v1334, 2863311531
        %v1336 = vextract.low.u32 %v1335
        %v1337 = vextract.high.u32 %v1335
        %v1338 = vshrl.u32 %v1337, 4
        %v1339 = vmul.u32 %v1338, 24
        %v1340 = vsub.s32 %v1334, %v1339
        %v1341 = vsub.s32 0, %v1340
        %v1342 = vsel %vm1332, %v1341, %v1340
        %vm1343 = vcmp.lt.s32.totalorder %v317, 0
        %v1344 = vsub.s32 0, %v317
        %v1345 = vsel %vm1343, %v1344, %v317
        %v1346 = vmul.u32.u64.compose %v1345, 2863311531
        %v1347 = vextract.low.u32 %v1346
        %v1348 = vextract.high.u32 %v1346
        %v1349 = vshrl.u32 %v1348, 4
        %v1350 = vmul.u32 %v1349, 24
        %v1351 = vsub.s32 %v1345, %v1350
        %v1352 = vsub.s32 0, %v1351
        %v1353 = vsel %vm1343, %v1352, %v1351
        %vm1354 = vcmp.lt.s32.totalorder %v318, 0
        %v1355 = vsub.s32 0, %v318
        %v1356 = vsel %vm1354, %v1355, %v318
        %v1357 = vmul.u32.u64.compose %v1356, 2863311531
        %v1358 = vextract.low.u32 %v1357
        %v1359 = vextract.high.u32 %v1357
        %v1360 = vshrl.u32 %v1359, 4
        %v1361 = vmul.u32 %v1360, 24
        %v1362 = vsub.s32 %v1356, %v1361
        %v1363 = vsub.s32 0, %v1362
        %v1364 = vsel %vm1354, %v1363, %v1362
        %vm1365 = vcmp.lt.s32.totalorder %v319, 0
        %v1366 = vsub.s32 0, %v319
        %v1367 = vsel %vm1365, %v1366, %v319
        %v1368 = vmul.u32.u64.compose %v1367, 2863311531
        %v1369 = vextract.low.u32 %v1368
        %v1370 = vextract.high.u32 %v1368
        %v1371 = vshrl.u32 %v1370, 4
        %v1372 = vmul.u32 %v1371, 24
        %v1373 = vsub.s32 %v1367, %v1372
        %v1374 = vsub.s32 0, %v1373
        %v1375 = vsel %vm1365, %v1374, %v1373
        %vm1376 = vcmp.ne.s32.totalorder %v330, 0
        %vm1377 = vcmp.ne.s32.totalorder %v341, 0
        %vm1378 = vcmp.ne.s32.totalorder %v352, 0
        %vm1379 = vcmp.ne.s32.totalorder %v363, 0
        %vm1380 = vcmp.ne.s32.totalorder %v374, 0
        %vm1381 = vcmp.ne.s32.totalorder %v385, 0
        %vm1382 = vcmp.ne.s32.totalorder %v396, 0
        %vm1383 = vcmp.ne.s32.totalorder %v407, 0
        %vm1384 = vcmp.ne.s32.totalorder %v418, 0
        %vm1385 = vcmp.ne.s32.totalorder %v429, 0
        %vm1386 = vcmp.ne.s32.totalorder %v440, 0
        %vm1387 = vcmp.ne.s32.totalorder %v451, 0
        %vm1388 = vcmp.ne.s32.totalorder %v462, 0
        %vm1389 = vcmp.ne.s32.totalorder %v473, 0
        %vm1390 = vcmp.ne.s32.totalorder %v484, 0
        %vm1391 = vcmp.ne.s32.totalorder %v495, 0
        %vm1392 = vcmp.ne.s32.totalorder %v506, 0
        %vm1393 = vcmp.ne.s32.totalorder %v517, 0
        %vm1394 = vcmp.ne.s32.totalorder %v528, 0
        %vm1395 = vcmp.ne.s32.totalorder %v539, 0
        %vm1396 = vcmp.ne.s32.totalorder %v550, 0
        %vm1397 = vcmp.ne.s32.totalorder %v561, 0
        %vm1398 = vcmp.ne.s32.totalorder %v572, 0
        %vm1399 = vcmp.ne.s32.totalorder %v583, 0
        %vm1400 = vcmp.ne.s32.totalorder %v594, 0
        %vm1401 = vcmp.ne.s32.totalorder %v605, 0
        %vm1402 = vcmp.ne.s32.totalorder %v616, 0
        %vm1403 = vcmp.ne.s32.totalorder %v627, 0
        %vm1404 = vcmp.ne.s32.totalorder %v638, 0
        %vm1405 = vcmp.ne.s32.totalorder %v649, 0
        %vm1406 = vcmp.ne.s32.totalorder %v660, 0
        %vm1407 = vcmp.ne.s32.totalorder %v671, 0
        %vm1408 = vcmp.ne.s32.totalorder %v682, 0
        %vm1409 = vcmp.ne.s32.totalorder %v693, 0
        %vm1410 = vcmp.ne.s32.totalorder %v704, 0
        %vm1411 = vcmp.ne.s32.totalorder %v715, 0
        %vm1412 = vcmp.ne.s32.totalorder %v726, 0
        %vm1413 = vcmp.ne.s32.totalorder %v737, 0
        %vm1414 = vcmp.ne.s32.totalorder %v748, 0
        %vm1415 = vcmp.ne.s32.totalorder %v759, 0
        %vm1416 = vcmp.ne.s32.totalorder %v770, 0
        %vm1417 = vcmp.ne.s32.totalorder %v781, 0
        %vm1418 = vcmp.ne.s32.totalorder %v792, 0
        %vm1419 = vcmp.ne.s32.totalorder %v803, 0
        %vm1420 = vcmp.ne.s32.totalorder %v814, 0
        %vm1421 = vcmp.ne.s32.totalorder %v825, 0
        %vm1422 = vcmp.ne.s32.totalorder %v836, 0
        %vm1423 = vcmp.ne.s32.totalorder %v847, 0
        %vm1424 = vcmp.ne.s32.totalorder %v858, 0
        %vm1425 = vcmp.ne.s32.totalorder %v869, 0
        %vm1426 = vcmp.ne.s32.totalorder %v880, 0
        %vm1427 = vcmp.ne.s32.totalorder %v891, 0
        %vm1428 = vcmp.ne.s32.totalorder %v902, 0
        %vm1429 = vcmp.ne.s32.totalorder %v913, 0
        %vm1430 = vcmp.ne.s32.totalorder %v924, 0
        %vm1431 = vcmp.ne.s32.totalorder %v935, 0
        %vm1432 = vcmp.ne.s32.totalorder %v946, 0
        %vm1433 = vcmp.ne.s32.totalorder %v957, 0
        %vm1434 = vcmp.ne.s32.totalorder %v968, 0
        %vm1435 = vcmp.ne.s32.totalorder %v979, 0
        %vm1436 = vcmp.ne.s32.totalorder %v990, 0
        %vm1437 = vcmp.ne.s32.totalorder %v1001, 0
        %vm1438 = vcmp.ne.s32.totalorder %v1012, 0
        %vm1439 = vcmp.ne.s32.totalorder %v1023, 0
        %vm1440 = vcmp.ne.s32.totalorder %v1034, 0
        %vm1441 = vcmp.ne.s32.totalorder %v1045, 0
        %vm1442 = vcmp.ne.s32.totalorder %v1056, 0
        %vm1443 = vcmp.ne.s32.totalorder %v1067, 0
        %vm1444 = vcmp.ne.s32.totalorder %v1078, 0
        %vm1445 = vcmp.ne.s32.totalorder %v1089, 0
        %vm1446 = vcmp.ne.s32.totalorder %v1100, 0
        %vm1447 = vcmp.ne.s32.totalorder %v1111, 0
        %vm1448 = vcmp.ne.s32.totalorder %v1122, 0
        %vm1449 = vcmp.ne.s32.totalorder %v1133, 0
        %vm1450 = vcmp.ne.s32.totalorder %v1144, 0
        %vm1451 = vcmp.ne.s32.totalorder %v1155, 0
        %vm1452 = vcmp.ne.s32.totalorder %v1166, 0
        %vm1453 = vcmp.ne.s32.totalorder %v1177, 0
        %vm1454 = vcmp.ne.s32.totalorder %v1188, 0
        %vm1455 = vcmp.ne.s32.totalorder %v1199, 0
        %vm1456 = vcmp.ne.s32.totalorder %v1210, 0
        %vm1457 = vcmp.ne.s32.totalorder %v1221, 0
        %vm1458 = vcmp.ne.s32.totalorder %v1232, 0
        %vm1459 = vcmp.ne.s32.totalorder %v1243, 0
        %vm1460 = vcmp.ne.s32.totalorder %v1254, 0
        %vm1461 = vcmp.ne.s32.totalorder %v1265, 0
        %vm1462 = vcmp.ne.s32.totalorder %v1276, 0
        %vm1463 = vcmp.ne.s32.totalorder %v1287, 0
        %vm1464 = vcmp.ne.s32.totalorder %v1298, 0
        %vm1465 = vcmp.ne.s32.totalorder %v1309, 0
        %vm1466 = vcmp.ne.s32.totalorder %v1320, 0
        %vm1467 = vcmp.ne.s32.totalorder %v1331, 0
        %vm1468 = vcmp.ne.s32.totalorder %v1342, 0
        %vm1469 = vcmp.ne.s32.totalorder %v1353, 0
        %vm1470 = vcmp.ne.s32.totalorder %v1364, 0
        %vm1471 = vcmp.ne.s32.totalorder %v1375, 0
        %vm1472 = vcmp.lt.s32.totalorder %v330, 0
        %vm1473 = vcmp.lt.s32.totalorder %v341, 0
        %vm1474 = vcmp.lt.s32.totalorder %v352, 0
        %vm1475 = vcmp.lt.s32.totalorder %v363, 0
        %vm1476 = vcmp.lt.s32.totalorder %v374, 0
        %vm1477 = vcmp.lt.s32.totalorder %v385, 0
        %vm1478 = vcmp.lt.s32.totalorder %v396, 0
        %vm1479 = vcmp.lt.s32.totalorder %v407, 0
        %vm1480 = vcmp.lt.s32.totalorder %v418, 0
        %vm1481 = vcmp.lt.s32.totalorder %v429, 0
        %vm1482 = vcmp.lt.s32.totalorder %v440, 0
        %vm1483 = vcmp.lt.s32.totalorder %v451, 0
        %vm1484 = vcmp.lt.s32.totalorder %v462, 0
        %vm1485 = vcmp.lt.s32.totalorder %v473, 0
        %vm1486 = vcmp.lt.s32.totalorder %v484, 0
        %vm1487 = vcmp.lt.s32.totalorder %v495, 0
        %vm1488 = vcmp.lt.s32.totalorder %v506, 0
        %vm1489 = vcmp.lt.s32.totalorder %v517, 0
        %vm1490 = vcmp.lt.s32.totalorder %v528, 0
        %vm1491 = vcmp.lt.s32.totalorder %v539, 0
        %vm1492 = vcmp.lt.s32.totalorder %v550, 0
        %vm1493 = vcmp.lt.s32.totalorder %v561, 0
        %vm1494 = vcmp.lt.s32.totalorder %v572, 0
        %vm1495 = vcmp.lt.s32.totalorder %v583, 0
        %vm1496 = vcmp.lt.s32.totalorder %v594, 0
        %vm1497 = vcmp.lt.s32.totalorder %v605, 0
        %vm1498 = vcmp.lt.s32.totalorder %v616, 0
        %vm1499 = vcmp.lt.s32.totalorder %v627, 0
        %vm1500 = vcmp.lt.s32.totalorder %v638, 0
        %vm1501 = vcmp.lt.s32.totalorder %v649, 0
        %vm1502 = vcmp.lt.s32.totalorder %v660, 0
        %vm1503 = vcmp.lt.s32.totalorder %v671, 0
        %vm1504 = vcmp.lt.s32.totalorder %v682, 0
        %vm1505 = vcmp.lt.s32.totalorder %v693, 0
        %vm1506 = vcmp.lt.s32.totalorder %v704, 0
        %vm1507 = vcmp.lt.s32.totalorder %v715, 0
        %vm1508 = vcmp.lt.s32.totalorder %v726, 0
        %vm1509 = vcmp.lt.s32.totalorder %v737, 0
        %vm1510 = vcmp.lt.s32.totalorder %v748, 0
        %vm1511 = vcmp.lt.s32.totalorder %v759, 0
        %vm1512 = vcmp.lt.s32.totalorder %v770, 0
        %vm1513 = vcmp.lt.s32.totalorder %v781, 0
        %vm1514 = vcmp.lt.s32.totalorder %v792, 0
        %vm1515 = vcmp.lt.s32.totalorder %v803, 0
        %vm1516 = vcmp.lt.s32.totalorder %v814, 0
        %vm1517 = vcmp.lt.s32.totalorder %v825, 0
        %vm1518 = vcmp.lt.s32.totalorder %v836, 0
        %vm1519 = vcmp.lt.s32.totalorder %v847, 0
        %vm1520 = vcmp.lt.s32.totalorder %v858, 0
        %vm1521 = vcmp.lt.s32.totalorder %v869, 0
        %vm1522 = vcmp.lt.s32.totalorder %v880, 0
        %vm1523 = vcmp.lt.s32.totalorder %v891, 0
        %vm1524 = vcmp.lt.s32.totalorder %v902, 0
        %vm1525 = vcmp.lt.s32.totalorder %v913, 0
        %vm1526 = vcmp.lt.s32.totalorder %v924, 0
        %vm1527 = vcmp.lt.s32.totalorder %v935, 0
        %vm1528 = vcmp.lt.s32.totalorder %v946, 0
        %vm1529 = vcmp.lt.s32.totalorder %v957, 0
        %vm1530 = vcmp.lt.s32.totalorder %v968, 0
        %vm1531 = vcmp.lt.s32.totalorder %v979, 0
        %vm1532 = vcmp.lt.s32.totalorder %v990, 0
        %vm1533 = vcmp.lt.s32.totalorder %v1001, 0
        %vm1534 = vcmp.lt.s32.totalorder %v1012, 0
        %vm1535 = vcmp.lt.s32.totalorder %v1023, 0
        %vm1536 = vcmp.lt.s32.totalorder %v1034, 0
        %vm1537 = vcmp.lt.s32.totalorder %v1045, 0
        %vm1538 = vcmp.lt.s32.totalorder %v1056, 0
        %vm1539 = vcmp.lt.s32.totalorder %v1067, 0
        %vm1540 = vcmp.lt.s32.totalorder %v1078, 0
        %vm1541 = vcmp.lt.s32.totalorder %v1089, 0
        %vm1542 = vcmp.lt.s32.totalorder %v1100, 0
        %vm1543 = vcmp.lt.s32.totalorder %v1111, 0
        %vm1544 = vcmp.lt.s32.totalorder %v1122, 0
        %vm1545 = vcmp.lt.s32.totalorder %v1133, 0
        %vm1546 = vcmp.lt.s32.totalorder %v1144, 0
        %vm1547 = vcmp.lt.s32.totalorder %v1155, 0
        %vm1548 = vcmp.lt.s32.totalorder %v1166, 0
        %vm1549 = vcmp.lt.s32.totalorder %v1177, 0
        %vm1550 = vcmp.lt.s32.totalorder %v1188, 0
        %vm1551 = vcmp.lt.s32.totalorder %v1199, 0
        %vm1552 = vcmp.lt.s32.totalorder %v1210, 0
        %vm1553 = vcmp.lt.s32.totalorder %v1221, 0
        %vm1554 = vcmp.lt.s32.totalorder %v1232, 0
        %vm1555 = vcmp.lt.s32.totalorder %v1243, 0
        %vm1556 = vcmp.lt.s32.totalorder %v1254, 0
        %vm1557 = vcmp.lt.s32.totalorder %v1265, 0
        %vm1558 = vcmp.lt.s32.totalorder %v1276, 0
        %vm1559 = vcmp.lt.s32.totalorder %v1287, 0
        %vm1560 = vcmp.lt.s32.totalorder %v1298, 0
        %vm1561 = vcmp.lt.s32.totalorder %v1309, 0
        %vm1562 = vcmp.lt.s32.totalorder %v1320, 0
        %vm1563 = vcmp.lt.s32.totalorder %v1331, 0
        %vm1564 = vcmp.lt.s32.totalorder %v1342, 0
        %vm1565 = vcmp.lt.s32.totalorder %v1353, 0
        %vm1566 = vcmp.lt.s32.totalorder %v1364, 0
        %vm1567 = vcmp.lt.s32.totalorder %v1375, 0
        %vm1568 = vmand %vm1472, %vm1376
        %vm1569 = vmand %vm1473, %vm1377
        %vm1570 = vmand %vm1474, %vm1378
        %vm1571 = vmand %vm1475, %vm1379
        %vm1572 = vmand %vm1476, %vm1380
        %vm1573 = vmand %vm1477, %vm1381
        %vm1574 = vmand %vm1478, %vm1382
        %vm1575 = vmand %vm1479, %vm1383
        %vm1576 = vmand %vm1480, %vm1384
        %vm1577 = vmand %vm1481, %vm1385
        %vm1578 = vmand %vm1482, %vm1386
        %vm1579 = vmand %vm1483, %vm1387
        %vm1580 = vmand %vm1484, %vm1388
        %vm1581 = vmand %vm1485, %vm1389
        %vm1582 = vmand %vm1486, %vm1390
        %vm1583 = vmand %vm1487, %vm1391
        %vm1584 = vmand %vm1488, %vm1392
        %vm1585 = vmand %vm1489, %vm1393
        %vm1586 = vmand %vm1490, %vm1394
        %vm1587 = vmand %vm1491, %vm1395
        %vm1588 = vmand %vm1492, %vm1396
        %vm1589 = vmand %vm1493, %vm1397
        %vm1590 = vmand %vm1494, %vm1398
        %vm1591 = vmand %vm1495, %vm1399
        %vm1592 = vmand %vm1496, %vm1400
        %vm1593 = vmand %vm1497, %vm1401
        %vm1594 = vmand %vm1498, %vm1402
        %vm1595 = vmand %vm1499, %vm1403
        %vm1596 = vmand %vm1500, %vm1404
        %vm1597 = vmand %vm1501, %vm1405
        %vm1598 = vmand %vm1502, %vm1406
        %vm1599 = vmand %vm1503, %vm1407
        %vm1600 = vmand %vm1504, %vm1408
        %vm1601 = vmand %vm1505, %vm1409
        %vm1602 = vmand %vm1506, %vm1410
        %vm1603 = vmand %vm1507, %vm1411
        %vm1604 = vmand %vm1508, %vm1412
        %vm1605 = vmand %vm1509, %vm1413
        %vm1606 = vmand %vm1510, %vm1414
        %vm1607 = vmand %vm1511, %vm1415
        %vm1608 = vmand %vm1512, %vm1416
        %vm1609 = vmand %vm1513, %vm1417
        %vm1610 = vmand %vm1514, %vm1418
        %vm1611 = vmand %vm1515, %vm1419
        %vm1612 = vmand %vm1516, %vm1420
        %vm1613 = vmand %vm1517, %vm1421
        %vm1614 = vmand %vm1518, %vm1422
        %vm1615 = vmand %vm1519, %vm1423
        %vm1616 = vmand %vm1520, %vm1424
        %vm1617 = vmand %vm1521, %vm1425
        %vm1618 = vmand %vm1522, %vm1426
        %vm1619 = vmand %vm1523, %vm1427
        %vm1620 = vmand %vm1524, %vm1428
        %vm1621 = vmand %vm1525, %vm1429
        %vm1622 = vmand %vm1526, %vm1430
        %vm1623 = vmand %vm1527, %vm1431
        %vm1624 = vmand %vm1528, %vm1432
        %vm1625 = vmand %vm1529, %vm1433
        %vm1626 = vmand %vm1530, %vm1434
        %vm1627 = vmand %vm1531, %vm1435
        %vm1628 = vmand %vm1532, %vm1436
        %vm1629 = vmand %vm1533, %vm1437
        %vm1630 = vmand %vm1534, %vm1438
        %vm1631 = vmand %vm1535, %vm1439
        %vm1632 = vmand %vm1536, %vm1440
        %vm1633 = vmand %vm1537, %vm1441
        %vm1634 = vmand %vm1538, %vm1442
        %vm1635 = vmand %vm1539, %vm1443
        %vm1636 = vmand %vm1540, %vm1444
        %vm1637 = vmand %vm1541, %vm1445
        %vm1638 = vmand %vm1542, %vm1446
        %vm1639 = vmand %vm1543, %vm1447
        %vm1640 = vmand %vm1544, %vm1448
        %vm1641 = vmand %vm1545, %vm1449
        %vm1642 = vmand %vm1546, %vm1450
        %vm1643 = vmand %vm1547, %vm1451
        %vm1644 = vmand %vm1548, %vm1452
        %vm1645 = vmand %vm1549, %vm1453
        %vm1646 = vmand %vm1550, %vm1454
        %vm1647 = vmand %vm1551, %vm1455
        %vm1648 = vmand %vm1552, %vm1456
        %vm1649 = vmand %vm1553, %vm1457
        %vm1650 = vmand %vm1554, %vm1458
        %vm1651 = vmand %vm1555, %vm1459
        %vm1652 = vmand %vm1556, %vm1460
        %vm1653 = vmand %vm1557, %vm1461
        %vm1654 = vmand %vm1558, %vm1462
        %vm1655 = vmand %vm1559, %vm1463
        %vm1656 = vmand %vm1560, %vm1464
        %vm1657 = vmand %vm1561, %vm1465
        %vm1658 = vmand %vm1562, %vm1466
        %vm1659 = vmand %vm1563, %vm1467
        %vm1660 = vmand %vm1564, %vm1468
        %vm1661 = vmand %vm1565, %vm1469
        %vm1662 = vmand %vm1566, %vm1470
        %vm1663 = vmand %vm1567, %vm1471
        %v1664 = vadd.s32 %v330, 24
        %v1665 = vadd.s32 %v341, 24
        %v1666 = vadd.s32 %v352, 24
        %v1667 = vadd.s32 %v363, 24
        %v1668 = vadd.s32 %v374, 24
        %v1669 = vadd.s32 %v385, 24
        %v1670 = vadd.s32 %v396, 24
        %v1671 = vadd.s32 %v407, 24
        %v1672 = vadd.s32 %v418, 24
        %v1673 = vadd.s32 %v429, 24
        %v1674 = vadd.s32 %v440, 24
        %v1675 = vadd.s32 %v451, 24
        %v1676 = vadd.s32 %v462, 24
        %v1677 = vadd.s32 %v473, 24
        %v1678 = vadd.s32 %v484, 24
        %v1679 = vadd.s32 %v495, 24
        %v1680 = vadd.s32 %v506, 24
        %v1681 = vadd.s32 %v517, 24
        %v1682 = vadd.s32 %v528, 24
        %v1683 = vadd.s32 %v539, 24
        %v1684 = vadd.s32 %v550, 24
        %v1685 = vadd.s32 %v561, 24
        %v1686 = vadd.s32 %v572, 24
        %v1687 = vadd.s32 %v583, 24
        %v1688 = vadd.s32 %v594, 24
        %v1689 = vadd.s32 %v605, 24
        %v1690 = vadd.s32 %v616, 24
        %v1691 = vadd.s32 %v627, 24
        %v1692 = vadd.s32 %v638, 24
        %v1693 = vadd.s32 %v649, 24
        %v1694 = vadd.s32 %v660, 24
        %v1695 = vadd.s32 %v671, 24
        %v1696 = vadd.s32 %v682, 24
        %v1697 = vadd.s32 %v693, 24
        %v1698 = vadd.s32 %v704, 24
        %v1699 = vadd.s32 %v715, 24
        %v1700 = vadd.s32 %v726, 24
        %v1701 = vadd.s32 %v737, 24
        %v1702 = vadd.s32 %v748, 24
        %v1703 = vadd.s32 %v759, 24
        %v1704 = vadd.s32 %v770, 24
        %v1705 = vadd.s32 %v781, 24
        %v1706 = vadd.s32 %v792, 24
        %v1707 = vadd.s32 %v803, 24
        %v1708 = vadd.s32 %v814, 24
        %v1709 = vadd.s32 %v825, 24
        %v1710 = vadd.s32 %v836, 24
        %v1711 = vadd.s32 %v847, 24
        %v1712 = vadd.s32 %v858, 24
        %v1713 = vadd.s32 %v869, 24
        %v1714 = vadd.s32 %v880, 24
        %v1715 = vadd.s32 %v891, 24
        %v1716 = vadd.s32 %v902, 24
        %v1717 = vadd.s32 %v913, 24
        %v1718 = vadd.s32 %v924, 24
        %v1719 = vadd.s32 %v935, 24
        %v1720 = vadd.s32 %v946, 24
        %v1721 = vadd.s32 %v957, 24
        %v1722 = vadd.s32 %v968, 24
        %v1723 = vadd.s32 %v979, 24
        %v1724 = vadd.s32 %v990, 24
        %v1725 = vadd.s32 %v1001, 24
        %v1726 = vadd.s32 %v1012, 24
        %v1727 = vadd.s32 %v1023, 24
        %v1728 = vadd.s32 %v1034, 24
        %v1729 = vadd.s32 %v1045, 24
        %v1730 = vadd.s32 %v1056, 24
        %v1731 = vadd.s32 %v1067, 24
        %v1732 = vadd.s32 %v1078, 24
        %v1733 = vadd.s32 %v1089, 24
        %v1734 = vadd.s32 %v1100, 24
        %v1735 = vadd.s32 %v1111, 24
        %v1736 = vadd.s32 %v1122, 24
        %v1737 = vadd.s32 %v1133, 24
        %v1738 = vadd.s32 %v1144, 24
        %v1739 = vadd.s32 %v1155, 24
        %v1740 = vadd.s32 %v1166, 24
        %v1741 = vadd.s32 %v1177, 24
        %v1742 = vadd.s32 %v1188, 24
        %v1743 = vadd.s32 %v1199, 24
        %v1744 = vadd.s32 %v1210, 24
        %v1745 = vadd.s32 %v1221, 24
        %v1746 = vadd.s32 %v1232, 24
        %v1747 = vadd.s32 %v1243, 24
        %v1748 = vadd.s32 %v1254, 24
        %v1749 = vadd.s32 %v1265, 24
        %v1750 = vadd.s32 %v1276, 24
        %v1751 = vadd.s32 %v1287, 24
        %v1752 = vadd.s32 %v1298, 24
        %v1753 = vadd.s32 %v1309, 24
        %v1754 = vadd.s32 %v1320, 24
        %v1755 = vadd.s32 %v1331, 24
        %v1756 = vadd.s32 %v1342, 24
        %v1757 = vadd.s32 %v1353, 24
        %v1758 = vadd.s32 %v1364, 24
        %v1759 = vadd.s32 %v1375, 24
        %v1760 = vsel %vm1568, %v1664, %v330
        %v1761 = vsel %vm1569, %v1665, %v341
        %v1762 = vsel %vm1570, %v1666, %v352
        %v1763 = vsel %vm1571, %v1667, %v363
        %v1764 = vsel %vm1572, %v1668, %v374
        %v1765 = vsel %vm1573, %v1669, %v385
        %v1766 = vsel %vm1574, %v1670, %v396
        %v1767 = vsel %vm1575, %v1671, %v407
        %v1768 = vsel %vm1576, %v1672, %v418
        %v1769 = vsel %vm1577, %v1673, %v429
        %v1770 = vsel %vm1578, %v1674, %v440
        %v1771 = vsel %vm1579, %v1675, %v451
        %v1772 = vsel %vm1580, %v1676, %v462
        %v1773 = vsel %vm1581, %v1677, %v473
        %v1774 = vsel %vm1582, %v1678, %v484
        %v1775 = vsel %vm1583, %v1679, %v495
        %v1776 = vsel %vm1584, %v1680, %v506
        %v1777 = vsel %vm1585, %v1681, %v517
        %v1778 = vsel %vm1586, %v1682, %v528
        %v1779 = vsel %vm1587, %v1683, %v539
        %v1780 = vsel %vm1588, %v1684, %v550
        %v1781 = vsel %vm1589, %v1685, %v561
        %v1782 = vsel %vm1590, %v1686, %v572
        %v1783 = vsel %vm1591, %v1687, %v583
        %v1784 = vsel %vm1592, %v1688, %v594
        %v1785 = vsel %vm1593, %v1689, %v605
        %v1786 = vsel %vm1594, %v1690, %v616
        %v1787 = vsel %vm1595, %v1691, %v627
        %v1788 = vsel %vm1596, %v1692, %v638
        %v1789 = vsel %vm1597, %v1693, %v649
        %v1790 = vsel %vm1598, %v1694, %v660
        %v1791 = vsel %vm1599, %v1695, %v671
        %v1792 = vsel %vm1600, %v1696, %v682
        %v1793 = vsel %vm1601, %v1697, %v693
        %v1794 = vsel %vm1602, %v1698, %v704
        %v1795 = vsel %vm1603, %v1699, %v715
        %v1796 = vsel %vm1604, %v1700, %v726
        %v1797 = vsel %vm1605, %v1701, %v737
        %v1798 = vsel %vm1606, %v1702, %v748
        %v1799 = vsel %vm1607, %v1703, %v759
        %v1800 = vsel %vm1608, %v1704, %v770
        %v1801 = vsel %vm1609, %v1705, %v781
        %v1802 = vsel %vm1610, %v1706, %v792
        %v1803 = vsel %vm1611, %v1707, %v803
        %v1804 = vsel %vm1612, %v1708, %v814
        %v1805 = vsel %vm1613, %v1709, %v825
        %v1806 = vsel %vm1614, %v1710, %v836
        %v1807 = vsel %vm1615, %v1711, %v847
        %v1808 = vsel %vm1616, %v1712, %v858
        %v1809 = vsel %vm1617, %v1713, %v869
        %v1810 = vsel %vm1618, %v1714, %v880
        %v1811 = vsel %vm1619, %v1715, %v891
        %v1812 = vsel %vm1620, %v1716, %v902
        %v1813 = vsel %vm1621, %v1717, %v913
        %v1814 = vsel %vm1622, %v1718, %v924
        %v1815 = vsel %vm1623, %v1719, %v935
        %v1816 = vsel %vm1624, %v1720, %v946
        %v1817 = vsel %vm1625, %v1721, %v957
        %v1818 = vsel %vm1626, %v1722, %v968
        %v1819 = vsel %vm1627, %v1723, %v979
        %v1820 = vsel %vm1628, %v1724, %v990
        %v1821 = vsel %vm1629, %v1725, %v1001
        %v1822 = vsel %vm1630, %v1726, %v1012
        %v1823 = vsel %vm1631, %v1727, %v1023
        %v1824 = vsel %vm1632, %v1728, %v1034
        %v1825 = vsel %vm1633, %v1729, %v1045
        %v1826 = vsel %vm1634, %v1730, %v1056
        %v1827 = vsel %vm1635, %v1731, %v1067
        %v1828 = vsel %vm1636, %v1732, %v1078
        %v1829 = vsel %vm1637, %v1733, %v1089
        %v1830 = vsel %vm1638, %v1734, %v1100
        %v1831 = vsel %vm1639, %v1735, %v1111
        %v1832 = vsel %vm1640, %v1736, %v1122
        %v1833 = vsel %vm1641, %v1737, %v1133
        %v1834 = vsel %vm1642, %v1738, %v1144
        %v1835 = vsel %vm1643, %v1739, %v1155
        %v1836 = vsel %vm1644, %v1740, %v1166
        %v1837 = vsel %vm1645, %v1741, %v1177
        %v1838 = vsel %vm1646, %v1742, %v1188
        %v1839 = vsel %vm1647, %v1743, %v1199
        %v1840 = vsel %vm1648, %v1744, %v1210
        %v1841 = vsel %vm1649, %v1745, %v1221
        %v1842 = vsel %vm1650, %v1746, %v1232
        %v1843 = vsel %vm1651, %v1747, %v1243
        %v1844 = vsel %vm1652, %v1748, %v1254
        %v1845 = vsel %vm1653, %v1749, %v1265
        %v1846 = vsel %vm1654, %v1750, %v1276
        %v1847 = vsel %vm1655, %v1751, %v1287
        %v1848 = vsel %vm1656, %v1752, %v1298
        %v1849 = vsel %vm1657, %v1753, %v1309
        %v1850 = vsel %vm1658, %v1754, %v1320
        %v1851 = vsel %vm1659, %v1755, %v1331
        %v1852 = vsel %vm1660, %v1756, %v1342
        %v1853 = vsel %vm1661, %v1757, %v1353
        %v1854 = vsel %vm1662, %v1758, %v1364
        %v1855 = vsel %vm1663, %v1759, %v1375
        %vm1856 = vcmp.lt.s32.totalorder %v1760, 16
        %vm1857 = vcmp.lt.s32.totalorder %v1761, 16
        %vm1858 = vcmp.lt.s32.totalorder %v1762, 16
        %vm1859 = vcmp.lt.s32.totalorder %v1763, 16
        %vm1860 = vcmp.lt.s32.totalorder %v1764, 16
        %vm1861 = vcmp.lt.s32.totalorder %v1765, 16
        %vm1862 = vcmp.lt.s32.totalorder %v1766, 16
        %vm1863 = vcmp.lt.s32.totalorder %v1767, 16
        %vm1864 = vcmp.lt.s32.totalorder %v1768, 16
        %vm1865 = vcmp.lt.s32.totalorder %v1769, 16
        %vm1866 = vcmp.lt.s32.totalorder %v1770, 16
        %vm1867 = vcmp.lt.s32.totalorder %v1771, 16
        %vm1868 = vcmp.lt.s32.totalorder %v1772, 16
        %vm1869 = vcmp.lt.s32.totalorder %v1773, 16
        %vm1870 = vcmp.lt.s32.totalorder %v1774, 16
        %vm1871 = vcmp.lt.s32.totalorder %v1775, 16
        %vm1872 = vcmp.lt.s32.totalorder %v1776, 16
        %vm1873 = vcmp.lt.s32.totalorder %v1777, 16
        %vm1874 = vcmp.lt.s32.totalorder %v1778, 16
        %vm1875 = vcmp.lt.s32.totalorder %v1779, 16
        %vm1876 = vcmp.lt.s32.totalorder %v1780, 16
        %vm1877 = vcmp.lt.s32.totalorder %v1781, 16
        %vm1878 = vcmp.lt.s32.totalorder %v1782, 16
        %vm1879 = vcmp.lt.s32.totalorder %v1783, 16
        %vm1880 = vcmp.lt.s32.totalorder %v1784, 16
        %vm1881 = vcmp.lt.s32.totalorder %v1785, 16
        %vm1882 = vcmp.lt.s32.totalorder %v1786, 16
        %vm1883 = vcmp.lt.s32.totalorder %v1787, 16
        %vm1884 = vcmp.lt.s32.totalorder %v1788, 16
        %vm1885 = vcmp.lt.s32.totalorder %v1789, 16
        %vm1886 = vcmp.lt.s32.totalorder %v1790, 16
        %vm1887 = vcmp.lt.s32.totalorder %v1791, 16
        %vm1888 = vcmp.lt.s32.totalorder %v1792, 16
        %vm1889 = vcmp.lt.s32.totalorder %v1793, 16
        %vm1890 = vcmp.lt.s32.totalorder %v1794, 16
        %vm1891 = vcmp.lt.s32.totalorder %v1795, 16
        %vm1892 = vcmp.lt.s32.totalorder %v1796, 16
        %vm1893 = vcmp.lt.s32.totalorder %v1797, 16
        %vm1894 = vcmp.lt.s32.totalorder %v1798, 16
        %vm1895 = vcmp.lt.s32.totalorder %v1799, 16
        %vm1896 = vcmp.lt.s32.totalorder %v1800, 16
        %vm1897 = vcmp.lt.s32.totalorder %v1801, 16
        %vm1898 = vcmp.lt.s32.totalorder %v1802, 16
        %vm1899 = vcmp.lt.s32.totalorder %v1803, 16
        %vm1900 = vcmp.lt.s32.totalorder %v1804, 16
        %vm1901 = vcmp.lt.s32.totalorder %v1805, 16
        %vm1902 = vcmp.lt.s32.totalorder %v1806, 16
        %vm1903 = vcmp.lt.s32.totalorder %v1807, 16
        %vm1904 = vcmp.lt.s32.totalorder %v1808, 16
        %vm1905 = vcmp.lt.s32.totalorder %v1809, 16
        %vm1906 = vcmp.lt.s32.totalorder %v1810, 16
        %vm1907 = vcmp.lt.s32.totalorder %v1811, 16
        %vm1908 = vcmp.lt.s32.totalorder %v1812, 16
        %vm1909 = vcmp.lt.s32.totalorder %v1813, 16
        %vm1910 = vcmp.lt.s32.totalorder %v1814, 16
        %vm1911 = vcmp.lt.s32.totalorder %v1815, 16
        %vm1912 = vcmp.lt.s32.totalorder %v1816, 16
        %vm1913 = vcmp.lt.s32.totalorder %v1817, 16
        %vm1914 = vcmp.lt.s32.totalorder %v1818, 16
        %vm1915 = vcmp.lt.s32.totalorder %v1819, 16
        %vm1916 = vcmp.lt.s32.totalorder %v1820, 16
        %vm1917 = vcmp.lt.s32.totalorder %v1821, 16
        %vm1918 = vcmp.lt.s32.totalorder %v1822, 16
        %vm1919 = vcmp.lt.s32.totalorder %v1823, 16
        %vm1920 = vcmp.lt.s32.totalorder %v1824, 16
        %vm1921 = vcmp.lt.s32.totalorder %v1825, 16
        %vm1922 = vcmp.lt.s32.totalorder %v1826, 16
        %vm1923 = vcmp.lt.s32.totalorder %v1827, 16
        %vm1924 = vcmp.lt.s32.totalorder %v1828, 16
        %vm1925 = vcmp.lt.s32.totalorder %v1829, 16
        %vm1926 = vcmp.lt.s32.totalorder %v1830, 16
        %vm1927 = vcmp.lt.s32.totalorder %v1831, 16
        %vm1928 = vcmp.lt.s32.totalorder %v1832, 16
        %vm1929 = vcmp.lt.s32.totalorder %v1833, 16
        %vm1930 = vcmp.lt.s32.totalorder %v1834, 16
        %vm1931 = vcmp.lt.s32.totalorder %v1835, 16
        %vm1932 = vcmp.lt.s32.totalorder %v1836, 16
        %vm1933 = vcmp.lt.s32.totalorder %v1837, 16
        %vm1934 = vcmp.lt.s32.totalorder %v1838, 16
        %vm1935 = vcmp.lt.s32.totalorder %v1839, 16
        %vm1936 = vcmp.lt.s32.totalorder %v1840, 16
        %vm1937 = vcmp.lt.s32.totalorder %v1841, 16
        %vm1938 = vcmp.lt.s32.totalorder %v1842, 16
        %vm1939 = vcmp.lt.s32.totalorder %v1843, 16
        %vm1940 = vcmp.lt.s32.totalorder %v1844, 16
        %vm1941 = vcmp.lt.s32.totalorder %v1845, 16
        %vm1942 = vcmp.lt.s32.totalorder %v1846, 16
        %vm1943 = vcmp.lt.s32.totalorder %v1847, 16
        %vm1944 = vcmp.lt.s32.totalorder %v1848, 16
        %vm1945 = vcmp.lt.s32.totalorder %v1849, 16
        %vm1946 = vcmp.lt.s32.totalorder %v1850, 16
        %vm1947 = vcmp.lt.s32.totalorder %v1851, 16
        %vm1948 = vcmp.lt.s32.totalorder %v1852, 16
        %vm1949 = vcmp.lt.s32.totalorder %v1853, 16
        %vm1950 = vcmp.lt.s32.totalorder %v1854, 16
        %vm1951 = vcmp.lt.s32.totalorder %v1855, 16
        %v1952 = vsel %vm1856, 1, 0
        %v1953 = vsel %vm1857, 1, 0
        %v1954 = vsel %vm1858, 1, 0
        %v1955 = vsel %vm1859, 1, 0
        %v1956 = vsel %vm1860, 1, 0
        %v1957 = vsel %vm1861, 1, 0
        %v1958 = vsel %vm1862, 1, 0
        %v1959 = vsel %vm1863, 1, 0
        %v1960 = vsel %vm1864, 1, 0
        %v1961 = vsel %vm1865, 1, 0
        %v1962 = vsel %vm1866, 1, 0
        %v1963 = vsel %vm1867, 1, 0
        %v1964 = vsel %vm1868, 1, 0
        %v1965 = vsel %vm1869, 1, 0
        %v1966 = vsel %vm1870, 1, 0
        %v1967 = vsel %vm1871, 1, 0
        %v1968 = vsel %vm1872, 1, 0
        %v1969 = vsel %vm1873, 1, 0
        %v1970 = vsel %vm1874, 1, 0
        %v1971 = vsel %vm1875, 1, 0
        %v1972 = vsel %vm1876, 1, 0
        %v1973 = vsel %vm1877, 1, 0
        %v1974 = vsel %vm1878, 1, 0
        %v1975 = vsel %vm1879, 1, 0
        %v1976 = vsel %vm1880, 1, 0
        %v1977 = vsel %vm1881, 1, 0
        %v1978 = vsel %vm1882, 1, 0
        %v1979 = vsel %vm1883, 1, 0
        %v1980 = vsel %vm1884, 1, 0
        %v1981 = vsel %vm1885, 1, 0
        %v1982 = vsel %vm1886, 1, 0
        %v1983 = vsel %vm1887, 1, 0
        %v1984 = vsel %vm1888, 1, 0
        %v1985 = vsel %vm1889, 1, 0
        %v1986 = vsel %vm1890, 1, 0
        %v1987 = vsel %vm1891, 1, 0
        %v1988 = vsel %vm1892, 1, 0
        %v1989 = vsel %vm1893, 1, 0
        %v1990 = vsel %vm1894, 1, 0
        %v1991 = vsel %vm1895, 1, 0
        %v1992 = vsel %vm1896, 1, 0
        %v1993 = vsel %vm1897, 1, 0
        %v1994 = vsel %vm1898, 1, 0
        %v1995 = vsel %vm1899, 1, 0
        %v1996 = vsel %vm1900, 1, 0
        %v1997 = vsel %vm1901, 1, 0
        %v1998 = vsel %vm1902, 1, 0
        %v1999 = vsel %vm1903, 1, 0
        %v2000 = vsel %vm1904, 1, 0
        %v2001 = vsel %vm1905, 1, 0
        %v2002 = vsel %vm1906, 1, 0
        %v2003 = vsel %vm1907, 1, 0
        %v2004 = vsel %vm1908, 1, 0
        %v2005 = vsel %vm1909, 1, 0
        %v2006 = vsel %vm1910, 1, 0
        %v2007 = vsel %vm1911, 1, 0
        %v2008 = vsel %vm1912, 1, 0
        %v2009 = vsel %vm1913, 1, 0
        %v2010 = vsel %vm1914, 1, 0
        %v2011 = vsel %vm1915, 1, 0
        %v2012 = vsel %vm1916, 1, 0
        %v2013 = vsel %vm1917, 1, 0
        %v2014 = vsel %vm1918, 1, 0
        %v2015 = vsel %vm1919, 1, 0
        %v2016 = vsel %vm1920, 1, 0
        %v2017 = vsel %vm1921, 1, 0
        %v2018 = vsel %vm1922, 1, 0
        %v2019 = vsel %vm1923, 1, 0
        %v2020 = vsel %vm1924, 1, 0
        %v2021 = vsel %vm1925, 1, 0
        %v2022 = vsel %vm1926, 1, 0
        %v2023 = vsel %vm1927, 1, 0
        %v2024 = vsel %vm1928, 1, 0
        %v2025 = vsel %vm1929, 1, 0
        %v2026 = vsel %vm1930, 1, 0
        %v2027 = vsel %vm1931, 1, 0
        %v2028 = vsel %vm1932, 1, 0
        %v2029 = vsel %vm1933, 1, 0
        %v2030 = vsel %vm1934, 1, 0
        %v2031 = vsel %vm1935, 1, 0
        %v2032 = vsel %vm1936, 1, 0
        %v2033 = vsel %vm1937, 1, 0
        %v2034 = vsel %vm1938, 1, 0
        %v2035 = vsel %vm1939, 1, 0
        %v2036 = vsel %vm1940, 1, 0
        %v2037 = vsel %vm1941, 1, 0
        %v2038 = vsel %vm1942, 1, 0
        %v2039 = vsel %vm1943, 1, 0
        %v2040 = vsel %vm1944, 1, 0
        %v2041 = vsel %vm1945, 1, 0
        %v2042 = vsel %vm1946, 1, 0
        %v2043 = vsel %vm1947, 1, 0
        %v2044 = vsel %vm1948, 1, 0
        %v2045 = vsel %vm1949, 1, 0
        %v2046 = vsel %vm1950, 1, 0
        %v2047 = vsel %vm1951, 1, 0
        %v2048 = vcvt.s32.f32 %v1952
        %v2049 = vcvt.s32.f32 %v1953
        %v2050 = vcvt.s32.f32 %v1954
        %v2051 = vcvt.s32.f32 %v1955
        %v2052 = vcvt.s32.f32 %v1956
        %v2053 = vcvt.s32.f32 %v1957
        %v2054 = vcvt.s32.f32 %v1958
        %v2055 = vcvt.s32.f32 %v1959
        %v2056 = vcvt.s32.f32 %v1960
        %v2057 = vcvt.s32.f32 %v1961
        %v2058 = vcvt.s32.f32 %v1962
        %v2059 = vcvt.s32.f32 %v1963
        %v2060 = vcvt.s32.f32 %v1964
        %v2061 = vcvt.s32.f32 %v1965
        %v2062 = vcvt.s32.f32 %v1966
        %v2063 = vcvt.s32.f32 %v1967
        %v2064 = vcvt.s32.f32 %v1968
        %v2065 = vcvt.s32.f32 %v1969
        %v2066 = vcvt.s32.f32 %v1970
        %v2067 = vcvt.s32.f32 %v1971
        %v2068 = vcvt.s32.f32 %v1972
        %v2069 = vcvt.s32.f32 %v1973
        %v2070 = vcvt.s32.f32 %v1974
        %v2071 = vcvt.s32.f32 %v1975
        %v2072 = vcvt.s32.f32 %v1976
        %v2073 = vcvt.s32.f32 %v1977
        %v2074 = vcvt.s32.f32 %v1978
        %v2075 = vcvt.s32.f32 %v1979
        %v2076 = vcvt.s32.f32 %v1980
        %v2077 = vcvt.s32.f32 %v1981
        %v2078 = vcvt.s32.f32 %v1982
        %v2079 = vcvt.s32.f32 %v1983
        %v2080 = vcvt.s32.f32 %v1984
        %v2081 = vcvt.s32.f32 %v1985
        %v2082 = vcvt.s32.f32 %v1986
        %v2083 = vcvt.s32.f32 %v1987
        %v2084 = vcvt.s32.f32 %v1988
        %v2085 = vcvt.s32.f32 %v1989
        %v2086 = vcvt.s32.f32 %v1990
        %v2087 = vcvt.s32.f32 %v1991
        %v2088 = vcvt.s32.f32 %v1992
        %v2089 = vcvt.s32.f32 %v1993
        %v2090 = vcvt.s32.f32 %v1994
        %v2091 = vcvt.s32.f32 %v1995
        %v2092 = vcvt.s32.f32 %v1996
        %v2093 = vcvt.s32.f32 %v1997
        %v2094 = vcvt.s32.f32 %v1998
        %v2095 = vcvt.s32.f32 %v1999
        %v2096 = vcvt.s32.f32 %v2000
        %v2097 = vcvt.s32.f32 %v2001
        %v2098 = vcvt.s32.f32 %v2002
        %v2099 = vcvt.s32.f32 %v2003
        %v2100 = vcvt.s32.f32 %v2004
        %v2101 = vcvt.s32.f32 %v2005
        %v2102 = vcvt.s32.f32 %v2006
        %v2103 = vcvt.s32.f32 %v2007
        %v2104 = vcvt.s32.f32 %v2008
        %v2105 = vcvt.s32.f32 %v2009
        %v2106 = vcvt.s32.f32 %v2010
        %v2107 = vcvt.s32.f32 %v2011
        %v2108 = vcvt.s32.f32 %v2012
        %v2109 = vcvt.s32.f32 %v2013
        %v2110 = vcvt.s32.f32 %v2014
        %v2111 = vcvt.s32.f32 %v2015
        %v2112 = vcvt.s32.f32 %v2016
        %v2113 = vcvt.s32.f32 %v2017
        %v2114 = vcvt.s32.f32 %v2018
        %v2115 = vcvt.s32.f32 %v2019
        %v2116 = vcvt.s32.f32 %v2020
        %v2117 = vcvt.s32.f32 %v2021
        %v2118 = vcvt.s32.f32 %v2022
        %v2119 = vcvt.s32.f32 %v2023
        %v2120 = vcvt.s32.f32 %v2024
        %v2121 = vcvt.s32.f32 %v2025
        %v2122 = vcvt.s32.f32 %v2026
        %v2123 = vcvt.s32.f32 %v2027
        %v2124 = vcvt.s32.f32 %v2028
        %v2125 = vcvt.s32.f32 %v2029
        %v2126 = vcvt.s32.f32 %v2030
        %v2127 = vcvt.s32.f32 %v2031
        %v2128 = vcvt.s32.f32 %v2032
        %v2129 = vcvt.s32.f32 %v2033
        %v2130 = vcvt.s32.f32 %v2034
        %v2131 = vcvt.s32.f32 %v2035
        %v2132 = vcvt.s32.f32 %v2036
        %v2133 = vcvt.s32.f32 %v2037
        %v2134 = vcvt.s32.f32 %v2038
        %v2135 = vcvt.s32.f32 %v2039
        %v2136 = vcvt.s32.f32 %v2040
        %v2137 = vcvt.s32.f32 %v2041
        %v2138 = vcvt.s32.f32 %v2042
        %v2139 = vcvt.s32.f32 %v2043
        %v2140 = vcvt.s32.f32 %v2044
        %v2141 = vcvt.s32.f32 %v2045
        %v2142 = vcvt.s32.f32 %v2046
        %v2143 = vcvt.s32.f32 %v2047
        %v2144 = vld [vmem:[%s221] sm:$0xf]
        %v2145 = vld [vmem:[%s221 + $0x4] sm:$0xf]
        %v2146 = vld [vmem:[%s221 + $0x8] sm:$0xf]
        %v2147 = vld [vmem:[%s221 + $0xc] sm:$0xf]
        %v2148 = vld [vmem:[%s221 + $0x10] sm:$0xf]
        %v2149 = vld [vmem:[%s221 + $0x14] sm:$0xf]
        %v2150 = vld [vmem:[%s221 + $0x18] sm:$0xf]
        %v2151 = vld [vmem:[%s221 + $0x1c] sm:$0xf]
        %v2152 = vld [vmem:[%s221 + $0x20] sm:$0xf]
        %v2153 = vld [vmem:[%s221 + $0x24] sm:$0xf]
        %v2154 = vld [vmem:[%s221 + $0x28] sm:$0xf]
        %v2155 = vld [vmem:[%s221 + $0x2c] sm:$0xf]
        %v2156 = vld [vmem:[%s221 + $0x30] sm:$0xf]
        %v2157 = vld [vmem:[%s221 + $0x34] sm:$0xf]
        %v2158 = vld [vmem:[%s221 + $0x38] sm:$0xf]
        %v2159 = vld [vmem:[%s221 + $0x3c] sm:$0xf]
        %v2160 = vld [vmem:[%s221 + $0x40] sm:$0xf]
        %v2161 = vld [vmem:[%s221 + $0x44] sm:$0xf]
        %v2162 = vld [vmem:[%s221 + $0x48] sm:$0xf]
        %v2163 = vld [vmem:[%s221 + $0x4c] sm:$0xf]
        %v2164 = vld [vmem:[%s221 + $0x50] sm:$0xf]
        %v2165 = vld [vmem:[%s221 + $0x54] sm:$0xf]
        %v2166 = vld [vmem:[%s221 + $0x58] sm:$0xf]
        %v2167 = vld [vmem:[%s221 + $0x5c] sm:$0xf]
        %v2168 = vld [vmem:[%s221 + $0x60] sm:$0xf]
        %v2169 = vld [vmem:[%s221 + $0x64] sm:$0xf]
        %v2170 = vld [vmem:[%s221 + $0x68] sm:$0xf]
        %v2171 = vld [vmem:[%s221 + $0x6c] sm:$0xf]
        %v2172 = vld [vmem:[%s221 + $0x70] sm:$0xf]
        %v2173 = vld [vmem:[%s221 + $0x74] sm:$0xf]
        %v2174 = vld [vmem:[%s221 + $0x78] sm:$0xf]
        %v2175 = vld [vmem:[%s221 + $0x7c] sm:$0xf]
        %v2176 = vld [vmem:[%s221 + $0x80] sm:$0xf]
        %v2177 = vld [vmem:[%s221 + $0x84] sm:$0xf]
        %v2178 = vld [vmem:[%s221 + $0x88] sm:$0xf]
        %v2179 = vld [vmem:[%s221 + $0x8c] sm:$0xf]
        %v2180 = vld [vmem:[%s221 + $0x90] sm:$0xf]
        %v2181 = vld [vmem:[%s221 + $0x94] sm:$0xf]
        %v2182 = vld [vmem:[%s221 + $0x98] sm:$0xf]
        %v2183 = vld [vmem:[%s221 + $0x9c] sm:$0xf]
        %v2184 = vld [vmem:[%s221 + $0xa0] sm:$0xf]
        %v2185 = vld [vmem:[%s221 + $0xa4] sm:$0xf]
        %v2186 = vld [vmem:[%s221 + $0xa8] sm:$0xf]
        %v2187 = vld [vmem:[%s221 + $0xac] sm:$0xf]
        %v2188 = vld [vmem:[%s221 + $0xb0] sm:$0xf]
        %v2189 = vld [vmem:[%s221 + $0xb4] sm:$0xf]
        %v2190 = vld [vmem:[%s221 + $0xb8] sm:$0xf]
        %v2191 = vld [vmem:[%s221 + $0xbc] sm:$0xf]
        %v2192 = vld [vmem:[%s221 + $0xc0] sm:$0xf]
        %v2193 = vld [vmem:[%s221 + $0xc4] sm:$0xf]
        %v2194 = vld [vmem:[%s221 + $0xc8] sm:$0xf]
        %v2195 = vld [vmem:[%s221 + $0xcc] sm:$0xf]
        %v2196 = vld [vmem:[%s221 + $0xd0] sm:$0xf]
        %v2197 = vld [vmem:[%s221 + $0xd4] sm:$0xf]
        %v2198 = vld [vmem:[%s221 + $0xd8] sm:$0xf]
        %v2199 = vld [vmem:[%s221 + $0xdc] sm:$0xf]
        %v2200 = vld [vmem:[%s221 + $0xe0] sm:$0xf]
        %v2201 = vld [vmem:[%s221 + $0xe4] sm:$0xf]
        %v2202 = vld [vmem:[%s221 + $0xe8] sm:$0xf]
        %v2203 = vld [vmem:[%s221 + $0xec] sm:$0xf]
        %v2204 = vld [vmem:[%s221 + $0xf0] sm:$0xf]
        %v2205 = vld [vmem:[%s221 + $0xf4] sm:$0xf]
        %v2206 = vld [vmem:[%s221 + $0xf8] sm:$0xf]
        %v2207 = vld [vmem:[%s221 + $0xfc] sm:$0xf]
        %v2208 = vld [vmem:[%s221 + $0x100] sm:$0xf]
        %v2209 = vld [vmem:[%s221 + $0x104] sm:$0xf]
        %v2210 = vld [vmem:[%s221 + $0x108] sm:$0xf]
        %v2211 = vld [vmem:[%s221 + $0x10c] sm:$0xf]
        %v2212 = vld [vmem:[%s221 + $0x110] sm:$0xf]
        %v2213 = vld [vmem:[%s221 + $0x114] sm:$0xf]
        %v2214 = vld [vmem:[%s221 + $0x118] sm:$0xf]
        %v2215 = vld [vmem:[%s221 + $0x11c] sm:$0xf]
        %v2216 = vld [vmem:[%s221 + $0x120] sm:$0xf]
        %v2217 = vld [vmem:[%s221 + $0x124] sm:$0xf]
        %v2218 = vld [vmem:[%s221 + $0x128] sm:$0xf]
        %v2219 = vld [vmem:[%s221 + $0x12c] sm:$0xf]
        %v2220 = vld [vmem:[%s221 + $0x130] sm:$0xf]
        %v2221 = vld [vmem:[%s221 + $0x134] sm:$0xf]
        %v2222 = vld [vmem:[%s221 + $0x138] sm:$0xf]
        %v2223 = vld [vmem:[%s221 + $0x13c] sm:$0xf]
        %v2224 = vld [vmem:[%s221 + $0x140] sm:$0xf]
        %v2225 = vld [vmem:[%s221 + $0x144] sm:$0xf]
        %v2226 = vld [vmem:[%s221 + $0x148] sm:$0xf]
        %v2227 = vld [vmem:[%s221 + $0x14c] sm:$0xf]
        %v2228 = vld [vmem:[%s221 + $0x150] sm:$0xf]
        %v2229 = vld [vmem:[%s221 + $0x154] sm:$0xf]
        %v2230 = vld [vmem:[%s221 + $0x158] sm:$0xf]
        %v2231 = vld [vmem:[%s221 + $0x15c] sm:$0xf]
        %v2232 = vld [vmem:[%s221 + $0x160] sm:$0xf]
        %v2233 = vld [vmem:[%s221 + $0x164] sm:$0xf]
        %v2234 = vld [vmem:[%s221 + $0x168] sm:$0xf]
        %v2235 = vld [vmem:[%s221 + $0x16c] sm:$0xf]
        %v2236 = vld [vmem:[%s221 + $0x170] sm:$0xf]
        %v2237 = vld [vmem:[%s221 + $0x174] sm:$0xf]
        %v2238 = vld [vmem:[%s221 + $0x178] sm:$0xf]
        %v2239 = vld [vmem:[%s221 + $0x17c] sm:$0xf]
        %v2240 = vld [vmem:[%s1] sm:$0xf]
        %v2241 = vld [vmem:[%s1 + $0x4] sm:$0xf]
        %v2242 = vld [vmem:[%s1 + $0x8] sm:$0xf]
        %v2243 = vld [vmem:[%s1 + $0xc] sm:$0x3]
        %v2244 = vld [vmem:[%s2] sm:$0x1]
        %v2246 = vlaneseq
        %v2247 = vshrl.u32 %v2246, 7
        %v2248 = vsub.s32 0, %v2247
        %v2249 = vrot.slane %v2244, %v2248
        %v2347 = vunpack.c.l.b16 %v2144
        %v2348 = vunpack.c.l.b16 %v2145
        %v2349 = vunpack.c.l.b16 %v2146
        %v2350 = vunpack.c.l.b16 %v2147
        %v2351 = vunpack.c.l.b16 %v2148
        %v2352 = vunpack.c.l.b16 %v2149
        %v2353 = vunpack.c.l.b16 %v2150
        %v2354 = vunpack.c.l.b16 %v2151
        %v2355 = vunpack.c.l.b16 %v2152
        %v2356 = vunpack.c.l.b16 %v2153
        %v2357 = vunpack.c.l.b16 %v2154
        %v2358 = vunpack.c.l.b16 %v2155
        %v2359 = vunpack.c.l.b16 %v2156
        %v2360 = vunpack.c.l.b16 %v2157
        %v2361 = vunpack.c.l.b16 %v2158
        %v2362 = vunpack.c.l.b16 %v2159
        %v2363 = vunpack.c.l.b16 %v2160
        %v2364 = vunpack.c.l.b16 %v2161
        %v2365 = vunpack.c.l.b16 %v2162
        %v2366 = vunpack.c.l.b16 %v2163
        %v2367 = vunpack.c.l.b16 %v2164
        %v2368 = vunpack.c.l.b16 %v2165
        %v2369 = vunpack.c.l.b16 %v2166
        %v2370 = vunpack.c.l.b16 %v2167
        %v2371 = vunpack.c.l.b16 %v2168
        %v2372 = vunpack.c.l.b16 %v2169
        %v2373 = vunpack.c.l.b16 %v2170
        %v2374 = vunpack.c.l.b16 %v2171
        %v2375 = vunpack.c.l.b16 %v2172
        %v2376 = vunpack.c.l.b16 %v2173
        %v2377 = vunpack.c.l.b16 %v2174
        %v2378 = vunpack.c.l.b16 %v2175
        %v2379 = vunpack.c.l.b16 %v2176
        %v2380 = vunpack.c.l.b16 %v2177
        %v2381 = vunpack.c.l.b16 %v2178
        %v2382 = vunpack.c.l.b16 %v2179
        %v2383 = vunpack.c.l.b16 %v2180
        %v2384 = vunpack.c.l.b16 %v2181
        %v2385 = vunpack.c.l.b16 %v2182
        %v2386 = vunpack.c.l.b16 %v2183
        %v2387 = vunpack.c.l.b16 %v2184
        %v2388 = vunpack.c.l.b16 %v2185
        %v2389 = vunpack.c.l.b16 %v2186
        %v2390 = vunpack.c.l.b16 %v2187
        %v2391 = vunpack.c.l.b16 %v2188
        %v2392 = vunpack.c.l.b16 %v2189
        %v2393 = vunpack.c.l.b16 %v2190
        %v2394 = vunpack.c.l.b16 %v2191
        %v2395 = vunpack.c.l.b16 %v2192
        %v2396 = vunpack.c.l.b16 %v2193
        %v2397 = vunpack.c.l.b16 %v2194
        %v2398 = vunpack.c.l.b16 %v2195
        %v2399 = vunpack.c.l.b16 %v2196
        %v2400 = vunpack.c.l.b16 %v2197
        %v2401 = vunpack.c.l.b16 %v2198
        %v2402 = vunpack.c.l.b16 %v2199
        %v2403 = vunpack.c.l.b16 %v2200
        %v2404 = vunpack.c.l.b16 %v2201
        %v2405 = vunpack.c.l.b16 %v2202
        %v2406 = vunpack.c.l.b16 %v2203
        %v2407 = vunpack.c.l.b16 %v2204
        %v2408 = vunpack.c.l.b16 %v2205
        %v2409 = vunpack.c.l.b16 %v2206
        %v2410 = vunpack.c.l.b16 %v2207
        %v2411 = vunpack.c.l.b16 %v2208
        %v2412 = vunpack.c.l.b16 %v2209
        %v2413 = vunpack.c.l.b16 %v2210
        %v2414 = vunpack.c.l.b16 %v2211
        %v2415 = vunpack.c.l.b16 %v2212
        %v2416 = vunpack.c.l.b16 %v2213
        %v2417 = vunpack.c.l.b16 %v2214
        %v2418 = vunpack.c.l.b16 %v2215
        %v2419 = vunpack.c.l.b16 %v2216
        %v2420 = vunpack.c.l.b16 %v2217
        %v2421 = vunpack.c.l.b16 %v2218
        %v2422 = vunpack.c.l.b16 %v2219
        %v2423 = vunpack.c.l.b16 %v2220
        %v2424 = vunpack.c.l.b16 %v2221
        %v2425 = vunpack.c.l.b16 %v2222
        %v2426 = vunpack.c.l.b16 %v2223
        %v2427 = vunpack.c.l.b16 %v2224
        %v2428 = vunpack.c.l.b16 %v2225
        %v2429 = vunpack.c.l.b16 %v2226
        %v2430 = vunpack.c.l.b16 %v2227
        %v2431 = vunpack.c.l.b16 %v2228
        %v2432 = vunpack.c.l.b16 %v2229
        %v2433 = vunpack.c.l.b16 %v2230
        %v2434 = vunpack.c.l.b16 %v2231
        %v2435 = vunpack.c.l.b16 %v2232
        %v2436 = vunpack.c.l.b16 %v2233
        %v2437 = vunpack.c.l.b16 %v2234
        %v2438 = vunpack.c.l.b16 %v2235
        %v2439 = vunpack.c.l.b16 %v2236
        %v2440 = vunpack.c.l.b16 %v2237
        %v2441 = vunpack.c.l.b16 %v2238
        %v2442 = vunpack.c.l.b16 %v2239
        %v2443 = vpack.c.b16 %v2348, %v2347
        %v2444 = vpack.c.b16 %v2350, %v2349
        %v2445 = vpack.c.b16 %v2352, %v2351
        %v2446 = vpack.c.b16 %v2354, %v2353
        %v2447 = vpack.c.b16 %v2356, %v2355
        %v2448 = vpack.c.b16 %v2358, %v2357
        %v2449 = vpack.c.b16 %v2360, %v2359
        %v2450 = vpack.c.b16 %v2362, %v2361
        %v2451 = vpack.c.b16 %v2364, %v2363
        %v2452 = vpack.c.b16 %v2366, %v2365
        %v2453 = vpack.c.b16 %v2368, %v2367
        %v2454 = vpack.c.b16 %v2370, %v2369
        %v2455 = vpack.c.b16 %v2372, %v2371
        %v2456 = vpack.c.b16 %v2374, %v2373
        %v2457 = vpack.c.b16 %v2376, %v2375
        %v2458 = vpack.c.b16 %v2378, %v2377
        %v2459 = vpack.c.b16 %v2380, %v2379
        %v2460 = vpack.c.b16 %v2382, %v2381
        %v2461 = vpack.c.b16 %v2384, %v2383
        %v2462 = vpack.c.b16 %v2386, %v2385
        %v2463 = vpack.c.b16 %v2388, %v2387
        %v2464 = vpack.c.b16 %v2390, %v2389
        %v2465 = vpack.c.b16 %v2392, %v2391
        %v2466 = vpack.c.b16 %v2394, %v2393
        %v2467 = vpack.c.b16 %v2396, %v2395
        %v2468 = vpack.c.b16 %v2398, %v2397
        %v2469 = vpack.c.b16 %v2400, %v2399
        %v2470 = vpack.c.b16 %v2402, %v2401
        %v2471 = vpack.c.b16 %v2404, %v2403
        %v2472 = vpack.c.b16 %v2406, %v2405
        %v2473 = vpack.c.b16 %v2408, %v2407
        %v2474 = vpack.c.b16 %v2410, %v2409
        %v2475 = vpack.c.b16 %v2412, %v2411
        %v2476 = vpack.c.b16 %v2414, %v2413
        %v2477 = vpack.c.b16 %v2416, %v2415
        %v2478 = vpack.c.b16 %v2418, %v2417
        %v2479 = vpack.c.b16 %v2420, %v2419
        %v2480 = vpack.c.b16 %v2422, %v2421
        %v2481 = vpack.c.b16 %v2424, %v2423
        %v2482 = vpack.c.b16 %v2426, %v2425
        %v2483 = vpack.c.b16 %v2428, %v2427
        %v2484 = vpack.c.b16 %v2430, %v2429
        %v2485 = vpack.c.b16 %v2432, %v2431
        %v2486 = vpack.c.b16 %v2434, %v2433
        %v2487 = vpack.c.b16 %v2436, %v2435
        %v2488 = vpack.c.b16 %v2438, %v2437
        %v2489 = vpack.c.b16 %v2440, %v2439
        %v2490 = vpack.c.b16 %v2442, %v2441
        %v2495 = vunpack.c.l.b16 %v2240
        %v2496 = vunpack.c.l.b16 %v2241
        %v2497 = vunpack.c.l.b16 %v2242
        %v2498 = vunpack.c.l.b16 %v2243
        %v2499 = vpack.c.b16 %v2496, %v2495
        %v2500 = vpack.c.b16 %v2498, %v2497
        %vm2502 = vcmask 220160
        %v2504 = vsel %vm2502, %v2443, 0
        %v2507 = vsel %vm2502, %v2444, 0
        %v2510 = vsel %vm2502, %v2445, 0
        %v2513 = vsel %vm2502, %v2446, 0
        %v2516 = vsel %vm2502, %v2447, 0
        %v2519 = vsel %vm2502, %v2448, 0
        %v2522 = vsel %vm2502, %v2449, 0
        %v2525 = vsel %vm2502, %v2450, 0
        %v2528 = vsel %vm2502, %v2451, 0
        %v2531 = vsel %vm2502, %v2452, 0
        %v2534 = vsel %vm2502, %v2453, 0
        %v2537 = vsel %vm2502, %v2454, 0
        %v2540 = vsel %vm2502, %v2455, 0
        %v2543 = vsel %vm2502, %v2456, 0
        %v2546 = vsel %vm2502, %v2457, 0
        %v2549 = vsel %vm2502, %v2458, 0
        %v2552 = vsel %vm2502, %v2459, 0
        %v2555 = vsel %vm2502, %v2460, 0
        %v2558 = vsel %vm2502, %v2461, 0
        %v2561 = vsel %vm2502, %v2462, 0
        %v2564 = vsel %vm2502, %v2463, 0
        %v2567 = vsel %vm2502, %v2464, 0
        %v2570 = vsel %vm2502, %v2465, 0
        %v2573 = vsel %vm2502, %v2466, 0
        %v2576 = vsel %vm2502, %v2467, 0
        %v2579 = vsel %vm2502, %v2468, 0
        %v2582 = vsel %vm2502, %v2469, 0
        %v2585 = vsel %vm2502, %v2470, 0
        %v2588 = vsel %vm2502, %v2471, 0
        %v2591 = vsel %vm2502, %v2472, 0
        %v2594 = vsel %vm2502, %v2473, 0
        %v2597 = vsel %vm2502, %v2474, 0
        %v2600 = vsel %vm2502, %v2475, 0
        %v2603 = vsel %vm2502, %v2476, 0
        %v2606 = vsel %vm2502, %v2477, 0
        %v2609 = vsel %vm2502, %v2478, 0
        %v2612 = vsel %vm2502, %v2479, 0
        %v2615 = vsel %vm2502, %v2480, 0
        %v2618 = vsel %vm2502, %v2481, 0
        %v2621 = vsel %vm2502, %v2482, 0
        %v2624 = vsel %vm2502, %v2483, 0
        %v2627 = vsel %vm2502, %v2484, 0
        %v2630 = vsel %vm2502, %v2485, 0
        %v2633 = vsel %vm2502, %v2486, 0
        %v2636 = vsel %vm2502, %v2487, 0
        %v2639 = vsel %vm2502, %v2488, 0
        %v2642 = vsel %vm2502, %v2489, 0
        %v2645 = vsel %vm2502, %v2490, 0
        %vm2647 = vcmask 1044480
        %vm2648 = vcmask 1045504
        %v2649 = vsel %vm2647, 4294967295, 65535
        %v2650 = vsel %vm2648, %v2649, 0
        %v2652 = vand.u32 %v2500, %v2650
        %2654 = vmatprep.subr.bf16.mxu0 0
        %2655 = vmatpush1.bf16.msra.mxu0 %v2499
        %2656 = vmatprep.subr.bf16.mxu0 0
        %2657 = vmatpush1.bf16.msra.mxu0 %v2652
        %2658 = vmatprep.subr.bf16.mxu0 0
        %2659 = vmatpush1.bf16.msra.mxu0 0
        %2660 = vmatprep.subr.bf16.mxu0 0
        %2661 = vmatpush1.bf16.msra.mxu0 0
        %2662 = vmatprep.subr.bf16.mxu0 0
        %2663 = vmatpush1.bf16.msra.mxu0 0
        %2664 = vmatprep.subr.bf16.mxu0 0
        %2665 = vmatpush1.bf16.msra.mxu0 0
        %2666 = vmatprep.subr.bf16.mxu0 0
        %2667 = vmatpush1.bf16.msra.mxu0 0
        %2668 = vmatprep.subr.bf16.mxu0 0
        %2669 = vmatpush1.bf16.msra.mxu0 0
        %2670 = vmatprep.subr.bf16.mxu0 0
        %2671 = vmatpush1.bf16.msra.mxu0 0
        %2672 = vmatprep.subr.bf16.mxu0 0
        %2673 = vmatpush1.bf16.msra.mxu0 0
        %2674 = vmatprep.subr.bf16.mxu0 0
        %2675 = vmatpush1.bf16.msra.mxu0 0
        %2676 = vmatprep.subr.bf16.mxu0 0
        %2677 = vmatpush1.bf16.msra.mxu0 0
        %2678 = vmatprep.subr.bf16.mxu0 0
        %2679 = vmatpush1.bf16.msra.mxu0 0
        %2680 = vmatprep.subr.bf16.mxu0 0
        %2681 = vmatpush1.bf16.msra.mxu0 0
        %2682 = vmatprep.subr.bf16.mxu0 0
        %2683 = vmatpush1.bf16.msra.mxu0 0
        %2684 = vmatprep.subr.bf16.mxu0 0
        %2685 = vmatpush1.bf16.msra.mxu0 0
        %2686 = vmatprep.mubr.bf16.mxu0 0
        %2687 = vmatmul.mubr.bf16.gmra.mrb[0].mxu0 %v2504
        %v2688 = vpop.f32.mrb[0].mxu0
        %v2689 = vadd.f32 %v2249, %v2688
        %v2690 = vpop.f32.mrb[0].mxu0
        %v2691 = vpop.f32.mrb[0].mxu0
        %v2692 = vadd.f32 %v2249, %v2691
        %v2693 = vpop.f32.mrb[0].mxu0
        %2694 = vmatprep.mubr.bf16.mxu0 0
        %2695 = vmatmul.mubr.bf16.gmra.mrb[0].mxu0 %v2507
        %v2696 = vpop.f32.mrb[0].mxu0
        %v2697 = vadd.f32 %v2249, %v2696
        %v2698 = vpop.f32.mrb[0].mxu0
        %v2699 = vpop.f32.mrb[0].mxu0
        %v2700 = vadd.f32 %v2249, %v2699
        %v2701 = vpop.f32.mrb[0].mxu0
        %2702 = vmatprep.mubr.bf16.mxu0 0
        %2703 = vmatmul.mubr.bf16.gmra.mrb[0].mxu0 %v2510
        %v2704 = vpop.f32.mrb[0].mxu0
        %v2705 = vadd.f32 %v2249, %v2704
        %v2706 = vpop.f32.mrb[0].mxu0
        %v2707 = vpop.f32.mrb[0].mxu0
        %v2708 = vadd.f32 %v2249, %v2707
        %v2709 = vpop.f32.mrb[0].mxu0
        %2710 = vmatprep.mubr.bf16.mxu0 0
        %2711 = vmatmul.mubr.bf16.gmra.mrb[0].mxu0 %v2513
        %v2712 = vpop.f32.mrb[0].mxu0
        %v2713 = vadd.f32 %v2249, %v2712
        %v2714 = vpop.f32.mrb[0].mxu0
        %v2715 = vpop.f32.mrb[0].mxu0
        %v2716 = vadd.f32 %v2249, %v2715
        %v2717 = vpop.f32.mrb[0].mxu0
        %2718 = vmatprep.mubr.bf16.mxu0 0
        %2719 = vmatmul.mubr.bf16.gmra.mrb[0].mxu0 %v2516
        %v2720 = vpop.f32.mrb[0].mxu0
        %v2721 = vadd.f32 %v2249, %v2720
        %v2722 = vpop.f32.mrb[0].mxu0
        %v2723 = vpop.f32.mrb[0].mxu0
        %v2724 = vadd.f32 %v2249, %v2723
        %v2725 = vpop.f32.mrb[0].mxu0
        %2726 = vmatprep.mubr.bf16.mxu0 0
        %2727 = vmatmul.mubr.bf16.gmra.mrb[0].mxu0 %v2519
        %v2728 = vpop.f32.mrb[0].mxu0
        %v2729 = vadd.f32 %v2249, %v2728
        %v2730 = vpop.f32.mrb[0].mxu0
        %v2731 = vpop.f32.mrb[0].mxu0
        %v2732 = vadd.f32 %v2249, %v2731
        %v2733 = vpop.f32.mrb[0].mxu0
        %2734 = vmatprep.mubr.bf16.mxu0 0
        %2735 = vmatmul.mubr.bf16.gmra.mrb[0].mxu0 %v2522
        %v2736 = vpop.f32.mrb[0].mxu0
        %v2737 = vadd.f32 %v2249, %v2736
        %v2738 = vpop.f32.mrb[0].mxu0
        %v2739 = vpop.f32.mrb[0].mxu0
        %v2740 = vadd.f32 %v2249, %v2739
        %v2741 = vpop.f32.mrb[0].mxu0
        %2742 = vmatprep.mubr.bf16.mxu0 0
        %2743 = vmatmul.mubr.bf16.gmra.mrb[0].mxu0 %v2525
        %v2744 = vpop.f32.mrb[0].mxu0
        %v2745 = vadd.f32 %v2249, %v2744
        %v2746 = vpop.f32.mrb[0].mxu0
        %v2747 = vpop.f32.mrb[0].mxu0
        %v2748 = vadd.f32 %v2249, %v2747
        %v2749 = vpop.f32.mrb[0].mxu0
        %2750 = vmatprep.mubr.bf16.mxu0 0
        %2751 = vmatmul.mubr.bf16.gmra.mrb[0].mxu0 %v2528
        %v2752 = vpop.f32.mrb[0].mxu0
        %v2753 = vadd.f32 %v2249, %v2752
        %v2754 = vpop.f32.mrb[0].mxu0
        %v2755 = vpop.f32.mrb[0].mxu0
        %v2756 = vadd.f32 %v2249, %v2755
        %v2757 = vpop.f32.mrb[0].mxu0
        %2758 = vmatprep.mubr.bf16.mxu0 0
        %2759 = vmatmul.mubr.bf16.gmra.mrb[0].mxu0 %v2531
        %v2760 = vpop.f32.mrb[0].mxu0
        %v2761 = vadd.f32 %v2249, %v2760
        %v2762 = vpop.f32.mrb[0].mxu0
        %v2763 = vpop.f32.mrb[0].mxu0
        %v2764 = vadd.f32 %v2249, %v2763
        %v2765 = vpop.f32.mrb[0].mxu0
        %2766 = vmatprep.mubr.bf16.mxu0 0
        %2767 = vmatmul.mubr.bf16.gmra.mrb[0].mxu0 %v2534
        %v2768 = vpop.f32.mrb[0].mxu0
        %v2769 = vadd.f32 %v2249, %v2768
        %v2770 = vpop.f32.mrb[0].mxu0
        %v2771 = vpop.f32.mrb[0].mxu0
        %v2772 = vadd.f32 %v2249, %v2771
        %v2773 = vpop.f32.mrb[0].mxu0
        %2774 = vmatprep.mubr.bf16.mxu0 0
        %2775 = vmatmul.mubr.bf16.gmra.mrb[0].mxu0 %v2537
        %v2776 = vpop.f32.mrb[0].mxu0
        %v2777 = vadd.f32 %v2249, %v2776
        %v2778 = vpop.f32.mrb[0].mxu0
        %v2779 = vpop.f32.mrb[0].mxu0
        %v2780 = vadd.f32 %v2249, %v2779
        %v2781 = vpop.f32.mrb[0].mxu0
        %2782 = vmatprep.mubr.bf16.mxu0 0
        %2783 = vmatmul.mubr.bf16.gmra.mrb[0].mxu0 %v2540
        %v2784 = vpop.f32.mrb[0].mxu0
        %v2785 = vadd.f32 %v2249, %v2784
        %v2786 = vpop.f32.mrb[0].mxu0
        %v2787 = vpop.f32.mrb[0].mxu0
        %v2788 = vadd.f32 %v2249, %v2787
        %v2789 = vpop.f32.mrb[0].mxu0
        %2790 = vmatprep.mubr.bf16.mxu0 0
        %2791 = vmatmul.mubr.bf16.gmra.mrb[0].mxu0 %v2543
        %v2792 = vpop.f32.mrb[0].mxu0
        %v2793 = vadd.f32 %v2249, %v2792
        %v2794 = vpop.f32.mrb[0].mxu0
        %v2795 = vpop.f32.mrb[0].mxu0
        %v2796 = vadd.f32 %v2249, %v2795
        %v2797 = vpop.f32.mrb[0].mxu0
        %2798 = vmatprep.mubr.bf16.mxu0 0
        %2799 = vmatmul.mubr.bf16.gmra.mrb[0].mxu0 %v2546
        %v2800 = vpop.f32.mrb[0].mxu0
        %v2801 = vadd.f32 %v2249, %v2800
        %v2802 = vpop.f32.mrb[0].mxu0
        %v2803 = vpop.f32.mrb[0].mxu0
        %v2804 = vadd.f32 %v2249, %v2803
        %v2805 = vpop.f32.mrb[0].mxu0
        %2806 = vmatprep.mubr.bf16.mxu0 0
        %2807 = vmatmul.mubr.bf16.gmra.mrb[0].mxu0 %v2549
        %v2808 = vpop.f32.mrb[0].mxu0
        %v2809 = vadd.f32 %v2249, %v2808
        %v2810 = vpop.f32.mrb[0].mxu0
        %v2811 = vpop.f32.mrb[0].mxu0
        %v2812 = vadd.f32 %v2249, %v2811
        %v2813 = vpop.f32.mrb[0].mxu0
        %2814 = vmatprep.mubr.bf16.mxu0 0
        %2815 = vmatmul.mubr.bf16.gmra.mrb[0].mxu0 %v2552
        %v2816 = vpop.f32.mrb[0].mxu0
        %v2817 = vadd.f32 %v2249, %v2816
        %v2818 = vpop.f32.mrb[0].mxu0
        %v2819 = vpop.f32.mrb[0].mxu0
        %v2820 = vadd.f32 %v2249, %v2819
        %v2821 = vpop.f32.mrb[0].mxu0
        %2822 = vmatprep.mubr.bf16.mxu0 0
        %2823 = vmatmul.mubr.bf16.gmra.mrb[0].mxu0 %v2555
        %v2824 = vpop.f32.mrb[0].mxu0
        %v2825 = vadd.f32 %v2249, %v2824
        %v2826 = vpop.f32.mrb[0].mxu0
        %v2827 = vpop.f32.mrb[0].mxu0
        %v2828 = vadd.f32 %v2249, %v2827
        %v2829 = vpop.f32.mrb[0].mxu0
        %2830 = vmatprep.mubr.bf16.mxu0 0
        %2831 = vmatmul.mubr.bf16.gmra.mrb[0].mxu0 %v2558
        %v2832 = vpop.f32.mrb[0].mxu0
        %v2833 = vadd.f32 %v2249, %v2832
        %v2834 = vpop.f32.mrb[0].mxu0
        %v2835 = vpop.f32.mrb[0].mxu0
        %v2836 = vadd.f32 %v2249, %v2835
        %v2837 = vpop.f32.mrb[0].mxu0
        %2838 = vmatprep.mubr.bf16.mxu0 0
        %2839 = vmatmul.mubr.bf16.gmra.mrb[0].mxu0 %v2561
        %v2840 = vpop.f32.mrb[0].mxu0
        %v2841 = vadd.f32 %v2249, %v2840
        %v2842 = vpop.f32.mrb[0].mxu0
        %v2843 = vpop.f32.mrb[0].mxu0
        %v2844 = vadd.f32 %v2249, %v2843
        %v2845 = vpop.f32.mrb[0].mxu0
        %2846 = vmatprep.mubr.bf16.mxu0 0
        %2847 = vmatmul.mubr.bf16.gmra.mrb[0].mxu0 %v2564
        %v2848 = vpop.f32.mrb[0].mxu0
        %v2849 = vadd.f32 %v2249, %v2848
        %v2850 = vpop.f32.mrb[0].mxu0
        %v2851 = vpop.f32.mrb[0].mxu0
        %v2852 = vadd.f32 %v2249, %v2851
        %v2853 = vpop.f32.mrb[0].mxu0
        %2854 = vmatprep.mubr.bf16.mxu0 0
        %2855 = vmatmul.mubr.bf16.gmra.mrb[0].mxu0 %v2567
        %v2856 = vpop.f32.mrb[0].mxu0
        %v2857 = vadd.f32 %v2249, %v2856
        %v2858 = vpop.f32.mrb[0].mxu0
        %v2859 = vpop.f32.mrb[0].mxu0
        %v2860 = vadd.f32 %v2249, %v2859
        %v2861 = vpop.f32.mrb[0].mxu0
        %2862 = vmatprep.mubr.bf16.mxu0 0
        %2863 = vmatmul.mubr.bf16.gmra.mrb[0].mxu0 %v2570
        %v2864 = vpop.f32.mrb[0].mxu0
        %v2865 = vadd.f32 %v2249, %v2864
        %v2866 = vpop.f32.mrb[0].mxu0
        %v2867 = vpop.f32.mrb[0].mxu0
        %v2868 = vadd.f32 %v2249, %v2867
        %v2869 = vpop.f32.mrb[0].mxu0
        %2870 = vmatprep.mubr.bf16.mxu0 0
        %2871 = vmatmul.mubr.bf16.gmra.mrb[0].mxu0 %v2573
        %v2872 = vpop.f32.mrb[0].mxu0
        %v2873 = vadd.f32 %v2249, %v2872
        %v2874 = vpop.f32.mrb[0].mxu0
        %v2875 = vpop.f32.mrb[0].mxu0
        %v2876 = vadd.f32 %v2249, %v2875
        %v2877 = vpop.f32.mrb[0].mxu0
        %2878 = vmatprep.mubr.bf16.mxu0 0
        %2879 = vmatmul.mubr.bf16.gmra.mrb[0].mxu0 %v2576
        %v2880 = vpop.f32.mrb[0].mxu0
        %v2881 = vadd.f32 %v2249, %v2880
        %v2882 = vpop.f32.mrb[0].mxu0
        %v2883 = vpop.f32.mrb[0].mxu0
        %v2884 = vadd.f32 %v2249, %v2883
        %v2885 = vpop.f32.mrb[0].mxu0
        %2886 = vmatprep.mubr.bf16.mxu0 0
        %2887 = vmatmul.mubr.bf16.gmra.mrb[0].mxu0 %v2579
        %v2888 = vpop.f32.mrb[0].mxu0
        %v2889 = vadd.f32 %v2249, %v2888
        %v2890 = vpop.f32.mrb[0].mxu0
        %v2891 = vpop.f32.mrb[0].mxu0
        %v2892 = vadd.f32 %v2249, %v2891
        %v2893 = vpop.f32.mrb[0].mxu0
        %2894 = vmatprep.mubr.bf16.mxu0 0
        %2895 = vmatmul.mubr.bf16.gmra.mrb[0].mxu0 %v2582
        %v2896 = vpop.f32.mrb[0].mxu0
        %v2897 = vadd.f32 %v2249, %v2896
        %v2898 = vpop.f32.mrb[0].mxu0
        %v2899 = vpop.f32.mrb[0].mxu0
        %v2900 = vadd.f32 %v2249, %v2899
        %v2901 = vpop.f32.mrb[0].mxu0
        %2902 = vmatprep.mubr.bf16.mxu0 0
        %2903 = vmatmul.mubr.bf16.gmra.mrb[0].mxu0 %v2585
        %v2904 = vpop.f32.mrb[0].mxu0
        %v2905 = vadd.f32 %v2249, %v2904
        %v2906 = vpop.f32.mrb[0].mxu0
        %v2907 = vpop.f32.mrb[0].mxu0
        %v2908 = vadd.f32 %v2249, %v2907
        %v2909 = vpop.f32.mrb[0].mxu0
        %2910 = vmatprep.mubr.bf16.mxu0 0
        %2911 = vmatmul.mubr.bf16.gmra.mrb[0].mxu0 %v2588
        %v2912 = vpop.f32.mrb[0].mxu0
        %v2913 = vadd.f32 %v2249, %v2912
        %v2914 = vpop.f32.mrb[0].mxu0
        %v2915 = vpop.f32.mrb[0].mxu0
        %v2916 = vadd.f32 %v2249, %v2915
        %v2917 = vpop.f32.mrb[0].mxu0
        %2918 = vmatprep.mubr.bf16.mxu0 0
        %2919 = vmatmul.mubr.bf16.gmra.mrb[0].mxu0 %v2591
        %v2920 = vpop.f32.mrb[0].mxu0
        %v2921 = vadd.f32 %v2249, %v2920
        %v2922 = vpop.f32.mrb[0].mxu0
        %v2923 = vpop.f32.mrb[0].mxu0
        %v2924 = vadd.f32 %v2249, %v2923
        %v2925 = vpop.f32.mrb[0].mxu0
        %2926 = vmatprep.mubr.bf16.mxu0 0
        %2927 = vmatmul.mubr.bf16.gmra.mrb[0].mxu0 %v2594
        %v2928 = vpop.f32.mrb[0].mxu0
        %v2929 = vadd.f32 %v2249, %v2928
        %v2930 = vpop.f32.mrb[0].mxu0
        %v2931 = vpop.f32.mrb[0].mxu0
        %v2932 = vadd.f32 %v2249, %v2931
        %v2933 = vpop.f32.mrb[0].mxu0
        %2934 = vmatprep.mubr.bf16.mxu0 0
        %2935 = vmatmul.mubr.bf16.gmra.mrb[0].mxu0 %v2597
        %v2936 = vpop.f32.mrb[0].mxu0
        %v2937 = vadd.f32 %v2249, %v2936
        %v2938 = vpop.f32.mrb[0].mxu0
        %v2939 = vpop.f32.mrb[0].mxu0
        %v2940 = vadd.f32 %v2249, %v2939
        %v2941 = vpop.f32.mrb[0].mxu0
        %2942 = vmatprep.mubr.bf16.mxu0 0
        %2943 = vmatmul.mubr.bf16.gmra.mrb[0].mxu0 %v2600
        %v2944 = vpop.f32.mrb[0].mxu0
        %v2945 = vadd.f32 %v2249, %v2944
        %v2946 = vpop.f32.mrb[0].mxu0
        %v2947 = vpop.f32.mrb[0].mxu0
        %v2948 = vadd.f32 %v2249, %v2947
        %v2949 = vpop.f32.mrb[0].mxu0
        %2950 = vmatprep.mubr.bf16.mxu0 0
        %2951 = vmatmul.mubr.bf16.gmra.mrb[0].mxu0 %v2603
        %v2952 = vpop.f32.mrb[0].mxu0
        %v2953 = vadd.f32 %v2249, %v2952
        %v2954 = vpop.f32.mrb[0].mxu0
        %v2955 = vpop.f32.mrb[0].mxu0
        %v2956 = vadd.f32 %v2249, %v2955
        %v2957 = vpop.f32.mrb[0].mxu0
        %2958 = vmatprep.mubr.bf16.mxu0 0
        %2959 = vmatmul.mubr.bf16.gmra.mrb[0].mxu0 %v2606
        %v2960 = vpop.f32.mrb[0].mxu0
        %v2961 = vadd.f32 %v2249, %v2960
        %v2962 = vpop.f32.mrb[0].mxu0
        %v2963 = vpop.f32.mrb[0].mxu0
        %v2964 = vadd.f32 %v2249, %v2963
        %v2965 = vpop.f32.mrb[0].mxu0
        %2966 = vmatprep.mubr.bf16.mxu0 0
        %2967 = vmatmul.mubr.bf16.gmra.mrb[0].mxu0 %v2609
        %v2968 = vpop.f32.mrb[0].mxu0
        %v2969 = vadd.f32 %v2249, %v2968
        %v2970 = vpop.f32.mrb[0].mxu0
        %v2971 = vpop.f32.mrb[0].mxu0
        %v2972 = vadd.f32 %v2249, %v2971
        %v2973 = vpop.f32.mrb[0].mxu0
        %2974 = vmatprep.mubr.bf16.mxu0 0
        %2975 = vmatmul.mubr.bf16.gmra.mrb[0].mxu0 %v2612
        %v2976 = vpop.f32.mrb[0].mxu0
        %v2977 = vadd.f32 %v2249, %v2976
        %v2978 = vpop.f32.mrb[0].mxu0
        %v2979 = vpop.f32.mrb[0].mxu0
        %v2980 = vadd.f32 %v2249, %v2979
        %v2981 = vpop.f32.mrb[0].mxu0
        %2982 = vmatprep.mubr.bf16.mxu0 0
        %2983 = vmatmul.mubr.bf16.gmra.mrb[0].mxu0 %v2615
        %v2984 = vpop.f32.mrb[0].mxu0
        %v2985 = vadd.f32 %v2249, %v2984
        %v2986 = vpop.f32.mrb[0].mxu0
        %v2987 = vpop.f32.mrb[0].mxu0
        %v2988 = vadd.f32 %v2249, %v2987
        %v2989 = vpop.f32.mrb[0].mxu0
        %2990 = vmatprep.mubr.bf16.mxu0 0
        %2991 = vmatmul.mubr.bf16.gmra.mrb[0].mxu0 %v2618
        %v2992 = vpop.f32.mrb[0].mxu0
        %v2993 = vadd.f32 %v2249, %v2992
        %v2994 = vpop.f32.mrb[0].mxu0
        %v2995 = vpop.f32.mrb[0].mxu0
        %v2996 = vadd.f32 %v2249, %v2995
        %v2997 = vpop.f32.mrb[0].mxu0
        %2998 = vmatprep.mubr.bf16.mxu0 0
        %2999 = vmatmul.mubr.bf16.gmra.mrb[0].mxu0 %v2621
        %v3000 = vpop.f32.mrb[0].mxu0
        %v3001 = vadd.f32 %v2249, %v3000
        %v3002 = vpop.f32.mrb[0].mxu0
        %v3003 = vpop.f32.mrb[0].mxu0
        %v3004 = vadd.f32 %v2249, %v3003
        %v3005 = vpop.f32.mrb[0].mxu0
        %3006 = vmatprep.mubr.bf16.mxu0 0
        %3007 = vmatmul.mubr.bf16.gmra.mrb[0].mxu0 %v2624
        %v3008 = vpop.f32.mrb[0].mxu0
        %v3009 = vadd.f32 %v2249, %v3008
        %v3010 = vpop.f32.mrb[0].mxu0
        %v3011 = vpop.f32.mrb[0].mxu0
        %v3012 = vadd.f32 %v2249, %v3011
        %v3013 = vpop.f32.mrb[0].mxu0
        %3014 = vmatprep.mubr.bf16.mxu0 0
        %3015 = vmatmul.mubr.bf16.gmra.mrb[0].mxu0 %v2627
        %v3016 = vpop.f32.mrb[0].mxu0
        %v3017 = vadd.f32 %v2249, %v3016
        %v3018 = vpop.f32.mrb[0].mxu0
        %v3019 = vpop.f32.mrb[0].mxu0
        %v3020 = vadd.f32 %v2249, %v3019
        %v3021 = vpop.f32.mrb[0].mxu0
        %3022 = vmatprep.mubr.bf16.mxu0 0
        %3023 = vmatmul.mubr.bf16.gmra.mrb[0].mxu0 %v2630
        %v3024 = vpop.f32.mrb[0].mxu0
        %v3025 = vadd.f32 %v2249, %v3024
        %v3026 = vpop.f32.mrb[0].mxu0
        %v3027 = vpop.f32.mrb[0].mxu0
        %v3028 = vadd.f32 %v2249, %v3027
        %v3029 = vpop.f32.mrb[0].mxu0
        %3030 = vmatprep.mubr.bf16.mxu0 0
        %3031 = vmatmul.mubr.bf16.gmra.mrb[0].mxu0 %v2633
        %v3032 = vpop.f32.mrb[0].mxu0
        %v3033 = vadd.f32 %v2249, %v3032
        %v3034 = vpop.f32.mrb[0].mxu0
        %v3035 = vpop.f32.mrb[0].mxu0
        %v3036 = vadd.f32 %v2249, %v3035
        %v3037 = vpop.f32.mrb[0].mxu0
        %3038 = vmatprep.mubr.bf16.mxu0 0
        %3039 = vmatmul.mubr.bf16.gmra.mrb[0].mxu0 %v2636
        %v3040 = vpop.f32.mrb[0].mxu0
        %v3041 = vadd.f32 %v2249, %v3040
        %v3042 = vpop.f32.mrb[0].mxu0
        %v3043 = vpop.f32.mrb[0].mxu0
        %v3044 = vadd.f32 %v2249, %v3043
        %v3045 = vpop.f32.mrb[0].mxu0
        %3046 = vmatprep.mubr.bf16.mxu0 0
        %3047 = vmatmul.mubr.bf16.gmra.mrb[0].mxu0 %v2639
        %v3048 = vpop.f32.mrb[0].mxu0
        %v3049 = vadd.f32 %v2249, %v3048
        %v3050 = vpop.f32.mrb[0].mxu0
        %v3051 = vpop.f32.mrb[0].mxu0
        %v3052 = vadd.f32 %v2249, %v3051
        %v3053 = vpop.f32.mrb[0].mxu0
        %3054 = vmatprep.mubr.bf16.mxu0 0
        %3055 = vmatmul.mubr.bf16.gmra.mrb[0].mxu0 %v2642
        %v3056 = vpop.f32.mrb[0].mxu0
        %v3057 = vadd.f32 %v2249, %v3056
        %v3058 = vpop.f32.mrb[0].mxu0
        %v3059 = vpop.f32.mrb[0].mxu0
        %v3060 = vadd.f32 %v2249, %v3059
        %v3061 = vpop.f32.mrb[0].mxu0
        %3062 = vmatprep.mubr.bf16.mxu0 0
        %3063 = vmatmul.mubr.bf16.gmra.mrb[0].mxu0 %v2645
        %v3064 = vpop.f32.mrb[0].mxu0
        %v3065 = vadd.f32 %v2249, %v3064
        %v3066 = vpop.f32.mrb[0].mxu0
        %v3067 = vpop.f32.mrb[0].mxu0
        %v3068 = vadd.f32 %v2249, %v3067
        %v3069 = vpop.f32.mrb[0].mxu0
        %3070 = vdwg.mxu0
        %v3071 = vmax.f32 %v2689, 0.0
        %v3072 = vmax.f32 %v2692, 0.0
        %v3073 = vmax.f32 %v2697, 0.0
        %v3074 = vmax.f32 %v2700, 0.0
        %v3075 = vmax.f32 %v2705, 0.0
        %v3076 = vmax.f32 %v2708, 0.0
        %v3077 = vmax.f32 %v2713, 0.0
        %v3078 = vmax.f32 %v2716, 0.0
        %v3079 = vmax.f32 %v2721, 0.0
        %v3080 = vmax.f32 %v2724, 0.0
        %v3081 = vmax.f32 %v2729, 0.0
        %v3082 = vmax.f32 %v2732, 0.0
        %v3083 = vmax.f32 %v2737, 0.0
        %v3084 = vmax.f32 %v2740, 0.0
        %v3085 = vmax.f32 %v2745, 0.0
        %v3086 = vmax.f32 %v2748, 0.0
        %v3087 = vmax.f32 %v2753, 0.0
        %v3088 = vmax.f32 %v2756, 0.0
        %v3089 = vmax.f32 %v2761, 0.0
        %v3090 = vmax.f32 %v2764, 0.0
        %v3091 = vmax.f32 %v2769, 0.0
        %v3092 = vmax.f32 %v2772, 0.0
        %v3093 = vmax.f32 %v2777, 0.0
        %v3094 = vmax.f32 %v2780, 0.0
        %v3095 = vmax.f32 %v2785, 0.0
        %v3096 = vmax.f32 %v2788, 0.0
        %v3097 = vmax.f32 %v2793, 0.0
        %v3098 = vmax.f32 %v2796, 0.0
        %v3099 = vmax.f32 %v2801, 0.0
        %v3100 = vmax.f32 %v2804, 0.0
        %v3101 = vmax.f32 %v2809, 0.0
        %v3102 = vmax.f32 %v2812, 0.0
        %v3103 = vmax.f32 %v2817, 0.0
        %v3104 = vmax.f32 %v2820, 0.0
        %v3105 = vmax.f32 %v2825, 0.0
        %v3106 = vmax.f32 %v2828, 0.0
        %v3107 = vmax.f32 %v2833, 0.0
        %v3108 = vmax.f32 %v2836, 0.0
        %v3109 = vmax.f32 %v2841, 0.0
        %v3110 = vmax.f32 %v2844, 0.0
        %v3111 = vmax.f32 %v2849, 0.0
        %v3112 = vmax.f32 %v2852, 0.0
        %v3113 = vmax.f32 %v2857, 0.0
        %v3114 = vmax.f32 %v2860, 0.0
        %v3115 = vmax.f32 %v2865, 0.0
        %v3116 = vmax.f32 %v2868, 0.0
        %v3117 = vmax.f32 %v2873, 0.0
        %v3118 = vmax.f32 %v2876, 0.0
        %v3119 = vmax.f32 %v2881, 0.0
        %v3120 = vmax.f32 %v2884, 0.0
        %v3121 = vmax.f32 %v2889, 0.0
        %v3122 = vmax.f32 %v2892, 0.0
        %v3123 = vmax.f32 %v2897, 0.0
        %v3124 = vmax.f32 %v2900, 0.0
        %v3125 = vmax.f32 %v2905, 0.0
        %v3126 = vmax.f32 %v2908, 0.0
        %v3127 = vmax.f32 %v2913, 0.0
        %v3128 = vmax.f32 %v2916, 0.0
        %v3129 = vmax.f32 %v2921, 0.0
        %v3130 = vmax.f32 %v2924, 0.0
        %v3131 = vmax.f32 %v2929, 0.0
        %v3132 = vmax.f32 %v2932, 0.0
        %v3133 = vmax.f32 %v2937, 0.0
        %v3134 = vmax.f32 %v2940, 0.0
        %v3135 = vmax.f32 %v2945, 0.0
        %v3136 = vmax.f32 %v2948, 0.0
        %v3137 = vmax.f32 %v2953, 0.0
        %v3138 = vmax.f32 %v2956, 0.0
        %v3139 = vmax.f32 %v2961, 0.0
        %v3140 = vmax.f32 %v2964, 0.0
        %v3141 = vmax.f32 %v2969, 0.0
        %v3142 = vmax.f32 %v2972, 0.0
        %v3143 = vmax.f32 %v2977, 0.0
        %v3144 = vmax.f32 %v2980, 0.0
        %v3145 = vmax.f32 %v2985, 0.0
        %v3146 = vmax.f32 %v2988, 0.0
        %v3147 = vmax.f32 %v2993, 0.0
        %v3148 = vmax.f32 %v2996, 0.0
        %v3149 = vmax.f32 %v3001, 0.0
        %v3150 = vmax.f32 %v3004, 0.0
        %v3151 = vmax.f32 %v3009, 0.0
        %v3152 = vmax.f32 %v3012, 0.0
        %v3153 = vmax.f32 %v3017, 0.0
        %v3154 = vmax.f32 %v3020, 0.0
        %v3155 = vmax.f32 %v3025, 0.0
        %v3156 = vmax.f32 %v3028, 0.0
        %v3157 = vmax.f32 %v3033, 0.0
        %v3158 = vmax.f32 %v3036, 0.0
        %v3159 = vmax.f32 %v3041, 0.0
        %v3160 = vmax.f32 %v3044, 0.0
        %v3161 = vmax.f32 %v3049, 0.0
        %v3162 = vmax.f32 %v3052, 0.0
        %v3163 = vmax.f32 %v3057, 0.0
        %v3164 = vmax.f32 %v3060, 0.0
        %v3165 = vmax.f32 %v3065, 0.0
        %v3166 = vmax.f32 %v3068, 0.0
        %v3167 = vmul.f32 %v3071, %v2048
        %v3168 = vmul.f32 %v3072, %v2049
        %v3169 = vmul.f32 %v3073, %v2050
        %v3170 = vmul.f32 %v3074, %v2051
        %v3171 = vmul.f32 %v3075, %v2052
        %v3172 = vmul.f32 %v3076, %v2053
        %v3173 = vmul.f32 %v3077, %v2054
        %v3174 = vmul.f32 %v3078, %v2055
        %v3175 = vmul.f32 %v3079, %v2056
        %v3176 = vmul.f32 %v3080, %v2057
        %v3177 = vmul.f32 %v3081, %v2058
        %v3178 = vmul.f32 %v3082, %v2059
        %v3179 = vmul.f32 %v3083, %v2060
        %v3180 = vmul.f32 %v3084, %v2061
        %v3181 = vmul.f32 %v3085, %v2062
        %v3182 = vmul.f32 %v3086, %v2063
        %v3183 = vmul.f32 %v3087, %v2064
        %v3184 = vmul.f32 %v3088, %v2065
        %v3185 = vmul.f32 %v3089, %v2066
        %v3186 = vmul.f32 %v3090, %v2067
        %v3187 = vmul.f32 %v3091, %v2068
        %v3188 = vmul.f32 %v3092, %v2069
        %v3189 = vmul.f32 %v3093, %v2070
        %v3190 = vmul.f32 %v3094, %v2071
        %v3191 = vmul.f32 %v3095, %v2072
        %v3192 = vmul.f32 %v3096, %v2073
        %v3193 = vmul.f32 %v3097, %v2074
        %v3194 = vmul.f32 %v3098, %v2075
        %v3195 = vmul.f32 %v3099, %v2076
        %v3196 = vmul.f32 %v3100, %v2077
        %v3197 = vmul.f32 %v3101, %v2078
        %v3198 = vmul.f32 %v3102, %v2079
        %v3199 = vmul.f32 %v3103, %v2080
        %v3200 = vmul.f32 %v3104, %v2081
        %v3201 = vmul.f32 %v3105, %v2082
        %v3202 = vmul.f32 %v3106, %v2083
        %v3203 = vmul.f32 %v3107, %v2084
        %v3204 = vmul.f32 %v3108, %v2085
        %v3205 = vmul.f32 %v3109, %v2086
        %v3206 = vmul.f32 %v3110, %v2087
        %v3207 = vmul.f32 %v3111, %v2088
        %v3208 = vmul.f32 %v3112, %v2089
        %v3209 = vmul.f32 %v3113, %v2090
        %v3210 = vmul.f32 %v3114, %v2091
        %v3211 = vmul.f32 %v3115, %v2092
        %v3212 = vmul.f32 %v3116, %v2093
        %v3213 = vmul.f32 %v3117, %v2094
        %v3214 = vmul.f32 %v3118, %v2095
        %v3215 = vmul.f32 %v3119, %v2096
        %v3216 = vmul.f32 %v3120, %v2097
        %v3217 = vmul.f32 %v3121, %v2098
        %v3218 = vmul.f32 %v3122, %v2099
        %v3219 = vmul.f32 %v3123, %v2100
        %v3220 = vmul.f32 %v3124, %v2101
        %v3221 = vmul.f32 %v3125, %v2102
        %v3222 = vmul.f32 %v3126, %v2103
        %v3223 = vmul.f32 %v3127, %v2104
        %v3224 = vmul.f32 %v3128, %v2105
        %v3225 = vmul.f32 %v3129, %v2106
        %v3226 = vmul.f32 %v3130, %v2107
        %v3227 = vmul.f32 %v3131, %v2108
        %v3228 = vmul.f32 %v3132, %v2109
        %v3229 = vmul.f32 %v3133, %v2110
        %v3230 = vmul.f32 %v3134, %v2111
        %v3231 = vmul.f32 %v3135, %v2112
        %v3232 = vmul.f32 %v3136, %v2113
        %v3233 = vmul.f32 %v3137, %v2114
        %v3234 = vmul.f32 %v3138, %v2115
        %v3235 = vmul.f32 %v3139, %v2116
        %v3236 = vmul.f32 %v3140, %v2117
        %v3237 = vmul.f32 %v3141, %v2118
        %v3238 = vmul.f32 %v3142, %v2119
        %v3239 = vmul.f32 %v3143, %v2120
        %v3240 = vmul.f32 %v3144, %v2121
        %v3241 = vmul.f32 %v3145, %v2122
        %v3242 = vmul.f32 %v3146, %v2123
        %v3243 = vmul.f32 %v3147, %v2124
        %v3244 = vmul.f32 %v3148, %v2125
        %v3245 = vmul.f32 %v3149, %v2126
        %v3246 = vmul.f32 %v3150, %v2127
        %v3247 = vmul.f32 %v3151, %v2128
        %v3248 = vmul.f32 %v3152, %v2129
        %v3249 = vmul.f32 %v3153, %v2130
        %v3250 = vmul.f32 %v3154, %v2131
        %v3251 = vmul.f32 %v3155, %v2132
        %v3252 = vmul.f32 %v3156, %v2133
        %v3253 = vmul.f32 %v3157, %v2134
        %v3254 = vmul.f32 %v3158, %v2135
        %v3255 = vmul.f32 %v3159, %v2136
        %v3256 = vmul.f32 %v3160, %v2137
        %v3257 = vmul.f32 %v3161, %v2138
        %v3258 = vmul.f32 %v3162, %v2139
        %v3259 = vmul.f32 %v3163, %v2140
        %v3260 = vmul.f32 %v3164, %v2141
        %v3261 = vmul.f32 %v3165, %v2142
        %v3262 = vmul.f32 %v3166, %v2143
        %3263 = vst [vmem:[#allocation2] sm:$0xff] 0.0
        %3264 = vst [vmem:[#allocation2 + $0x8] sm:$0xff] 0.0
        %3265 = vst [vmem:[#allocation2 + $0x10] sm:$0xff] 0.0
        %3266 = vst [vmem:[#allocation2 + $0x18] sm:$0xff] 0.0
        %s3267 = scalar_lea.vmem [#allocation2], 448
        %3268 = vst [vmem:[%s3267] sm:$0xff] 0.0
        %3269 = vst [vmem:[%s3267 + $0x8] sm:$0xff] 0.0
        %3270 = vst [vmem:[%s3267 + $0x10] sm:$0xff] 0.0
        %3271 = vst [vmem:[%s3267 + $0x18] sm:$0xff] 0.0
        %3272 = vst [vmem:[#allocation2 + $0x1a0] sm:$0xff] 0.0
        %3273 = vst [vmem:[#allocation2 + $0x1a8] sm:$0xff] 0.0
        %3274 = vst [vmem:[#allocation2 + $0x1b0] sm:$0xff] 0.0
        %3275 = vst [vmem:[#allocation2 + $0x1b8] sm:$0xff] 0.0
        %3276 = vst [vmem:[%s3267 + $0x1a0] sm:$0xff] 0.0
        %3277 = vst [vmem:[%s3267 + $0x1a8] sm:$0xff] 0.0
        %3278 = vst [vmem:[%s3267 + $0x1b0] sm:$0xff] 0.0
        %3279 = vst [vmem:[%s3267 + $0x1b8] sm:$0xff] 0.0
        %3280 = vst [vmem:[#allocation2 + $0x20] sm:$0xff] %v3167
        %3281 = vst [vmem:[#allocation2 + $0x28] sm:$0xff] %v3168
        %3282 = vst [vmem:[#allocation2 + $0x30] sm:$0xff] %v3169
        %3283 = vst [vmem:[#allocation2 + $0x38] sm:$0xff] %v3170
        %3284 = vst [vmem:[#allocation2 + $0x40] sm:$0xff] %v3171
        %3285 = vst [vmem:[#allocation2 + $0x48] sm:$0xff] %v3172
        %3286 = vst [vmem:[#allocation2 + $0x50] sm:$0xff] %v3173
        %3287 = vst [vmem:[#allocation2 + $0x58] sm:$0xff] %v3174
        %3288 = vst [vmem:[#allocation2 + $0x60] sm:$0xff] %v3175
        %3289 = vst [vmem:[#allocation2 + $0x68] sm:$0xff] %v3176
        %3290 = vst [vmem:[#allocation2 + $0x70] sm:$0xff] %v3177
        %3291 = vst [vmem:[#allocation2 + $0x78] sm:$0xff] %v3178
        %3292 = vst [vmem:[#allocation2 + $0x80] sm:$0xff] %v3179
        %3293 = vst [vmem:[#allocation2 + $0x88] sm:$0xff] %v3180
        %3294 = vst [vmem:[#allocation2 + $0x90] sm:$0xff] %v3181
        %3295 = vst [vmem:[#allocation2 + $0x98] sm:$0xff] %v3182
        %3296 = vst [vmem:[#allocation2 + $0xa0] sm:$0xff] %v3183
        %3297 = vst [vmem:[#allocation2 + $0xa8] sm:$0xff] %v3184
        %3298 = vst [vmem:[#allocation2 + $0xb0] sm:$0xff] %v3185
        %3299 = vst [vmem:[#allocation2 + $0xb8] sm:$0xff] %v3186
        %3300 = vst [vmem:[#allocation2 + $0xc0] sm:$0xff] %v3187
        %3301 = vst [vmem:[#allocation2 + $0xc8] sm:$0xff] %v3188
        %3302 = vst [vmem:[#allocation2 + $0xd0] sm:$0xff] %v3189
        %3303 = vst [vmem:[#allocation2 + $0xd8] sm:$0xff] %v3190
        %3304 = vst [vmem:[#allocation2 + $0xe0] sm:$0xff] %v3191
        %3305 = vst [vmem:[#allocation2 + $0xe8] sm:$0xff] %v3192
        %3306 = vst [vmem:[#allocation2 + $0xf0] sm:$0xff] %v3193
        %3307 = vst [vmem:[#allocation2 + $0xf8] sm:$0xff] %v3194
        %3308 = vst [vmem:[#allocation2 + $0x100] sm:$0xff] %v3195
        %3309 = vst [vmem:[#allocation2 + $0x108] sm:$0xff] %v3196
        %3310 = vst [vmem:[#allocation2 + $0x110] sm:$0xff] %v3197
        %3311 = vst [vmem:[#allocation2 + $0x118] sm:$0xff] %v3198
        %3312 = vst [vmem:[#allocation2 + $0x120] sm:$0xff] %v3199
        %3313 = vst [vmem:[#allocation2 + $0x128] sm:$0xff] %v3200
        %3314 = vst [vmem:[#allocation2 + $0x130] sm:$0xff] %v3201
        %3315 = vst [vmem:[#allocation2 + $0x138] sm:$0xff] %v3202
        %3316 = vst [vmem:[#allocation2 + $0x140] sm:$0xff] %v3203
        %3317 = vst [vmem:[#allocation2 + $0x148] sm:$0xff] %v3204
        %3318 = vst [vmem:[#allocation2 + $0x150] sm:$0xff] %v3205
        %3319 = vst [vmem:[#allocation2 + $0x158] sm:$0xff] %v3206
        %3320 = vst [vmem:[#allocation2 + $0x160] sm:$0xff] %v3207
        %3321 = vst [vmem:[#allocation2 + $0x168] sm:$0xff] %v3208
        %3322 = vst [vmem:[#allocation2 + $0x170] sm:$0xff] %v3209
        %3323 = vst [vmem:[#allocation2 + $0x178] sm:$0xff] %v3210
        %3324 = vst [vmem:[#allocation2 + $0x180] sm:$0xff] %v3211
        %3325 = vst [vmem:[#allocation2 + $0x188] sm:$0xff] %v3212
        %3326 = vst [vmem:[#allocation2 + $0x190] sm:$0xff] %v3213
        %3327 = vst [vmem:[#allocation2 + $0x198] sm:$0xff] %v3214
        %3328 = vst [vmem:[%s3267 + $0x20] sm:$0xff] %v3215
        %3329 = vst [vmem:[%s3267 + $0x28] sm:$0xff] %v3216
        %3330 = vst [vmem:[%s3267 + $0x30] sm:$0xff] %v3217
        %3331 = vst [vmem:[%s3267 + $0x38] sm:$0xff] %v3218
        %3332 = vst [vmem:[%s3267 + $0x40] sm:$0xff] %v3219
        %3333 = vst [vmem:[%s3267 + $0x48] sm:$0xff] %v3220
        %3334 = vst [vmem:[%s3267 + $0x50] sm:$0xff] %v3221
        %3335 = vst [vmem:[%s3267 + $0x58] sm:$0xff] %v3222
        %3336 = vst [vmem:[%s3267 + $0x60] sm:$0xff] %v3223
        %3337 = vst [vmem:[%s3267 + $0x68] sm:$0xff] %v3224
        %3338 = vst [vmem:[%s3267 + $0x70] sm:$0xff] %v3225
        %3339 = vst [vmem:[%s3267 + $0x78] sm:$0xff] %v3226
        %3340 = vst [vmem:[%s3267 + $0x80] sm:$0xff] %v3227
        %3341 = vst [vmem:[%s3267 + $0x88] sm:$0xff] %v3228
        %3342 = vst [vmem:[%s3267 + $0x90] sm:$0xff] %v3229
        %3343 = vst [vmem:[%s3267 + $0x98] sm:$0xff] %v3230
        %3344 = vst [vmem:[%s3267 + $0xa0] sm:$0xff] %v3231
        %3345 = vst [vmem:[%s3267 + $0xa8] sm:$0xff] %v3232
        %3346 = vst [vmem:[%s3267 + $0xb0] sm:$0xff] %v3233
        %3347 = vst [vmem:[%s3267 + $0xb8] sm:$0xff] %v3234
        %3348 = vst [vmem:[%s3267 + $0xc0] sm:$0xff] %v3235
        %3349 = vst [vmem:[%s3267 + $0xc8] sm:$0xff] %v3236
        %3350 = vst [vmem:[%s3267 + $0xd0] sm:$0xff] %v3237
        %3351 = vst [vmem:[%s3267 + $0xd8] sm:$0xff] %v3238
        %3352 = vst [vmem:[%s3267 + $0xe0] sm:$0xff] %v3239
        %3353 = vst [vmem:[%s3267 + $0xe8] sm:$0xff] %v3240
        %3354 = vst [vmem:[%s3267 + $0xf0] sm:$0xff] %v3241
        %3355 = vst [vmem:[%s3267 + $0xf8] sm:$0xff] %v3242
        %3356 = vst [vmem:[%s3267 + $0x100] sm:$0xff] %v3243
        %3357 = vst [vmem:[%s3267 + $0x108] sm:$0xff] %v3244
        %3358 = vst [vmem:[%s3267 + $0x110] sm:$0xff] %v3245
        %3359 = vst [vmem:[%s3267 + $0x118] sm:$0xff] %v3246
        %3360 = vst [vmem:[%s3267 + $0x120] sm:$0xff] %v3247
        %3361 = vst [vmem:[%s3267 + $0x128] sm:$0xff] %v3248
        %3362 = vst [vmem:[%s3267 + $0x130] sm:$0xff] %v3249
        %3363 = vst [vmem:[%s3267 + $0x138] sm:$0xff] %v3250
        %3364 = vst [vmem:[%s3267 + $0x140] sm:$0xff] %v3251
        %3365 = vst [vmem:[%s3267 + $0x148] sm:$0xff] %v3252
        %3366 = vst [vmem:[%s3267 + $0x150] sm:$0xff] %v3253
        %3367 = vst [vmem:[%s3267 + $0x158] sm:$0xff] %v3254
        %3368 = vst [vmem:[%s3267 + $0x160] sm:$0xff] %v3255
        %3369 = vst [vmem:[%s3267 + $0x168] sm:$0xff] %v3256
        %3370 = vst [vmem:[%s3267 + $0x170] sm:$0xff] %v3257
        %3371 = vst [vmem:[%s3267 + $0x178] sm:$0xff] %v3258
        %3372 = vst [vmem:[%s3267 + $0x180] sm:$0xff] %v3259
        %3373 = vst [vmem:[%s3267 + $0x188] sm:$0xff] %v3260
        %3374 = vst [vmem:[%s3267 + $0x190] sm:$0xff] %v3261
        %3375 = vst [vmem:[%s3267 + $0x198] sm:$0xff] %v3262
        %v3376 = vld [vmem:[%s3] sm:$0xf]
        %v3377 = vld [vmem:[%s3 + $0x4] sm:$0xf]
        %v3378 = vld [vmem:[%s3 + $0x8] sm:$0xf]
        %v3379 = vld [vmem:[%s3 + $0xc] sm:$0xf]
        %v3380 = vld [vmem:[%s3 + $0x10] sm:$0xf]
        %v3381 = vld [vmem:[%s3 + $0x14] sm:$0xf]
        %v3382 = vld [vmem:[%s3 + $0x18] sm:$0xf]
        %v3383 = vld [vmem:[%s3 + $0x1c] sm:$0xf]
        %v3384 = vld [vmem:[%s3 + $0x20] sm:$0xf]
        %v3385 = vld [vmem:[%s3 + $0x24] sm:$0xf]
        %v3386 = vld [vmem:[%s3 + $0x28] sm:$0xf]
        %v3387 = vld [vmem:[%s3 + $0x2c] sm:$0xf]
        %v3388 = vld [vmem:[%s3 + $0x30] sm:$0xf]
        %v3389 = vld [vmem:[%s3 + $0x34] sm:$0xf]
        %v3390 = vld [vmem:[%s3 + $0x38] sm:$0xf]
        %v3391 = vld [vmem:[%s3 + $0x3c] sm:$0xf]
        %v3392 = vld [vmem:[#allocation2 + $0x7] sm:$0xff]
        %v3393 = vld [vmem:[#allocation2 + $0xf] sm:$0xff]
        %v3394 = vld [vmem:[#allocation2 + $0x17] sm:$0xff]
        %v3395 = vld [vmem:[#allocation2 + $0x1f] sm:$0xff]
        %v3396 = vld [vmem:[#allocation2 + $0x27] sm:$0xff]
        %v3397 = vld [vmem:[#allocation2 + $0x2f] sm:$0xff]
        %v3398 = vld [vmem:[#allocation2 + $0x37] sm:$0xff]
        %v3399 = vld [vmem:[#allocation2 + $0x3f] sm:$0xff]
        %v3400 = vld [vmem:[#allocation2 + $0x47] sm:$0xff]
        %v3401 = vld [vmem:[#allocation2 + $0x4f] sm:$0xff]
        %v3402 = vld [vmem:[#allocation2 + $0x57] sm:$0xff]
        %v3403 = vld [vmem:[#allocation2 + $0x5f] sm:$0xff]
        %v3404 = vld [vmem:[#allocation2 + $0x67] sm:$0xff]
        %v3405 = vld [vmem:[#allocation2 + $0x6f] sm:$0xff]
        %v3406 = vld [vmem:[#allocation2 + $0x77] sm:$0xff]
        %v3407 = vld [vmem:[#allocation2 + $0x7f] sm:$0xff]
        %v3408 = vld [vmem:[#allocation2 + $0x87] sm:$0xff]
        %v3409 = vld [vmem:[#allocation2 + $0x8f] sm:$0xff]
        %v3410 = vld [vmem:[#allocation2 + $0x97] sm:$0xff]
        %v3411 = vld [vmem:[#allocation2 + $0x9f] sm:$0xff]
        %v3412 = vld [vmem:[#allocation2 + $0xa7] sm:$0xff]
        %v3413 = vld [vmem:[#allocation2 + $0xaf] sm:$0xff]
        %v3414 = vld [vmem:[#allocation2 + $0xb7] sm:$0xff]
        %v3415 = vld [vmem:[#allocation2 + $0xbf] sm:$0xff]
        %v3416 = vld [vmem:[#allocation2 + $0xc7] sm:$0xff]
        %v3417 = vld [vmem:[#allocation2 + $0xcf] sm:$0xff]
        %v3418 = vld [vmem:[#allocation2 + $0xd7] sm:$0xff]
        %v3419 = vld [vmem:[#allocation2 + $0xdf] sm:$0xff]
        %v3420 = vld [vmem:[#allocation2 + $0xe7] sm:$0xff]
        %v3421 = vld [vmem:[#allocation2 + $0xef] sm:$0xff]
        %v3422 = vld [vmem:[#allocation2 + $0xf7] sm:$0xff]
        %v3423 = vld [vmem:[#allocation2 + $0xff] sm:$0xff]
        %v3424 = vld [vmem:[#allocation2 + $0x107] sm:$0xff]
        %v3425 = vld [vmem:[#allocation2 + $0x10f] sm:$0xff]
        %v3426 = vld [vmem:[#allocation2 + $0x117] sm:$0xff]
        %v3427 = vld [vmem:[#allocation2 + $0x11f] sm:$0xff]
        %v3428 = vld [vmem:[#allocation2 + $0x127] sm:$0xff]
        %v3429 = vld [vmem:[#allocation2 + $0x12f] sm:$0xff]
        %v3430 = vld [vmem:[#allocation2 + $0x137] sm:$0xff]
        %v3431 = vld [vmem:[#allocation2 + $0x13f] sm:$0xff]
        %v3432 = vld [vmem:[#allocation2 + $0x147] sm:$0xff]
        %v3433 = vld [vmem:[#allocation2 + $0x14f] sm:$0xff]
        %v3434 = vld [vmem:[#allocation2 + $0x157] sm:$0xff]
        %v3435 = vld [vmem:[#allocation2 + $0x15f] sm:$0xff]
        %v3436 = vld [vmem:[#allocation2 + $0x167] sm:$0xff]
        %v3437 = vld [vmem:[#allocation2 + $0x16f] sm:$0xff]
        %v3438 = vld [vmem:[#allocation2 + $0x177] sm:$0xff]
        %v3439 = vld [vmem:[#allocation2 + $0x17f] sm:$0xff]
        %v3440 = vpack.c.bf16 %v3393, %v3392
        %v3441 = vpack.c.bf16 %v3395, %v3394
        %v3442 = vpack.c.bf16 %v3397, %v3396
        %v3443 = vpack.c.bf16 %v3399, %v3398
        %v3444 = vpack.c.bf16 %v3401, %v3400
        %v3445 = vpack.c.bf16 %v3403, %v3402
        %v3446 = vpack.c.bf16 %v3405, %v3404
        %v3447 = vpack.c.bf16 %v3407, %v3406
        %v3448 = vpack.c.bf16 %v3409, %v3408
        %v3449 = vpack.c.bf16 %v3411, %v3410
        %v3450 = vpack.c.bf16 %v3413, %v3412
        %v3451 = vpack.c.bf16 %v3415, %v3414
        %v3452 = vpack.c.bf16 %v3417, %v3416
        %v3453 = vpack.c.bf16 %v3419, %v3418
        %v3454 = vpack.c.bf16 %v3421, %v3420
        %v3455 = vpack.c.bf16 %v3423, %v3422
        %v3456 = vpack.c.bf16 %v3425, %v3424
        %v3457 = vpack.c.bf16 %v3427, %v3426
        %v3458 = vpack.c.bf16 %v3429, %v3428
        %v3459 = vpack.c.bf16 %v3431, %v3430
        %v3460 = vpack.c.bf16 %v3433, %v3432
        %v3461 = vpack.c.bf16 %v3435, %v3434
        %v3462 = vpack.c.bf16 %v3437, %v3436
        %v3463 = vpack.c.bf16 %v3439, %v3438
        %v3464 = vld [vmem:[%s3267 + $0x7] sm:$0xff]
        %v3465 = vld [vmem:[%s3267 + $0xf] sm:$0xff]
        %v3466 = vld [vmem:[%s3267 + $0x17] sm:$0xff]
        %v3467 = vld [vmem:[%s3267 + $0x1f] sm:$0xff]
        %v3468 = vld [vmem:[%s3267 + $0x27] sm:$0xff]
        %v3469 = vld [vmem:[%s3267 + $0x2f] sm:$0xff]
        %v3470 = vld [vmem:[%s3267 + $0x37] sm:$0xff]
        %v3471 = vld [vmem:[%s3267 + $0x3f] sm:$0xff]
        %v3472 = vld [vmem:[%s3267 + $0x47] sm:$0xff]
        %v3473 = vld [vmem:[%s3267 + $0x4f] sm:$0xff]
        %v3474 = vld [vmem:[%s3267 + $0x57] sm:$0xff]
        %v3475 = vld [vmem:[%s3267 + $0x5f] sm:$0xff]
        %v3476 = vld [vmem:[%s3267 + $0x67] sm:$0xff]
        %v3477 = vld [vmem:[%s3267 + $0x6f] sm:$0xff]
        %v3478 = vld [vmem:[%s3267 + $0x77] sm:$0xff]
        %v3479 = vld [vmem:[%s3267 + $0x7f] sm:$0xff]
        %v3480 = vld [vmem:[%s3267 + $0x87] sm:$0xff]
        %v3481 = vld [vmem:[%s3267 + $0x8f] sm:$0xff]
        %v3482 = vld [vmem:[%s3267 + $0x97] sm:$0xff]
        %v3483 = vld [vmem:[%s3267 + $0x9f] sm:$0xff]
        %v3484 = vld [vmem:[%s3267 + $0xa7] sm:$0xff]
        %v3485 = vld [vmem:[%s3267 + $0xaf] sm:$0xff]
        %v3486 = vld [vmem:[%s3267 + $0xb7] sm:$0xff]
        %v3487 = vld [vmem:[%s3267 + $0xbf] sm:$0xff]
        %v3488 = vld [vmem:[%s3267 + $0xc7] sm:$0xff]
        %v3489 = vld [vmem:[%s3267 + $0xcf] sm:$0xff]
        %v3490 = vld [vmem:[%s3267 + $0xd7] sm:$0xff]
        %v3491 = vld [vmem:[%s3267 + $0xdf] sm:$0xff]
        %v3492 = vld [vmem:[%s3267 + $0xe7] sm:$0xff]
        %v3493 = vld [vmem:[%s3267 + $0xef] sm:$0xff]
        %v3494 = vld [vmem:[%s3267 + $0xf7] sm:$0xff]
        %v3495 = vld [vmem:[%s3267 + $0xff] sm:$0xff]
        %v3496 = vld [vmem:[%s3267 + $0x107] sm:$0xff]
        %v3497 = vld [vmem:[%s3267 + $0x10f] sm:$0xff]
        %v3498 = vld [vmem:[%s3267 + $0x117] sm:$0xff]
        %v3499 = vld [vmem:[%s3267 + $0x11f] sm:$0xff]
        %v3500 = vld [vmem:[%s3267 + $0x127] sm:$0xff]
        %v3501 = vld [vmem:[%s3267 + $0x12f] sm:$0xff]
        %v3502 = vld [vmem:[%s3267 + $0x137] sm:$0xff]
        %v3503 = vld [vmem:[%s3267 + $0x13f] sm:$0xff]
        %v3504 = vld [vmem:[%s3267 + $0x147] sm:$0xff]
        %v3505 = vld [vmem:[%s3267 + $0x14f] sm:$0xff]
        %v3506 = vld [vmem:[%s3267 + $0x157] sm:$0xff]
        %v3507 = vld [vmem:[%s3267 + $0x15f] sm:$0xff]
        %v3508 = vld [vmem:[%s3267 + $0x167] sm:$0xff]
        %v3509 = vld [vmem:[%s3267 + $0x16f] sm:$0xff]
        %v3510 = vld [vmem:[%s3267 + $0x177] sm:$0xff]
        %v3511 = vld [vmem:[%s3267 + $0x17f] sm:$0xff]
        %v3512 = vpack.c.bf16 %v3465, %v3464
        %v3513 = vpack.c.bf16 %v3467, %v3466
        %v3514 = vpack.c.bf16 %v3469, %v3468
        %v3515 = vpack.c.bf16 %v3471, %v3470
        %v3516 = vpack.c.bf16 %v3473, %v3472
        %v3517 = vpack.c.bf16 %v3475, %v3474
        %v3518 = vpack.c.bf16 %v3477, %v3476
        %v3519 = vpack.c.bf16 %v3479, %v3478
        %v3520 = vpack.c.bf16 %v3481, %v3480
        %v3521 = vpack.c.bf16 %v3483, %v3482
        %v3522 = vpack.c.bf16 %v3485, %v3484
        %v3523 = vpack.c.bf16 %v3487, %v3486
        %v3524 = vpack.c.bf16 %v3489, %v3488
        %v3525 = vpack.c.bf16 %v3491, %v3490
        %v3526 = vpack.c.bf16 %v3493, %v3492
        %v3527 = vpack.c.bf16 %v3495, %v3494
        %v3528 = vpack.c.bf16 %v3497, %v3496
        %v3529 = vpack.c.bf16 %v3499, %v3498
        %v3530 = vpack.c.bf16 %v3501, %v3500
        %v3531 = vpack.c.bf16 %v3503, %v3502
        %v3532 = vpack.c.bf16 %v3505, %v3504
        %v3533 = vpack.c.bf16 %v3507, %v3506
        %v3534 = vpack.c.bf16 %v3509, %v3508
        %v3535 = vpack.c.bf16 %v3511, %v3510
        %s3536 = scalar_lea.vmem %s3, 64
        %v3537 = vld [vmem:[%s3536] sm:$0xf]
        %v3538 = vld [vmem:[%s3536 + $0x4] sm:$0xf]
        %v3539 = vld [vmem:[%s3536 + $0x8] sm:$0xf]
        %v3540 = vld [vmem:[%s3536 + $0xc] sm:$0xf]
        %v3541 = vld [vmem:[%s3536 + $0x10] sm:$0xf]
        %v3542 = vld [vmem:[%s3536 + $0x14] sm:$0xf]
        %v3543 = vld [vmem:[%s3536 + $0x18] sm:$0xf]
        %v3544 = vld [vmem:[%s3536 + $0x1c] sm:$0xf]
        %v3545 = vld [vmem:[%s3536 + $0x20] sm:$0xf]
        %v3546 = vld [vmem:[%s3536 + $0x24] sm:$0xf]
        %v3547 = vld [vmem:[%s3536 + $0x28] sm:$0xf]
        %v3548 = vld [vmem:[%s3536 + $0x2c] sm:$0xf]
        %v3549 = vld [vmem:[%s3536 + $0x30] sm:$0xf]
        %v3550 = vld [vmem:[%s3536 + $0x34] sm:$0xf]
        %v3551 = vld [vmem:[%s3536 + $0x38] sm:$0xf]
        %v3552 = vld [vmem:[%s3536 + $0x3c] sm:$0xf]
        %v3553 = vld [vmem:[#allocation2 + $0x8] sm:$0xff]
        %v3554 = vld [vmem:[#allocation2 + $0x10] sm:$0xff]
        %v3555 = vld [vmem:[#allocation2 + $0x18] sm:$0xff]
        %v3556 = vld [vmem:[#allocation2 + $0x20] sm:$0xff]
        %v3557 = vld [vmem:[#allocation2 + $0x28] sm:$0xff]
        %v3558 = vld [vmem:[#allocation2 + $0x30] sm:$0xff]
        %v3559 = vld [vmem:[#allocation2 + $0x38] sm:$0xff]
        %v3560 = vld [vmem:[#allocation2 + $0x40] sm:$0xff]
        %v3561 = vld [vmem:[#allocation2 + $0x48] sm:$0xff]
        %v3562 = vld [vmem:[#allocation2 + $0x50] sm:$0xff]
        %v3563 = vld [vmem:[#allocation2 + $0x58] sm:$0xff]
        %v3564 = vld [vmem:[#allocation2 + $0x60] sm:$0xff]
        %v3565 = vld [vmem:[#allocation2 + $0x68] sm:$0xff]
        %v3566 = vld [vmem:[#allocation2 + $0x70] sm:$0xff]
        %v3567 = vld [vmem:[#allocation2 + $0x78] sm:$0xff]
        %v3568 = vld [vmem:[#allocation2 + $0x80] sm:$0xff]
        %v3569 = vld [vmem:[#allocation2 + $0x88] sm:$0xff]
        %v3570 = vld [vmem:[#allocation2 + $0x90] sm:$0xff]
        %v3571 = vld [vmem:[#allocation2 + $0x98] sm:$0xff]
        %v3572 = vld [vmem:[#allocation2 + $0xa0] sm:$0xff]
        %v3573 = vld [vmem:[#allocation2 + $0xa8] sm:$0xff]
        %v3574 = vld [vmem:[#allocation2 + $0xb0] sm:$0xff]
        %v3575 = vld [vmem:[#allocation2 + $0xb8] sm:$0xff]
        %v3576 = vld [vmem:[#allocation2 + $0xc0] sm:$0xff]
        %v3577 = vld [vmem:[#allocation2 + $0xc8] sm:$0xff]
        %v3578 = vld [vmem:[#allocation2 + $0xd0] sm:$0xff]
        %v3579 = vld [vmem:[#allocation2 + $0xd8] sm:$0xff]
        %v3580 = vld [vmem:[#allocation2 + $0xe0] sm:$0xff]
        %v3581 = vld [vmem:[#allocation2 + $0xe8] sm:$0xff]
        %v3582 = vld [vmem:[#allocation2 + $0xf0] sm:$0xff]
        %v3583 = vld [vmem:[#allocation2 + $0xf8] sm:$0xff]
        %v3584 = vld [vmem:[#allocation2 + $0x100] sm:$0xff]
        %v3585 = vld [vmem:[#allocation2 + $0x108] sm:$0xff]
        %v3586 = vld [vmem:[#allocation2 + $0x110] sm:$0xff]
        %v3587 = vld [vmem:[#allocation2 + $0x118] sm:$0xff]
        %v3588 = vld [vmem:[#allocation2 + $0x120] sm:$0xff]
        %v3589 = vld [vmem:[#allocation2 + $0x128] sm:$0xff]
        %v3590 = vld [vmem:[#allocation2 + $0x130] sm:$0xff]
        %v3591 = vld [vmem:[#allocation2 + $0x138] sm:$0xff]
        %v3592 = vld [vmem:[#allocation2 + $0x140] sm:$0xff]
        %v3593 = vld [vmem:[#allocation2 + $0x148] sm:$0xff]
        %v3594 = vld [vmem:[#allocation2 + $0x150] sm:$0xff]
        %v3595 = vld [vmem:[#allocation2 + $0x158] sm:$0xff]
        %v3596 = vld [vmem:[#allocation2 + $0x160] sm:$0xff]
        %v3597 = vld [vmem:[#allocation2 + $0x168] sm:$0xff]
        %v3598 = vld [vmem:[#allocation2 + $0x170] sm:$0xff]
        %v3599 = vld [vmem:[#allocation2 + $0x178] sm:$0xff]
        %v3600 = vld [vmem:[#allocation2 + $0x180] sm:$0xff]
        %v3601 = vpack.c.bf16 %v3554, %v3553
        %v3602 = vpack.c.bf16 %v3556, %v3555
        %v3603 = vpack.c.bf16 %v3558, %v3557
        %v3604 = vpack.c.bf16 %v3560, %v3559
        %v3605 = vpack.c.bf16 %v3562, %v3561
        %v3606 = vpack.c.bf16 %v3564, %v3563
        %v3607 = vpack.c.bf16 %v3566, %v3565
        %v3608 = vpack.c.bf16 %v3568, %v3567
        %v3609 = vpack.c.bf16 %v3570, %v3569
        %v3610 = vpack.c.bf16 %v3572, %v3571
        %v3611 = vpack.c.bf16 %v3574, %v3573
        %v3612 = vpack.c.bf16 %v3576, %v3575
        %v3613 = vpack.c.bf16 %v3578, %v3577
        %v3614 = vpack.c.bf16 %v3580, %v3579
        %v3615 = vpack.c.bf16 %v3582, %v3581
        %v3616 = vpack.c.bf16 %v3584, %v3583
        %v3617 = vpack.c.bf16 %v3586, %v3585
        %v3618 = vpack.c.bf16 %v3588, %v3587
        %v3619 = vpack.c.bf16 %v3590, %v3589
        %v3620 = vpack.c.bf16 %v3592, %v3591
        %v3621 = vpack.c.bf16 %v3594, %v3593
        %v3622 = vpack.c.bf16 %v3596, %v3595
        %v3623 = vpack.c.bf16 %v3598, %v3597
        %v3624 = vpack.c.bf16 %v3600, %v3599
        %v3641 = vunpack.c.l.b16 %v3537
        %v3642 = vunpack.c.l.b16 %v3538
        %v3643 = vunpack.c.l.b16 %v3539
        %v3644 = vunpack.c.l.b16 %v3540
        %v3645 = vunpack.c.l.b16 %v3541
        %v3646 = vunpack.c.l.b16 %v3542
        %v3647 = vunpack.c.l.b16 %v3543
        %v3648 = vunpack.c.l.b16 %v3544
        %v3649 = vunpack.c.l.b16 %v3545
        %v3650 = vunpack.c.l.b16 %v3546
        %v3651 = vunpack.c.l.b16 %v3547
        %v3652 = vunpack.c.l.b16 %v3548
        %v3653 = vunpack.c.l.b16 %v3549
        %v3654 = vunpack.c.l.b16 %v3550
        %v3655 = vunpack.c.l.b16 %v3551
        %v3656 = vunpack.c.l.b16 %v3552
        %v3657 = vpack.c.b16 %v3642, %v3641
        %v3658 = vpack.c.b16 %v3644, %v3643
        %v3659 = vpack.c.b16 %v3646, %v3645
        %v3660 = vpack.c.b16 %v3648, %v3647
        %v3661 = vpack.c.b16 %v3650, %v3649
        %v3662 = vpack.c.b16 %v3652, %v3651
        %v3663 = vpack.c.b16 %v3654, %v3653
        %v3664 = vpack.c.b16 %v3656, %v3655
        %3673 = vmatprep.subr.bf16.mxu0 0
        %3674 = vmatpush1.bf16.msra.mxu0 %v3657
        %3675 = vmatprep.subr.bf16.mxu0 0
        %3676 = vmatpush1.bf16.msra.mxu0 %v3658
        %3677 = vmatprep.subr.bf16.mxu0 0
        %3678 = vmatpush1.bf16.msra.mxu0 %v3659
        %3679 = vmatprep.subr.bf16.mxu0 0
        %3680 = vmatpush1.bf16.msra.mxu0 %v3660
        %3681 = vmatprep.subr.bf16.mxu0 0
        %3682 = vmatpush1.bf16.msra.mxu0 %v3661
        %3683 = vmatprep.subr.bf16.mxu0 0
        %3684 = vmatpush1.bf16.msra.mxu0 %v3662
        %3685 = vmatprep.subr.bf16.mxu0 0
        %3686 = vmatpush1.bf16.msra.mxu0 %v3663
        %3687 = vmatprep.subr.bf16.mxu0 0
        %3688 = vmatpush1.bf16.msra.mxu0 %v3664
        %3689 = vmatprep.subr.bf16.mxu0 0
        %3690 = vmatpush1.bf16.msra.mxu0 0
        %3691 = vmatprep.subr.bf16.mxu0 0
        %3692 = vmatpush1.bf16.msra.mxu0 0
        %3693 = vmatprep.subr.bf16.mxu0 0
        %3694 = vmatpush1.bf16.msra.mxu0 0
        %3695 = vmatprep.subr.bf16.mxu0 0
        %3696 = vmatpush1.bf16.msra.mxu0 0
        %3697 = vmatprep.subr.bf16.mxu0 0
        %3698 = vmatpush1.bf16.msra.mxu0 0
        %3699 = vmatprep.subr.bf16.mxu0 0
        %3700 = vmatpush1.bf16.msra.mxu0 0
        %3701 = vmatprep.subr.bf16.mxu0 0
        %3702 = vmatpush1.bf16.msra.mxu0 0
        %3703 = vmatprep.subr.bf16.mxu0 0
        %3704 = vmatpush1.bf16.msra.mxu0 0
        %3705 = vmatprep.mubr.bf16.mxu0 0
        %3706 = vmatmul.mubr.bf16.gmra.mrb[0].mxu0 %v3601
        %v3707 = vpop.f32.mrb[0].mxu0
        %v3708 = vadd.f32 0.0, %v3707
        %v3709 = vpop.f32.mrb[0].mxu0
        %v3710 = vpop.f32.mrb[0].mxu0
        %v3711 = vadd.f32 0.0, %v3710
        %v3712 = vpop.f32.mrb[0].mxu0
        %3713 = vmatprep.mubr.bf16.mxu0 0
        %3714 = vmatmul.mubr.bf16.gmra.mrb[0].mxu0 %v3602
        %v3715 = vpop.f32.mrb[0].mxu0
        %v3716 = vadd.f32 0.0, %v3715
        %v3717 = vpop.f32.mrb[0].mxu0
        %v3718 = vpop.f32.mrb[0].mxu0
        %v3719 = vadd.f32 0.0, %v3718
        %v3720 = vpop.f32.mrb[0].mxu0
        %3721 = vmatprep.mubr.bf16.mxu0 0
        %3722 = vmatmul.mubr.bf16.gmra.mrb[0].mxu0 %v3603
        %v3723 = vpop.f32.mrb[0].mxu0
        %v3724 = vadd.f32 0.0, %v3723
        %v3725 = vpop.f32.mrb[0].mxu0
        %v3726 = vpop.f32.mrb[0].mxu0
        %v3727 = vadd.f32 0.0, %v3726
        %v3728 = vpop.f32.mrb[0].mxu0
        %3729 = vmatprep.mubr.bf16.mxu0 0
        %3730 = vmatmul.mubr.bf16.gmra.mrb[0].mxu0 %v3604
        %v3731 = vpop.f32.mrb[0].mxu0
        %v3732 = vadd.f32 0.0, %v3731
        %v3733 = vpop.f32.mrb[0].mxu0
        %v3734 = vpop.f32.mrb[0].mxu0
        %v3735 = vadd.f32 0.0, %v3734
        %v3736 = vpop.f32.mrb[0].mxu0
        %3737 = vmatprep.mubr.bf16.mxu0 0
        %3738 = vmatmul.mubr.bf16.gmra.mrb[0].mxu0 %v3605
        %v3739 = vpop.f32.mrb[0].mxu0
        %v3740 = vadd.f32 0.0, %v3739
        %v3741 = vpop.f32.mrb[0].mxu0
        %v3742 = vpop.f32.mrb[0].mxu0
        %v3743 = vadd.f32 0.0, %v3742
        %v3744 = vpop.f32.mrb[0].mxu0
        %3745 = vmatprep.mubr.bf16.mxu0 0
        %3746 = vmatmul.mubr.bf16.gmra.mrb[0].mxu0 %v3606
        %v3747 = vpop.f32.mrb[0].mxu0
        %v3748 = vadd.f32 0.0, %v3747
        %v3749 = vpop.f32.mrb[0].mxu0
        %v3750 = vpop.f32.mrb[0].mxu0
        %v3751 = vadd.f32 0.0, %v3750
        %v3752 = vpop.f32.mrb[0].mxu0
        %3753 = vmatprep.mubr.bf16.mxu0 0
        %3754 = vmatmul.mubr.bf16.gmra.mrb[0].mxu0 %v3607
        %v3755 = vpop.f32.mrb[0].mxu0
        %v3756 = vadd.f32 0.0, %v3755
        %v3757 = vpop.f32.mrb[0].mxu0
        %v3758 = vpop.f32.mrb[0].mxu0
        %v3759 = vadd.f32 0.0, %v3758
        %v3760 = vpop.f32.mrb[0].mxu0
        %3761 = vmatprep.mubr.bf16.mxu0 0
        %3762 = vmatmul.mubr.bf16.gmra.mrb[0].mxu0 %v3608
        %v3763 = vpop.f32.mrb[0].mxu0
        %v3764 = vadd.f32 0.0, %v3763
        %v3765 = vpop.f32.mrb[0].mxu0
        %v3766 = vpop.f32.mrb[0].mxu0
        %v3767 = vadd.f32 0.0, %v3766
        %v3768 = vpop.f32.mrb[0].mxu0
        %3769 = vmatprep.mubr.bf16.mxu0 0
        %3770 = vmatmul.mubr.bf16.gmra.mrb[0].mxu0 %v3609
        %v3771 = vpop.f32.mrb[0].mxu0
        %v3772 = vadd.f32 0.0, %v3771
        %v3773 = vpop.f32.mrb[0].mxu0
        %v3774 = vpop.f32.mrb[0].mxu0
        %v3775 = vadd.f32 0.0, %v3774
        %v3776 = vpop.f32.mrb[0].mxu0
        %3777 = vmatprep.mubr.bf16.mxu0 0
        %3778 = vmatmul.mubr.bf16.gmra.mrb[0].mxu0 %v3610
        %v3779 = vpop.f32.mrb[0].mxu0
        %v3780 = vadd.f32 0.0, %v3779
        %v3781 = vpop.f32.mrb[0].mxu0
        %v3782 = vpop.f32.mrb[0].mxu0
        %v3783 = vadd.f32 0.0, %v3782
        %v3784 = vpop.f32.mrb[0].mxu0
        %3785 = vmatprep.mubr.bf16.mxu0 0
        %3786 = vmatmul.mubr.bf16.gmra.mrb[0].mxu0 %v3611
        %v3787 = vpop.f32.mrb[0].mxu0
        %v3788 = vadd.f32 0.0, %v3787
        %v3789 = vpop.f32.mrb[0].mxu0
        %v3790 = vpop.f32.mrb[0].mxu0
        %v3791 = vadd.f32 0.0, %v3790
        %v3792 = vpop.f32.mrb[0].mxu0
        %3793 = vmatprep.mubr.bf16.mxu0 0
        %3794 = vmatmul.mubr.bf16.gmra.mrb[0].mxu0 %v3612
        %v3795 = vpop.f32.mrb[0].mxu0
        %v3796 = vadd.f32 0.0, %v3795
        %v3797 = vpop.f32.mrb[0].mxu0
        %v3798 = vpop.f32.mrb[0].mxu0
        %v3799 = vadd.f32 0.0, %v3798
        %v3800 = vpop.f32.mrb[0].mxu0
        %3801 = vmatprep.mubr.bf16.mxu0 0
        %3802 = vmatmul.mubr.bf16.gmra.mrb[0].mxu0 %v3613
        %v3803 = vpop.f32.mrb[0].mxu0
        %v3804 = vadd.f32 0.0, %v3803
        %v3805 = vpop.f32.mrb[0].mxu0
        %v3806 = vpop.f32.mrb[0].mxu0
        %v3807 = vadd.f32 0.0, %v3806
        %v3808 = vpop.f32.mrb[0].mxu0
        %3809 = vmatprep.mubr.bf16.mxu0 0
        %3810 = vmatmul.mubr.bf16.gmra.mrb[0].mxu0 %v3614
        %v3811 = vpop.f32.mrb[0].mxu0
        %v3812 = vadd.f32 0.0, %v3811
        %v3813 = vpop.f32.mrb[0].mxu0
        %v3814 = vpop.f32.mrb[0].mxu0
        %v3815 = vadd.f32 0.0, %v3814
        %v3816 = vpop.f32.mrb[0].mxu0
        %3817 = vmatprep.mubr.bf16.mxu0 0
        %3818 = vmatmul.mubr.bf16.gmra.mrb[0].mxu0 %v3615
        %v3819 = vpop.f32.mrb[0].mxu0
        %v3820 = vadd.f32 0.0, %v3819
        %v3821 = vpop.f32.mrb[0].mxu0
        %v3822 = vpop.f32.mrb[0].mxu0
        %v3823 = vadd.f32 0.0, %v3822
        %v3824 = vpop.f32.mrb[0].mxu0
        %3825 = vmatprep.mubr.bf16.mxu0 0
        %3826 = vmatmul.mubr.bf16.gmra.mrb[0].mxu0 %v3616
        %v3827 = vpop.f32.mrb[0].mxu0
        %v3828 = vadd.f32 0.0, %v3827
        %v3829 = vpop.f32.mrb[0].mxu0
        %v3830 = vpop.f32.mrb[0].mxu0
        %v3831 = vadd.f32 0.0, %v3830
        %v3832 = vpop.f32.mrb[0].mxu0
        %3833 = vmatprep.mubr.bf16.mxu0 0
        %3834 = vmatmul.mubr.bf16.gmra.mrb[0].mxu0 %v3617
        %v3835 = vpop.f32.mrb[0].mxu0
        %v3836 = vadd.f32 0.0, %v3835
        %v3837 = vpop.f32.mrb[0].mxu0
        %v3838 = vpop.f32.mrb[0].mxu0
        %v3839 = vadd.f32 0.0, %v3838
        %v3840 = vpop.f32.mrb[0].mxu0
        %3841 = vmatprep.mubr.bf16.mxu0 0
        %3842 = vmatmul.mubr.bf16.gmra.mrb[0].mxu0 %v3618
        %v3843 = vpop.f32.mrb[0].mxu0
        %v3844 = vadd.f32 0.0, %v3843
        %v3845 = vpop.f32.mrb[0].mxu0
        %v3846 = vpop.f32.mrb[0].mxu0
        %v3847 = vadd.f32 0.0, %v3846
        %v3848 = vpop.f32.mrb[0].mxu0
        %3849 = vmatprep.mubr.bf16.mxu0 0
        %3850 = vmatmul.mubr.bf16.gmra.mrb[0].mxu0 %v3619
        %v3851 = vpop.f32.mrb[0].mxu0
        %v3852 = vadd.f32 0.0, %v3851
        %v3853 = vpop.f32.mrb[0].mxu0
        %v3854 = vpop.f32.mrb[0].mxu0
        %v3855 = vadd.f32 0.0, %v3854
        %v3856 = vpop.f32.mrb[0].mxu0
        %3857 = vmatprep.mubr.bf16.mxu0 0
        %3858 = vmatmul.mubr.bf16.gmra.mrb[0].mxu0 %v3620
        %v3859 = vpop.f32.mrb[0].mxu0
        %v3860 = vadd.f32 0.0, %v3859
        %v3861 = vpop.f32.mrb[0].mxu0
        %v3862 = vpop.f32.mrb[0].mxu0
        %v3863 = vadd.f32 0.0, %v3862
        %v3864 = vpop.f32.mrb[0].mxu0
        %3865 = vmatprep.mubr.bf16.mxu0 0
        %3866 = vmatmul.mubr.bf16.gmra.mrb[0].mxu0 %v3621
        %v3867 = vpop.f32.mrb[0].mxu0
        %v3868 = vadd.f32 0.0, %v3867
        %v3869 = vpop.f32.mrb[0].mxu0
        %v3870 = vpop.f32.mrb[0].mxu0
        %v3871 = vadd.f32 0.0, %v3870
        %v3872 = vpop.f32.mrb[0].mxu0
        %3873 = vmatprep.mubr.bf16.mxu0 0
        %3874 = vmatmul.mubr.bf16.gmra.mrb[0].mxu0 %v3622
        %v3875 = vpop.f32.mrb[0].mxu0
        %v3876 = vadd.f32 0.0, %v3875
        %v3877 = vpop.f32.mrb[0].mxu0
        %v3878 = vpop.f32.mrb[0].mxu0
        %v3879 = vadd.f32 0.0, %v3878
        %v3880 = vpop.f32.mrb[0].mxu0
        %3881 = vmatprep.mubr.bf16.mxu0 0
        %3882 = vmatmul.mubr.bf16.gmra.mrb[0].mxu0 %v3623
        %v3883 = vpop.f32.mrb[0].mxu0
        %v3884 = vadd.f32 0.0, %v3883
        %v3885 = vpop.f32.mrb[0].mxu0
        %v3886 = vpop.f32.mrb[0].mxu0
        %v3887 = vadd.f32 0.0, %v3886
        %v3888 = vpop.f32.mrb[0].mxu0
        %3889 = vmatprep.mubr.bf16.mxu0 0
        %3890 = vmatmul.mubr.bf16.gmra.mrb[0].mxu0 %v3624
        %v3891 = vpop.f32.mrb[0].mxu0
        %v3892 = vadd.f32 0.0, %v3891
        %v3893 = vpop.f32.mrb[0].mxu0
        %v3894 = vpop.f32.mrb[0].mxu0
        %v3895 = vadd.f32 0.0, %v3894
        %v3896 = vpop.f32.mrb[0].mxu0
        %3897 = vdwg.mxu0
        %v3914 = vunpack.c.l.b16 %v3376
        %v3915 = vunpack.c.l.b16 %v3377
        %v3916 = vunpack.c.l.b16 %v3378
        %v3917 = vunpack.c.l.b16 %v3379
        %v3918 = vunpack.c.l.b16 %v3380
        %v3919 = vunpack.c.l.b16 %v3381
        %v3920 = vunpack.c.l.b16 %v3382
        %v3921 = vunpack.c.l.b16 %v3383
        %v3922 = vunpack.c.l.b16 %v3384
        %v3923 = vunpack.c.l.b16 %v3385
        %v3924 = vunpack.c.l.b16 %v3386
        %v3925 = vunpack.c.l.b16 %v3387
        %v3926 = vunpack.c.l.b16 %v3388
        %v3927 = vunpack.c.l.b16 %v3389
        %v3928 = vunpack.c.l.b16 %v3390
        %v3929 = vunpack.c.l.b16 %v3391
        %v3930 = vpack.c.b16 %v3915, %v3914
        %v3931 = vpack.c.b16 %v3917, %v3916
        %v3932 = vpack.c.b16 %v3919, %v3918
        %v3933 = vpack.c.b16 %v3921, %v3920
        %v3934 = vpack.c.b16 %v3923, %v3922
        %v3935 = vpack.c.b16 %v3925, %v3924
        %v3936 = vpack.c.b16 %v3927, %v3926
        %v3937 = vpack.c.b16 %v3929, %v3928
        %3946 = vmatprep.subr.bf16.mxu0 0
        %3947 = vmatpush1.bf16.msra.mxu0 %v3930
        %3948 = vmatprep.subr.bf16.mxu0 0
        %3949 = vmatpush1.bf16.msra.mxu0 %v3931
        %3950 = vmatprep.subr.bf16.mxu0 0
        %3951 = vmatpush1.bf16.msra.mxu0 %v3932
        %3952 = vmatprep.subr.bf16.mxu0 0
        %3953 = vmatpush1.bf16.msra.mxu0 %v3933
        %3954 = vmatprep.subr.bf16.mxu0 0
        %3955 = vmatpush1.bf16.msra.mxu0 %v3934
        %3956 = vmatprep.subr.bf16.mxu0 0
        %3957 = vmatpush1.bf16.msra.mxu0 %v3935
        %3958 = vmatprep.subr.bf16.mxu0 0
        %3959 = vmatpush1.bf16.msra.mxu0 %v3936
        %3960 = vmatprep.subr.bf16.mxu0 0
        %3961 = vmatpush1.bf16.msra.mxu0 %v3937
        %3962 = vmatprep.subr.bf16.mxu0 0
        %3963 = vmatpush1.bf16.msra.mxu0 0
        %3964 = vmatprep.subr.bf16.mxu0 0
        %3965 = vmatpush1.bf16.msra.mxu0 0
        %3966 = vmatprep.subr.bf16.mxu0 0
        %3967 = vmatpush1.bf16.msra.mxu0 0
        %3968 = vmatprep.subr.bf16.mxu0 0
        %3969 = vmatpush1.bf16.msra.mxu0 0
        %3970 = vmatprep.subr.bf16.mxu0 0
        %3971 = vmatpush1.bf16.msra.mxu0 0
        %3972 = vmatprep.subr.bf16.mxu0 0
        %3973 = vmatpush1.bf16.msra.mxu0 0
        %3974 = vmatprep.subr.bf16.mxu0 0
        %3975 = vmatpush1.bf16.msra.mxu0 0
        %3976 = vmatprep.subr.bf16.mxu0 0
        %3977 = vmatpush1.bf16.msra.mxu0 0
        %3978 = vmatprep.mubr.bf16.mxu0 0
        %3979 = vmatmul.mubr.bf16.gmra.mrb[0].mxu0 %v3440
        %v3980 = vpop.f32.mrb[0].mxu0
        %v3981 = vadd.f32 %v3708, %v3980
        %v3982 = vpop.f32.mrb[0].mxu0
        %v3983 = vpop.f32.mrb[0].mxu0
        %v3984 = vadd.f32 %v3711, %v3983
        %v3985 = vpop.f32.mrb[0].mxu0
        %3986 = vmatprep.mubr.bf16.mxu0 0
        %3987 = vmatmul.mubr.bf16.gmra.mrb[0].mxu0 %v3441
        %v3988 = vpop.f32.mrb[0].mxu0
        %v3989 = vadd.f32 %v3716, %v3988
        %v3990 = vpop.f32.mrb[0].mxu0
        %v3991 = vpop.f32.mrb[0].mxu0
        %v3992 = vadd.f32 %v3719, %v3991
        %v3993 = vpop.f32.mrb[0].mxu0
        %3994 = vmatprep.mubr.bf16.mxu0 0
        %3995 = vmatmul.mubr.bf16.gmra.mrb[0].mxu0 %v3442
        %v3996 = vpop.f32.mrb[0].mxu0
        %v3997 = vadd.f32 %v3724, %v3996
        %v3998 = vpop.f32.mrb[0].mxu0
        %v3999 = vpop.f32.mrb[0].mxu0
        %v4000 = vadd.f32 %v3727, %v3999
        %v4001 = vpop.f32.mrb[0].mxu0
        %4002 = vmatprep.mubr.bf16.mxu0 0
        %4003 = vmatmul.mubr.bf16.gmra.mrb[0].mxu0 %v3443
        %v4004 = vpop.f32.mrb[0].mxu0
        %v4005 = vadd.f32 %v3732, %v4004
        %v4006 = vpop.f32.mrb[0].mxu0
        %v4007 = vpop.f32.mrb[0].mxu0
        %v4008 = vadd.f32 %v3735, %v4007
        %v4009 = vpop.f32.mrb[0].mxu0
        %4010 = vmatprep.mubr.bf16.mxu0 0
        %4011 = vmatmul.mubr.bf16.gmra.mrb[0].mxu0 %v3444
        %v4012 = vpop.f32.mrb[0].mxu0
        %v4013 = vadd.f32 %v3740, %v4012
        %v4014 = vpop.f32.mrb[0].mxu0
        %v4015 = vpop.f32.mrb[0].mxu0
        %v4016 = vadd.f32 %v3743, %v4015
        %v4017 = vpop.f32.mrb[0].mxu0
        %4018 = vmatprep.mubr.bf16.mxu0 0
        %4019 = vmatmul.mubr.bf16.gmra.mrb[0].mxu0 %v3445
        %v4020 = vpop.f32.mrb[0].mxu0
        %v4021 = vadd.f32 %v3748, %v4020
        %v4022 = vpop.f32.mrb[0].mxu0
        %v4023 = vpop.f32.mrb[0].mxu0
        %v4024 = vadd.f32 %v3751, %v4023
        %v4025 = vpop.f32.mrb[0].mxu0
        %4026 = vmatprep.mubr.bf16.mxu0 0
        %4027 = vmatmul.mubr.bf16.gmra.mrb[0].mxu0 %v3446
        %v4028 = vpop.f32.mrb[0].mxu0
        %v4029 = vadd.f32 %v3756, %v4028
        %v4030 = vpop.f32.mrb[0].mxu0
        %v4031 = vpop.f32.mrb[0].mxu0
        %v4032 = vadd.f32 %v3759, %v4031
        %v4033 = vpop.f32.mrb[0].mxu0
        %4034 = vmatprep.mubr.bf16.mxu0 0
        %4035 = vmatmul.mubr.bf16.gmra.mrb[0].mxu0 %v3447
        %v4036 = vpop.f32.mrb[0].mxu0
        %v4037 = vadd.f32 %v3764, %v4036
        %v4038 = vpop.f32.mrb[0].mxu0
        %v4039 = vpop.f32.mrb[0].mxu0
        %v4040 = vadd.f32 %v3767, %v4039
        %v4041 = vpop.f32.mrb[0].mxu0
        %4042 = vmatprep.mubr.bf16.mxu0 0
        %4043 = vmatmul.mubr.bf16.gmra.mrb[0].mxu0 %v3448
        %v4044 = vpop.f32.mrb[0].mxu0
        %v4045 = vadd.f32 %v3772, %v4044
        %v4046 = vpop.f32.mrb[0].mxu0
        %v4047 = vpop.f32.mrb[0].mxu0
        %v4048 = vadd.f32 %v3775, %v4047
        %v4049 = vpop.f32.mrb[0].mxu0
        %4050 = vmatprep.mubr.bf16.mxu0 0
        %4051 = vmatmul.mubr.bf16.gmra.mrb[0].mxu0 %v3449
        %v4052 = vpop.f32.mrb[0].mxu0
        %v4053 = vadd.f32 %v3780, %v4052
        %v4054 = vpop.f32.mrb[0].mxu0
        %v4055 = vpop.f32.mrb[0].mxu0
        %v4056 = vadd.f32 %v3783, %v4055
        %v4057 = vpop.f32.mrb[0].mxu0
        %4058 = vmatprep.mubr.bf16.mxu0 0
        %4059 = vmatmul.mubr.bf16.gmra.mrb[0].mxu0 %v3450
        %v4060 = vpop.f32.mrb[0].mxu0
        %v4061 = vadd.f32 %v3788, %v4060
        %v4062 = vpop.f32.mrb[0].mxu0
        %v4063 = vpop.f32.mrb[0].mxu0
        %v4064 = vadd.f32 %v3791, %v4063
        %v4065 = vpop.f32.mrb[0].mxu0
        %4066 = vmatprep.mubr.bf16.mxu0 0
        %4067 = vmatmul.mubr.bf16.gmra.mrb[0].mxu0 %v3451
        %v4068 = vpop.f32.mrb[0].mxu0
        %v4069 = vadd.f32 %v3796, %v4068
        %v4070 = vpop.f32.mrb[0].mxu0
        %v4071 = vpop.f32.mrb[0].mxu0
        %v4072 = vadd.f32 %v3799, %v4071
        %v4073 = vpop.f32.mrb[0].mxu0
        %4074 = vmatprep.mubr.bf16.mxu0 0
        %4075 = vmatmul.mubr.bf16.gmra.mrb[0].mxu0 %v3452
        %v4076 = vpop.f32.mrb[0].mxu0
        %v4077 = vadd.f32 %v3804, %v4076
        %v4078 = vpop.f32.mrb[0].mxu0
        %v4079 = vpop.f32.mrb[0].mxu0
        %v4080 = vadd.f32 %v3807, %v4079
        %v4081 = vpop.f32.mrb[0].mxu0
        %4082 = vmatprep.mubr.bf16.mxu0 0
        %4083 = vmatmul.mubr.bf16.gmra.mrb[0].mxu0 %v3453
        %v4084 = vpop.f32.mrb[0].mxu0
        %v4085 = vadd.f32 %v3812, %v4084
        %v4086 = vpop.f32.mrb[0].mxu0
        %v4087 = vpop.f32.mrb[0].mxu0
        %v4088 = vadd.f32 %v3815, %v4087
        %v4089 = vpop.f32.mrb[0].mxu0
        %4090 = vmatprep.mubr.bf16.mxu0 0
        %4091 = vmatmul.mubr.bf16.gmra.mrb[0].mxu0 %v3454
        %v4092 = vpop.f32.mrb[0].mxu0
        %v4093 = vadd.f32 %v3820, %v4092
        %v4094 = vpop.f32.mrb[0].mxu0
        %v4095 = vpop.f32.mrb[0].mxu0
        %v4096 = vadd.f32 %v3823, %v4095
        %v4097 = vpop.f32.mrb[0].mxu0
        %4098 = vmatprep.mubr.bf16.mxu0 0
        %4099 = vmatmul.mubr.bf16.gmra.mrb[0].mxu0 %v3455
        %v4100 = vpop.f32.mrb[0].mxu0
        %v4101 = vadd.f32 %v3828, %v4100
        %v4102 = vpop.f32.mrb[0].mxu0
        %v4103 = vpop.f32.mrb[0].mxu0
        %v4104 = vadd.f32 %v3831, %v4103
        %v4105 = vpop.f32.mrb[0].mxu0
        %4106 = vmatprep.mubr.bf16.mxu0 0
        %4107 = vmatmul.mubr.bf16.gmra.mrb[0].mxu0 %v3456
        %v4108 = vpop.f32.mrb[0].mxu0
        %v4109 = vadd.f32 %v3836, %v4108
        %v4110 = vpop.f32.mrb[0].mxu0
        %v4111 = vpop.f32.mrb[0].mxu0
        %v4112 = vadd.f32 %v3839, %v4111
        %v4113 = vpop.f32.mrb[0].mxu0
        %4114 = vmatprep.mubr.bf16.mxu0 0
        %4115 = vmatmul.mubr.bf16.gmra.mrb[0].mxu0 %v3457
        %v4116 = vpop.f32.mrb[0].mxu0
        %v4117 = vadd.f32 %v3844, %v4116
        %v4118 = vpop.f32.mrb[0].mxu0
        %v4119 = vpop.f32.mrb[0].mxu0
        %v4120 = vadd.f32 %v3847, %v4119
        %v4121 = vpop.f32.mrb[0].mxu0
        %4122 = vmatprep.mubr.bf16.mxu0 0
        %4123 = vmatmul.mubr.bf16.gmra.mrb[0].mxu0 %v3458
        %v4124 = vpop.f32.mrb[0].mxu0
        %v4125 = vadd.f32 %v3852, %v4124
        %v4126 = vpop.f32.mrb[0].mxu0
        %v4127 = vpop.f32.mrb[0].mxu0
        %v4128 = vadd.f32 %v3855, %v4127
        %v4129 = vpop.f32.mrb[0].mxu0
        %4130 = vmatprep.mubr.bf16.mxu0 0
        %4131 = vmatmul.mubr.bf16.gmra.mrb[0].mxu0 %v3459
        %v4132 = vpop.f32.mrb[0].mxu0
        %v4133 = vadd.f32 %v3860, %v4132
        %v4134 = vpop.f32.mrb[0].mxu0
        %v4135 = vpop.f32.mrb[0].mxu0
        %v4136 = vadd.f32 %v3863, %v4135
        %v4137 = vpop.f32.mrb[0].mxu0
        %4138 = vmatprep.mubr.bf16.mxu0 0
        %4139 = vmatmul.mubr.bf16.gmra.mrb[0].mxu0 %v3460
        %v4140 = vpop.f32.mrb[0].mxu0
        %v4141 = vadd.f32 %v3868, %v4140
        %v4142 = vpop.f32.mrb[0].mxu0
        %v4143 = vpop.f32.mrb[0].mxu0
        %v4144 = vadd.f32 %v3871, %v4143
        %v4145 = vpop.f32.mrb[0].mxu0
        %4146 = vmatprep.mubr.bf16.mxu0 0
        %4147 = vmatmul.mubr.bf16.gmra.mrb[0].mxu0 %v3461
        %v4148 = vpop.f32.mrb[0].mxu0
        %v4149 = vadd.f32 %v3876, %v4148
        %v4150 = vpop.f32.mrb[0].mxu0
        %v4151 = vpop.f32.mrb[0].mxu0
        %v4152 = vadd.f32 %v3879, %v4151
        %v4153 = vpop.f32.mrb[0].mxu0
        %4154 = vmatprep.mubr.bf16.mxu0 0
        %4155 = vmatmul.mubr.bf16.gmra.mrb[0].mxu0 %v3462
        %v4156 = vpop.f32.mrb[0].mxu0
        %v4157 = vadd.f32 %v3884, %v4156
        %v4158 = vpop.f32.mrb[0].mxu0
        %v4159 = vpop.f32.mrb[0].mxu0
        %v4160 = vadd.f32 %v3887, %v4159
        %v4161 = vpop.f32.mrb[0].mxu0
        %4162 = vmatprep.mubr.bf16.mxu0 0
        %4163 = vmatmul.mubr.bf16.gmra.mrb[0].mxu0 %v3463
        %v4164 = vpop.f32.mrb[0].mxu0
        %v4165 = vadd.f32 %v3892, %v4164
        %v4166 = vpop.f32.mrb[0].mxu0
        %v4167 = vpop.f32.mrb[0].mxu0
        %v4168 = vadd.f32 %v3895, %v4167
        %v4169 = vpop.f32.mrb[0].mxu0
        %4170 = vdwg.mxu0
        %v4171 = vld [vmem:[%s3267 + $0x8] sm:$0xff]
        %v4172 = vld [vmem:[%s3267 + $0x10] sm:$0xff]
        %v4173 = vld [vmem:[%s3267 + $0x18] sm:$0xff]
        %v4174 = vld [vmem:[%s3267 + $0x20] sm:$0xff]
        %v4175 = vld [vmem:[%s3267 + $0x28] sm:$0xff]
        %v4176 = vld [vmem:[%s3267 + $0x30] sm:$0xff]
        %v4177 = vld [vmem:[%s3267 + $0x38] sm:$0xff]
        %v4178 = vld [vmem:[%s3267 + $0x40] sm:$0xff]
        %v4179 = vld [vmem:[%s3267 + $0x48] sm:$0xff]
        %v4180 = vld [vmem:[%s3267 + $0x50] sm:$0xff]
        %v4181 = vld [vmem:[%s3267 + $0x58] sm:$0xff]
        %v4182 = vld [vmem:[%s3267 + $0x60] sm:$0xff]
        %v4183 = vld [vmem:[%s3267 + $0x68] sm:$0xff]
        %v4184 = vld [vmem:[%s3267 + $0x70] sm:$0xff]
        %v4185 = vld [vmem:[%s3267 + $0x78] sm:$0xff]
        %v4186 = vld [vmem:[%s3267 + $0x80] sm:$0xff]
        %v4187 = vld [vmem:[%s3267 + $0x88] sm:$0xff]
        %v4188 = vld [vmem:[%s3267 + $0x90] sm:$0xff]
        %v4189 = vld [vmem:[%s3267 + $0x98] sm:$0xff]
        %v4190 = vld [vmem:[%s3267 + $0xa0] sm:$0xff]
        %v4191 = vld [vmem:[%s3267 + $0xa8] sm:$0xff]
        %v4192 = vld [vmem:[%s3267 + $0xb0] sm:$0xff]
        %v4193 = vld [vmem:[%s3267 + $0xb8] sm:$0xff]
        %v4194 = vld [vmem:[%s3267 + $0xc0] sm:$0xff]
        %v4195 = vld [vmem:[%s3267 + $0xc8] sm:$0xff]
        %v4196 = vld [vmem:[%s3267 + $0xd0] sm:$0xff]
        %v4197 = vld [vmem:[%s3267 + $0xd8] sm:$0xff]
        %v4198 = vld [vmem:[%s3267 + $0xe0] sm:$0xff]
        %v4199 = vld [vmem:[%s3267 + $0xe8] sm:$0xff]
        %v4200 = vld [vmem:[%s3267 + $0xf0] sm:$0xff]
        %v4201 = vld [vmem:[%s3267 + $0xf8] sm:$0xff]
        %v4202 = vld [vmem:[%s3267 + $0x100] sm:$0xff]
        %v4203 = vld [vmem:[%s3267 + $0x108] sm:$0xff]
        %v4204 = vld [vmem:[%s3267 + $0x110] sm:$0xff]
        %v4205 = vld [vmem:[%s3267 + $0x118] sm:$0xff]
        %v4206 = vld [vmem:[%s3267 + $0x120] sm:$0xff]
        %v4207 = vld [vmem:[%s3267 + $0x128] sm:$0xff]
        %v4208 = vld [vmem:[%s3267 + $0x130] sm:$0xff]
        %v4209 = vld [vmem:[%s3267 + $0x138] sm:$0xff]
        %v4210 = vld [vmem:[%s3267 + $0x140] sm:$0xff]
        %v4211 = vld [vmem:[%s3267 + $0x148] sm:$0xff]
        %v4212 = vld [vmem:[%s3267 + $0x150] sm:$0xff]
        %v4213 = vld [vmem:[%s3267 + $0x158] sm:$0xff]
        %v4214 = vld [vmem:[%s3267 + $0x160] sm:$0xff]
        %v4215 = vld [vmem:[%s3267 + $0x168] sm:$0xff]
        %v4216 = vld [vmem:[%s3267 + $0x170] sm:$0xff]
        %v4217 = vld [vmem:[%s3267 + $0x178] sm:$0xff]
        %v4218 = vld [vmem:[%s3267 + $0x180] sm:$0xff]
        %v4219 = vpack.c.bf16 %v4172, %v4171
        %v4220 = vpack.c.bf16 %v4174, %v4173
        %v4221 = vpack.c.bf16 %v4176, %v4175
        %v4222 = vpack.c.bf16 %v4178, %v4177
        %v4223 = vpack.c.bf16 %v4180, %v4179
        %v4224 = vpack.c.bf16 %v4182, %v4181
        %v4225 = vpack.c.bf16 %v4184, %v4183
        %v4226 = vpack.c.bf16 %v4186, %v4185
        %v4227 = vpack.c.bf16 %v4188, %v4187
        %v4228 = vpack.c.bf16 %v4190, %v4189
        %v4229 = vpack.c.bf16 %v4192, %v4191
        %v4230 = vpack.c.bf16 %v4194, %v4193
        %v4231 = vpack.c.bf16 %v4196, %v4195
        %v4232 = vpack.c.bf16 %v4198, %v4197
        %v4233 = vpack.c.bf16 %v4200, %v4199
        %v4234 = vpack.c.bf16 %v4202, %v4201
        %v4235 = vpack.c.bf16 %v4204, %v4203
        %v4236 = vpack.c.bf16 %v4206, %v4205
        %v4237 = vpack.c.bf16 %v4208, %v4207
        %v4238 = vpack.c.bf16 %v4210, %v4209
        %v4239 = vpack.c.bf16 %v4212, %v4211
        %v4240 = vpack.c.bf16 %v4214, %v4213
        %v4241 = vpack.c.bf16 %v4216, %v4215
        %v4242 = vpack.c.bf16 %v4218, %v4217
        %4243 = vmatprep.subr.bf16.mxu0 0
        %4244 = vmatpush1.bf16.msra.mxu0 %v3657
        %4245 = vmatprep.subr.bf16.mxu0 0
        %4246 = vmatpush1.bf16.msra.mxu0 %v3658
        %4247 = vmatprep.subr.bf16.mxu0 0
        %4248 = vmatpush1.bf16.msra.mxu0 %v3659
        %4249 = vmatprep.subr.bf16.mxu0 0
        %4250 = vmatpush1.bf16.msra.mxu0 %v3660
        %4251 = vmatprep.subr.bf16.mxu0 0
        %4252 = vmatpush1.bf16.msra.mxu0 %v3661
        %4253 = vmatprep.subr.bf16.mxu0 0
        %4254 = vmatpush1.bf16.msra.mxu0 %v3662
        %4255 = vmatprep.subr.bf16.mxu0 0
        %4256 = vmatpush1.bf16.msra.mxu0 %v3663
        %4257 = vmatprep.subr.bf16.mxu0 0
        %4258 = vmatpush1.bf16.msra.mxu0 %v3664
        %4259 = vmatprep.subr.bf16.mxu0 0
        %4260 = vmatpush1.bf16.msra.mxu0 0
        %4261 = vmatprep.subr.bf16.mxu0 0
        %4262 = vmatpush1.bf16.msra.mxu0 0
        %4263 = vmatprep.subr.bf16.mxu0 0
        %4264 = vmatpush1.bf16.msra.mxu0 0
        %4265 = vmatprep.subr.bf16.mxu0 0
        %4266 = vmatpush1.bf16.msra.mxu0 0
        %4267 = vmatprep.subr.bf16.mxu0 0
        %4268 = vmatpush1.bf16.msra.mxu0 0
        %4269 = vmatprep.subr.bf16.mxu0 0
        %4270 = vmatpush1.bf16.msra.mxu0 0
        %4271 = vmatprep.subr.bf16.mxu0 0
        %4272 = vmatpush1.bf16.msra.mxu0 0
        %4273 = vmatprep.subr.bf16.mxu0 0
        %4274 = vmatpush1.bf16.msra.mxu0 0
        %4275 = vmatprep.mubr.bf16.mxu0 0
        %4276 = vmatmul.mubr.bf16.gmra.mrb[0].mxu0 %v4219
        %v4277 = vpop.f32.mrb[0].mxu0
        %v4278 = vadd.f32 0.0, %v4277
        %v4279 = vpop.f32.mrb[0].mxu0
        %v4280 = vpop.f32.mrb[0].mxu0
        %v4281 = vadd.f32 0.0, %v4280
        %v4282 = vpop.f32.mrb[0].mxu0
        %4283 = vmatprep.mubr.bf16.mxu0 0
        %4284 = vmatmul.mubr.bf16.gmra.mrb[0].mxu0 %v4220
        %v4285 = vpop.f32.mrb[0].mxu0
        %v4286 = vadd.f32 0.0, %v4285
        %v4287 = vpop.f32.mrb[0].mxu0
        %v4288 = vpop.f32.mrb[0].mxu0
        %v4289 = vadd.f32 0.0, %v4288
        %v4290 = vpop.f32.mrb[0].mxu0
        %4291 = vmatprep.mubr.bf16.mxu0 0
        %4292 = vmatmul.mubr.bf16.gmra.mrb[0].mxu0 %v4221
        %v4293 = vpop.f32.mrb[0].mxu0
        %v4294 = vadd.f32 0.0, %v4293
        %v4295 = vpop.f32.mrb[0].mxu0
        %v4296 = vpop.f32.mrb[0].mxu0
        %v4297 = vadd.f32 0.0, %v4296
        %v4298 = vpop.f32.mrb[0].mxu0
        %4299 = vmatprep.mubr.bf16.mxu0 0
        %4300 = vmatmul.mubr.bf16.gmra.mrb[0].mxu0 %v4222
        %v4301 = vpop.f32.mrb[0].mxu0
        %v4302 = vadd.f32 0.0, %v4301
        %v4303 = vpop.f32.mrb[0].mxu0
        %v4304 = vpop.f32.mrb[0].mxu0
        %v4305 = vadd.f32 0.0, %v4304
        %v4306 = vpop.f32.mrb[0].mxu0
        %4307 = vmatprep.mubr.bf16.mxu0 0
        %4308 = vmatmul.mubr.bf16.gmra.mrb[0].mxu0 %v4223
        %v4309 = vpop.f32.mrb[0].mxu0
        %v4310 = vadd.f32 0.0, %v4309
        %v4311 = vpop.f32.mrb[0].mxu0
        %v4312 = vpop.f32.mrb[0].mxu0
        %v4313 = vadd.f32 0.0, %v4312
        %v4314 = vpop.f32.mrb[0].mxu0
        %4315 = vmatprep.mubr.bf16.mxu0 0
        %4316 = vmatmul.mubr.bf16.gmra.mrb[0].mxu0 %v4224
        %v4317 = vpop.f32.mrb[0].mxu0
        %v4318 = vadd.f32 0.0, %v4317
        %v4319 = vpop.f32.mrb[0].mxu0
        %v4320 = vpop.f32.mrb[0].mxu0
        %v4321 = vadd.f32 0.0, %v4320
        %v4322 = vpop.f32.mrb[0].mxu0
        %4323 = vmatprep.mubr.bf16.mxu0 0
        %4324 = vmatmul.mubr.bf16.gmra.mrb[0].mxu0 %v4225
        %v4325 = vpop.f32.mrb[0].mxu0
        %v4326 = vadd.f32 0.0, %v4325
        %v4327 = vpop.f32.mrb[0].mxu0
        %v4328 = vpop.f32.mrb[0].mxu0
        %v4329 = vadd.f32 0.0, %v4328
        %v4330 = vpop.f32.mrb[0].mxu0
        %4331 = vmatprep.mubr.bf16.mxu0 0
        %4332 = vmatmul.mubr.bf16.gmra.mrb[0].mxu0 %v4226
        %v4333 = vpop.f32.mrb[0].mxu0
        %v4334 = vadd.f32 0.0, %v4333
        %v4335 = vpop.f32.mrb[0].mxu0
        %v4336 = vpop.f32.mrb[0].mxu0
        %v4337 = vadd.f32 0.0, %v4336
        %v4338 = vpop.f32.mrb[0].mxu0
        %4339 = vmatprep.mubr.bf16.mxu0 0
        %4340 = vmatmul.mubr.bf16.gmra.mrb[0].mxu0 %v4227
        %v4341 = vpop.f32.mrb[0].mxu0
        %v4342 = vadd.f32 0.0, %v4341
        %v4343 = vpop.f32.mrb[0].mxu0
        %v4344 = vpop.f32.mrb[0].mxu0
        %v4345 = vadd.f32 0.0, %v4344
        %v4346 = vpop.f32.mrb[0].mxu0
        %4347 = vmatprep.mubr.bf16.mxu0 0
        %4348 = vmatmul.mubr.bf16.gmra.mrb[0].mxu0 %v4228
        %v4349 = vpop.f32.mrb[0].mxu0
        %v4350 = vadd.f32 0.0, %v4349
        %v4351 = vpop.f32.mrb[0].mxu0
        %v4352 = vpop.f32.mrb[0].mxu0
        %v4353 = vadd.f32 0.0, %v4352
        %v4354 = vpop.f32.mrb[0].mxu0
        %4355 = vmatprep.mubr.bf16.mxu0 0
        %4356 = vmatmul.mubr.bf16.gmra.mrb[0].mxu0 %v4229
        %v4357 = vpop.f32.mrb[0].mxu0
        %v4358 = vadd.f32 0.0, %v4357
        %v4359 = vpop.f32.mrb[0].mxu0
        %v4360 = vpop.f32.mrb[0].mxu0
        %v4361 = vadd.f32 0.0, %v4360
        %v4362 = vpop.f32.mrb[0].mxu0
        %4363 = vmatprep.mubr.bf16.mxu0 0
        %4364 = vmatmul.mubr.bf16.gmra.mrb[0].mxu0 %v4230
        %v4365 = vpop.f32.mrb[0].mxu0
        %v4366 = vadd.f32 0.0, %v4365
        %v4367 = vpop.f32.mrb[0].mxu0
        %v4368 = vpop.f32.mrb[0].mxu0
        %v4369 = vadd.f32 0.0, %v4368
        %v4370 = vpop.f32.mrb[0].mxu0
        %4371 = vmatprep.mubr.bf16.mxu0 0
        %4372 = vmatmul.mubr.bf16.gmra.mrb[0].mxu0 %v4231
        %v4373 = vpop.f32.mrb[0].mxu0
        %v4374 = vadd.f32 0.0, %v4373
        %v4375 = vpop.f32.mrb[0].mxu0
        %v4376 = vpop.f32.mrb[0].mxu0
        %v4377 = vadd.f32 0.0, %v4376
        %v4378 = vpop.f32.mrb[0].mxu0
        %4379 = vmatprep.mubr.bf16.mxu0 0
        %4380 = vmatmul.mubr.bf16.gmra.mrb[0].mxu0 %v4232
        %v4381 = vpop.f32.mrb[0].mxu0
        %v4382 = vadd.f32 0.0, %v4381
        %v4383 = vpop.f32.mrb[0].mxu0
        %v4384 = vpop.f32.mrb[0].mxu0
        %v4385 = vadd.f32 0.0, %v4384
        %v4386 = vpop.f32.mrb[0].mxu0
        %4387 = vmatprep.mubr.bf16.mxu0 0
        %4388 = vmatmul.mubr.bf16.gmra.mrb[0].mxu0 %v4233
        %v4389 = vpop.f32.mrb[0].mxu0
        %v4390 = vadd.f32 0.0, %v4389
        %v4391 = vpop.f32.mrb[0].mxu0
        %v4392 = vpop.f32.mrb[0].mxu0
        %v4393 = vadd.f32 0.0, %v4392
        %v4394 = vpop.f32.mrb[0].mxu0
        %4395 = vmatprep.mubr.bf16.mxu0 0
        %4396 = vmatmul.mubr.bf16.gmra.mrb[0].mxu0 %v4234
        %v4397 = vpop.f32.mrb[0].mxu0
        %v4398 = vadd.f32 0.0, %v4397
        %v4399 = vpop.f32.mrb[0].mxu0
        %v4400 = vpop.f32.mrb[0].mxu0
        %v4401 = vadd.f32 0.0, %v4400
        %v4402 = vpop.f32.mrb[0].mxu0
        %4403 = vmatprep.mubr.bf16.mxu0 0
        %4404 = vmatmul.mubr.bf16.gmra.mrb[0].mxu0 %v4235
        %v4405 = vpop.f32.mrb[0].mxu0
        %v4406 = vadd.f32 0.0, %v4405
        %v4407 = vpop.f32.mrb[0].mxu0
        %v4408 = vpop.f32.mrb[0].mxu0
        %v4409 = vadd.f32 0.0, %v4408
        %v4410 = vpop.f32.mrb[0].mxu0
        %4411 = vmatprep.mubr.bf16.mxu0 0
        %4412 = vmatmul.mubr.bf16.gmra.mrb[0].mxu0 %v4236
        %v4413 = vpop.f32.mrb[0].mxu0
        %v4414 = vadd.f32 0.0, %v4413
        %v4415 = vpop.f32.mrb[0].mxu0
        %v4416 = vpop.f32.mrb[0].mxu0
        %v4417 = vadd.f32 0.0, %v4416
        %v4418 = vpop.f32.mrb[0].mxu0
        %4419 = vmatprep.mubr.bf16.mxu0 0
        %4420 = vmatmul.mubr.bf16.gmra.mrb[0].mxu0 %v4237
        %v4421 = vpop.f32.mrb[0].mxu0
        %v4422 = vadd.f32 0.0, %v4421
        %v4423 = vpop.f32.mrb[0].mxu0
        %v4424 = vpop.f32.mrb[0].mxu0
        %v4425 = vadd.f32 0.0, %v4424
        %v4426 = vpop.f32.mrb[0].mxu0
        %4427 = vmatprep.mubr.bf16.mxu0 0
        %4428 = vmatmul.mubr.bf16.gmra.mrb[0].mxu0 %v4238
        %v4429 = vpop.f32.mrb[0].mxu0
        %v4430 = vadd.f32 0.0, %v4429
        %v4431 = vpop.f32.mrb[0].mxu0
        %v4432 = vpop.f32.mrb[0].mxu0
        %v4433 = vadd.f32 0.0, %v4432
        %v4434 = vpop.f32.mrb[0].mxu0
        %4435 = vmatprep.mubr.bf16.mxu0 0
        %4436 = vmatmul.mubr.bf16.gmra.mrb[0].mxu0 %v4239
        %v4437 = vpop.f32.mrb[0].mxu0
        %v4438 = vadd.f32 0.0, %v4437
        %v4439 = vpop.f32.mrb[0].mxu0
        %v4440 = vpop.f32.mrb[0].mxu0
        %v4441 = vadd.f32 0.0, %v4440
        %v4442 = vpop.f32.mrb[0].mxu0
        %4443 = vmatprep.mubr.bf16.mxu0 0
        %4444 = vmatmul.mubr.bf16.gmra.mrb[0].mxu0 %v4240
        %v4445 = vpop.f32.mrb[0].mxu0
        %v4446 = vadd.f32 0.0, %v4445
        %v4447 = vpop.f32.mrb[0].mxu0
        %v4448 = vpop.f32.mrb[0].mxu0
        %v4449 = vadd.f32 0.0, %v4448
        %v4450 = vpop.f32.mrb[0].mxu0
        %4451 = vmatprep.mubr.bf16.mxu0 0
        %4452 = vmatmul.mubr.bf16.gmra.mrb[0].mxu0 %v4241
        %v4453 = vpop.f32.mrb[0].mxu0
        %v4454 = vadd.f32 0.0, %v4453
        %v4455 = vpop.f32.mrb[0].mxu0
        %v4456 = vpop.f32.mrb[0].mxu0
        %v4457 = vadd.f32 0.0, %v4456
        %v4458 = vpop.f32.mrb[0].mxu0
        %4459 = vmatprep.mubr.bf16.mxu0 0
        %4460 = vmatmul.mubr.bf16.gmra.mrb[0].mxu0 %v4242
        %v4461 = vpop.f32.mrb[0].mxu0
        %v4462 = vadd.f32 0.0, %v4461
        %v4463 = vpop.f32.mrb[0].mxu0
        %v4464 = vpop.f32.mrb[0].mxu0
        %v4465 = vadd.f32 0.0, %v4464
        %v4466 = vpop.f32.mrb[0].mxu0
        %4467 = vdwg.mxu0
        %4468 = vmatprep.subr.bf16.mxu0 0
        %4469 = vmatpush1.bf16.msra.mxu0 %v3930
        %4470 = vmatprep.subr.bf16.mxu0 0
        %4471 = vmatpush1.bf16.msra.mxu0 %v3931
        %4472 = vmatprep.subr.bf16.mxu0 0
        %4473 = vmatpush1.bf16.msra.mxu0 %v3932
        %4474 = vmatprep.subr.bf16.mxu0 0
        %4475 = vmatpush1.bf16.msra.mxu0 %v3933
        %4476 = vmatprep.subr.bf16.mxu0 0
        %4477 = vmatpush1.bf16.msra.mxu0 %v3934
        %4478 = vmatprep.subr.bf16.mxu0 0
        %4479 = vmatpush1.bf16.msra.mxu0 %v3935
        %4480 = vmatprep.subr.bf16.mxu0 0
        %4481 = vmatpush1.bf16.msra.mxu0 %v3936
        %4482 = vmatprep.subr.bf16.mxu0 0
        %4483 = vmatpush1.bf16.msra.mxu0 %v3937
        %4484 = vmatprep.subr.bf16.mxu0 0
        %4485 = vmatpush1.bf16.msra.mxu0 0
        %4486 = vmatprep.subr.bf16.mxu0 0
        %4487 = vmatpush1.bf16.msra.mxu0 0
        %4488 = vmatprep.subr.bf16.mxu0 0
        %4489 = vmatpush1.bf16.msra.mxu0 0
        %4490 = vmatprep.subr.bf16.mxu0 0
        %4491 = vmatpush1.bf16.msra.mxu0 0
        %4492 = vmatprep.subr.bf16.mxu0 0
        %4493 = vmatpush1.bf16.msra.mxu0 0
        %4494 = vmatprep.subr.bf16.mxu0 0
        %4495 = vmatpush1.bf16.msra.mxu0 0
        %4496 = vmatprep.subr.bf16.mxu0 0
        %4497 = vmatpush1.bf16.msra.mxu0 0
        %4498 = vmatprep.subr.bf16.mxu0 0
        %4499 = vmatpush1.bf16.msra.mxu0 0
        %4500 = vmatprep.mubr.bf16.mxu0 0
        %4501 = vmatmul.mubr.bf16.gmra.mrb[0].mxu0 %v3512
        %v4502 = vpop.f32.mrb[0].mxu0
        %v4503 = vadd.f32 %v4278, %v4502
        %v4504 = vpop.f32.mrb[0].mxu0
        %v4505 = vpop.f32.mrb[0].mxu0
        %v4506 = vadd.f32 %v4281, %v4505
        %v4507 = vpop.f32.mrb[0].mxu0
        %4508 = vmatprep.mubr.bf16.mxu0 0
        %4509 = vmatmul.mubr.bf16.gmra.mrb[0].mxu0 %v3513
        %v4510 = vpop.f32.mrb[0].mxu0
        %v4511 = vadd.f32 %v4286, %v4510
        %v4512 = vpop.f32.mrb[0].mxu0
        %v4513 = vpop.f32.mrb[0].mxu0
        %v4514 = vadd.f32 %v4289, %v4513
        %v4515 = vpop.f32.mrb[0].mxu0
        %4516 = vmatprep.mubr.bf16.mxu0 0
        %4517 = vmatmul.mubr.bf16.gmra.mrb[0].mxu0 %v3514
        %v4518 = vpop.f32.mrb[0].mxu0
        %v4519 = vadd.f32 %v4294, %v4518
        %v4520 = vpop.f32.mrb[0].mxu0
        %v4521 = vpop.f32.mrb[0].mxu0
        %v4522 = vadd.f32 %v4297, %v4521
        %v4523 = vpop.f32.mrb[0].mxu0
        %4524 = vmatprep.mubr.bf16.mxu0 0
        %4525 = vmatmul.mubr.bf16.gmra.mrb[0].mxu0 %v3515
        %v4526 = vpop.f32.mrb[0].mxu0
        %v4527 = vadd.f32 %v4302, %v4526
        %v4528 = vpop.f32.mrb[0].mxu0
        %v4529 = vpop.f32.mrb[0].mxu0
        %v4530 = vadd.f32 %v4305, %v4529
        %v4531 = vpop.f32.mrb[0].mxu0
        %4532 = vmatprep.mubr.bf16.mxu0 0
        %4533 = vmatmul.mubr.bf16.gmra.mrb[0].mxu0 %v3516
        %v4534 = vpop.f32.mrb[0].mxu0
        %v4535 = vadd.f32 %v4310, %v4534
        %v4536 = vpop.f32.mrb[0].mxu0
        %v4537 = vpop.f32.mrb[0].mxu0
        %v4538 = vadd.f32 %v4313, %v4537
        %v4539 = vpop.f32.mrb[0].mxu0
        %4540 = vmatprep.mubr.bf16.mxu0 0
        %4541 = vmatmul.mubr.bf16.gmra.mrb[0].mxu0 %v3517
        %v4542 = vpop.f32.mrb[0].mxu0
        %v4543 = vadd.f32 %v4318, %v4542
        %v4544 = vpop.f32.mrb[0].mxu0
        %v4545 = vpop.f32.mrb[0].mxu0
        %v4546 = vadd.f32 %v4321, %v4545
        %v4547 = vpop.f32.mrb[0].mxu0
        %4548 = vmatprep.mubr.bf16.mxu0 0
        %4549 = vmatmul.mubr.bf16.gmra.mrb[0].mxu0 %v3518
        %v4550 = vpop.f32.mrb[0].mxu0
        %v4551 = vadd.f32 %v4326, %v4550
        %v4552 = vpop.f32.mrb[0].mxu0
        %v4553 = vpop.f32.mrb[0].mxu0
        %v4554 = vadd.f32 %v4329, %v4553
        %v4555 = vpop.f32.mrb[0].mxu0
        %4556 = vmatprep.mubr.bf16.mxu0 0
        %4557 = vmatmul.mubr.bf16.gmra.mrb[0].mxu0 %v3519
        %v4558 = vpop.f32.mrb[0].mxu0
        %v4559 = vadd.f32 %v4334, %v4558
        %v4560 = vpop.f32.mrb[0].mxu0
        %v4561 = vpop.f32.mrb[0].mxu0
        %v4562 = vadd.f32 %v4337, %v4561
        %v4563 = vpop.f32.mrb[0].mxu0
        %4564 = vmatprep.mubr.bf16.mxu0 0
        %4565 = vmatmul.mubr.bf16.gmra.mrb[0].mxu0 %v3520
        %v4566 = vpop.f32.mrb[0].mxu0
        %v4567 = vadd.f32 %v4342, %v4566
        %v4568 = vpop.f32.mrb[0].mxu0
        %v4569 = vpop.f32.mrb[0].mxu0
        %v4570 = vadd.f32 %v4345, %v4569
        %v4571 = vpop.f32.mrb[0].mxu0
        %4572 = vmatprep.mubr.bf16.mxu0 0
        %4573 = vmatmul.mubr.bf16.gmra.mrb[0].mxu0 %v3521
        %v4574 = vpop.f32.mrb[0].mxu0
        %v4575 = vadd.f32 %v4350, %v4574
        %v4576 = vpop.f32.mrb[0].mxu0
        %v4577 = vpop.f32.mrb[0].mxu0
        %v4578 = vadd.f32 %v4353, %v4577
        %v4579 = vpop.f32.mrb[0].mxu0
        %4580 = vmatprep.mubr.bf16.mxu0 0
        %4581 = vmatmul.mubr.bf16.gmra.mrb[0].mxu0 %v3522
        %v4582 = vpop.f32.mrb[0].mxu0
        %v4583 = vadd.f32 %v4358, %v4582
        %v4584 = vpop.f32.mrb[0].mxu0
        %v4585 = vpop.f32.mrb[0].mxu0
        %v4586 = vadd.f32 %v4361, %v4585
        %v4587 = vpop.f32.mrb[0].mxu0
        %4588 = vmatprep.mubr.bf16.mxu0 0
        %4589 = vmatmul.mubr.bf16.gmra.mrb[0].mxu0 %v3523
        %v4590 = vpop.f32.mrb[0].mxu0
        %v4591 = vadd.f32 %v4366, %v4590
        %v4592 = vpop.f32.mrb[0].mxu0
        %v4593 = vpop.f32.mrb[0].mxu0
        %v4594 = vadd.f32 %v4369, %v4593
        %v4595 = vpop.f32.mrb[0].mxu0
        %4596 = vmatprep.mubr.bf16.mxu0 0
        %4597 = vmatmul.mubr.bf16.gmra.mrb[0].mxu0 %v3524
        %v4598 = vpop.f32.mrb[0].mxu0
        %v4599 = vadd.f32 %v4374, %v4598
        %v4600 = vpop.f32.mrb[0].mxu0
        %v4601 = vpop.f32.mrb[0].mxu0
        %v4602 = vadd.f32 %v4377, %v4601
        %v4603 = vpop.f32.mrb[0].mxu0
        %4604 = vmatprep.mubr.bf16.mxu0 0
        %4605 = vmatmul.mubr.bf16.gmra.mrb[0].mxu0 %v3525
        %v4606 = vpop.f32.mrb[0].mxu0
        %v4607 = vadd.f32 %v4382, %v4606
        %v4608 = vpop.f32.mrb[0].mxu0
        %v4609 = vpop.f32.mrb[0].mxu0
        %v4610 = vadd.f32 %v4385, %v4609
        %v4611 = vpop.f32.mrb[0].mxu0
        %4612 = vmatprep.mubr.bf16.mxu0 0
        %4613 = vmatmul.mubr.bf16.gmra.mrb[0].mxu0 %v3526
        %v4614 = vpop.f32.mrb[0].mxu0
        %v4615 = vadd.f32 %v4390, %v4614
        %v4616 = vpop.f32.mrb[0].mxu0
        %v4617 = vpop.f32.mrb[0].mxu0
        %v4618 = vadd.f32 %v4393, %v4617
        %v4619 = vpop.f32.mrb[0].mxu0
        %4620 = vmatprep.mubr.bf16.mxu0 0
        %4621 = vmatmul.mubr.bf16.gmra.mrb[0].mxu0 %v3527
        %v4622 = vpop.f32.mrb[0].mxu0
        %v4623 = vadd.f32 %v4398, %v4622
        %v4624 = vpop.f32.mrb[0].mxu0
        %v4625 = vpop.f32.mrb[0].mxu0
        %v4626 = vadd.f32 %v4401, %v4625
        %v4627 = vpop.f32.mrb[0].mxu0
        %4628 = vmatprep.mubr.bf16.mxu0 0
        %4629 = vmatmul.mubr.bf16.gmra.mrb[0].mxu0 %v3528
        %v4630 = vpop.f32.mrb[0].mxu0
        %v4631 = vadd.f32 %v4406, %v4630
        %v4632 = vpop.f32.mrb[0].mxu0
        %v4633 = vpop.f32.mrb[0].mxu0
        %v4634 = vadd.f32 %v4409, %v4633
        %v4635 = vpop.f32.mrb[0].mxu0
        %4636 = vmatprep.mubr.bf16.mxu0 0
        %4637 = vmatmul.mubr.bf16.gmra.mrb[0].mxu0 %v3529
        %v4638 = vpop.f32.mrb[0].mxu0
        %v4639 = vadd.f32 %v4414, %v4638
        %v4640 = vpop.f32.mrb[0].mxu0
        %v4641 = vpop.f32.mrb[0].mxu0
        %v4642 = vadd.f32 %v4417, %v4641
        %v4643 = vpop.f32.mrb[0].mxu0
        %4644 = vmatprep.mubr.bf16.mxu0 0
        %4645 = vmatmul.mubr.bf16.gmra.mrb[0].mxu0 %v3530
        %v4646 = vpop.f32.mrb[0].mxu0
        %v4647 = vadd.f32 %v4422, %v4646
        %v4648 = vpop.f32.mrb[0].mxu0
        %v4649 = vpop.f32.mrb[0].mxu0
        %v4650 = vadd.f32 %v4425, %v4649
        %v4651 = vpop.f32.mrb[0].mxu0
        %4652 = vmatprep.mubr.bf16.mxu0 0
        %4653 = vmatmul.mubr.bf16.gmra.mrb[0].mxu0 %v3531
        %v4654 = vpop.f32.mrb[0].mxu0
        %v4655 = vadd.f32 %v4430, %v4654
        %v4656 = vpop.f32.mrb[0].mxu0
        %v4657 = vpop.f32.mrb[0].mxu0
        %v4658 = vadd.f32 %v4433, %v4657
        %v4659 = vpop.f32.mrb[0].mxu0
        %4660 = vmatprep.mubr.bf16.mxu0 0
        %4661 = vmatmul.mubr.bf16.gmra.mrb[0].mxu0 %v3532
        %v4662 = vpop.f32.mrb[0].mxu0
        %v4663 = vadd.f32 %v4438, %v4662
        %v4664 = vpop.f32.mrb[0].mxu0
        %v4665 = vpop.f32.mrb[0].mxu0
        %v4666 = vadd.f32 %v4441, %v4665
        %v4667 = vpop.f32.mrb[0].mxu0
        %4668 = vmatprep.mubr.bf16.mxu0 0
        %4669 = vmatmul.mubr.bf16.gmra.mrb[0].mxu0 %v3533
        %v4670 = vpop.f32.mrb[0].mxu0
        %v4671 = vadd.f32 %v4446, %v4670
        %v4672 = vpop.f32.mrb[0].mxu0
        %v4673 = vpop.f32.mrb[0].mxu0
        %v4674 = vadd.f32 %v4449, %v4673
        %v4675 = vpop.f32.mrb[0].mxu0
        %4676 = vmatprep.mubr.bf16.mxu0 0
        %4677 = vmatmul.mubr.bf16.gmra.mrb[0].mxu0 %v3534
        %v4678 = vpop.f32.mrb[0].mxu0
        %v4679 = vadd.f32 %v4454, %v4678
        %v4680 = vpop.f32.mrb[0].mxu0
        %v4681 = vpop.f32.mrb[0].mxu0
        %v4682 = vadd.f32 %v4457, %v4681
        %v4683 = vpop.f32.mrb[0].mxu0
        %4684 = vmatprep.mubr.bf16.mxu0 0
        %4685 = vmatmul.mubr.bf16.gmra.mrb[0].mxu0 %v3535
        %v4686 = vpop.f32.mrb[0].mxu0
        %v4687 = vadd.f32 %v4462, %v4686
        %v4688 = vpop.f32.mrb[0].mxu0
        %v4689 = vpop.f32.mrb[0].mxu0
        %v4690 = vadd.f32 %v4465, %v4689
        %v4691 = vpop.f32.mrb[0].mxu0
        %4692 = vdwg.mxu0
        %s4693 = scalar_lea.vmem %s3, 128
        %v4694 = vld [vmem:[%s4693] sm:$0xf]
        %v4695 = vld [vmem:[%s4693 + $0x4] sm:$0xf]
        %v4696 = vld [vmem:[%s4693 + $0x8] sm:$0xf]
        %v4697 = vld [vmem:[%s4693 + $0xc] sm:$0xf]
        %v4698 = vld [vmem:[%s4693 + $0x10] sm:$0xf]
        %v4699 = vld [vmem:[%s4693 + $0x14] sm:$0xf]
        %v4700 = vld [vmem:[%s4693 + $0x18] sm:$0xf]
        %v4701 = vld [vmem:[%s4693 + $0x1c] sm:$0xf]
        %v4702 = vld [vmem:[%s4693 + $0x20] sm:$0xf]
        %v4703 = vld [vmem:[%s4693 + $0x24] sm:$0xf]
        %v4704 = vld [vmem:[%s4693 + $0x28] sm:$0xf]
        %v4705 = vld [vmem:[%s4693 + $0x2c] sm:$0xf]
        %v4706 = vld [vmem:[%s4693 + $0x30] sm:$0xf]
        %v4707 = vld [vmem:[%s4693 + $0x34] sm:$0xf]
        %v4708 = vld [vmem:[%s4693 + $0x38] sm:$0xf]
        %v4709 = vld [vmem:[%s4693 + $0x3c] sm:$0xf]
        %v4710 = vld [vmem:[#allocation2 + $0x9] sm:$0xff]
        %v4711 = vld [vmem:[#allocation2 + $0x11] sm:$0xff]
        %v4712 = vld [vmem:[#allocation2 + $0x19] sm:$0xff]
        %v4713 = vld [vmem:[#allocation2 + $0x21] sm:$0xff]
        %v4714 = vld [vmem:[#allocation2 + $0x29] sm:$0xff]
        %v4715 = vld [vmem:[#allocation2 + $0x31] sm:$0xff]
        %v4716 = vld [vmem:[#allocation2 + $0x39] sm:$0xff]
        %v4717 = vld [vmem:[#allocation2 + $0x41] sm:$0xff]
        %v4718 = vld [vmem:[#allocation2 + $0x49] sm:$0xff]
        %v4719 = vld [vmem:[#allocation2 + $0x51] sm:$0xff]
        %v4720 = vld [vmem:[#allocation2 + $0x59] sm:$0xff]
        %v4721 = vld [vmem:[#allocation2 + $0x61] sm:$0xff]
        %v4722 = vld [vmem:[#allocation2 + $0x69] sm:$0xff]
        %v4723 = vld [vmem:[#allocation2 + $0x71] sm:$0xff]
        %v4724 = vld [vmem:[#allocation2 + $0x79] sm:$0xff]
        %v4725 = vld [vmem:[#allocation2 + $0x81] sm:$0xff]
        %v4726 = vld [vmem:[#allocation2 + $0x89] sm:$0xff]
        %v4727 = vld [vmem:[#allocation2 + $0x91] sm:$0xff]
        %v4728 = vld [vmem:[#allocation2 + $0x99] sm:$0xff]
        %v4729 = vld [vmem:[#allocation2 + $0xa1] sm:$0xff]
        %v4730 = vld [vmem:[#allocation2 + $0xa9] sm:$0xff]
        %v4731 = vld [vmem:[#allocation2 + $0xb1] sm:$0xff]
        %v4732 = vld [vmem:[#allocation2 + $0xb9] sm:$0xff]
        %v4733 = vld [vmem:[#allocation2 + $0xc1] sm:$0xff]
        %v4734 = vld [vmem:[#allocation2 + $0xc9] sm:$0xff]
        %v4735 = vld [vmem:[#allocation2 + $0xd1] sm:$0xff]
        %v4736 = vld [vmem:[#allocation2 + $0xd9] sm:$0xff]
        %v4737 = vld [vmem:[#allocation2 + $0xe1] sm:$0xff]
        %v4738 = vld [vmem:[#allocation2 + $0xe9] sm:$0xff]
        %v4739 = vld [vmem:[#allocation2 + $0xf1] sm:$0xff]
        %v4740 = vld [vmem:[#allocation2 + $0xf9] sm:$0xff]
        %v4741 = vld [vmem:[#allocation2 + $0x101] sm:$0xff]
        %v4742 = vld [vmem:[#allocation2 + $0x109] sm:$0xff]
        %v4743 = vld [vmem:[#allocation2 + $0x111] sm:$0xff]
        %v4744 = vld [vmem:[#allocation2 + $0x119] sm:$0xff]
        %v4745 = vld [vmem:[#allocation2 + $0x121] sm:$0xff]
        %v4746 = vld [vmem:[#allocation2 + $0x129] sm:$0xff]
        %v4747 = vld [vmem:[#allocation2 + $0x131] sm:$0xff]
        %v4748 = vld [vmem:[#allocation2 + $0x139] sm:$0xff]
        %v4749 = vld [vmem:[#allocation2 + $0x141] sm:$0xff]
        %v4750 = vld [vmem:[#allocation2 + $0x149] sm:$0xff]
        %v4751 = vld [vmem:[#allocation2 + $0x151] sm:$0xff]
        %v4752 = vld [vmem:[#allocation2 + $0x159] sm:$0xff]
        %v4753 = vld [vmem:[#allocation2 + $0x161] sm:$0xff]
        %v4754 = vld [vmem:[#allocation2 + $0x169] sm:$0xff]
        %v4755 = vld [vmem:[#allocation2 + $0x171] sm:$0xff]
        %v4756 = vld [vmem:[#allocation2 + $0x179] sm:$0xff]
        %v4757 = vld [vmem:[#allocation2 + $0x181] sm:$0xff]
        %v4758 = vpack.c.bf16 %v4711, %v4710
        %v4759 = vpack.c.bf16 %v4713, %v4712
        %v4760 = vpack.c.bf16 %v4715, %v4714
        %v4761 = vpack.c.bf16 %v4717, %v4716
        %v4762 = vpack.c.bf16 %v4719, %v4718
        %v4763 = vpack.c.bf16 %v4721, %v4720
        %v4764 = vpack.c.bf16 %v4723, %v4722
        %v4765 = vpack.c.bf16 %v4725, %v4724
        %v4766 = vpack.c.bf16 %v4727, %v4726
        %v4767 = vpack.c.bf16 %v4729, %v4728
        %v4768 = vpack.c.bf16 %v4731, %v4730
        %v4769 = vpack.c.bf16 %v4733, %v4732
        %v4770 = vpack.c.bf16 %v4735, %v4734
        %v4771 = vpack.c.bf16 %v4737, %v4736
        %v4772 = vpack.c.bf16 %v4739, %v4738
        %v4773 = vpack.c.bf16 %v4741, %v4740
        %v4774 = vpack.c.bf16 %v4743, %v4742
        %v4775 = vpack.c.bf16 %v4745, %v4744
        %v4776 = vpack.c.bf16 %v4747, %v4746
        %v4777 = vpack.c.bf16 %v4749, %v4748
        %v4778 = vpack.c.bf16 %v4751, %v4750
        %v4779 = vpack.c.bf16 %v4753, %v4752
        %v4780 = vpack.c.bf16 %v4755, %v4754
        %v4781 = vpack.c.bf16 %v4757, %v4756
        %v4798 = vunpack.c.l.b16 %v4694
        %v4799 = vunpack.c.l.b16 %v4695
        %v4800 = vunpack.c.l.b16 %v4696
        %v4801 = vunpack.c.l.b16 %v4697
        %v4802 = vunpack.c.l.b16 %v4698
        %v4803 = vunpack.c.l.b16 %v4699
        %v4804 = vunpack.c.l.b16 %v4700
        %v4805 = vunpack.c.l.b16 %v4701
        %v4806 = vunpack.c.l.b16 %v4702
        %v4807 = vunpack.c.l.b16 %v4703
        %v4808 = vunpack.c.l.b16 %v4704
        %v4809 = vunpack.c.l.b16 %v4705
        %v4810 = vunpack.c.l.b16 %v4706
        %v4811 = vunpack.c.l.b16 %v4707
        %v4812 = vunpack.c.l.b16 %v4708
        %v4813 = vunpack.c.l.b16 %v4709
        %v4814 = vpack.c.b16 %v4799, %v4798
        %v4815 = vpack.c.b16 %v4801, %v4800
        %v4816 = vpack.c.b16 %v4803, %v4802
        %v4817 = vpack.c.b16 %v4805, %v4804
        %v4818 = vpack.c.b16 %v4807, %v4806
        %v4819 = vpack.c.b16 %v4809, %v4808
        %v4820 = vpack.c.b16 %v4811, %v4810
        %v4821 = vpack.c.b16 %v4813, %v4812
        %4830 = vmatprep.subr.bf16.mxu0 0
        %4831 = vmatpush1.bf16.msra.mxu0 %v4814
        %4832 = vmatprep.subr.bf16.mxu0 0
        %4833 = vmatpush1.bf16.msra.mxu0 %v4815
        %4834 = vmatprep.subr.bf16.mxu0 0
        %4835 = vmatpush1.bf16.msra.mxu0 %v4816
        %4836 = vmatprep.subr.bf16.mxu0 0
        %4837 = vmatpush1.bf16.msra.mxu0 %v4817
        %4838 = vmatprep.subr.bf16.mxu0 0
        %4839 = vmatpush1.bf16.msra.mxu0 %v4818
        %4840 = vmatprep.subr.bf16.mxu0 0
        %4841 = vmatpush1.bf16.msra.mxu0 %v4819
        %4842 = vmatprep.subr.bf16.mxu0 0
        %4843 = vmatpush1.bf16.msra.mxu0 %v4820
        %4844 = vmatprep.subr.bf16.mxu0 0
        %4845 = vmatpush1.bf16.msra.mxu0 %v4821
        %4846 = vmatprep.subr.bf16.mxu0 0
        %4847 = vmatpush1.bf16.msra.mxu0 0
        %4848 = vmatprep.subr.bf16.mxu0 0
        %4849 = vmatpush1.bf16.msra.mxu0 0
        %4850 = vmatprep.subr.bf16.mxu0 0
        %4851 = vmatpush1.bf16.msra.mxu0 0
        %4852 = vmatprep.subr.bf16.mxu0 0
        %4853 = vmatpush1.bf16.msra.mxu0 0
        %4854 = vmatprep.subr.bf16.mxu0 0
        %4855 = vmatpush1.bf16.msra.mxu0 0
        %4856 = vmatprep.subr.bf16.mxu0 0
        %4857 = vmatpush1.bf16.msra.mxu0 0
        %4858 = vmatprep.subr.bf16.mxu0 0
        %4859 = vmatpush1.bf16.msra.mxu0 0
        %4860 = vmatprep.subr.bf16.mxu0 0
        %4861 = vmatpush1.bf16.msra.mxu0 0
        %4862 = vmatprep.mubr.bf16.mxu0 0
        %4863 = vmatmul.mubr.bf16.gmra.mrb[0].mxu0 %v4758
        %v4864 = vpop.f32.mrb[0].mxu0
        %v4865 = vadd.f32 0.0, %v4864
        %v4866 = vpop.f32.mrb[0].mxu0
        %v4867 = vpop.f32.mrb[0].mxu0
        %v4868 = vadd.f32 0.0, %v4867
        %v4869 = vpop.f32.mrb[0].mxu0
        %4870 = vmatprep.mubr.bf16.mxu0 0
        %4871 = vmatmul.mubr.bf16.gmra.mrb[0].mxu0 %v4759
        %v4872 = vpop.f32.mrb[0].mxu0
        %v4873 = vadd.f32 0.0, %v4872
        %v4874 = vpop.f32.mrb[0].mxu0
        %v4875 = vpop.f32.mrb[0].mxu0
        %v4876 = vadd.f32 0.0, %v4875
        %v4877 = vpop.f32.mrb[0].mxu0
        %4878 = vmatprep.mubr.bf16.mxu0 0
        %4879 = vmatmul.mubr.bf16.gmra.mrb[0].mxu0 %v4760
        %v4880 = vpop.f32.mrb[0].mxu0
        %v4881 = vadd.f32 0.0, %v4880
        %v4882 = vpop.f32.mrb[0].mxu0
        %v4883 = vpop.f32.mrb[0].mxu0
        %v4884 = vadd.f32 0.0, %v4883
        %v4885 = vpop.f32.mrb[0].mxu0
        %4886 = vmatprep.mubr.bf16.mxu0 0
        %4887 = vmatmul.mubr.bf16.gmra.mrb[0].mxu0 %v4761
        %v4888 = vpop.f32.mrb[0].mxu0
        %v4889 = vadd.f32 0.0, %v4888
        %v4890 = vpop.f32.mrb[0].mxu0
        %v4891 = vpop.f32.mrb[0].mxu0
        %v4892 = vadd.f32 0.0, %v4891
        %v4893 = vpop.f32.mrb[0].mxu0
        %4894 = vmatprep.mubr.bf16.mxu0 0
        %4895 = vmatmul.mubr.bf16.gmra.mrb[0].mxu0 %v4762
        %v4896 = vpop.f32.mrb[0].mxu0
        %v4897 = vadd.f32 0.0, %v4896
        %v4898 = vpop.f32.mrb[0].mxu0
        %v4899 = vpop.f32.mrb[0].mxu0
        %v4900 = vadd.f32 0.0, %v4899
        %v4901 = vpop.f32.mrb[0].mxu0
        %4902 = vmatprep.mubr.bf16.mxu0 0
        %4903 = vmatmul.mubr.bf16.gmra.mrb[0].mxu0 %v4763
        %v4904 = vpop.f32.mrb[0].mxu0
        %v4905 = vadd.f32 0.0, %v4904
        %v4906 = vpop.f32.mrb[0].mxu0
        %v4907 = vpop.f32.mrb[0].mxu0
        %v4908 = vadd.f32 0.0, %v4907
        %v4909 = vpop.f32.mrb[0].mxu0
        %4910 = vmatprep.mubr.bf16.mxu0 0
        %4911 = vmatmul.mubr.bf16.gmra.mrb[0].mxu0 %v4764
        %v4912 = vpop.f32.mrb[0].mxu0
        %v4913 = vadd.f32 0.0, %v4912
        %v4914 = vpop.f32.mrb[0].mxu0
        %v4915 = vpop.f32.mrb[0].mxu0
        %v4916 = vadd.f32 0.0, %v4915
        %v4917 = vpop.f32.mrb[0].mxu0
        %4918 = vmatprep.mubr.bf16.mxu0 0
        %4919 = vmatmul.mubr.bf16.gmra.mrb[0].mxu0 %v4765
        %v4920 = vpop.f32.mrb[0].mxu0
        %v4921 = vadd.f32 0.0, %v4920
        %v4922 = vpop.f32.mrb[0].mxu0
        %v4923 = vpop.f32.mrb[0].mxu0
        %v4924 = vadd.f32 0.0, %v4923
        %v4925 = vpop.f32.mrb[0].mxu0
        %4926 = vmatprep.mubr.bf16.mxu0 0
        %4927 = vmatmul.mubr.bf16.gmra.mrb[0].mxu0 %v4766
        %v4928 = vpop.f32.mrb[0].mxu0
        %v4929 = vadd.f32 0.0, %v4928
        %v4930 = vpop.f32.mrb[0].mxu0
        %v4931 = vpop.f32.mrb[0].mxu0
        %v4932 = vadd.f32 0.0, %v4931
        %v4933 = vpop.f32.mrb[0].mxu0
        %4934 = vmatprep.mubr.bf16.mxu0 0
        %4935 = vmatmul.mubr.bf16.gmra.mrb[0].mxu0 %v4767
        %v4936 = vpop.f32.mrb[0].mxu0
        %v4937 = vadd.f32 0.0, %v4936
        %v4938 = vpop.f32.mrb[0].mxu0
        %v4939 = vpop.f32.mrb[0].mxu0
        %v4940 = vadd.f32 0.0, %v4939
        %v4941 = vpop.f32.mrb[0].mxu0
        %4942 = vmatprep.mubr.bf16.mxu0 0
        %4943 = vmatmul.mubr.bf16.gmra.mrb[0].mxu0 %v4768
        %v4944 = vpop.f32.mrb[0].mxu0
        %v4945 = vadd.f32 0.0, %v4944
        %v4946 = vpop.f32.mrb[0].mxu0
        %v4947 = vpop.f32.mrb[0].mxu0
        %v4948 = vadd.f32 0.0, %v4947
        %v4949 = vpop.f32.mrb[0].mxu0
        %4950 = vmatprep.mubr.bf16.mxu0 0
        %4951 = vmatmul.mubr.bf16.gmra.mrb[0].mxu0 %v4769
        %v4952 = vpop.f32.mrb[0].mxu0
        %v4953 = vadd.f32 0.0, %v4952
        %v4954 = vpop.f32.mrb[0].mxu0
        %v4955 = vpop.f32.mrb[0].mxu0
        %v4956 = vadd.f32 0.0, %v4955
        %v4957 = vpop.f32.mrb[0].mxu0
        %4958 = vmatprep.mubr.bf16.mxu0 0
        %4959 = vmatmul.mubr.bf16.gmra.mrb[0].mxu0 %v4770
        %v4960 = vpop.f32.mrb[0].mxu0
        %v4961 = vadd.f32 0.0, %v4960
        %v4962 = vpop.f32.mrb[0].mxu0
        %v4963 = vpop.f32.mrb[0].mxu0
        %v4964 = vadd.f32 0.0, %v4963
        %v4965 = vpop.f32.mrb[0].mxu0
        %4966 = vmatprep.mubr.bf16.mxu0 0
        %4967 = vmatmul.mubr.bf16.gmra.mrb[0].mxu0 %v4771
        %v4968 = vpop.f32.mrb[0].mxu0
        %v4969 = vadd.f32 0.0, %v4968
        %v4970 = vpop.f32.mrb[0].mxu0
        %v4971 = vpop.f32.mrb[0].mxu0
        %v4972 = vadd.f32 0.0, %v4971
        %v4973 = vpop.f32.mrb[0].mxu0
        %4974 = vmatprep.mubr.bf16.mxu0 0
        %4975 = vmatmul.mubr.bf16.gmra.mrb[0].mxu0 %v4772
        %v4976 = vpop.f32.mrb[0].mxu0
        %v4977 = vadd.f32 0.0, %v4976
        %v4978 = vpop.f32.mrb[0].mxu0
        %v4979 = vpop.f32.mrb[0].mxu0
        %v4980 = vadd.f32 0.0, %v4979
        %v4981 = vpop.f32.mrb[0].mxu0
        %4982 = vmatprep.mubr.bf16.mxu0 0
        %4983 = vmatmul.mubr.bf16.gmra.mrb[0].mxu0 %v4773
        %v4984 = vpop.f32.mrb[0].mxu0
        %v4985 = vadd.f32 0.0, %v4984
        %v4986 = vpop.f32.mrb[0].mxu0
        %v4987 = vpop.f32.mrb[0].mxu0
        %v4988 = vadd.f32 0.0, %v4987
        %v4989 = vpop.f32.mrb[0].mxu0
        %4990 = vmatprep.mubr.bf16.mxu0 0
        %4991 = vmatmul.mubr.bf16.gmra.mrb[0].mxu0 %v4774
        %v4992 = vpop.f32.mrb[0].mxu0
        %v4993 = vadd.f32 0.0, %v4992
        %v4994 = vpop.f32.mrb[0].mxu0
        %v4995 = vpop.f32.mrb[0].mxu0
        %v4996 = vadd.f32 0.0, %v4995
        %v4997 = vpop.f32.mrb[0].mxu0
        %4998 = vmatprep.mubr.bf16.mxu0 0
        %4999 = vmatmul.mubr.bf16.gmra.mrb[0].mxu0 %v4775
        %v5000 = vpop.f32.mrb[0].mxu0
        %v5001 = vadd.f32 0.0, %v5000
        %v5002 = vpop.f32.mrb[0].mxu0
        %v5003 = vpop.f32.mrb[0].mxu0
        %v5004 = vadd.f32 0.0, %v5003
        %v5005 = vpop.f32.mrb[0].mxu0
        %5006 = vmatprep.mubr.bf16.mxu0 0
        %5007 = vmatmul.mubr.bf16.gmra.mrb[0].mxu0 %v4776
        %v5008 = vpop.f32.mrb[0].mxu0
        %v5009 = vadd.f32 0.0, %v5008
        %v5010 = vpop.f32.mrb[0].mxu0
        %v5011 = vpop.f32.mrb[0].mxu0
        %v5012 = vadd.f32 0.0, %v5011
        %v5013 = vpop.f32.mrb[0].mxu0
        %5014 = vmatprep.mubr.bf16.mxu0 0
        %5015 = vmatmul.mubr.bf16.gmra.mrb[0].mxu0 %v4777
        %v5016 = vpop.f32.mrb[0].mxu0
        %v5017 = vadd.f32 0.0, %v5016
        %v5018 = vpop.f32.mrb[0].mxu0
        %v5019 = vpop.f32.mrb[0].mxu0
        %v5020 = vadd.f32 0.0, %v5019
        %v5021 = vpop.f32.mrb[0].mxu0
        %5022 = vmatprep.mubr.bf16.mxu0 0
        %5023 = vmatmul.mubr.bf16.gmra.mrb[0].mxu0 %v4778
        %v5024 = vpop.f32.mrb[0].mxu0
        %v5025 = vadd.f32 0.0, %v5024
        %v5026 = vpop.f32.mrb[0].mxu0
        %v5027 = vpop.f32.mrb[0].mxu0
        %v5028 = vadd.f32 0.0, %v5027
        %v5029 = vpop.f32.mrb[0].mxu0
        %5030 = vmatprep.mubr.bf16.mxu0 0
        %5031 = vmatmul.mubr.bf16.gmra.mrb[0].mxu0 %v4779
        %v5032 = vpop.f32.mrb[0].mxu0
        %v5033 = vadd.f32 0.0, %v5032
        %v5034 = vpop.f32.mrb[0].mxu0
        %v5035 = vpop.f32.mrb[0].mxu0
        %v5036 = vadd.f32 0.0, %v5035
        %v5037 = vpop.f32.mrb[0].mxu0
        %5038 = vmatprep.mubr.bf16.mxu0 0
        %5039 = vmatmul.mubr.bf16.gmra.mrb[0].mxu0 %v4780
        %v5040 = vpop.f32.mrb[0].mxu0
        %v5041 = vadd.f32 0.0, %v5040
        %v5042 = vpop.f32.mrb[0].mxu0
        %v5043 = vpop.f32.mrb[0].mxu0
        %v5044 = vadd.f32 0.0, %v5043
        %v5045 = vpop.f32.mrb[0].mxu0
        %5046 = vmatprep.mubr.bf16.mxu0 0
        %5047 = vmatmul.mubr.bf16.gmra.mrb[0].mxu0 %v4781
        %v5048 = vpop.f32.mrb[0].mxu0
        %v5049 = vadd.f32 0.0, %v5048
        %v5050 = vpop.f32.mrb[0].mxu0
        %v5051 = vpop.f32.mrb[0].mxu0
        %v5052 = vadd.f32 0.0, %v5051
        %v5053 = vpop.f32.mrb[0].mxu0
        %5054 = vdwg.mxu0
        %v5055 = vadd.f32 %v3981, %v4865
        %v5056 = vadd.f32 %v3984, %v4868
        %v5057 = vadd.f32 %v3989, %v4873
        %v5058 = vadd.f32 %v3992, %v4876
        %v5059 = vadd.f32 %v3997, %v4881
        %v5060 = vadd.f32 %v4000, %v4884
        %v5061 = vadd.f32 %v4005, %v4889
        %v5062 = vadd.f32 %v4008, %v4892
        %v5063 = vadd.f32 %v4013, %v4897
        %v5064 = vadd.f32 %v4016, %v4900
        %v5065 = vadd.f32 %v4021, %v4905
        %v5066 = vadd.f32 %v4024, %v4908
        %v5067 = vadd.f32 %v4029, %v4913
        %v5068 = vadd.f32 %v4032, %v4916
        %v5069 = vadd.f32 %v4037, %v4921
        %v5070 = vadd.f32 %v4040, %v4924
        %v5071 = vadd.f32 %v4045, %v4929
        %v5072 = vadd.f32 %v4048, %v4932
        %v5073 = vadd.f32 %v4053, %v4937
        %v5074 = vadd.f32 %v4056, %v4940
        %v5075 = vadd.f32 %v4061, %v4945
        %v5076 = vadd.f32 %v4064, %v4948
        %v5077 = vadd.f32 %v4069, %v4953
        %v5078 = vadd.f32 %v4072, %v4956
        %v5079 = vadd.f32 %v4077, %v4961
        %v5080 = vadd.f32 %v4080, %v4964
        %v5081 = vadd.f32 %v4085, %v4969
        %v5082 = vadd.f32 %v4088, %v4972
        %v5083 = vadd.f32 %v4093, %v4977
        %v5084 = vadd.f32 %v4096, %v4980
        %v5085 = vadd.f32 %v4101, %v4985
        %v5086 = vadd.f32 %v4104, %v4988
        %v5087 = vadd.f32 %v4109, %v4993
        %v5088 = vadd.f32 %v4112, %v4996
        %v5089 = vadd.f32 %v4117, %v5001
        %v5090 = vadd.f32 %v4120, %v5004
        %v5091 = vadd.f32 %v4125, %v5009
        %v5092 = vadd.f32 %v4128, %v5012
        %v5093 = vadd.f32 %v4133, %v5017
        %v5094 = vadd.f32 %v4136, %v5020
        %v5095 = vadd.f32 %v4141, %v5025
        %v5096 = vadd.f32 %v4144, %v5028
        %v5097 = vadd.f32 %v4149, %v5033
        %v5098 = vadd.f32 %v4152, %v5036
        %v5099 = vadd.f32 %v4157, %v5041
        %v5100 = vadd.f32 %v4160, %v5044
        %v5101 = vadd.f32 %v4165, %v5049
        %v5102 = vadd.f32 %v4168, %v5052
        %v5103 = vld [vmem:[%s3267 + $0x9] sm:$0xff]
        %v5104 = vld [vmem:[%s3267 + $0x11] sm:$0xff]
        %v5105 = vld [vmem:[%s3267 + $0x19] sm:$0xff]
        %v5106 = vld [vmem:[%s3267 + $0x21] sm:$0xff]
        %v5107 = vld [vmem:[%s3267 + $0x29] sm:$0xff]
        %v5108 = vld [vmem:[%s3267 + $0x31] sm:$0xff]
        %v5109 = vld [vmem:[%s3267 + $0x39] sm:$0xff]
        %v5110 = vld [vmem:[%s3267 + $0x41] sm:$0xff]
        %v5111 = vld [vmem:[%s3267 + $0x49] sm:$0xff]
        %v5112 = vld [vmem:[%s3267 + $0x51] sm:$0xff]
        %v5113 = vld [vmem:[%s3267 + $0x59] sm:$0xff]
        %v5114 = vld [vmem:[%s3267 + $0x61] sm:$0xff]
        %v5115 = vld [vmem:[%s3267 + $0x69] sm:$0xff]
        %v5116 = vld [vmem:[%s3267 + $0x71] sm:$0xff]
        %v5117 = vld [vmem:[%s3267 + $0x79] sm:$0xff]
        %v5118 = vld [vmem:[%s3267 + $0x81] sm:$0xff]
        %v5119 = vld [vmem:[%s3267 + $0x89] sm:$0xff]
        %v5120 = vld [vmem:[%s3267 + $0x91] sm:$0xff]
        %v5121 = vld [vmem:[%s3267 + $0x99] sm:$0xff]
        %v5122 = vld [vmem:[%s3267 + $0xa1] sm:$0xff]
        %v5123 = vld [vmem:[%s3267 + $0xa9] sm:$0xff]
        %v5124 = vld [vmem:[%s3267 + $0xb1] sm:$0xff]
        %v5125 = vld [vmem:[%s3267 + $0xb9] sm:$0xff]
        %v5126 = vld [vmem:[%s3267 + $0xc1] sm:$0xff]
        %v5127 = vld [vmem:[%s3267 + $0xc9] sm:$0xff]
        %v5128 = vld [vmem:[%s3267 + $0xd1] sm:$0xff]
        %v5129 = vld [vmem:[%s3267 + $0xd9] sm:$0xff]
        %v5130 = vld [vmem:[%s3267 + $0xe1] sm:$0xff]
        %v5131 = vld [vmem:[%s3267 + $0xe9] sm:$0xff]
        %v5132 = vld [vmem:[%s3267 + $0xf1] sm:$0xff]
        %v5133 = vld [vmem:[%s3267 + $0xf9] sm:$0xff]
        %v5134 = vld [vmem:[%s3267 + $0x101] sm:$0xff]
        %v5135 = vld [vmem:[%s3267 + $0x109] sm:$0xff]
        %v5136 = vld [vmem:[%s3267 + $0x111] sm:$0xff]
        %v5137 = vld [vmem:[%s3267 + $0x119] sm:$0xff]
        %v5138 = vld [vmem:[%s3267 + $0x121] sm:$0xff]
        %v5139 = vld [vmem:[%s3267 + $0x129] sm:$0xff]
        %v5140 = vld [vmem:[%s3267 + $0x131] sm:$0xff]
        %v5141 = vld [vmem:[%s3267 + $0x139] sm:$0xff]
        %v5142 = vld [vmem:[%s3267 + $0x141] sm:$0xff]
        %v5143 = vld [vmem:[%s3267 + $0x149] sm:$0xff]
        %v5144 = vld [vmem:[%s3267 + $0x151] sm:$0xff]
        %v5145 = vld [vmem:[%s3267 + $0x159] sm:$0xff]
        %v5146 = vld [vmem:[%s3267 + $0x161] sm:$0xff]
        %v5147 = vld [vmem:[%s3267 + $0x169] sm:$0xff]
        %v5148 = vld [vmem:[%s3267 + $0x171] sm:$0xff]
        %v5149 = vld [vmem:[%s3267 + $0x179] sm:$0xff]
        %v5150 = vld [vmem:[%s3267 + $0x181] sm:$0xff]
        %v5151 = vpack.c.bf16 %v5104, %v5103
        %v5152 = vpack.c.bf16 %v5106, %v5105
        %v5153 = vpack.c.bf16 %v5108, %v5107
        %v5154 = vpack.c.bf16 %v5110, %v5109
        %v5155 = vpack.c.bf16 %v5112, %v5111
        %v5156 = vpack.c.bf16 %v5114, %v5113
        %v5157 = vpack.c.bf16 %v5116, %v5115
        %v5158 = vpack.c.bf16 %v5118, %v5117
        %v5159 = vpack.c.bf16 %v5120, %v5119
        %v5160 = vpack.c.bf16 %v5122, %v5121
        %v5161 = vpack.c.bf16 %v5124, %v5123
        %v5162 = vpack.c.bf16 %v5126, %v5125
        %v5163 = vpack.c.bf16 %v5128, %v5127
        %v5164 = vpack.c.bf16 %v5130, %v5129
        %v5165 = vpack.c.bf16 %v5132, %v5131
        %v5166 = vpack.c.bf16 %v5134, %v5133
        %v5167 = vpack.c.bf16 %v5136, %v5135
        %v5168 = vpack.c.bf16 %v5138, %v5137
        %v5169 = vpack.c.bf16 %v5140, %v5139
        %v5170 = vpack.c.bf16 %v5142, %v5141
        %v5171 = vpack.c.bf16 %v5144, %v5143
        %v5172 = vpack.c.bf16 %v5146, %v5145
        %v5173 = vpack.c.bf16 %v5148, %v5147
        %v5174 = vpack.c.bf16 %v5150, %v5149
        %5175 = vmatprep.subr.bf16.mxu0 0
        %5176 = vmatpush1.bf16.msra.mxu0 %v4814
        %5177 = vmatprep.subr.bf16.mxu0 0
        %5178 = vmatpush1.bf16.msra.mxu0 %v4815
        %5179 = vmatprep.subr.bf16.mxu0 0
        %5180 = vmatpush1.bf16.msra.mxu0 %v4816
        %5181 = vmatprep.subr.bf16.mxu0 0
        %5182 = vmatpush1.bf16.msra.mxu0 %v4817
        %5183 = vmatprep.subr.bf16.mxu0 0
        %5184 = vmatpush1.bf16.msra.mxu0 %v4818
        %5185 = vmatprep.subr.bf16.mxu0 0
        %5186 = vmatpush1.bf16.msra.mxu0 %v4819
        %5187 = vmatprep.subr.bf16.mxu0 0
        %5188 = vmatpush1.bf16.msra.mxu0 %v4820
        %5189 = vmatprep.subr.bf16.mxu0 0
        %5190 = vmatpush1.bf16.msra.mxu0 %v4821
        %5191 = vmatprep.subr.bf16.mxu0 0
        %5192 = vmatpush1.bf16.msra.mxu0 0
        %5193 = vmatprep.subr.bf16.mxu0 0
        %5194 = vmatpush1.bf16.msra.mxu0 0
        %5195 = vmatprep.subr.bf16.mxu0 0
        %5196 = vmatpush1.bf16.msra.mxu0 0
        %5197 = vmatprep.subr.bf16.mxu0 0
        %5198 = vmatpush1.bf16.msra.mxu0 0
        %5199 = vmatprep.subr.bf16.mxu0 0
        %5200 = vmatpush1.bf16.msra.mxu0 0
        %5201 = vmatprep.subr.bf16.mxu0 0
        %5202 = vmatpush1.bf16.msra.mxu0 0
        %5203 = vmatprep.subr.bf16.mxu0 0
        %5204 = vmatpush1.bf16.msra.mxu0 0
        %5205 = vmatprep.subr.bf16.mxu0 0
        %5206 = vmatpush1.bf16.msra.mxu0 0
        %5207 = vmatprep.mubr.bf16.mxu0 0
        %5208 = vmatmul.mubr.bf16.gmra.mrb[0].mxu0 %v5151
        %v5209 = vpop.f32.mrb[0].mxu0
        %v5210 = vadd.f32 0.0, %v5209
        %v5211 = vpop.f32.mrb[0].mxu0
        %v5212 = vpop.f32.mrb[0].mxu0
        %v5213 = vadd.f32 0.0, %v5212
        %v5214 = vpop.f32.mrb[0].mxu0
        %5215 = vmatprep.mubr.bf16.mxu0 0
        %5216 = vmatmul.mubr.bf16.gmra.mrb[0].mxu0 %v5152
        %v5217 = vpop.f32.mrb[0].mxu0
        %v5218 = vadd.f32 0.0, %v5217
        %v5219 = vpop.f32.mrb[0].mxu0
        %v5220 = vpop.f32.mrb[0].mxu0
        %v5221 = vadd.f32 0.0, %v5220
        %v5222 = vpop.f32.mrb[0].mxu0
        %5223 = vmatprep.mubr.bf16.mxu0 0
        %5224 = vmatmul.mubr.bf16.gmra.mrb[0].mxu0 %v5153
        %v5225 = vpop.f32.mrb[0].mxu0
        %v5226 = vadd.f32 0.0, %v5225
        %v5227 = vpop.f32.mrb[0].mxu0
        %v5228 = vpop.f32.mrb[0].mxu0
        %v5229 = vadd.f32 0.0, %v5228
        %v5230 = vpop.f32.mrb[0].mxu0
        %5231 = vmatprep.mubr.bf16.mxu0 0
        %5232 = vmatmul.mubr.bf16.gmra.mrb[0].mxu0 %v5154
        %v5233 = vpop.f32.mrb[0].mxu0
        %v5234 = vadd.f32 0.0, %v5233
        %v5235 = vpop.f32.mrb[0].mxu0
        %v5236 = vpop.f32.mrb[0].mxu0
        %v5237 = vadd.f32 0.0, %v5236
        %v5238 = vpop.f32.mrb[0].mxu0
        %5239 = vmatprep.mubr.bf16.mxu0 0
        %5240 = vmatmul.mubr.bf16.gmra.mrb[0].mxu0 %v5155
        %v5241 = vpop.f32.mrb[0].mxu0
        %v5242 = vadd.f32 0.0, %v5241
        %v5243 = vpop.f32.mrb[0].mxu0
        %v5244 = vpop.f32.mrb[0].mxu0
        %v5245 = vadd.f32 0.0, %v5244
        %v5246 = vpop.f32.mrb[0].mxu0
        %5247 = vmatprep.mubr.bf16.mxu0 0
        %5248 = vmatmul.mubr.bf16.gmra.mrb[0].mxu0 %v5156
        %v5249 = vpop.f32.mrb[0].mxu0
        %v5250 = vadd.f32 0.0, %v5249
        %v5251 = vpop.f32.mrb[0].mxu0
        %v5252 = vpop.f32.mrb[0].mxu0
        %v5253 = vadd.f32 0.0, %v5252
        %v5254 = vpop.f32.mrb[0].mxu0
        %5255 = vmatprep.mubr.bf16.mxu0 0
        %5256 = vmatmul.mubr.bf16.gmra.mrb[0].mxu0 %v5157
        %v5257 = vpop.f32.mrb[0].mxu0
        %v5258 = vadd.f32 0.0, %v5257
        %v5259 = vpop.f32.mrb[0].mxu0
        %v5260 = vpop.f32.mrb[0].mxu0
        %v5261 = vadd.f32 0.0, %v5260
        %v5262 = vpop.f32.mrb[0].mxu0
        %5263 = vmatprep.mubr.bf16.mxu0 0
        %5264 = vmatmul.mubr.bf16.gmra.mrb[0].mxu0 %v5158
        %v5265 = vpop.f32.mrb[0].mxu0
        %v5266 = vadd.f32 0.0, %v5265
        %v5267 = vpop.f32.mrb[0].mxu0
        %v5268 = vpop.f32.mrb[0].mxu0
        %v5269 = vadd.f32 0.0, %v5268
        %v5270 = vpop.f32.mrb[0].mxu0
        %5271 = vmatprep.mubr.bf16.mxu0 0
        %5272 = vmatmul.mubr.bf16.gmra.mrb[0].mxu0 %v5159
        %v5273 = vpop.f32.mrb[0].mxu0
        %v5274 = vadd.f32 0.0, %v5273
        %v5275 = vpop.f32.mrb[0].mxu0
        %v5276 = vpop.f32.mrb[0].mxu0
        %v5277 = vadd.f32 0.0, %v5276
        %v5278 = vpop.f32.mrb[0].mxu0
        %5279 = vmatprep.mubr.bf16.mxu0 0
        %5280 = vmatmul.mubr.bf16.gmra.mrb[0].mxu0 %v5160
        %v5281 = vpop.f32.mrb[0].mxu0
        %v5282 = vadd.f32 0.0, %v5281
        %v5283 = vpop.f32.mrb[0].mxu0
        %v5284 = vpop.f32.mrb[0].mxu0
        %v5285 = vadd.f32 0.0, %v5284
        %v5286 = vpop.f32.mrb[0].mxu0
        %5287 = vmatprep.mubr.bf16.mxu0 0
        %5288 = vmatmul.mubr.bf16.gmra.mrb[0].mxu0 %v5161
        %v5289 = vpop.f32.mrb[0].mxu0
        %v5290 = vadd.f32 0.0, %v5289
        %v5291 = vpop.f32.mrb[0].mxu0
        %v5292 = vpop.f32.mrb[0].mxu0
        %v5293 = vadd.f32 0.0, %v5292
        %v5294 = vpop.f32.mrb[0].mxu0
        %5295 = vmatprep.mubr.bf16.mxu0 0
        %5296 = vmatmul.mubr.bf16.gmra.mrb[0].mxu0 %v5162
        %v5297 = vpop.f32.mrb[0].mxu0
        %v5298 = vadd.f32 0.0, %v5297
        %v5299 = vpop.f32.mrb[0].mxu0
        %v5300 = vpop.f32.mrb[0].mxu0
        %v5301 = vadd.f32 0.0, %v5300
        %v5302 = vpop.f32.mrb[0].mxu0
        %5303 = vmatprep.mubr.bf16.mxu0 0
        %5304 = vmatmul.mubr.bf16.gmra.mrb[0].mxu0 %v5163
        %v5305 = vpop.f32.mrb[0].mxu0
        %v5306 = vadd.f32 0.0, %v5305
        %v5307 = vpop.f32.mrb[0].mxu0
        %v5308 = vpop.f32.mrb[0].mxu0
        %v5309 = vadd.f32 0.0, %v5308
        %v5310 = vpop.f32.mrb[0].mxu0
        %5311 = vmatprep.mubr.bf16.mxu0 0
        %5312 = vmatmul.mubr.bf16.gmra.mrb[0].mxu0 %v5164
        %v5313 = vpop.f32.mrb[0].mxu0
        %v5314 = vadd.f32 0.0, %v5313
        %v5315 = vpop.f32.mrb[0].mxu0
        %v5316 = vpop.f32.mrb[0].mxu0
        %v5317 = vadd.f32 0.0, %v5316
        %v5318 = vpop.f32.mrb[0].mxu0
        %5319 = vmatprep.mubr.bf16.mxu0 0
        %5320 = vmatmul.mubr.bf16.gmra.mrb[0].mxu0 %v5165
        %v5321 = vpop.f32.mrb[0].mxu0
        %v5322 = vadd.f32 0.0, %v5321
        %v5323 = vpop.f32.mrb[0].mxu0
        %v5324 = vpop.f32.mrb[0].mxu0
        %v5325 = vadd.f32 0.0, %v5324
        %v5326 = vpop.f32.mrb[0].mxu0
        %5327 = vmatprep.mubr.bf16.mxu0 0
        %5328 = vmatmul.mubr.bf16.gmra.mrb[0].mxu0 %v5166
        %v5329 = vpop.f32.mrb[0].mxu0
        %v5330 = vadd.f32 0.0, %v5329
        %v5331 = vpop.f32.mrb[0].mxu0
        %v5332 = vpop.f32.mrb[0].mxu0
        %v5333 = vadd.f32 0.0, %v5332
        %v5334 = vpop.f32.mrb[0].mxu0
        %5335 = vmatprep.mubr.bf16.mxu0 0
        %5336 = vmatmul.mubr.bf16.gmra.mrb[0].mxu0 %v5167
        %v5337 = vpop.f32.mrb[0].mxu0
        %v5338 = vadd.f32 0.0, %v5337
        %v5339 = vpop.f32.mrb[0].mxu0
        %v5340 = vpop.f32.mrb[0].mxu0
        %v5341 = vadd.f32 0.0, %v5340
        %v5342 = vpop.f32.mrb[0].mxu0
        %5343 = vmatprep.mubr.bf16.mxu0 0
        %5344 = vmatmul.mubr.bf16.gmra.mrb[0].mxu0 %v5168
        %v5345 = vpop.f32.mrb[0].mxu0
        %v5346 = vadd.f32 0.0, %v5345
        %v5347 = vpop.f32.mrb[0].mxu0
        %v5348 = vpop.f32.mrb[0].mxu0
        %v5349 = vadd.f32 0.0, %v5348
        %v5350 = vpop.f32.mrb[0].mxu0
        %5351 = vmatprep.mubr.bf16.mxu0 0
        %5352 = vmatmul.mubr.bf16.gmra.mrb[0].mxu0 %v5169
        %v5353 = vpop.f32.mrb[0].mxu0
        %v5354 = vadd.f32 0.0, %v5353
        %v5355 = vpop.f32.mrb[0].mxu0
        %v5356 = vpop.f32.mrb[0].mxu0
        %v5357 = vadd.f32 0.0, %v5356
        %v5358 = vpop.f32.mrb[0].mxu0
        %5359 = vmatprep.mubr.bf16.mxu0 0
        %5360 = vmatmul.mubr.bf16.gmra.mrb[0].mxu0 %v5170
        %v5361 = vpop.f32.mrb[0].mxu0
        %v5362 = vadd.f32 0.0, %v5361
        %v5363 = vpop.f32.mrb[0].mxu0
        %v5364 = vpop.f32.mrb[0].mxu0
        %v5365 = vadd.f32 0.0, %v5364
        %v5366 = vpop.f32.mrb[0].mxu0
        %5367 = vmatprep.mubr.bf16.mxu0 0
        %5368 = vmatmul.mubr.bf16.gmra.mrb[0].mxu0 %v5171
        %v5369 = vpop.f32.mrb[0].mxu0
        %v5370 = vadd.f32 0.0, %v5369
        %v5371 = vpop.f32.mrb[0].mxu0
        %v5372 = vpop.f32.mrb[0].mxu0
        %v5373 = vadd.f32 0.0, %v5372
        %v5374 = vpop.f32.mrb[0].mxu0
        %5375 = vmatprep.mubr.bf16.mxu0 0
        %5376 = vmatmul.mubr.bf16.gmra.mrb[0].mxu0 %v5172
        %v5377 = vpop.f32.mrb[0].mxu0
        %v5378 = vadd.f32 0.0, %v5377
        %v5379 = vpop.f32.mrb[0].mxu0
        %v5380 = vpop.f32.mrb[0].mxu0
        %v5381 = vadd.f32 0.0, %v5380
        %v5382 = vpop.f32.mrb[0].mxu0
        %5383 = vmatprep.mubr.bf16.mxu0 0
        %5384 = vmatmul.mubr.bf16.gmra.mrb[0].mxu0 %v5173
        %v5385 = vpop.f32.mrb[0].mxu0
        %v5386 = vadd.f32 0.0, %v5385
        %v5387 = vpop.f32.mrb[0].mxu0
        %v5388 = vpop.f32.mrb[0].mxu0
        %v5389 = vadd.f32 0.0, %v5388
        %v5390 = vpop.f32.mrb[0].mxu0
        %5391 = vmatprep.mubr.bf16.mxu0 0
        %5392 = vmatmul.mubr.bf16.gmra.mrb[0].mxu0 %v5174
        %v5393 = vpop.f32.mrb[0].mxu0
        %v5394 = vadd.f32 0.0, %v5393
        %v5395 = vpop.f32.mrb[0].mxu0
        %v5396 = vpop.f32.mrb[0].mxu0
        %v5397 = vadd.f32 0.0, %v5396
        %v5398 = vpop.f32.mrb[0].mxu0
        %5399 = vdwg.mxu0
        %v5400 = vadd.f32 %v4503, %v5210
        %v5401 = vadd.f32 %v4506, %v5213
        %v5402 = vadd.f32 %v4511, %v5218
        %v5403 = vadd.f32 %v4514, %v5221
        %v5404 = vadd.f32 %v4519, %v5226
        %v5405 = vadd.f32 %v4522, %v5229
        %v5406 = vadd.f32 %v4527, %v5234
        %v5407 = vadd.f32 %v4530, %v5237
        %v5408 = vadd.f32 %v4535, %v5242
        %v5409 = vadd.f32 %v4538, %v5245
        %v5410 = vadd.f32 %v4543, %v5250
        %v5411 = vadd.f32 %v4546, %v5253
        %v5412 = vadd.f32 %v4551, %v5258
        %v5413 = vadd.f32 %v4554, %v5261
        %v5414 = vadd.f32 %v4559, %v5266
        %v5415 = vadd.f32 %v4562, %v5269
        %v5416 = vadd.f32 %v4567, %v5274
        %v5417 = vadd.f32 %v4570, %v5277
        %v5418 = vadd.f32 %v4575, %v5282
        %v5419 = vadd.f32 %v4578, %v5285
        %v5420 = vadd.f32 %v4583, %v5290
        %v5421 = vadd.f32 %v4586, %v5293
        %v5422 = vadd.f32 %v4591, %v5298
        %v5423 = vadd.f32 %v4594, %v5301
        %v5424 = vadd.f32 %v4599, %v5306
        %v5425 = vadd.f32 %v4602, %v5309
        %v5426 = vadd.f32 %v4607, %v5314
        %v5427 = vadd.f32 %v4610, %v5317
        %v5428 = vadd.f32 %v4615, %v5322
        %v5429 = vadd.f32 %v4618, %v5325
        %v5430 = vadd.f32 %v4623, %v5330
        %v5431 = vadd.f32 %v4626, %v5333
        %v5432 = vadd.f32 %v4631, %v5338
        %v5433 = vadd.f32 %v4634, %v5341
        %v5434 = vadd.f32 %v4639, %v5346
        %v5435 = vadd.f32 %v4642, %v5349
        %v5436 = vadd.f32 %v4647, %v5354
        %v5437 = vadd.f32 %v4650, %v5357
        %v5438 = vadd.f32 %v4655, %v5362
        %v5439 = vadd.f32 %v4658, %v5365
        %v5440 = vadd.f32 %v4663, %v5370
        %v5441 = vadd.f32 %v4666, %v5373
        %v5442 = vadd.f32 %v4671, %v5378
        %v5443 = vadd.f32 %v4674, %v5381
        %v5444 = vadd.f32 %v4679, %v5386
        %v5445 = vadd.f32 %v4682, %v5389
        %v5446 = vadd.f32 %v4687, %v5394
        %v5447 = vadd.f32 %v4690, %v5397
        %s5448 = scalar_lea.vmem %s3, 192
        %v5449 = vld [vmem:[%s5448] sm:$0xf]
        %v5450 = vld [vmem:[%s5448 + $0x4] sm:$0xf]
        %v5451 = vld [vmem:[%s5448 + $0x8] sm:$0xf]
        %v5452 = vld [vmem:[%s5448 + $0xc] sm:$0xf]
        %v5453 = vld [vmem:[%s5448 + $0x10] sm:$0xf]
        %v5454 = vld [vmem:[%s5448 + $0x14] sm:$0xf]
        %v5455 = vld [vmem:[%s5448 + $0x18] sm:$0xf]
        %v5456 = vld [vmem:[%s5448 + $0x1c] sm:$0xf]
        %v5457 = vld [vmem:[%s5448 + $0x20] sm:$0xf]
        %v5458 = vld [vmem:[%s5448 + $0x24] sm:$0xf]
        %v5459 = vld [vmem:[%s5448 + $0x28] sm:$0xf]
        %v5460 = vld [vmem:[%s5448 + $0x2c] sm:$0xf]
        %v5461 = vld [vmem:[%s5448 + $0x30] sm:$0xf]
        %v5462 = vld [vmem:[%s5448 + $0x34] sm:$0xf]
        %v5463 = vld [vmem:[%s5448 + $0x38] sm:$0xf]
        %v5464 = vld [vmem:[%s5448 + $0x3c] sm:$0xf]
        %v5465 = vld [vmem:[#allocation2 + $0x1f] sm:$0xff]
        %v5466 = vld [vmem:[#allocation2 + $0x27] sm:$0xff]
        %v5467 = vld [vmem:[#allocation2 + $0x2f] sm:$0xff]
        %v5468 = vld [vmem:[#allocation2 + $0x37] sm:$0xff]
        %v5469 = vld [vmem:[#allocation2 + $0x3f] sm:$0xff]
        %v5470 = vld [vmem:[#allocation2 + $0x47] sm:$0xff]
        %v5471 = vld [vmem:[#allocation2 + $0x4f] sm:$0xff]
        %v5472 = vld [vmem:[#allocation2 + $0x57] sm:$0xff]
        %v5473 = vld [vmem:[#allocation2 + $0x5f] sm:$0xff]
        %v5474 = vld [vmem:[#allocation2 + $0x67] sm:$0xff]
        %v5475 = vld [vmem:[#allocation2 + $0x6f] sm:$0xff]
        %v5476 = vld [vmem:[#allocation2 + $0x77] sm:$0xff]
        %v5477 = vld [vmem:[#allocation2 + $0x7f] sm:$0xff]
        %v5478 = vld [vmem:[#allocation2 + $0x87] sm:$0xff]
        %v5479 = vld [vmem:[#allocation2 + $0x8f] sm:$0xff]
        %v5480 = vld [vmem:[#allocation2 + $0x97] sm:$0xff]
        %v5481 = vld [vmem:[#allocation2 + $0x9f] sm:$0xff]
        %v5482 = vld [vmem:[#allocation2 + $0xa7] sm:$0xff]
        %v5483 = vld [vmem:[#allocation2 + $0xaf] sm:$0xff]
        %v5484 = vld [vmem:[#allocation2 + $0xb7] sm:$0xff]
        %v5485 = vld [vmem:[#allocation2 + $0xbf] sm:$0xff]
        %v5486 = vld [vmem:[#allocation2 + $0xc7] sm:$0xff]
        %v5487 = vld [vmem:[#allocation2 + $0xcf] sm:$0xff]
        %v5488 = vld [vmem:[#allocation2 + $0xd7] sm:$0xff]
        %v5489 = vld [vmem:[#allocation2 + $0xdf] sm:$0xff]
        %v5490 = vld [vmem:[#allocation2 + $0xe7] sm:$0xff]
        %v5491 = vld [vmem:[#allocation2 + $0xef] sm:$0xff]
        %v5492 = vld [vmem:[#allocation2 + $0xf7] sm:$0xff]
        %v5493 = vld [vmem:[#allocation2 + $0xff] sm:$0xff]
        %v5494 = vld [vmem:[#allocation2 + $0x107] sm:$0xff]
        %v5495 = vld [vmem:[#allocation2 + $0x10f] sm:$0xff]
        %v5496 = vld [vmem:[#allocation2 + $0x117] sm:$0xff]
        %v5497 = vld [vmem:[#allocation2 + $0x11f] sm:$0xff]
        %v5498 = vld [vmem:[#allocation2 + $0x127] sm:$0xff]
        %v5499 = vld [vmem:[#allocation2 + $0x12f] sm:$0xff]
        %v5500 = vld [vmem:[#allocation2 + $0x137] sm:$0xff]
        %v5501 = vld [vmem:[#allocation2 + $0x13f] sm:$0xff]
        %v5502 = vld [vmem:[#allocation2 + $0x147] sm:$0xff]
        %v5503 = vld [vmem:[#allocation2 + $0x14f] sm:$0xff]
        %v5504 = vld [vmem:[#allocation2 + $0x157] sm:$0xff]
        %v5505 = vld [vmem:[#allocation2 + $0x15f] sm:$0xff]
        %v5506 = vld [vmem:[#allocation2 + $0x167] sm:$0xff]
        %v5507 = vld [vmem:[#allocation2 + $0x16f] sm:$0xff]
        %v5508 = vld [vmem:[#allocation2 + $0x177] sm:$0xff]
        %v5509 = vld [vmem:[#allocation2 + $0x17f] sm:$0xff]
        %v5510 = vld [vmem:[#allocation2 + $0x187] sm:$0xff]
        %v5511 = vld [vmem:[#allocation2 + $0x18f] sm:$0xff]
        %v5512 = vld [vmem:[#allocation2 + $0x197] sm:$0xff]
        %v5513 = vpack.c.bf16 %v5466, %v5465
        %v5514 = vpack.c.bf16 %v5468, %v5467
        %v5515 = vpack.c.bf16 %v5470, %v5469
        %v5516 = vpack.c.bf16 %v5472, %v5471
        %v5517 = vpack.c.bf16 %v5474, %v5473
        %v5518 = vpack.c.bf16 %v5476, %v5475
        %v5519 = vpack.c.bf16 %v5478, %v5477
        %v5520 = vpack.c.bf16 %v5480, %v5479
        %v5521 = vpack.c.bf16 %v5482, %v5481
        %v5522 = vpack.c.bf16 %v5484, %v5483
        %v5523 = vpack.c.bf16 %v5486, %v5485
        %v5524 = vpack.c.bf16 %v5488, %v5487
        %v5525 = vpack.c.bf16 %v5490, %v5489
        %v5526 = vpack.c.bf16 %v5492, %v5491
        %v5527 = vpack.c.bf16 %v5494, %v5493
        %v5528 = vpack.c.bf16 %v5496, %v5495
        %v5529 = vpack.c.bf16 %v5498, %v5497
        %v5530 = vpack.c.bf16 %v5500, %v5499
        %v5531 = vpack.c.bf16 %v5502, %v5501
        %v5532 = vpack.c.bf16 %v5504, %v5503
        %v5533 = vpack.c.bf16 %v5506, %v5505
        %v5534 = vpack.c.bf16 %v5508, %v5507
        %v5535 = vpack.c.bf16 %v5510, %v5509
        %v5536 = vpack.c.bf16 %v5512, %v5511
        %v5553 = vunpack.c.l.b16 %v5449
        %v5554 = vunpack.c.l.b16 %v5450
        %v5555 = vunpack.c.l.b16 %v5451
        %v5556 = vunpack.c.l.b16 %v5452
        %v5557 = vunpack.c.l.b16 %v5453
        %v5558 = vunpack.c.l.b16 %v5454
        %v5559 = vunpack.c.l.b16 %v5455
        %v5560 = vunpack.c.l.b16 %v5456
        %v5561 = vunpack.c.l.b16 %v5457
        %v5562 = vunpack.c.l.b16 %v5458
        %v5563 = vunpack.c.l.b16 %v5459
        %v5564 = vunpack.c.l.b16 %v5460
        %v5565 = vunpack.c.l.b16 %v5461
        %v5566 = vunpack.c.l.b16 %v5462
        %v5567 = vunpack.c.l.b16 %v5463
        %v5568 = vunpack.c.l.b16 %v5464
        %v5569 = vpack.c.b16 %v5554, %v5553
        %v5570 = vpack.c.b16 %v5556, %v5555
        %v5571 = vpack.c.b16 %v5558, %v5557
        %v5572 = vpack.c.b16 %v5560, %v5559
        %v5573 = vpack.c.b16 %v5562, %v5561
        %v5574 = vpack.c.b16 %v5564, %v5563
        %v5575 = vpack.c.b16 %v5566, %v5565
        %v5576 = vpack.c.b16 %v5568, %v5567
        %5585 = vmatprep.subr.bf16.mxu0 0
        %5586 = vmatpush1.bf16.msra.mxu0 %v5569
        %5587 = vmatprep.subr.bf16.mxu0 0
        %5588 = vmatpush1.bf16.msra.mxu0 %v5570
        %5589 = vmatprep.subr.bf16.mxu0 0
        %5590 = vmatpush1.bf16.msra.mxu0 %v5571
        %5591 = vmatprep.subr.bf16.mxu0 0
        %5592 = vmatpush1.bf16.msra.mxu0 %v5572
        %5593 = vmatprep.subr.bf16.mxu0 0
        %5594 = vmatpush1.bf16.msra.mxu0 %v5573
        %5595 = vmatprep.subr.bf16.mxu0 0
        %5596 = vmatpush1.bf16.msra.mxu0 %v5574
        %5597 = vmatprep.subr.bf16.mxu0 0
        %5598 = vmatpush1.bf16.msra.mxu0 %v5575
        %5599 = vmatprep.subr.bf16.mxu0 0
        %5600 = vmatpush1.bf16.msra.mxu0 %v5576
        %5601 = vmatprep.subr.bf16.mxu0 0
        %5602 = vmatpush1.bf16.msra.mxu0 0
        %5603 = vmatprep.subr.bf16.mxu0 0
        %5604 = vmatpush1.bf16.msra.mxu0 0
        %5605 = vmatprep.subr.bf16.mxu0 0
        %5606 = vmatpush1.bf16.msra.mxu0 0
        %5607 = vmatprep.subr.bf16.mxu0 0
        %5608 = vmatpush1.bf16.msra.mxu0 0
        %5609 = vmatprep.subr.bf16.mxu0 0
        %5610 = vmatpush1.bf16.msra.mxu0 0
        %5611 = vmatprep.subr.bf16.mxu0 0
        %5612 = vmatpush1.bf16.msra.mxu0 0
        %5613 = vmatprep.subr.bf16.mxu0 0
        %5614 = vmatpush1.bf16.msra.mxu0 0
        %5615 = vmatprep.subr.bf16.mxu0 0
        %5616 = vmatpush1.bf16.msra.mxu0 0
        %5617 = vmatprep.mubr.bf16.mxu0 0
        %5618 = vmatmul.mubr.bf16.gmra.mrb[0].mxu0 %v5513
        %v5619 = vpop.f32.mrb[0].mxu0
        %v5620 = vadd.f32 0.0, %v5619
        %v5621 = vpop.f32.mrb[0].mxu0
        %v5622 = vpop.f32.mrb[0].mxu0
        %v5623 = vadd.f32 0.0, %v5622
        %v5624 = vpop.f32.mrb[0].mxu0
        %5625 = vmatprep.mubr.bf16.mxu0 0
        %5626 = vmatmul.mubr.bf16.gmra.mrb[0].mxu0 %v5514
        %v5627 = vpop.f32.mrb[0].mxu0
        %v5628 = vadd.f32 0.0, %v5627
        %v5629 = vpop.f32.mrb[0].mxu0
        %v5630 = vpop.f32.mrb[0].mxu0
        %v5631 = vadd.f32 0.0, %v5630
        %v5632 = vpop.f32.mrb[0].mxu0
        %5633 = vmatprep.mubr.bf16.mxu0 0
        %5634 = vmatmul.mubr.bf16.gmra.mrb[0].mxu0 %v5515
        %v5635 = vpop.f32.mrb[0].mxu0
        %v5636 = vadd.f32 0.0, %v5635
        %v5637 = vpop.f32.mrb[0].mxu0
        %v5638 = vpop.f32.mrb[0].mxu0
        %v5639 = vadd.f32 0.0, %v5638
        %v5640 = vpop.f32.mrb[0].mxu0
        %5641 = vmatprep.mubr.bf16.mxu0 0
        %5642 = vmatmul.mubr.bf16.gmra.mrb[0].mxu0 %v5516
        %v5643 = vpop.f32.mrb[0].mxu0
        %v5644 = vadd.f32 0.0, %v5643
        %v5645 = vpop.f32.mrb[0].mxu0
        %v5646 = vpop.f32.mrb[0].mxu0
        %v5647 = vadd.f32 0.0, %v5646
        %v5648 = vpop.f32.mrb[0].mxu0
        %5649 = vmatprep.mubr.bf16.mxu0 0
        %5650 = vmatmul.mubr.bf16.gmra.mrb[0].mxu0 %v5517
        %v5651 = vpop.f32.mrb[0].mxu0
        %v5652 = vadd.f32 0.0, %v5651
        %v5653 = vpop.f32.mrb[0].mxu0
        %v5654 = vpop.f32.mrb[0].mxu0
        %v5655 = vadd.f32 0.0, %v5654
        %v5656 = vpop.f32.mrb[0].mxu0
        %5657 = vmatprep.mubr.bf16.mxu0 0
        %5658 = vmatmul.mubr.bf16.gmra.mrb[0].mxu0 %v5518
        %v5659 = vpop.f32.mrb[0].mxu0
        %v5660 = vadd.f32 0.0, %v5659
        %v5661 = vpop.f32.mrb[0].mxu0
        %v5662 = vpop.f32.mrb[0].mxu0
        %v5663 = vadd.f32 0.0, %v5662
        %v5664 = vpop.f32.mrb[0].mxu0
        %5665 = vmatprep.mubr.bf16.mxu0 0
        %5666 = vmatmul.mubr.bf16.gmra.mrb[0].mxu0 %v5519
        %v5667 = vpop.f32.mrb[0].mxu0
        %v5668 = vadd.f32 0.0, %v5667
        %v5669 = vpop.f32.mrb[0].mxu0
        %v5670 = vpop.f32.mrb[0].mxu0
        %v5671 = vadd.f32 0.0, %v5670
        %v5672 = vpop.f32.mrb[0].mxu0
        %5673 = vmatprep.mubr.bf16.mxu0 0
        %5674 = vmatmul.mubr.bf16.gmra.mrb[0].mxu0 %v5520
        %v5675 = vpop.f32.mrb[0].mxu0
        %v5676 = vadd.f32 0.0, %v5675
        %v5677 = vpop.f32.mrb[0].mxu0
        %v5678 = vpop.f32.mrb[0].mxu0
        %v5679 = vadd.f32 0.0, %v5678
        %v5680 = vpop.f32.mrb[0].mxu0
        %5681 = vmatprep.mubr.bf16.mxu0 0
        %5682 = vmatmul.mubr.bf16.gmra.mrb[0].mxu0 %v5521
        %v5683 = vpop.f32.mrb[0].mxu0
        %v5684 = vadd.f32 0.0, %v5683
        %v5685 = vpop.f32.mrb[0].mxu0
        %v5686 = vpop.f32.mrb[0].mxu0
        %v5687 = vadd.f32 0.0, %v5686
        %v5688 = vpop.f32.mrb[0].mxu0
        %5689 = vmatprep.mubr.bf16.mxu0 0
        %5690 = vmatmul.mubr.bf16.gmra.mrb[0].mxu0 %v5522
        %v5691 = vpop.f32.mrb[0].mxu0
        %v5692 = vadd.f32 0.0, %v5691
        %v5693 = vpop.f32.mrb[0].mxu0
        %v5694 = vpop.f32.mrb[0].mxu0
        %v5695 = vadd.f32 0.0, %v5694
        %v5696 = vpop.f32.mrb[0].mxu0
        %5697 = vmatprep.mubr.bf16.mxu0 0
        %5698 = vmatmul.mubr.bf16.gmra.mrb[0].mxu0 %v5523
        %v5699 = vpop.f32.mrb[0].mxu0
        %v5700 = vadd.f32 0.0, %v5699
        %v5701 = vpop.f32.mrb[0].mxu0
        %v5702 = vpop.f32.mrb[0].mxu0
        %v5703 = vadd.f32 0.0, %v5702
        %v5704 = vpop.f32.mrb[0].mxu0
        %5705 = vmatprep.mubr.bf16.mxu0 0
        %5706 = vmatmul.mubr.bf16.gmra.mrb[0].mxu0 %v5524
        %v5707 = vpop.f32.mrb[0].mxu0
        %v5708 = vadd.f32 0.0, %v5707
        %v5709 = vpop.f32.mrb[0].mxu0
        %v5710 = vpop.f32.mrb[0].mxu0
        %v5711 = vadd.f32 0.0, %v5710
        %v5712 = vpop.f32.mrb[0].mxu0
        %5713 = vmatprep.mubr.bf16.mxu0 0
        %5714 = vmatmul.mubr.bf16.gmra.mrb[0].mxu0 %v5525
        %v5715 = vpop.f32.mrb[0].mxu0
        %v5716 = vadd.f32 0.0, %v5715
        %v5717 = vpop.f32.mrb[0].mxu0
        %v5718 = vpop.f32.mrb[0].mxu0
        %v5719 = vadd.f32 0.0, %v5718
        %v5720 = vpop.f32.mrb[0].mxu0
        %5721 = vmatprep.mubr.bf16.mxu0 0
        %5722 = vmatmul.mubr.bf16.gmra.mrb[0].mxu0 %v5526
        %v5723 = vpop.f32.mrb[0].mxu0
        %v5724 = vadd.f32 0.0, %v5723
        %v5725 = vpop.f32.mrb[0].mxu0
        %v5726 = vpop.f32.mrb[0].mxu0
        %v5727 = vadd.f32 0.0, %v5726
        %v5728 = vpop.f32.mrb[0].mxu0
        %5729 = vmatprep.mubr.bf16.mxu0 0
        %5730 = vmatmul.mubr.bf16.gmra.mrb[0].mxu0 %v5527
        %v5731 = vpop.f32.mrb[0].mxu0
        %v5732 = vadd.f32 0.0, %v5731
        %v5733 = vpop.f32.mrb[0].mxu0
        %v5734 = vpop.f32.mrb[0].mxu0
        %v5735 = vadd.f32 0.0, %v5734
        %v5736 = vpop.f32.mrb[0].mxu0
        %5737 = vmatprep.mubr.bf16.mxu0 0
        %5738 = vmatmul.mubr.bf16.gmra.mrb[0].mxu0 %v5528
        %v5739 = vpop.f32.mrb[0].mxu0
        %v5740 = vadd.f32 0.0, %v5739
        %v5741 = vpop.f32.mrb[0].mxu0
        %v5742 = vpop.f32.mrb[0].mxu0
        %v5743 = vadd.f32 0.0, %v5742
        %v5744 = vpop.f32.mrb[0].mxu0
        %5745 = vmatprep.mubr.bf16.mxu0 0
        %5746 = vmatmul.mubr.bf16.gmra.mrb[0].mxu0 %v5529
        %v5747 = vpop.f32.mrb[0].mxu0
        %v5748 = vadd.f32 0.0, %v5747
        %v5749 = vpop.f32.mrb[0].mxu0
        %v5750 = vpop.f32.mrb[0].mxu0
        %v5751 = vadd.f32 0.0, %v5750
        %v5752 = vpop.f32.mrb[0].mxu0
        %5753 = vmatprep.mubr.bf16.mxu0 0
        %5754 = vmatmul.mubr.bf16.gmra.mrb[0].mxu0 %v5530
        %v5755 = vpop.f32.mrb[0].mxu0
        %v5756 = vadd.f32 0.0, %v5755
        %v5757 = vpop.f32.mrb[0].mxu0
        %v5758 = vpop.f32.mrb[0].mxu0
        %v5759 = vadd.f32 0.0, %v5758
        %v5760 = vpop.f32.mrb[0].mxu0
        %5761 = vmatprep.mubr.bf16.mxu0 0
        %5762 = vmatmul.mubr.bf16.gmra.mrb[0].mxu0 %v5531
        %v5763 = vpop.f32.mrb[0].mxu0
        %v5764 = vadd.f32 0.0, %v5763
        %v5765 = vpop.f32.mrb[0].mxu0
        %v5766 = vpop.f32.mrb[0].mxu0
        %v5767 = vadd.f32 0.0, %v5766
        %v5768 = vpop.f32.mrb[0].mxu0
        %5769 = vmatprep.mubr.bf16.mxu0 0
        %5770 = vmatmul.mubr.bf16.gmra.mrb[0].mxu0 %v5532
        %v5771 = vpop.f32.mrb[0].mxu0
        %v5772 = vadd.f32 0.0, %v5771
        %v5773 = vpop.f32.mrb[0].mxu0
        %v5774 = vpop.f32.mrb[0].mxu0
        %v5775 = vadd.f32 0.0, %v5774
        %v5776 = vpop.f32.mrb[0].mxu0
        %5777 = vmatprep.mubr.bf16.mxu0 0
        %5778 = vmatmul.mubr.bf16.gmra.mrb[0].mxu0 %v5533
        %v5779 = vpop.f32.mrb[0].mxu0
        %v5780 = vadd.f32 0.0, %v5779
        %v5781 = vpop.f32.mrb[0].mxu0
        %v5782 = vpop.f32.mrb[0].mxu0
        %v5783 = vadd.f32 0.0, %v5782
        %v5784 = vpop.f32.mrb[0].mxu0
        %5785 = vmatprep.mubr.bf16.mxu0 0
        %5786 = vmatmul.mubr.bf16.gmra.mrb[0].mxu0 %v5534
        %v5787 = vpop.f32.mrb[0].mxu0
        %v5788 = vadd.f32 0.0, %v5787
        %v5789 = vpop.f32.mrb[0].mxu0
        %v5790 = vpop.f32.mrb[0].mxu0
        %v5791 = vadd.f32 0.0, %v5790
        %v5792 = vpop.f32.mrb[0].mxu0
        %5793 = vmatprep.mubr.bf16.mxu0 0
        %5794 = vmatmul.mubr.bf16.gmra.mrb[0].mxu0 %v5535
        %v5795 = vpop.f32.mrb[0].mxu0
        %v5796 = vadd.f32 0.0, %v5795
        %v5797 = vpop.f32.mrb[0].mxu0
        %v5798 = vpop.f32.mrb[0].mxu0
        %v5799 = vadd.f32 0.0, %v5798
        %v5800 = vpop.f32.mrb[0].mxu0
        %5801 = vmatprep.mubr.bf16.mxu0 0
        %5802 = vmatmul.mubr.bf16.gmra.mrb[0].mxu0 %v5536
        %v5803 = vpop.f32.mrb[0].mxu0
        %v5804 = vadd.f32 0.0, %v5803
        %v5805 = vpop.f32.mrb[0].mxu0
        %v5806 = vpop.f32.mrb[0].mxu0
        %v5807 = vadd.f32 0.0, %v5806
        %v5808 = vpop.f32.mrb[0].mxu0
        %5809 = vdwg.mxu0
        %v5810 = vadd.f32 %v5055, %v5620
        %v5811 = vadd.f32 %v5056, %v5623
        %v5812 = vadd.f32 %v5057, %v5628
        %v5813 = vadd.f32 %v5058, %v5631
        %v5814 = vadd.f32 %v5059, %v5636
        %v5815 = vadd.f32 %v5060, %v5639
        %v5816 = vadd.f32 %v5061, %v5644
        %v5817 = vadd.f32 %v5062, %v5647
        %v5818 = vadd.f32 %v5063, %v5652
        %v5819 = vadd.f32 %v5064, %v5655
        %v5820 = vadd.f32 %v5065, %v5660
        %v5821 = vadd.f32 %v5066, %v5663
        %v5822 = vadd.f32 %v5067, %v5668
        %v5823 = vadd.f32 %v5068, %v5671
        %v5824 = vadd.f32 %v5069, %v5676
        %v5825 = vadd.f32 %v5070, %v5679
        %v5826 = vadd.f32 %v5071, %v5684
        %v5827 = vadd.f32 %v5072, %v5687
        %v5828 = vadd.f32 %v5073, %v5692
        %v5829 = vadd.f32 %v5074, %v5695
        %v5830 = vadd.f32 %v5075, %v5700
        %v5831 = vadd.f32 %v5076, %v5703
        %v5832 = vadd.f32 %v5077, %v5708
        %v5833 = vadd.f32 %v5078, %v5711
        %v5834 = vadd.f32 %v5079, %v5716
        %v5835 = vadd.f32 %v5080, %v5719
        %v5836 = vadd.f32 %v5081, %v5724
        %v5837 = vadd.f32 %v5082, %v5727
        %v5838 = vadd.f32 %v5083, %v5732
        %v5839 = vadd.f32 %v5084, %v5735
        %v5840 = vadd.f32 %v5085, %v5740
        %v5841 = vadd.f32 %v5086, %v5743
        %v5842 = vadd.f32 %v5087, %v5748
        %v5843 = vadd.f32 %v5088, %v5751
        %v5844 = vadd.f32 %v5089, %v5756
        %v5845 = vadd.f32 %v5090, %v5759
        %v5846 = vadd.f32 %v5091, %v5764
        %v5847 = vadd.f32 %v5092, %v5767
        %v5848 = vadd.f32 %v5093, %v5772
        %v5849 = vadd.f32 %v5094, %v5775
        %v5850 = vadd.f32 %v5095, %v5780
        %v5851 = vadd.f32 %v5096, %v5783
        %v5852 = vadd.f32 %v5097, %v5788
        %v5853 = vadd.f32 %v5098, %v5791
        %v5854 = vadd.f32 %v5099, %v5796
        %v5855 = vadd.f32 %v5100, %v5799
        %v5856 = vadd.f32 %v5101, %v5804
        %v5857 = vadd.f32 %v5102, %v5807
        %v5858 = vld [vmem:[%s3267 + $0x1f] sm:$0xff]
        %v5859 = vld [vmem:[%s3267 + $0x27] sm:$0xff]
        %v5860 = vld [vmem:[%s3267 + $0x2f] sm:$0xff]
        %v5861 = vld [vmem:[%s3267 + $0x37] sm:$0xff]
        %v5862 = vld [vmem:[%s3267 + $0x3f] sm:$0xff]
        %v5863 = vld [vmem:[%s3267 + $0x47] sm:$0xff]
        %v5864 = vld [vmem:[%s3267 + $0x4f] sm:$0xff]
        %v5865 = vld [vmem:[%s3267 + $0x57] sm:$0xff]
        %v5866 = vld [vmem:[%s3267 + $0x5f] sm:$0xff]
        %v5867 = vld [vmem:[%s3267 + $0x67] sm:$0xff]
        %v5868 = vld [vmem:[%s3267 + $0x6f] sm:$0xff]
        %v5869 = vld [vmem:[%s3267 + $0x77] sm:$0xff]
        %v5870 = vld [vmem:[%s3267 + $0x7f] sm:$0xff]
        %v5871 = vld [vmem:[%s3267 + $0x87] sm:$0xff]
        %v5872 = vld [vmem:[%s3267 + $0x8f] sm:$0xff]
        %v5873 = vld [vmem:[%s3267 + $0x97] sm:$0xff]
        %v5874 = vld [vmem:[%s3267 + $0x9f] sm:$0xff]
        %v5875 = vld [vmem:[%s3267 + $0xa7] sm:$0xff]
        %v5876 = vld [vmem:[%s3267 + $0xaf] sm:$0xff]
        %v5877 = vld [vmem:[%s3267 + $0xb7] sm:$0xff]
        %v5878 = vld [vmem:[%s3267 + $0xbf] sm:$0xff]
        %v5879 = vld [vmem:[%s3267 + $0xc7] sm:$0xff]
        %v5880 = vld [vmem:[%s3267 + $0xcf] sm:$0xff]
        %v5881 = vld [vmem:[%s3267 + $0xd7] sm:$0xff]
        %v5882 = vld [vmem:[%s3267 + $0xdf] sm:$0xff]
        %v5883 = vld [vmem:[%s3267 + $0xe7] sm:$0xff]
        %v5884 = vld [vmem:[%s3267 + $0xef] sm:$0xff]
        %v5885 = vld [vmem:[%s3267 + $0xf7] sm:$0xff]
        %v5886 = vld [vmem:[%s3267 + $0xff] sm:$0xff]
        %v5887 = vld [vmem:[%s3267 + $0x107] sm:$0xff]
        %v5888 = vld [vmem:[%s3267 + $0x10f] sm:$0xff]
        %v5889 = vld [vmem:[%s3267 + $0x117] sm:$0xff]
        %v5890 = vld [vmem:[%s3267 + $0x11f] sm:$0xff]
        %v5891 = vld [vmem:[%s3267 + $0x127] sm:$0xff]
        %v5892 = vld [vmem:[%s3267 + $0x12f] sm:$0xff]
        %v5893 = vld [vmem:[%s3267 + $0x137] sm:$0xff]
        %v5894 = vld [vmem:[%s3267 + $0x13f] sm:$0xff]
        %v5895 = vld [vmem:[%s3267 + $0x147] sm:$0xff]
        %v5896 = vld [vmem:[%s3267 + $0x14f] sm:$0xff]
        %v5897 = vld [vmem:[%s3267 + $0x157] sm:$0xff]
        %v5898 = vld [vmem:[%s3267 + $0x15f] sm:$0xff]
        %v5899 = vld [vmem:[%s3267 + $0x167] sm:$0xff]
        %v5900 = vld [vmem:[%s3267 + $0x16f] sm:$0xff]
        %v5901 = vld [vmem:[%s3267 + $0x177] sm:$0xff]
        %v5902 = vld [vmem:[%s3267 + $0x17f] sm:$0xff]
        %v5903 = vld [vmem:[%s3267 + $0x187] sm:$0xff]
        %v5904 = vld [vmem:[%s3267 + $0x18f] sm:$0xff]
        %v5905 = vld [vmem:[%s3267 + $0x197] sm:$0xff]
        %v5906 = vpack.c.bf16 %v5859, %v5858
        %v5907 = vpack.c.bf16 %v5861, %v5860
        %v5908 = vpack.c.bf16 %v5863, %v5862
        %v5909 = vpack.c.bf16 %v5865, %v5864
        %v5910 = vpack.c.bf16 %v5867, %v5866
        %v5911 = vpack.c.bf16 %v5869, %v5868
        %v5912 = vpack.c.bf16 %v5871, %v5870
        %v5913 = vpack.c.bf16 %v5873, %v5872
        %v5914 = vpack.c.bf16 %v5875, %v5874
        %v5915 = vpack.c.bf16 %v5877, %v5876
        %v5916 = vpack.c.bf16 %v5879, %v5878
        %v5917 = vpack.c.bf16 %v5881, %v5880
        %v5918 = vpack.c.bf16 %v5883, %v5882
        %v5919 = vpack.c.bf16 %v5885, %v5884
        %v5920 = vpack.c.bf16 %v5887, %v5886
        %v5921 = vpack.c.bf16 %v5889, %v5888
        %v5922 = vpack.c.bf16 %v5891, %v5890
        %v5923 = vpack.c.bf16 %v5893, %v5892
        %v5924 = vpack.c.bf16 %v5895, %v5894
        %v5925 = vpack.c.bf16 %v5897, %v5896
        %v5926 = vpack.c.bf16 %v5899, %v5898
        %v5927 = vpack.c.bf16 %v5901, %v5900
        %v5928 = vpack.c.bf16 %v5903, %v5902
        %v5929 = vpack.c.bf16 %v5905, %v5904
        %5930 = vmatprep.subr.bf16.mxu0 0
        %5931 = vmatpush1.bf16.msra.mxu0 %v5569
        %5932 = vmatprep.subr.bf16.mxu0 0
        %5933 = vmatpush1.bf16.msra.mxu0 %v5570
        %5934 = vmatprep.subr.bf16.mxu0 0
        %5935 = vmatpush1.bf16.msra.mxu0 %v5571
        %5936 = vmatprep.subr.bf16.mxu0 0
        %5937 = vmatpush1.bf16.msra.mxu0 %v5572
        %5938 = vmatprep.subr.bf16.mxu0 0
        %5939 = vmatpush1.bf16.msra.mxu0 %v5573
        %5940 = vmatprep.subr.bf16.mxu0 0
        %5941 = vmatpush1.bf16.msra.mxu0 %v5574
        %5942 = vmatprep.subr.bf16.mxu0 0
        %5943 = vmatpush1.bf16.msra.mxu0 %v5575
        %5944 = vmatprep.subr.bf16.mxu0 0
        %5945 = vmatpush1.bf16.msra.mxu0 %v5576
        %5946 = vmatprep.subr.bf16.mxu0 0
        %5947 = vmatpush1.bf16.msra.mxu0 0
        %5948 = vmatprep.subr.bf16.mxu0 0
        %5949 = vmatpush1.bf16.msra.mxu0 0
        %5950 = vmatprep.subr.bf16.mxu0 0
        %5951 = vmatpush1.bf16.msra.mxu0 0
        %5952 = vmatprep.subr.bf16.mxu0 0
        %5953 = vmatpush1.bf16.msra.mxu0 0
        %5954 = vmatprep.subr.bf16.mxu0 0
        %5955 = vmatpush1.bf16.msra.mxu0 0
        %5956 = vmatprep.subr.bf16.mxu0 0
        %5957 = vmatpush1.bf16.msra.mxu0 0
        %5958 = vmatprep.subr.bf16.mxu0 0
        %5959 = vmatpush1.bf16.msra.mxu0 0
        %5960 = vmatprep.subr.bf16.mxu0 0
        %5961 = vmatpush1.bf16.msra.mxu0 0
        %5962 = vmatprep.mubr.bf16.mxu0 0
        %5963 = vmatmul.mubr.bf16.gmra.mrb[0].mxu0 %v5906
        %v5964 = vpop.f32.mrb[0].mxu0
        %v5965 = vadd.f32 0.0, %v5964
        %v5966 = vpop.f32.mrb[0].mxu0
        %v5967 = vpop.f32.mrb[0].mxu0
        %v5968 = vadd.f32 0.0, %v5967
        %v5969 = vpop.f32.mrb[0].mxu0
        %5970 = vmatprep.mubr.bf16.mxu0 0
        %5971 = vmatmul.mubr.bf16.gmra.mrb[0].mxu0 %v5907
        %v5972 = vpop.f32.mrb[0].mxu0
        %v5973 = vadd.f32 0.0, %v5972
        %v5974 = vpop.f32.mrb[0].mxu0
        %v5975 = vpop.f32.mrb[0].mxu0
        %v5976 = vadd.f32 0.0, %v5975
        %v5977 = vpop.f32.mrb[0].mxu0
        %5978 = vmatprep.mubr.bf16.mxu0 0
        %5979 = vmatmul.mubr.bf16.gmra.mrb[0].mxu0 %v5908
        %v5980 = vpop.f32.mrb[0].mxu0
        %v5981 = vadd.f32 0.0, %v5980
        %v5982 = vpop.f32.mrb[0].mxu0
        %v5983 = vpop.f32.mrb[0].mxu0
        %v5984 = vadd.f32 0.0, %v5983
        %v5985 = vpop.f32.mrb[0].mxu0
        %5986 = vmatprep.mubr.bf16.mxu0 0
        %5987 = vmatmul.mubr.bf16.gmra.mrb[0].mxu0 %v5909
        %v5988 = vpop.f32.mrb[0].mxu0
        %v5989 = vadd.f32 0.0, %v5988
        %v5990 = vpop.f32.mrb[0].mxu0
        %v5991 = vpop.f32.mrb[0].mxu0
        %v5992 = vadd.f32 0.0, %v5991
        %v5993 = vpop.f32.mrb[0].mxu0
        %5994 = vmatprep.mubr.bf16.mxu0 0
        %5995 = vmatmul.mubr.bf16.gmra.mrb[0].mxu0 %v5910
        %v5996 = vpop.f32.mrb[0].mxu0
        %v5997 = vadd.f32 0.0, %v5996
        %v5998 = vpop.f32.mrb[0].mxu0
        %v5999 = vpop.f32.mrb[0].mxu0
        %v6000 = vadd.f32 0.0, %v5999
        %v6001 = vpop.f32.mrb[0].mxu0
        %6002 = vmatprep.mubr.bf16.mxu0 0
        %6003 = vmatmul.mubr.bf16.gmra.mrb[0].mxu0 %v5911
        %v6004 = vpop.f32.mrb[0].mxu0
        %v6005 = vadd.f32 0.0, %v6004
        %v6006 = vpop.f32.mrb[0].mxu0
        %v6007 = vpop.f32.mrb[0].mxu0
        %v6008 = vadd.f32 0.0, %v6007
        %v6009 = vpop.f32.mrb[0].mxu0
        %6010 = vmatprep.mubr.bf16.mxu0 0
        %6011 = vmatmul.mubr.bf16.gmra.mrb[0].mxu0 %v5912
        %v6012 = vpop.f32.mrb[0].mxu0
        %v6013 = vadd.f32 0.0, %v6012
        %v6014 = vpop.f32.mrb[0].mxu0
        %v6015 = vpop.f32.mrb[0].mxu0
        %v6016 = vadd.f32 0.0, %v6015
        %v6017 = vpop.f32.mrb[0].mxu0
        %6018 = vmatprep.mubr.bf16.mxu0 0
        %6019 = vmatmul.mubr.bf16.gmra.mrb[0].mxu0 %v5913
        %v6020 = vpop.f32.mrb[0].mxu0
        %v6021 = vadd.f32 0.0, %v6020
        %v6022 = vpop.f32.mrb[0].mxu0
        %v6023 = vpop.f32.mrb[0].mxu0
        %v6024 = vadd.f32 0.0, %v6023
        %v6025 = vpop.f32.mrb[0].mxu0
        %6026 = vmatprep.mubr.bf16.mxu0 0
        %6027 = vmatmul.mubr.bf16.gmra.mrb[0].mxu0 %v5914
        %v6028 = vpop.f32.mrb[0].mxu0
        %v6029 = vadd.f32 0.0, %v6028
        %v6030 = vpop.f32.mrb[0].mxu0
        %v6031 = vpop.f32.mrb[0].mxu0
        %v6032 = vadd.f32 0.0, %v6031
        %v6033 = vpop.f32.mrb[0].mxu0
        %6034 = vmatprep.mubr.bf16.mxu0 0
        %6035 = vmatmul.mubr.bf16.gmra.mrb[0].mxu0 %v5915
        %v6036 = vpop.f32.mrb[0].mxu0
        %v6037 = vadd.f32 0.0, %v6036
        %v6038 = vpop.f32.mrb[0].mxu0
        %v6039 = vpop.f32.mrb[0].mxu0
        %v6040 = vadd.f32 0.0, %v6039
        %v6041 = vpop.f32.mrb[0].mxu0
        %6042 = vmatprep.mubr.bf16.mxu0 0
        %6043 = vmatmul.mubr.bf16.gmra.mrb[0].mxu0 %v5916
        %v6044 = vpop.f32.mrb[0].mxu0
        %v6045 = vadd.f32 0.0, %v6044
        %v6046 = vpop.f32.mrb[0].mxu0
        %v6047 = vpop.f32.mrb[0].mxu0
        %v6048 = vadd.f32 0.0, %v6047
        %v6049 = vpop.f32.mrb[0].mxu0
        %6050 = vmatprep.mubr.bf16.mxu0 0
        %6051 = vmatmul.mubr.bf16.gmra.mrb[0].mxu0 %v5917
        %v6052 = vpop.f32.mrb[0].mxu0
        %v6053 = vadd.f32 0.0, %v6052
        %v6054 = vpop.f32.mrb[0].mxu0
        %v6055 = vpop.f32.mrb[0].mxu0
        %v6056 = vadd.f32 0.0, %v6055
        %v6057 = vpop.f32.mrb[0].mxu0
        %6058 = vmatprep.mubr.bf16.mxu0 0
        %6059 = vmatmul.mubr.bf16.gmra.mrb[0].mxu0 %v5918
        %v6060 = vpop.f32.mrb[0].mxu0
        %v6061 = vadd.f32 0.0, %v6060
        %v6062 = vpop.f32.mrb[0].mxu0
        %v6063 = vpop.f32.mrb[0].mxu0
        %v6064 = vadd.f32 0.0, %v6063
        %v6065 = vpop.f32.mrb[0].mxu0
        %6066 = vmatprep.mubr.bf16.mxu0 0
        %6067 = vmatmul.mubr.bf16.gmra.mrb[0].mxu0 %v5919
        %v6068 = vpop.f32.mrb[0].mxu0
        %v6069 = vadd.f32 0.0, %v6068
        %v6070 = vpop.f32.mrb[0].mxu0
        %v6071 = vpop.f32.mrb[0].mxu0
        %v6072 = vadd.f32 0.0, %v6071
        %v6073 = vpop.f32.mrb[0].mxu0
        %6074 = vmatprep.mubr.bf16.mxu0 0
        %6075 = vmatmul.mubr.bf16.gmra.mrb[0].mxu0 %v5920
        %v6076 = vpop.f32.mrb[0].mxu0
        %v6077 = vadd.f32 0.0, %v6076
        %v6078 = vpop.f32.mrb[0].mxu0
        %v6079 = vpop.f32.mrb[0].mxu0
        %v6080 = vadd.f32 0.0, %v6079
        %v6081 = vpop.f32.mrb[0].mxu0
        %6082 = vmatprep.mubr.bf16.mxu0 0
        %6083 = vmatmul.mubr.bf16.gmra.mrb[0].mxu0 %v5921
        %v6084 = vpop.f32.mrb[0].mxu0
        %v6085 = vadd.f32 0.0, %v6084
        %v6086 = vpop.f32.mrb[0].mxu0
        %v6087 = vpop.f32.mrb[0].mxu0
        %v6088 = vadd.f32 0.0, %v6087
        %v6089 = vpop.f32.mrb[0].mxu0
        %6090 = vmatprep.mubr.bf16.mxu0 0
        %6091 = vmatmul.mubr.bf16.gmra.mrb[0].mxu0 %v5922
        %v6092 = vpop.f32.mrb[0].mxu0
        %v6093 = vadd.f32 0.0, %v6092
        %v6094 = vpop.f32.mrb[0].mxu0
        %v6095 = vpop.f32.mrb[0].mxu0
        %v6096 = vadd.f32 0.0, %v6095
        %v6097 = vpop.f32.mrb[0].mxu0
        %6098 = vmatprep.mubr.bf16.mxu0 0
        %6099 = vmatmul.mubr.bf16.gmra.mrb[0].mxu0 %v5923
        %v6100 = vpop.f32.mrb[0].mxu0
        %v6101 = vadd.f32 0.0, %v6100
        %v6102 = vpop.f32.mrb[0].mxu0
        %v6103 = vpop.f32.mrb[0].mxu0
        %v6104 = vadd.f32 0.0, %v6103
        %v6105 = vpop.f32.mrb[0].mxu0
        %6106 = vmatprep.mubr.bf16.mxu0 0
        %6107 = vmatmul.mubr.bf16.gmra.mrb[0].mxu0 %v5924
        %v6108 = vpop.f32.mrb[0].mxu0
        %v6109 = vadd.f32 0.0, %v6108
        %v6110 = vpop.f32.mrb[0].mxu0
        %v6111 = vpop.f32.mrb[0].mxu0
        %v6112 = vadd.f32 0.0, %v6111
        %v6113 = vpop.f32.mrb[0].mxu0
        %6114 = vmatprep.mubr.bf16.mxu0 0
        %6115 = vmatmul.mubr.bf16.gmra.mrb[0].mxu0 %v5925
        %v6116 = vpop.f32.mrb[0].mxu0
        %v6117 = vadd.f32 0.0, %v6116
        %v6118 = vpop.f32.mrb[0].mxu0
        %v6119 = vpop.f32.mrb[0].mxu0
        %v6120 = vadd.f32 0.0, %v6119
        %v6121 = vpop.f32.mrb[0].mxu0
        %6122 = vmatprep.mubr.bf16.mxu0 0
        %6123 = vmatmul.mubr.bf16.gmra.mrb[0].mxu0 %v5926
        %v6124 = vpop.f32.mrb[0].mxu0
        %v6125 = vadd.f32 0.0, %v6124
        %v6126 = vpop.f32.mrb[0].mxu0
        %v6127 = vpop.f32.mrb[0].mxu0
        %v6128 = vadd.f32 0.0, %v6127
        %v6129 = vpop.f32.mrb[0].mxu0
        %6130 = vmatprep.mubr.bf16.mxu0 0
        %6131 = vmatmul.mubr.bf16.gmra.mrb[0].mxu0 %v5927
        %v6132 = vpop.f32.mrb[0].mxu0
        %v6133 = vadd.f32 0.0, %v6132
        %v6134 = vpop.f32.mrb[0].mxu0
        %v6135 = vpop.f32.mrb[0].mxu0
        %v6136 = vadd.f32 0.0, %v6135
        %v6137 = vpop.f32.mrb[0].mxu0
        %6138 = vmatprep.mubr.bf16.mxu0 0
        %6139 = vmatmul.mubr.bf16.gmra.mrb[0].mxu0 %v5928
        %v6140 = vpop.f32.mrb[0].mxu0
        %v6141 = vadd.f32 0.0, %v6140
        %v6142 = vpop.f32.mrb[0].mxu0
        %v6143 = vpop.f32.mrb[0].mxu0
        %v6144 = vadd.f32 0.0, %v6143
        %v6145 = vpop.f32.mrb[0].mxu0
        %6146 = vmatprep.mubr.bf16.mxu0 0
        %6147 = vmatmul.mubr.bf16.gmra.mrb[0].mxu0 %v5929
        %v6148 = vpop.f32.mrb[0].mxu0
        %v6149 = vadd.f32 0.0, %v6148
        %v6150 = vpop.f32.mrb[0].mxu0
        %v6151 = vpop.f32.mrb[0].mxu0
        %v6152 = vadd.f32 0.0, %v6151
        %v6153 = vpop.f32.mrb[0].mxu0
        %6154 = vdwg.mxu0
        %v6155 = vadd.f32 %v5400, %v5965
        %v6156 = vadd.f32 %v5401, %v5968
        %v6157 = vadd.f32 %v5402, %v5973
        %v6158 = vadd.f32 %v5403, %v5976
        %v6159 = vadd.f32 %v5404, %v5981
        %v6160 = vadd.f32 %v5405, %v5984
        %v6161 = vadd.f32 %v5406, %v5989
        %v6162 = vadd.f32 %v5407, %v5992
        %v6163 = vadd.f32 %v5408, %v5997
        %v6164 = vadd.f32 %v5409, %v6000
        %v6165 = vadd.f32 %v5410, %v6005
        %v6166 = vadd.f32 %v5411, %v6008
        %v6167 = vadd.f32 %v5412, %v6013
        %v6168 = vadd.f32 %v5413, %v6016
        %v6169 = vadd.f32 %v5414, %v6021
        %v6170 = vadd.f32 %v5415, %v6024
        %v6171 = vadd.f32 %v5416, %v6029
        %v6172 = vadd.f32 %v5417, %v6032
        %v6173 = vadd.f32 %v5418, %v6037
        %v6174 = vadd.f32 %v5419, %v6040
        %v6175 = vadd.f32 %v5420, %v6045
        %v6176 = vadd.f32 %v5421, %v6048
        %v6177 = vadd.f32 %v5422, %v6053
        %v6178 = vadd.f32 %v5423, %v6056
        %v6179 = vadd.f32 %v5424, %v6061
        %v6180 = vadd.f32 %v5425, %v6064
        %v6181 = vadd.f32 %v5426, %v6069
        %v6182 = vadd.f32 %v5427, %v6072
        %v6183 = vadd.f32 %v5428, %v6077
        %v6184 = vadd.f32 %v5429, %v6080
        %v6185 = vadd.f32 %v5430, %v6085
        %v6186 = vadd.f32 %v5431, %v6088
        %v6187 = vadd.f32 %v5432, %v6093
        %v6188 = vadd.f32 %v5433, %v6096
        %v6189 = vadd.f32 %v5434, %v6101
        %v6190 = vadd.f32 %v5435, %v6104
        %v6191 = vadd.f32 %v5436, %v6109
        %v6192 = vadd.f32 %v5437, %v6112
        %v6193 = vadd.f32 %v5438, %v6117
        %v6194 = vadd.f32 %v5439, %v6120
        %v6195 = vadd.f32 %v5440, %v6125
        %v6196 = vadd.f32 %v5441, %v6128
        %v6197 = vadd.f32 %v5442, %v6133
        %v6198 = vadd.f32 %v5443, %v6136
        %v6199 = vadd.f32 %v5444, %v6141
        %v6200 = vadd.f32 %v5445, %v6144
        %v6201 = vadd.f32 %v5446, %v6149
        %v6202 = vadd.f32 %v5447, %v6152
        %s6203 = scalar_lea.vmem %s3, 256
        %v6204 = vld [vmem:[%s6203] sm:$0xf]
        %v6205 = vld [vmem:[%s6203 + $0x4] sm:$0xf]
        %v6206 = vld [vmem:[%s6203 + $0x8] sm:$0xf]
        %v6207 = vld [vmem:[%s6203 + $0xc] sm:$0xf]
        %v6208 = vld [vmem:[%s6203 + $0x10] sm:$0xf]
        %v6209 = vld [vmem:[%s6203 + $0x14] sm:$0xf]
        %v6210 = vld [vmem:[%s6203 + $0x18] sm:$0xf]
        %v6211 = vld [vmem:[%s6203 + $0x1c] sm:$0xf]
        %v6212 = vld [vmem:[%s6203 + $0x20] sm:$0xf]
        %v6213 = vld [vmem:[%s6203 + $0x24] sm:$0xf]
        %v6214 = vld [vmem:[%s6203 + $0x28] sm:$0xf]
        %v6215 = vld [vmem:[%s6203 + $0x2c] sm:$0xf]
        %v6216 = vld [vmem:[%s6203 + $0x30] sm:$0xf]
        %v6217 = vld [vmem:[%s6203 + $0x34] sm:$0xf]
        %v6218 = vld [vmem:[%s6203 + $0x38] sm:$0xf]
        %v6219 = vld [vmem:[%s6203 + $0x3c] sm:$0xf]
        %v6220 = vld [vmem:[#allocation2 + $0x20] sm:$0xff]
        %v6221 = vld [vmem:[#allocation2 + $0x28] sm:$0xff]
        %v6222 = vld [vmem:[#allocation2 + $0x30] sm:$0xff]
        %v6223 = vld [vmem:[#allocation2 + $0x38] sm:$0xff]
        %v6224 = vld [vmem:[#allocation2 + $0x40] sm:$0xff]
        %v6225 = vld [vmem:[#allocation2 + $0x48] sm:$0xff]
        %v6226 = vld [vmem:[#allocation2 + $0x50] sm:$0xff]
        %v6227 = vld [vmem:[#allocation2 + $0x58] sm:$0xff]
        %v6228 = vld [vmem:[#allocation2 + $0x60] sm:$0xff]
        %v6229 = vld [vmem:[#allocation2 + $0x68] sm:$0xff]
        %v6230 = vld [vmem:[#allocation2 + $0x70] sm:$0xff]
        %v6231 = vld [vmem:[#allocation2 + $0x78] sm:$0xff]
        %v6232 = vld [vmem:[#allocation2 + $0x80] sm:$0xff]
        %v6233 = vld [vmem:[#allocation2 + $0x88] sm:$0xff]
        %v6234 = vld [vmem:[#allocation2 + $0x90] sm:$0xff]
        %v6235 = vld [vmem:[#allocation2 + $0x98] sm:$0xff]
        %v6236 = vld [vmem:[#allocation2 + $0xa0] sm:$0xff]
        %v6237 = vld [vmem:[#allocation2 + $0xa8] sm:$0xff]
        %v6238 = vld [vmem:[#allocation2 + $0xb0] sm:$0xff]
        %v6239 = vld [vmem:[#allocation2 + $0xb8] sm:$0xff]
        %v6240 = vld [vmem:[#allocation2 + $0xc0] sm:$0xff]
        %v6241 = vld [vmem:[#allocation2 + $0xc8] sm:$0xff]
        %v6242 = vld [vmem:[#allocation2 + $0xd0] sm:$0xff]
        %v6243 = vld [vmem:[#allocation2 + $0xd8] sm:$0xff]
        %v6244 = vld [vmem:[#allocation2 + $0xe0] sm:$0xff]
        %v6245 = vld [vmem:[#allocation2 + $0xe8] sm:$0xff]
        %v6246 = vld [vmem:[#allocation2 + $0xf0] sm:$0xff]
        %v6247 = vld [vmem:[#allocation2 + $0xf8] sm:$0xff]
        %v6248 = vld [vmem:[#allocation2 + $0x100] sm:$0xff]
        %v6249 = vld [vmem:[#allocation2 + $0x108] sm:$0xff]
        %v6250 = vld [vmem:[#allocation2 + $0x110] sm:$0xff]
        %v6251 = vld [vmem:[#allocation2 + $0x118] sm:$0xff]
        %v6252 = vld [vmem:[#allocation2 + $0x120] sm:$0xff]
        %v6253 = vld [vmem:[#allocation2 + $0x128] sm:$0xff]
        %v6254 = vld [vmem:[#allocation2 + $0x130] sm:$0xff]
        %v6255 = vld [vmem:[#allocation2 + $0x138] sm:$0xff]
        %v6256 = vld [vmem:[#allocation2 + $0x140] sm:$0xff]
        %v6257 = vld [vmem:[#allocation2 + $0x148] sm:$0xff]
        %v6258 = vld [vmem:[#allocation2 + $0x150] sm:$0xff]
        %v6259 = vld [vmem:[#allocation2 + $0x158] sm:$0xff]
        %v6260 = vld [vmem:[#allocation2 + $0x160] sm:$0xff]
        %v6261 = vld [vmem:[#allocation2 + $0x168] sm:$0xff]
        %v6262 = vld [vmem:[#allocation2 + $0x170] sm:$0xff]
        %v6263 = vld [vmem:[#allocation2 + $0x178] sm:$0xff]
        %v6264 = vld [vmem:[#allocation2 + $0x180] sm:$0xff]
        %v6265 = vld [vmem:[#allocation2 + $0x188] sm:$0xff]
        %v6266 = vld [vmem:[#allocation2 + $0x190] sm:$0xff]
        %v6267 = vld [vmem:[#allocation2 + $0x198] sm:$0xff]
        %v6268 = vpack.c.bf16 %v6221, %v6220
        %v6269 = vpack.c.bf16 %v6223, %v6222
        %v6270 = vpack.c.bf16 %v6225, %v6224
        %v6271 = vpack.c.bf16 %v6227, %v6226
        %v6272 = vpack.c.bf16 %v6229, %v6228
        %v6273 = vpack.c.bf16 %v6231, %v6230
        %v6274 = vpack.c.bf16 %v6233, %v6232
        %v6275 = vpack.c.bf16 %v6235, %v6234
        %v6276 = vpack.c.bf16 %v6237, %v6236
        %v6277 = vpack.c.bf16 %v6239, %v6238
        %v6278 = vpack.c.bf16 %v6241, %v6240
        %v6279 = vpack.c.bf16 %v6243, %v6242
        %v6280 = vpack.c.bf16 %v6245, %v6244
        %v6281 = vpack.c.bf16 %v6247, %v6246
        %v6282 = vpack.c.bf16 %v6249, %v6248
        %v6283 = vpack.c.bf16 %v6251, %v6250
        %v6284 = vpack.c.bf16 %v6253, %v6252
        %v6285 = vpack.c.bf16 %v6255, %v6254
        %v6286 = vpack.c.bf16 %v6257, %v6256
        %v6287 = vpack.c.bf16 %v6259, %v6258
        %v6288 = vpack.c.bf16 %v6261, %v6260
        %v6289 = vpack.c.bf16 %v6263, %v6262
        %v6290 = vpack.c.bf16 %v6265, %v6264
        %v6291 = vpack.c.bf16 %v6267, %v6266
        %v6308 = vunpack.c.l.b16 %v6204
        %v6309 = vunpack.c.l.b16 %v6205
        %v6310 = vunpack.c.l.b16 %v6206
        %v6311 = vunpack.c.l.b16 %v6207
        %v6312 = vunpack.c.l.b16 %v6208
        %v6313 = vunpack.c.l.b16 %v6209
        %v6314 = vunpack.c.l.b16 %v6210
        %v6315 = vunpack.c.l.b16 %v6211
        %v6316 = vunpack.c.l.b16 %v6212
        %v6317 = vunpack.c.l.b16 %v6213
        %v6318 = vunpack.c.l.b16 %v6214
        %v6319 = vunpack.c.l.b16 %v6215
        %v6320 = vunpack.c.l.b16 %v6216
        %v6321 = vunpack.c.l.b16 %v6217
        %v6322 = vunpack.c.l.b16 %v6218
        %v6323 = vunpack.c.l.b16 %v6219
        %v6324 = vpack.c.b16 %v6309, %v6308
        %v6325 = vpack.c.b16 %v6311, %v6310
        %v6326 = vpack.c.b16 %v6313, %v6312
        %v6327 = vpack.c.b16 %v6315, %v6314
        %v6328 = vpack.c.b16 %v6317, %v6316
        %v6329 = vpack.c.b16 %v6319, %v6318
        %v6330 = vpack.c.b16 %v6321, %v6320
        %v6331 = vpack.c.b16 %v6323, %v6322
        %6340 = vmatprep.subr.bf16.mxu0 0
        %6341 = vmatpush1.bf16.msra.mxu0 %v6324
        %6342 = vmatprep.subr.bf16.mxu0 0
        %6343 = vmatpush1.bf16.msra.mxu0 %v6325
        %6344 = vmatprep.subr.bf16.mxu0 0
        %6345 = vmatpush1.bf16.msra.mxu0 %v6326
        %6346 = vmatprep.subr.bf16.mxu0 0
        %6347 = vmatpush1.bf16.msra.mxu0 %v6327
        %6348 = vmatprep.subr.bf16.mxu0 0
        %6349 = vmatpush1.bf16.msra.mxu0 %v6328
        %6350 = vmatprep.subr.bf16.mxu0 0
        %6351 = vmatpush1.bf16.msra.mxu0 %v6329
        %6352 = vmatprep.subr.bf16.mxu0 0
        %6353 = vmatpush1.bf16.msra.mxu0 %v6330
        %6354 = vmatprep.subr.bf16.mxu0 0
        %6355 = vmatpush1.bf16.msra.mxu0 %v6331
        %6356 = vmatprep.subr.bf16.mxu0 0
        %6357 = vmatpush1.bf16.msra.mxu0 0
        %6358 = vmatprep.subr.bf16.mxu0 0
        %6359 = vmatpush1.bf16.msra.mxu0 0
        %6360 = vmatprep.subr.bf16.mxu0 0
        %6361 = vmatpush1.bf16.msra.mxu0 0
        %6362 = vmatprep.subr.bf16.mxu0 0
        %6363 = vmatpush1.bf16.msra.mxu0 0
        %6364 = vmatprep.subr.bf16.mxu0 0
        %6365 = vmatpush1.bf16.msra.mxu0 0
        %6366 = vmatprep.subr.bf16.mxu0 0
        %6367 = vmatpush1.bf16.msra.mxu0 0
        %6368 = vmatprep.subr.bf16.mxu0 0
        %6369 = vmatpush1.bf16.msra.mxu0 0
        %6370 = vmatprep.subr.bf16.mxu0 0
        %6371 = vmatpush1.bf16.msra.mxu0 0
        %6372 = vmatprep.mubr.bf16.mxu0 0
        %6373 = vmatmul.mubr.bf16.gmra.mrb[0].mxu0 %v6268
        %v6374 = vpop.f32.mrb[0].mxu0
        %v6375 = vadd.f32 0.0, %v6374
        %v6376 = vpop.f32.mrb[0].mxu0
        %v6377 = vpop.f32.mrb[0].mxu0
        %v6378 = vadd.f32 0.0, %v6377
        %v6379 = vpop.f32.mrb[0].mxu0
        %6380 = vmatprep.mubr.bf16.mxu0 0
        %6381 = vmatmul.mubr.bf16.gmra.mrb[0].mxu0 %v6269
        %v6382 = vpop.f32.mrb[0].mxu0
        %v6383 = vadd.f32 0.0, %v6382
        %v6384 = vpop.f32.mrb[0].mxu0
        %v6385 = vpop.f32.mrb[0].mxu0
        %v6386 = vadd.f32 0.0, %v6385
        %v6387 = vpop.f32.mrb[0].mxu0
        %6388 = vmatprep.mubr.bf16.mxu0 0
        %6389 = vmatmul.mubr.bf16.gmra.mrb[0].mxu0 %v6270
        %v6390 = vpop.f32.mrb[0].mxu0
        %v6391 = vadd.f32 0.0, %v6390
        %v6392 = vpop.f32.mrb[0].mxu0
        %v6393 = vpop.f32.mrb[0].mxu0
        %v6394 = vadd.f32 0.0, %v6393
        %v6395 = vpop.f32.mrb[0].mxu0
        %6396 = vmatprep.mubr.bf16.mxu0 0
        %6397 = vmatmul.mubr.bf16.gmra.mrb[0].mxu0 %v6271
        %v6398 = vpop.f32.mrb[0].mxu0
        %v6399 = vadd.f32 0.0, %v6398
        %v6400 = vpop.f32.mrb[0].mxu0
        %v6401 = vpop.f32.mrb[0].mxu0
        %v6402 = vadd.f32 0.0, %v6401
        %v6403 = vpop.f32.mrb[0].mxu0
        %6404 = vmatprep.mubr.bf16.mxu0 0
        %6405 = vmatmul.mubr.bf16.gmra.mrb[0].mxu0 %v6272
        %v6406 = vpop.f32.mrb[0].mxu0
        %v6407 = vadd.f32 0.0, %v6406
        %v6408 = vpop.f32.mrb[0].mxu0
        %v6409 = vpop.f32.mrb[0].mxu0
        %v6410 = vadd.f32 0.0, %v6409
        %v6411 = vpop.f32.mrb[0].mxu0
        %6412 = vmatprep.mubr.bf16.mxu0 0
        %6413 = vmatmul.mubr.bf16.gmra.mrb[0].mxu0 %v6273
        %v6414 = vpop.f32.mrb[0].mxu0
        %v6415 = vadd.f32 0.0, %v6414
        %v6416 = vpop.f32.mrb[0].mxu0
        %v6417 = vpop.f32.mrb[0].mxu0
        %v6418 = vadd.f32 0.0, %v6417
        %v6419 = vpop.f32.mrb[0].mxu0
        %6420 = vmatprep.mubr.bf16.mxu0 0
        %6421 = vmatmul.mubr.bf16.gmra.mrb[0].mxu0 %v6274
        %v6422 = vpop.f32.mrb[0].mxu0
        %v6423 = vadd.f32 0.0, %v6422
        %v6424 = vpop.f32.mrb[0].mxu0
        %v6425 = vpop.f32.mrb[0].mxu0
        %v6426 = vadd.f32 0.0, %v6425
        %v6427 = vpop.f32.mrb[0].mxu0
        %6428 = vmatprep.mubr.bf16.mxu0 0
        %6429 = vmatmul.mubr.bf16.gmra.mrb[0].mxu0 %v6275
        %v6430 = vpop.f32.mrb[0].mxu0
        %v6431 = vadd.f32 0.0, %v6430
        %v6432 = vpop.f32.mrb[0].mxu0
        %v6433 = vpop.f32.mrb[0].mxu0
        %v6434 = vadd.f32 0.0, %v6433
        %v6435 = vpop.f32.mrb[0].mxu0
        %6436 = vmatprep.mubr.bf16.mxu0 0
        %6437 = vmatmul.mubr.bf16.gmra.mrb[0].mxu0 %v6276
        %v6438 = vpop.f32.mrb[0].mxu0
        %v6439 = vadd.f32 0.0, %v6438
        %v6440 = vpop.f32.mrb[0].mxu0
        %v6441 = vpop.f32.mrb[0].mxu0
        %v6442 = vadd.f32 0.0, %v6441
        %v6443 = vpop.f32.mrb[0].mxu0
        %6444 = vmatprep.mubr.bf16.mxu0 0
        %6445 = vmatmul.mubr.bf16.gmra.mrb[0].mxu0 %v6277
        %v6446 = vpop.f32.mrb[0].mxu0
        %v6447 = vadd.f32 0.0, %v6446
        %v6448 = vpop.f32.mrb[0].mxu0
        %v6449 = vpop.f32.mrb[0].mxu0
        %v6450 = vadd.f32 0.0, %v6449
        %v6451 = vpop.f32.mrb[0].mxu0
        %6452 = vmatprep.mubr.bf16.mxu0 0
        %6453 = vmatmul.mubr.bf16.gmra.mrb[0].mxu0 %v6278
        %v6454 = vpop.f32.mrb[0].mxu0
        %v6455 = vadd.f32 0.0, %v6454
        %v6456 = vpop.f32.mrb[0].mxu0
        %v6457 = vpop.f32.mrb[0].mxu0
        %v6458 = vadd.f32 0.0, %v6457
        %v6459 = vpop.f32.mrb[0].mxu0
        %6460 = vmatprep.mubr.bf16.mxu0 0
        %6461 = vmatmul.mubr.bf16.gmra.mrb[0].mxu0 %v6279
        %v6462 = vpop.f32.mrb[0].mxu0
        %v6463 = vadd.f32 0.0, %v6462
        %v6464 = vpop.f32.mrb[0].mxu0
        %v6465 = vpop.f32.mrb[0].mxu0
        %v6466 = vadd.f32 0.0, %v6465
        %v6467 = vpop.f32.mrb[0].mxu0
        %6468 = vmatprep.mubr.bf16.mxu0 0
        %6469 = vmatmul.mubr.bf16.gmra.mrb[0].mxu0 %v6280
        %v6470 = vpop.f32.mrb[0].mxu0
        %v6471 = vadd.f32 0.0, %v6470
        %v6472 = vpop.f32.mrb[0].mxu0
        %v6473 = vpop.f32.mrb[0].mxu0
        %v6474 = vadd.f32 0.0, %v6473
        %v6475 = vpop.f32.mrb[0].mxu0
        %6476 = vmatprep.mubr.bf16.mxu0 0
        %6477 = vmatmul.mubr.bf16.gmra.mrb[0].mxu0 %v6281
        %v6478 = vpop.f32.mrb[0].mxu0
        %v6479 = vadd.f32 0.0, %v6478
        %v6480 = vpop.f32.mrb[0].mxu0
        %v6481 = vpop.f32.mrb[0].mxu0
        %v6482 = vadd.f32 0.0, %v6481
        %v6483 = vpop.f32.mrb[0].mxu0
        %6484 = vmatprep.mubr.bf16.mxu0 0
        %6485 = vmatmul.mubr.bf16.gmra.mrb[0].mxu0 %v6282
        %v6486 = vpop.f32.mrb[0].mxu0
        %v6487 = vadd.f32 0.0, %v6486
        %v6488 = vpop.f32.mrb[0].mxu0
        %v6489 = vpop.f32.mrb[0].mxu0
        %v6490 = vadd.f32 0.0, %v6489
        %v6491 = vpop.f32.mrb[0].mxu0
        %6492 = vmatprep.mubr.bf16.mxu0 0
        %6493 = vmatmul.mubr.bf16.gmra.mrb[0].mxu0 %v6283
        %v6494 = vpop.f32.mrb[0].mxu0
        %v6495 = vadd.f32 0.0, %v6494
        %v6496 = vpop.f32.mrb[0].mxu0
        %v6497 = vpop.f32.mrb[0].mxu0
        %v6498 = vadd.f32 0.0, %v6497
        %v6499 = vpop.f32.mrb[0].mxu0
        %6500 = vmatprep.mubr.bf16.mxu0 0
        %6501 = vmatmul.mubr.bf16.gmra.mrb[0].mxu0 %v6284
        %v6502 = vpop.f32.mrb[0].mxu0
        %v6503 = vadd.f32 0.0, %v6502
        %v6504 = vpop.f32.mrb[0].mxu0
        %v6505 = vpop.f32.mrb[0].mxu0
        %v6506 = vadd.f32 0.0, %v6505
        %v6507 = vpop.f32.mrb[0].mxu0
        %6508 = vmatprep.mubr.bf16.mxu0 0
        %6509 = vmatmul.mubr.bf16.gmra.mrb[0].mxu0 %v6285
        %v6510 = vpop.f32.mrb[0].mxu0
        %v6511 = vadd.f32 0.0, %v6510
        %v6512 = vpop.f32.mrb[0].mxu0
        %v6513 = vpop.f32.mrb[0].mxu0
        %v6514 = vadd.f32 0.0, %v6513
        %v6515 = vpop.f32.mrb[0].mxu0
        %6516 = vmatprep.mubr.bf16.mxu0 0
        %6517 = vmatmul.mubr.bf16.gmra.mrb[0].mxu0 %v6286
        %v6518 = vpop.f32.mrb[0].mxu0
        %v6519 = vadd.f32 0.0, %v6518
        %v6520 = vpop.f32.mrb[0].mxu0
        %v6521 = vpop.f32.mrb[0].mxu0
        %v6522 = vadd.f32 0.0, %v6521
        %v6523 = vpop.f32.mrb[0].mxu0
        %6524 = vmatprep.mubr.bf16.mxu0 0
        %6525 = vmatmul.mubr.bf16.gmra.mrb[0].mxu0 %v6287
        %v6526 = vpop.f32.mrb[0].mxu0
        %v6527 = vadd.f32 0.0, %v6526
        %v6528 = vpop.f32.mrb[0].mxu0
        %v6529 = vpop.f32.mrb[0].mxu0
        %v6530 = vadd.f32 0.0, %v6529
        %v6531 = vpop.f32.mrb[0].mxu0
        %6532 = vmatprep.mubr.bf16.mxu0 0
        %6533 = vmatmul.mubr.bf16.gmra.mrb[0].mxu0 %v6288
        %v6534 = vpop.f32.mrb[0].mxu0
        %v6535 = vadd.f32 0.0, %v6534
        %v6536 = vpop.f32.mrb[0].mxu0
        %v6537 = vpop.f32.mrb[0].mxu0
        %v6538 = vadd.f32 0.0, %v6537
        %v6539 = vpop.f32.mrb[0].mxu0
        %6540 = vmatprep.mubr.bf16.mxu0 0
        %6541 = vmatmul.mubr.bf16.gmra.mrb[0].mxu0 %v6289
        %v6542 = vpop.f32.mrb[0].mxu0
        %v6543 = vadd.f32 0.0, %v6542
        %v6544 = vpop.f32.mrb[0].mxu0
        %v6545 = vpop.f32.mrb[0].mxu0
        %v6546 = vadd.f32 0.0, %v6545
        %v6547 = vpop.f32.mrb[0].mxu0
        %6548 = vmatprep.mubr.bf16.mxu0 0
        %6549 = vmatmul.mubr.bf16.gmra.mrb[0].mxu0 %v6290
        %v6550 = vpop.f32.mrb[0].mxu0
        %v6551 = vadd.f32 0.0, %v6550
        %v6552 = vpop.f32.mrb[0].mxu0
        %v6553 = vpop.f32.mrb[0].mxu0
        %v6554 = vadd.f32 0.0, %v6553
        %v6555 = vpop.f32.mrb[0].mxu0
        %6556 = vmatprep.mubr.bf16.mxu0 0
        %6557 = vmatmul.mubr.bf16.gmra.mrb[0].mxu0 %v6291
        %v6558 = vpop.f32.mrb[0].mxu0
        %v6559 = vadd.f32 0.0, %v6558
        %v6560 = vpop.f32.mrb[0].mxu0
        %v6561 = vpop.f32.mrb[0].mxu0
        %v6562 = vadd.f32 0.0, %v6561
        %v6563 = vpop.f32.mrb[0].mxu0
        %6564 = vdwg.mxu0
        %v6565 = vadd.f32 %v5810, %v6375
        %v6566 = vadd.f32 %v5811, %v6378
        %v6567 = vadd.f32 %v5812, %v6383
        %v6568 = vadd.f32 %v5813, %v6386
        %v6569 = vadd.f32 %v5814, %v6391
        %v6570 = vadd.f32 %v5815, %v6394
        %v6571 = vadd.f32 %v5816, %v6399
        %v6572 = vadd.f32 %v5817, %v6402
        %v6573 = vadd.f32 %v5818, %v6407
        %v6574 = vadd.f32 %v5819, %v6410
        %v6575 = vadd.f32 %v5820, %v6415
        %v6576 = vadd.f32 %v5821, %v6418
        %v6577 = vadd.f32 %v5822, %v6423
        %v6578 = vadd.f32 %v5823, %v6426
        %v6579 = vadd.f32 %v5824, %v6431
        %v6580 = vadd.f32 %v5825, %v6434
        %v6581 = vadd.f32 %v5826, %v6439
        %v6582 = vadd.f32 %v5827, %v6442
        %v6583 = vadd.f32 %v5828, %v6447
        %v6584 = vadd.f32 %v5829, %v6450
        %v6585 = vadd.f32 %v5830, %v6455
        %v6586 = vadd.f32 %v5831, %v6458
        %v6587 = vadd.f32 %v5832, %v6463
        %v6588 = vadd.f32 %v5833, %v6466
        %v6589 = vadd.f32 %v5834, %v6471
        %v6590 = vadd.f32 %v5835, %v6474
        %v6591 = vadd.f32 %v5836, %v6479
        %v6592 = vadd.f32 %v5837, %v6482
        %v6593 = vadd.f32 %v5838, %v6487
        %v6594 = vadd.f32 %v5839, %v6490
        %v6595 = vadd.f32 %v5840, %v6495
        %v6596 = vadd.f32 %v5841, %v6498
        %v6597 = vadd.f32 %v5842, %v6503
        %v6598 = vadd.f32 %v5843, %v6506
        %v6599 = vadd.f32 %v5844, %v6511
        %v6600 = vadd.f32 %v5845, %v6514
        %v6601 = vadd.f32 %v5846, %v6519
        %v6602 = vadd.f32 %v5847, %v6522
        %v6603 = vadd.f32 %v5848, %v6527
        %v6604 = vadd.f32 %v5849, %v6530
        %v6605 = vadd.f32 %v5850, %v6535
        %v6606 = vadd.f32 %v5851, %v6538
        %v6607 = vadd.f32 %v5852, %v6543
        %v6608 = vadd.f32 %v5853, %v6546
        %v6609 = vadd.f32 %v5854, %v6551
        %v6610 = vadd.f32 %v5855, %v6554
        %v6611 = vadd.f32 %v5856, %v6559
        %v6612 = vadd.f32 %v5857, %v6562
        %v6613 = vld [vmem:[%s3267 + $0x20] sm:$0xff]
        %v6614 = vld [vmem:[%s3267 + $0x28] sm:$0xff]
        %v6615 = vld [vmem:[%s3267 + $0x30] sm:$0xff]
        %v6616 = vld [vmem:[%s3267 + $0x38] sm:$0xff]
        %v6617 = vld [vmem:[%s3267 + $0x40] sm:$0xff]
        %v6618 = vld [vmem:[%s3267 + $0x48] sm:$0xff]
        %v6619 = vld [vmem:[%s3267 + $0x50] sm:$0xff]
        %v6620 = vld [vmem:[%s3267 + $0x58] sm:$0xff]
        %v6621 = vld [vmem:[%s3267 + $0x60] sm:$0xff]
        %v6622 = vld [vmem:[%s3267 + $0x68] sm:$0xff]
        %v6623 = vld [vmem:[%s3267 + $0x70] sm:$0xff]
        %v6624 = vld [vmem:[%s3267 + $0x78] sm:$0xff]
        %v6625 = vld [vmem:[%s3267 + $0x80] sm:$0xff]
        %v6626 = vld [vmem:[%s3267 + $0x88] sm:$0xff]
        %v6627 = vld [vmem:[%s3267 + $0x90] sm:$0xff]
        %v6628 = vld [vmem:[%s3267 + $0x98] sm:$0xff]
        %v6629 = vld [vmem:[%s3267 + $0xa0] sm:$0xff]
        %v6630 = vld [vmem:[%s3267 + $0xa8] sm:$0xff]
        %v6631 = vld [vmem:[%s3267 + $0xb0] sm:$0xff]
        %v6632 = vld [vmem:[%s3267 + $0xb8] sm:$0xff]
        %v6633 = vld [vmem:[%s3267 + $0xc0] sm:$0xff]
        %v6634 = vld [vmem:[%s3267 + $0xc8] sm:$0xff]
        %v6635 = vld [vmem:[%s3267 + $0xd0] sm:$0xff]
        %v6636 = vld [vmem:[%s3267 + $0xd8] sm:$0xff]
        %v6637 = vld [vmem:[%s3267 + $0xe0] sm:$0xff]
        %v6638 = vld [vmem:[%s3267 + $0xe8] sm:$0xff]
        %v6639 = vld [vmem:[%s3267 + $0xf0] sm:$0xff]
        %v6640 = vld [vmem:[%s3267 + $0xf8] sm:$0xff]
        %v6641 = vld [vmem:[%s3267 + $0x100] sm:$0xff]
        %v6642 = vld [vmem:[%s3267 + $0x108] sm:$0xff]
        %v6643 = vld [vmem:[%s3267 + $0x110] sm:$0xff]
        %v6644 = vld [vmem:[%s3267 + $0x118] sm:$0xff]
        %v6645 = vld [vmem:[%s3267 + $0x120] sm:$0xff]
        %v6646 = vld [vmem:[%s3267 + $0x128] sm:$0xff]
        %v6647 = vld [vmem:[%s3267 + $0x130] sm:$0xff]
        %v6648 = vld [vmem:[%s3267 + $0x138] sm:$0xff]
        %v6649 = vld [vmem:[%s3267 + $0x140] sm:$0xff]
        %v6650 = vld [vmem:[%s3267 + $0x148] sm:$0xff]
        %v6651 = vld [vmem:[%s3267 + $0x150] sm:$0xff]
        %v6652 = vld [vmem:[%s3267 + $0x158] sm:$0xff]
        %v6653 = vld [vmem:[%s3267 + $0x160] sm:$0xff]
        %v6654 = vld [vmem:[%s3267 + $0x168] sm:$0xff]
        %v6655 = vld [vmem:[%s3267 + $0x170] sm:$0xff]
        %v6656 = vld [vmem:[%s3267 + $0x178] sm:$0xff]
        %v6657 = vld [vmem:[%s3267 + $0x180] sm:$0xff]
        %v6658 = vld [vmem:[%s3267 + $0x188] sm:$0xff]
        %v6659 = vld [vmem:[%s3267 + $0x190] sm:$0xff]
        %v6660 = vld [vmem:[%s3267 + $0x198] sm:$0xff]
        %v6661 = vpack.c.bf16 %v6614, %v6613
        %v6662 = vpack.c.bf16 %v6616, %v6615
        %v6663 = vpack.c.bf16 %v6618, %v6617
        %v6664 = vpack.c.bf16 %v6620, %v6619
        %v6665 = vpack.c.bf16 %v6622, %v6621
        %v6666 = vpack.c.bf16 %v6624, %v6623
        %v6667 = vpack.c.bf16 %v6626, %v6625
        %v6668 = vpack.c.bf16 %v6628, %v6627
        %v6669 = vpack.c.bf16 %v6630, %v6629
        %v6670 = vpack.c.bf16 %v6632, %v6631
        %v6671 = vpack.c.bf16 %v6634, %v6633
        %v6672 = vpack.c.bf16 %v6636, %v6635
        %v6673 = vpack.c.bf16 %v6638, %v6637
        %v6674 = vpack.c.bf16 %v6640, %v6639
        %v6675 = vpack.c.bf16 %v6642, %v6641
        %v6676 = vpack.c.bf16 %v6644, %v6643
        %v6677 = vpack.c.bf16 %v6646, %v6645
        %v6678 = vpack.c.bf16 %v6648, %v6647
        %v6679 = vpack.c.bf16 %v6650, %v6649
        %v6680 = vpack.c.bf16 %v6652, %v6651
        %v6681 = vpack.c.bf16 %v6654, %v6653
        %v6682 = vpack.c.bf16 %v6656, %v6655
        %v6683 = vpack.c.bf16 %v6658, %v6657
        %v6684 = vpack.c.bf16 %v6660, %v6659
        %6685 = vmatprep.subr.bf16.mxu0 0
        %6686 = vmatpush1.bf16.msra.mxu0 %v6324
        %6687 = vmatprep.subr.bf16.mxu0 0
        %6688 = vmatpush1.bf16.msra.mxu0 %v6325
        %6689 = vmatprep.subr.bf16.mxu0 0
        %6690 = vmatpush1.bf16.msra.mxu0 %v6326
        %6691 = vmatprep.subr.bf16.mxu0 0
        %6692 = vmatpush1.bf16.msra.mxu0 %v6327
        %6693 = vmatprep.subr.bf16.mxu0 0
        %6694 = vmatpush1.bf16.msra.mxu0 %v6328
        %6695 = vmatprep.subr.bf16.mxu0 0
        %6696 = vmatpush1.bf16.msra.mxu0 %v6329
        %6697 = vmatprep.subr.bf16.mxu0 0
        %6698 = vmatpush1.bf16.msra.mxu0 %v6330
        %6699 = vmatprep.subr.bf16.mxu0 0
        %6700 = vmatpush1.bf16.msra.mxu0 %v6331
        %6701 = vmatprep.subr.bf16.mxu0 0
        %6702 = vmatpush1.bf16.msra.mxu0 0
        %6703 = vmatprep.subr.bf16.mxu0 0
        %6704 = vmatpush1.bf16.msra.mxu0 0
        %6705 = vmatprep.subr.bf16.mxu0 0
        %6706 = vmatpush1.bf16.msra.mxu0 0
        %6707 = vmatprep.subr.bf16.mxu0 0
        %6708 = vmatpush1.bf16.msra.mxu0 0
        %6709 = vmatprep.subr.bf16.mxu0 0
        %6710 = vmatpush1.bf16.msra.mxu0 0
        %6711 = vmatprep.subr.bf16.mxu0 0
        %6712 = vmatpush1.bf16.msra.mxu0 0
        %6713 = vmatprep.subr.bf16.mxu0 0
        %6714 = vmatpush1.bf16.msra.mxu0 0
        %6715 = vmatprep.subr.bf16.mxu0 0
        %6716 = vmatpush1.bf16.msra.mxu0 0
        %6717 = vmatprep.mubr.bf16.mxu0 0
        %6718 = vmatmul.mubr.bf16.gmra.mrb[0].mxu0 %v6661
        %v6719 = vpop.f32.mrb[0].mxu0
        %v6720 = vadd.f32 0.0, %v6719
        %v6721 = vpop.f32.mrb[0].mxu0
        %v6722 = vpop.f32.mrb[0].mxu0
        %v6723 = vadd.f32 0.0, %v6722
        %v6724 = vpop.f32.mrb[0].mxu0
        %6725 = vmatprep.mubr.bf16.mxu0 0
        %6726 = vmatmul.mubr.bf16.gmra.mrb[0].mxu0 %v6662
        %v6727 = vpop.f32.mrb[0].mxu0
        %v6728 = vadd.f32 0.0, %v6727
        %v6729 = vpop.f32.mrb[0].mxu0
        %v6730 = vpop.f32.mrb[0].mxu0
        %v6731 = vadd.f32 0.0, %v6730
        %v6732 = vpop.f32.mrb[0].mxu0
        %6733 = vmatprep.mubr.bf16.mxu0 0
        %6734 = vmatmul.mubr.bf16.gmra.mrb[0].mxu0 %v6663
        %v6735 = vpop.f32.mrb[0].mxu0
        %v6736 = vadd.f32 0.0, %v6735
        %v6737 = vpop.f32.mrb[0].mxu0
        %v6738 = vpop.f32.mrb[0].mxu0
        %v6739 = vadd.f32 0.0, %v6738
        %v6740 = vpop.f32.mrb[0].mxu0
        %6741 = vmatprep.mubr.bf16.mxu0 0
        %6742 = vmatmul.mubr.bf16.gmra.mrb[0].mxu0 %v6664
        %v6743 = vpop.f32.mrb[0].mxu0
        %v6744 = vadd.f32 0.0, %v6743
        %v6745 = vpop.f32.mrb[0].mxu0
        %v6746 = vpop.f32.mrb[0].mxu0
        %v6747 = vadd.f32 0.0, %v6746
        %v6748 = vpop.f32.mrb[0].mxu0
        %6749 = vmatprep.mubr.bf16.mxu0 0
        %6750 = vmatmul.mubr.bf16.gmra.mrb[0].mxu0 %v6665
        %v6751 = vpop.f32.mrb[0].mxu0
        %v6752 = vadd.f32 0.0, %v6751
        %v6753 = vpop.f32.mrb[0].mxu0
        %v6754 = vpop.f32.mrb[0].mxu0
        %v6755 = vadd.f32 0.0, %v6754
        %v6756 = vpop.f32.mrb[0].mxu0
        %6757 = vmatprep.mubr.bf16.mxu0 0
        %6758 = vmatmul.mubr.bf16.gmra.mrb[0].mxu0 %v6666
        %v6759 = vpop.f32.mrb[0].mxu0
        %v6760 = vadd.f32 0.0, %v6759
        %v6761 = vpop.f32.mrb[0].mxu0
        %v6762 = vpop.f32.mrb[0].mxu0
        %v6763 = vadd.f32 0.0, %v6762
        %v6764 = vpop.f32.mrb[0].mxu0
        %6765 = vmatprep.mubr.bf16.mxu0 0
        %6766 = vmatmul.mubr.bf16.gmra.mrb[0].mxu0 %v6667
        %v6767 = vpop.f32.mrb[0].mxu0
        %v6768 = vadd.f32 0.0, %v6767
        %v6769 = vpop.f32.mrb[0].mxu0
        %v6770 = vpop.f32.mrb[0].mxu0
        %v6771 = vadd.f32 0.0, %v6770
        %v6772 = vpop.f32.mrb[0].mxu0
        %6773 = vmatprep.mubr.bf16.mxu0 0
        %6774 = vmatmul.mubr.bf16.gmra.mrb[0].mxu0 %v6668
        %v6775 = vpop.f32.mrb[0].mxu0
        %v6776 = vadd.f32 0.0, %v6775
        %v6777 = vpop.f32.mrb[0].mxu0
        %v6778 = vpop.f32.mrb[0].mxu0
        %v6779 = vadd.f32 0.0, %v6778
        %v6780 = vpop.f32.mrb[0].mxu0
        %6781 = vmatprep.mubr.bf16.mxu0 0
        %6782 = vmatmul.mubr.bf16.gmra.mrb[0].mxu0 %v6669
        %v6783 = vpop.f32.mrb[0].mxu0
        %v6784 = vadd.f32 0.0, %v6783
        %v6785 = vpop.f32.mrb[0].mxu0
        %v6786 = vpop.f32.mrb[0].mxu0
        %v6787 = vadd.f32 0.0, %v6786
        %v6788 = vpop.f32.mrb[0].mxu0
        %6789 = vmatprep.mubr.bf16.mxu0 0
        %6790 = vmatmul.mubr.bf16.gmra.mrb[0].mxu0 %v6670
        %v6791 = vpop.f32.mrb[0].mxu0
        %v6792 = vadd.f32 0.0, %v6791
        %v6793 = vpop.f32.mrb[0].mxu0
        %v6794 = vpop.f32.mrb[0].mxu0
        %v6795 = vadd.f32 0.0, %v6794
        %v6796 = vpop.f32.mrb[0].mxu0
        %6797 = vmatprep.mubr.bf16.mxu0 0
        %6798 = vmatmul.mubr.bf16.gmra.mrb[0].mxu0 %v6671
        %v6799 = vpop.f32.mrb[0].mxu0
        %v6800 = vadd.f32 0.0, %v6799
        %v6801 = vpop.f32.mrb[0].mxu0
        %v6802 = vpop.f32.mrb[0].mxu0
        %v6803 = vadd.f32 0.0, %v6802
        %v6804 = vpop.f32.mrb[0].mxu0
        %6805 = vmatprep.mubr.bf16.mxu0 0
        %6806 = vmatmul.mubr.bf16.gmra.mrb[0].mxu0 %v6672
        %v6807 = vpop.f32.mrb[0].mxu0
        %v6808 = vadd.f32 0.0, %v6807
        %v6809 = vpop.f32.mrb[0].mxu0
        %v6810 = vpop.f32.mrb[0].mxu0
        %v6811 = vadd.f32 0.0, %v6810
        %v6812 = vpop.f32.mrb[0].mxu0
        %6813 = vmatprep.mubr.bf16.mxu0 0
        %6814 = vmatmul.mubr.bf16.gmra.mrb[0].mxu0 %v6673
        %v6815 = vpop.f32.mrb[0].mxu0
        %v6816 = vadd.f32 0.0, %v6815
        %v6817 = vpop.f32.mrb[0].mxu0
        %v6818 = vpop.f32.mrb[0].mxu0
        %v6819 = vadd.f32 0.0, %v6818
        %v6820 = vpop.f32.mrb[0].mxu0
        %6821 = vmatprep.mubr.bf16.mxu0 0
        %6822 = vmatmul.mubr.bf16.gmra.mrb[0].mxu0 %v6674
        %v6823 = vpop.f32.mrb[0].mxu0
        %v6824 = vadd.f32 0.0, %v6823
        %v6825 = vpop.f32.mrb[0].mxu0
        %v6826 = vpop.f32.mrb[0].mxu0
        %v6827 = vadd.f32 0.0, %v6826
        %v6828 = vpop.f32.mrb[0].mxu0
        %6829 = vmatprep.mubr.bf16.mxu0 0
        %6830 = vmatmul.mubr.bf16.gmra.mrb[0].mxu0 %v6675
        %v6831 = vpop.f32.mrb[0].mxu0
        %v6832 = vadd.f32 0.0, %v6831
        %v6833 = vpop.f32.mrb[0].mxu0
        %v6834 = vpop.f32.mrb[0].mxu0
        %v6835 = vadd.f32 0.0, %v6834
        %v6836 = vpop.f32.mrb[0].mxu0
        %6837 = vmatprep.mubr.bf16.mxu0 0
        %6838 = vmatmul.mubr.bf16.gmra.mrb[0].mxu0 %v6676
        %v6839 = vpop.f32.mrb[0].mxu0
        %v6840 = vadd.f32 0.0, %v6839
        %v6841 = vpop.f32.mrb[0].mxu0
        %v6842 = vpop.f32.mrb[0].mxu0
        %v6843 = vadd.f32 0.0, %v6842
        %v6844 = vpop.f32.mrb[0].mxu0
        %6845 = vmatprep.mubr.bf16.mxu0 0
        %6846 = vmatmul.mubr.bf16.gmra.mrb[0].mxu0 %v6677
        %v6847 = vpop.f32.mrb[0].mxu0
        %v6848 = vadd.f32 0.0, %v6847
        %v6849 = vpop.f32.mrb[0].mxu0
        %v6850 = vpop.f32.mrb[0].mxu0
        %v6851 = vadd.f32 0.0, %v6850
        %v6852 = vpop.f32.mrb[0].mxu0
        %6853 = vmatprep.mubr.bf16.mxu0 0
        %6854 = vmatmul.mubr.bf16.gmra.mrb[0].mxu0 %v6678
        %v6855 = vpop.f32.mrb[0].mxu0
        %v6856 = vadd.f32 0.0, %v6855
        %v6857 = vpop.f32.mrb[0].mxu0
        %v6858 = vpop.f32.mrb[0].mxu0
        %v6859 = vadd.f32 0.0, %v6858
        %v6860 = vpop.f32.mrb[0].mxu0
        %6861 = vmatprep.mubr.bf16.mxu0 0
        %6862 = vmatmul.mubr.bf16.gmra.mrb[0].mxu0 %v6679
        %v6863 = vpop.f32.mrb[0].mxu0
        %v6864 = vadd.f32 0.0, %v6863
        %v6865 = vpop.f32.mrb[0].mxu0
        %v6866 = vpop.f32.mrb[0].mxu0
        %v6867 = vadd.f32 0.0, %v6866
        %v6868 = vpop.f32.mrb[0].mxu0
        %6869 = vmatprep.mubr.bf16.mxu0 0
        %6870 = vmatmul.mubr.bf16.gmra.mrb[0].mxu0 %v6680
        %v6871 = vpop.f32.mrb[0].mxu0
        %v6872 = vadd.f32 0.0, %v6871
        %v6873 = vpop.f32.mrb[0].mxu0
        %v6874 = vpop.f32.mrb[0].mxu0
        %v6875 = vadd.f32 0.0, %v6874
        %v6876 = vpop.f32.mrb[0].mxu0
        %6877 = vmatprep.mubr.bf16.mxu0 0
        %6878 = vmatmul.mubr.bf16.gmra.mrb[0].mxu0 %v6681
        %v6879 = vpop.f32.mrb[0].mxu0
        %v6880 = vadd.f32 0.0, %v6879
        %v6881 = vpop.f32.mrb[0].mxu0
        %v6882 = vpop.f32.mrb[0].mxu0
        %v6883 = vadd.f32 0.0, %v6882
        %v6884 = vpop.f32.mrb[0].mxu0
        %6885 = vmatprep.mubr.bf16.mxu0 0
        %6886 = vmatmul.mubr.bf16.gmra.mrb[0].mxu0 %v6682
        %v6887 = vpop.f32.mrb[0].mxu0
        %v6888 = vadd.f32 0.0, %v6887
        %v6889 = vpop.f32.mrb[0].mxu0
        %v6890 = vpop.f32.mrb[0].mxu0
        %v6891 = vadd.f32 0.0, %v6890
        %v6892 = vpop.f32.mrb[0].mxu0
        %6893 = vmatprep.mubr.bf16.mxu0 0
        %6894 = vmatmul.mubr.bf16.gmra.mrb[0].mxu0 %v6683
        %v6895 = vpop.f32.mrb[0].mxu0
        %v6896 = vadd.f32 0.0, %v6895
        %v6897 = vpop.f32.mrb[0].mxu0
        %v6898 = vpop.f32.mrb[0].mxu0
        %v6899 = vadd.f32 0.0, %v6898
        %v6900 = vpop.f32.mrb[0].mxu0
        %6901 = vmatprep.mubr.bf16.mxu0 0
        %6902 = vmatmul.mubr.bf16.gmra.mrb[0].mxu0 %v6684
        %v6903 = vpop.f32.mrb[0].mxu0
        %v6904 = vadd.f32 0.0, %v6903
        %v6905 = vpop.f32.mrb[0].mxu0
        %v6906 = vpop.f32.mrb[0].mxu0
        %v6907 = vadd.f32 0.0, %v6906
        %v6908 = vpop.f32.mrb[0].mxu0
        %6909 = vdwg.mxu0
        %v6910 = vadd.f32 %v6155, %v6720
        %v6911 = vadd.f32 %v6156, %v6723
        %v6912 = vadd.f32 %v6157, %v6728
        %v6913 = vadd.f32 %v6158, %v6731
        %v6914 = vadd.f32 %v6159, %v6736
        %v6915 = vadd.f32 %v6160, %v6739
        %v6916 = vadd.f32 %v6161, %v6744
        %v6917 = vadd.f32 %v6162, %v6747
        %v6918 = vadd.f32 %v6163, %v6752
        %v6919 = vadd.f32 %v6164, %v6755
        %v6920 = vadd.f32 %v6165, %v6760
        %v6921 = vadd.f32 %v6166, %v6763
        %v6922 = vadd.f32 %v6167, %v6768
        %v6923 = vadd.f32 %v6168, %v6771
        %v6924 = vadd.f32 %v6169, %v6776
        %v6925 = vadd.f32 %v6170, %v6779
        %v6926 = vadd.f32 %v6171, %v6784
        %v6927 = vadd.f32 %v6172, %v6787
        %v6928 = vadd.f32 %v6173, %v6792
        %v6929 = vadd.f32 %v6174, %v6795
        %v6930 = vadd.f32 %v6175, %v6800
        %v6931 = vadd.f32 %v6176, %v6803
        %v6932 = vadd.f32 %v6177, %v6808
        %v6933 = vadd.f32 %v6178, %v6811
        %v6934 = vadd.f32 %v6179, %v6816
        %v6935 = vadd.f32 %v6180, %v6819
        %v6936 = vadd.f32 %v6181, %v6824
        %v6937 = vadd.f32 %v6182, %v6827
        %v6938 = vadd.f32 %v6183, %v6832
        %v6939 = vadd.f32 %v6184, %v6835
        %v6940 = vadd.f32 %v6185, %v6840
        %v6941 = vadd.f32 %v6186, %v6843
        %v6942 = vadd.f32 %v6187, %v6848
        %v6943 = vadd.f32 %v6188, %v6851
        %v6944 = vadd.f32 %v6189, %v6856
        %v6945 = vadd.f32 %v6190, %v6859
        %v6946 = vadd.f32 %v6191, %v6864
        %v6947 = vadd.f32 %v6192, %v6867
        %v6948 = vadd.f32 %v6193, %v6872
        %v6949 = vadd.f32 %v6194, %v6875
        %v6950 = vadd.f32 %v6195, %v6880
        %v6951 = vadd.f32 %v6196, %v6883
        %v6952 = vadd.f32 %v6197, %v6888
        %v6953 = vadd.f32 %v6198, %v6891
        %v6954 = vadd.f32 %v6199, %v6896
        %v6955 = vadd.f32 %v6200, %v6899
        %v6956 = vadd.f32 %v6201, %v6904
        %v6957 = vadd.f32 %v6202, %v6907
        %s6958 = scalar_lea.vmem %s3, 320
        %v6959 = vld [vmem:[%s6958] sm:$0xf]
        %v6960 = vld [vmem:[%s6958 + $0x4] sm:$0xf]
        %v6961 = vld [vmem:[%s6958 + $0x8] sm:$0xf]
        %v6962 = vld [vmem:[%s6958 + $0xc] sm:$0xf]
        %v6963 = vld [vmem:[%s6958 + $0x10] sm:$0xf]
        %v6964 = vld [vmem:[%s6958 + $0x14] sm:$0xf]
        %v6965 = vld [vmem:[%s6958 + $0x18] sm:$0xf]
        %v6966 = vld [vmem:[%s6958 + $0x1c] sm:$0xf]
        %v6967 = vld [vmem:[%s6958 + $0x20] sm:$0xf]
        %v6968 = vld [vmem:[%s6958 + $0x24] sm:$0xf]
        %v6969 = vld [vmem:[%s6958 + $0x28] sm:$0xf]
        %v6970 = vld [vmem:[%s6958 + $0x2c] sm:$0xf]
        %v6971 = vld [vmem:[%s6958 + $0x30] sm:$0xf]
        %v6972 = vld [vmem:[%s6958 + $0x34] sm:$0xf]
        %v6973 = vld [vmem:[%s6958 + $0x38] sm:$0xf]
        %v6974 = vld [vmem:[%s6958 + $0x3c] sm:$0xf]
        %v6975 = vld [vmem:[#allocation2 + $0x21] sm:$0xff]
        %v6976 = vld [vmem:[#allocation2 + $0x29] sm:$0xff]
        %v6977 = vld [vmem:[#allocation2 + $0x31] sm:$0xff]
        %v6978 = vld [vmem:[#allocation2 + $0x39] sm:$0xff]
        %v6979 = vld [vmem:[#allocation2 + $0x41] sm:$0xff]
        %v6980 = vld [vmem:[#allocation2 + $0x49] sm:$0xff]
        %v6981 = vld [vmem:[#allocation2 + $0x51] sm:$0xff]
        %v6982 = vld [vmem:[#allocation2 + $0x59] sm:$0xff]
        %v6983 = vld [vmem:[#allocation2 + $0x61] sm:$0xff]
        %v6984 = vld [vmem:[#allocation2 + $0x69] sm:$0xff]
        %v6985 = vld [vmem:[#allocation2 + $0x71] sm:$0xff]
        %v6986 = vld [vmem:[#allocation2 + $0x79] sm:$0xff]
        %v6987 = vld [vmem:[#allocation2 + $0x81] sm:$0xff]
        %v6988 = vld [vmem:[#allocation2 + $0x89] sm:$0xff]
        %v6989 = vld [vmem:[#allocation2 + $0x91] sm:$0xff]
        %v6990 = vld [vmem:[#allocation2 + $0x99] sm:$0xff]
        %v6991 = vld [vmem:[#allocation2 + $0xa1] sm:$0xff]
        %v6992 = vld [vmem:[#allocation2 + $0xa9] sm:$0xff]
        %v6993 = vld [vmem:[#allocation2 + $0xb1] sm:$0xff]
        %v6994 = vld [vmem:[#allocation2 + $0xb9] sm:$0xff]
        %v6995 = vld [vmem:[#allocation2 + $0xc1] sm:$0xff]
        %v6996 = vld [vmem:[#allocation2 + $0xc9] sm:$0xff]
        %v6997 = vld [vmem:[#allocation2 + $0xd1] sm:$0xff]
        %v6998 = vld [vmem:[#allocation2 + $0xd9] sm:$0xff]
        %v6999 = vld [vmem:[#allocation2 + $0xe1] sm:$0xff]
        %v7000 = vld [vmem:[#allocation2 + $0xe9] sm:$0xff]
        %v7001 = vld [vmem:[#allocation2 + $0xf1] sm:$0xff]
        %v7002 = vld [vmem:[#allocation2 + $0xf9] sm:$0xff]
        %v7003 = vld [vmem:[#allocation2 + $0x101] sm:$0xff]
        %v7004 = vld [vmem:[#allocation2 + $0x109] sm:$0xff]
        %v7005 = vld [vmem:[#allocation2 + $0x111] sm:$0xff]
        %v7006 = vld [vmem:[#allocation2 + $0x119] sm:$0xff]
        %v7007 = vld [vmem:[#allocation2 + $0x121] sm:$0xff]
        %v7008 = vld [vmem:[#allocation2 + $0x129] sm:$0xff]
        %v7009 = vld [vmem:[#allocation2 + $0x131] sm:$0xff]
        %v7010 = vld [vmem:[#allocation2 + $0x139] sm:$0xff]
        %v7011 = vld [vmem:[#allocation2 + $0x141] sm:$0xff]
        %v7012 = vld [vmem:[#allocation2 + $0x149] sm:$0xff]
        %v7013 = vld [vmem:[#allocation2 + $0x151] sm:$0xff]
        %v7014 = vld [vmem:[#allocation2 + $0x159] sm:$0xff]
        %v7015 = vld [vmem:[#allocation2 + $0x161] sm:$0xff]
        %v7016 = vld [vmem:[#allocation2 + $0x169] sm:$0xff]
        %v7017 = vld [vmem:[#allocation2 + $0x171] sm:$0xff]
        %v7018 = vld [vmem:[#allocation2 + $0x179] sm:$0xff]
        %v7019 = vld [vmem:[#allocation2 + $0x181] sm:$0xff]
        %v7020 = vld [vmem:[#allocation2 + $0x189] sm:$0xff]
        %v7021 = vld [vmem:[#allocation2 + $0x191] sm:$0xff]
        %v7022 = vld [vmem:[#allocation2 + $0x199] sm:$0xff]
        %v7023 = vpack.c.bf16 %v6976, %v6975
        %v7024 = vpack.c.bf16 %v6978, %v6977
        %v7025 = vpack.c.bf16 %v6980, %v6979
        %v7026 = vpack.c.bf16 %v6982, %v6981
        %v7027 = vpack.c.bf16 %v6984, %v6983
        %v7028 = vpack.c.bf16 %v6986, %v6985
        %v7029 = vpack.c.bf16 %v6988, %v6987
        %v7030 = vpack.c.bf16 %v6990, %v6989
        %v7031 = vpack.c.bf16 %v6992, %v6991
        %v7032 = vpack.c.bf16 %v6994, %v6993
        %v7033 = vpack.c.bf16 %v6996, %v6995
        %v7034 = vpack.c.bf16 %v6998, %v6997
        %v7035 = vpack.c.bf16 %v7000, %v6999
        %v7036 = vpack.c.bf16 %v7002, %v7001
        %v7037 = vpack.c.bf16 %v7004, %v7003
        %v7038 = vpack.c.bf16 %v7006, %v7005
        %v7039 = vpack.c.bf16 %v7008, %v7007
        %v7040 = vpack.c.bf16 %v7010, %v7009
        %v7041 = vpack.c.bf16 %v7012, %v7011
        %v7042 = vpack.c.bf16 %v7014, %v7013
        %v7043 = vpack.c.bf16 %v7016, %v7015
        %v7044 = vpack.c.bf16 %v7018, %v7017
        %v7045 = vpack.c.bf16 %v7020, %v7019
        %v7046 = vpack.c.bf16 %v7022, %v7021
        %v7063 = vunpack.c.l.b16 %v6959
        %v7064 = vunpack.c.l.b16 %v6960
        %v7065 = vunpack.c.l.b16 %v6961
        %v7066 = vunpack.c.l.b16 %v6962
        %v7067 = vunpack.c.l.b16 %v6963
        %v7068 = vunpack.c.l.b16 %v6964
        %v7069 = vunpack.c.l.b16 %v6965
        %v7070 = vunpack.c.l.b16 %v6966
        %v7071 = vunpack.c.l.b16 %v6967
        %v7072 = vunpack.c.l.b16 %v6968
        %v7073 = vunpack.c.l.b16 %v6969
        %v7074 = vunpack.c.l.b16 %v6970
        %v7075 = vunpack.c.l.b16 %v6971
        %v7076 = vunpack.c.l.b16 %v6972
        %v7077 = vunpack.c.l.b16 %v6973
        %v7078 = vunpack.c.l.b16 %v6974
        %v7079 = vpack.c.b16 %v7064, %v7063
        %v7080 = vpack.c.b16 %v7066, %v7065
        %v7081 = vpack.c.b16 %v7068, %v7067
        %v7082 = vpack.c.b16 %v7070, %v7069
        %v7083 = vpack.c.b16 %v7072, %v7071
        %v7084 = vpack.c.b16 %v7074, %v7073
        %v7085 = vpack.c.b16 %v7076, %v7075
        %v7086 = vpack.c.b16 %v7078, %v7077
        %7095 = vmatprep.subr.bf16.mxu0 0
        %7096 = vmatpush1.bf16.msra.mxu0 %v7079
        %7097 = vmatprep.subr.bf16.mxu0 0
        %7098 = vmatpush1.bf16.msra.mxu0 %v7080
        %7099 = vmatprep.subr.bf16.mxu0 0
        %7100 = vmatpush1.bf16.msra.mxu0 %v7081
        %7101 = vmatprep.subr.bf16.mxu0 0
        %7102 = vmatpush1.bf16.msra.mxu0 %v7082
        %7103 = vmatprep.subr.bf16.mxu0 0
        %7104 = vmatpush1.bf16.msra.mxu0 %v7083
        %7105 = vmatprep.subr.bf16.mxu0 0
        %7106 = vmatpush1.bf16.msra.mxu0 %v7084
        %7107 = vmatprep.subr.bf16.mxu0 0
        %7108 = vmatpush1.bf16.msra.mxu0 %v7085
        %7109 = vmatprep.subr.bf16.mxu0 0
        %7110 = vmatpush1.bf16.msra.mxu0 %v7086
        %7111 = vmatprep.subr.bf16.mxu0 0
        %7112 = vmatpush1.bf16.msra.mxu0 0
        %7113 = vmatprep.subr.bf16.mxu0 0
        %7114 = vmatpush1.bf16.msra.mxu0 0
        %7115 = vmatprep.subr.bf16.mxu0 0
        %7116 = vmatpush1.bf16.msra.mxu0 0
        %7117 = vmatprep.subr.bf16.mxu0 0
        %7118 = vmatpush1.bf16.msra.mxu0 0
        %7119 = vmatprep.subr.bf16.mxu0 0
        %7120 = vmatpush1.bf16.msra.mxu0 0
        %7121 = vmatprep.subr.bf16.mxu0 0
        %7122 = vmatpush1.bf16.msra.mxu0 0
        %7123 = vmatprep.subr.bf16.mxu0 0
        %7124 = vmatpush1.bf16.msra.mxu0 0
        %7125 = vmatprep.subr.bf16.mxu0 0
        %7126 = vmatpush1.bf16.msra.mxu0 0
        %7127 = vmatprep.mubr.bf16.mxu0 0
        %7128 = vmatmul.mubr.bf16.gmra.mrb[0].mxu0 %v7023
        %v7129 = vpop.f32.mrb[0].mxu0
        %v7130 = vadd.f32 0.0, %v7129
        %v7131 = vpop.f32.mrb[0].mxu0
        %v7132 = vpop.f32.mrb[0].mxu0
        %v7133 = vadd.f32 0.0, %v7132
        %v7134 = vpop.f32.mrb[0].mxu0
        %7135 = vmatprep.mubr.bf16.mxu0 0
        %7136 = vmatmul.mubr.bf16.gmra.mrb[0].mxu0 %v7024
        %v7137 = vpop.f32.mrb[0].mxu0
        %v7138 = vadd.f32 0.0, %v7137
        %v7139 = vpop.f32.mrb[0].mxu0
        %v7140 = vpop.f32.mrb[0].mxu0
        %v7141 = vadd.f32 0.0, %v7140
        %v7142 = vpop.f32.mrb[0].mxu0
        %7143 = vmatprep.mubr.bf16.mxu0 0
        %7144 = vmatmul.mubr.bf16.gmra.mrb[0].mxu0 %v7025
        %v7145 = vpop.f32.mrb[0].mxu0
        %v7146 = vadd.f32 0.0, %v7145
        %v7147 = vpop.f32.mrb[0].mxu0
        %v7148 = vpop.f32.mrb[0].mxu0
        %v7149 = vadd.f32 0.0, %v7148
        %v7150 = vpop.f32.mrb[0].mxu0
        %7151 = vmatprep.mubr.bf16.mxu0 0
        %7152 = vmatmul.mubr.bf16.gmra.mrb[0].mxu0 %v7026
        %v7153 = vpop.f32.mrb[0].mxu0
        %v7154 = vadd.f32 0.0, %v7153
        %v7155 = vpop.f32.mrb[0].mxu0
        %v7156 = vpop.f32.mrb[0].mxu0
        %v7157 = vadd.f32 0.0, %v7156
        %v7158 = vpop.f32.mrb[0].mxu0
        %7159 = vmatprep.mubr.bf16.mxu0 0
        %7160 = vmatmul.mubr.bf16.gmra.mrb[0].mxu0 %v7027
        %v7161 = vpop.f32.mrb[0].mxu0
        %v7162 = vadd.f32 0.0, %v7161
        %v7163 = vpop.f32.mrb[0].mxu0
        %v7164 = vpop.f32.mrb[0].mxu0
        %v7165 = vadd.f32 0.0, %v7164
        %v7166 = vpop.f32.mrb[0].mxu0
        %7167 = vmatprep.mubr.bf16.mxu0 0
        %7168 = vmatmul.mubr.bf16.gmra.mrb[0].mxu0 %v7028
        %v7169 = vpop.f32.mrb[0].mxu0
        %v7170 = vadd.f32 0.0, %v7169
        %v7171 = vpop.f32.mrb[0].mxu0
        %v7172 = vpop.f32.mrb[0].mxu0
        %v7173 = vadd.f32 0.0, %v7172
        %v7174 = vpop.f32.mrb[0].mxu0
        %7175 = vmatprep.mubr.bf16.mxu0 0
        %7176 = vmatmul.mubr.bf16.gmra.mrb[0].mxu0 %v7029
        %v7177 = vpop.f32.mrb[0].mxu0
        %v7178 = vadd.f32 0.0, %v7177
        %v7179 = vpop.f32.mrb[0].mxu0
        %v7180 = vpop.f32.mrb[0].mxu0
        %v7181 = vadd.f32 0.0, %v7180
        %v7182 = vpop.f32.mrb[0].mxu0
        %7183 = vmatprep.mubr.bf16.mxu0 0
        %7184 = vmatmul.mubr.bf16.gmra.mrb[0].mxu0 %v7030
        %v7185 = vpop.f32.mrb[0].mxu0
        %v7186 = vadd.f32 0.0, %v7185
        %v7187 = vpop.f32.mrb[0].mxu0
        %v7188 = vpop.f32.mrb[0].mxu0
        %v7189 = vadd.f32 0.0, %v7188
        %v7190 = vpop.f32.mrb[0].mxu0
        %7191 = vmatprep.mubr.bf16.mxu0 0
        %7192 = vmatmul.mubr.bf16.gmra.mrb[0].mxu0 %v7031
        %v7193 = vpop.f32.mrb[0].mxu0
        %v7194 = vadd.f32 0.0, %v7193
        %v7195 = vpop.f32.mrb[0].mxu0
        %v7196 = vpop.f32.mrb[0].mxu0
        %v7197 = vadd.f32 0.0, %v7196
        %v7198 = vpop.f32.mrb[0].mxu0
        %7199 = vmatprep.mubr.bf16.mxu0 0
        %7200 = vmatmul.mubr.bf16.gmra.mrb[0].mxu0 %v7032
        %v7201 = vpop.f32.mrb[0].mxu0
        %v7202 = vadd.f32 0.0, %v7201
        %v7203 = vpop.f32.mrb[0].mxu0
        %v7204 = vpop.f32.mrb[0].mxu0
        %v7205 = vadd.f32 0.0, %v7204
        %v7206 = vpop.f32.mrb[0].mxu0
        %7207 = vmatprep.mubr.bf16.mxu0 0
        %7208 = vmatmul.mubr.bf16.gmra.mrb[0].mxu0 %v7033
        %v7209 = vpop.f32.mrb[0].mxu0
        %v7210 = vadd.f32 0.0, %v7209
        %v7211 = vpop.f32.mrb[0].mxu0
        %v7212 = vpop.f32.mrb[0].mxu0
        %v7213 = vadd.f32 0.0, %v7212
        %v7214 = vpop.f32.mrb[0].mxu0
        %7215 = vmatprep.mubr.bf16.mxu0 0
        %7216 = vmatmul.mubr.bf16.gmra.mrb[0].mxu0 %v7034
        %v7217 = vpop.f32.mrb[0].mxu0
        %v7218 = vadd.f32 0.0, %v7217
        %v7219 = vpop.f32.mrb[0].mxu0
        %v7220 = vpop.f32.mrb[0].mxu0
        %v7221 = vadd.f32 0.0, %v7220
        %v7222 = vpop.f32.mrb[0].mxu0
        %7223 = vmatprep.mubr.bf16.mxu0 0
        %7224 = vmatmul.mubr.bf16.gmra.mrb[0].mxu0 %v7035
        %v7225 = vpop.f32.mrb[0].mxu0
        %v7226 = vadd.f32 0.0, %v7225
        %v7227 = vpop.f32.mrb[0].mxu0
        %v7228 = vpop.f32.mrb[0].mxu0
        %v7229 = vadd.f32 0.0, %v7228
        %v7230 = vpop.f32.mrb[0].mxu0
        %7231 = vmatprep.mubr.bf16.mxu0 0
        %7232 = vmatmul.mubr.bf16.gmra.mrb[0].mxu0 %v7036
        %v7233 = vpop.f32.mrb[0].mxu0
        %v7234 = vadd.f32 0.0, %v7233
        %v7235 = vpop.f32.mrb[0].mxu0
        %v7236 = vpop.f32.mrb[0].mxu0
        %v7237 = vadd.f32 0.0, %v7236
        %v7238 = vpop.f32.mrb[0].mxu0
        %7239 = vmatprep.mubr.bf16.mxu0 0
        %7240 = vmatmul.mubr.bf16.gmra.mrb[0].mxu0 %v7037
        %v7241 = vpop.f32.mrb[0].mxu0
        %v7242 = vadd.f32 0.0, %v7241
        %v7243 = vpop.f32.mrb[0].mxu0
        %v7244 = vpop.f32.mrb[0].mxu0
        %v7245 = vadd.f32 0.0, %v7244
        %v7246 = vpop.f32.mrb[0].mxu0
        %7247 = vmatprep.mubr.bf16.mxu0 0
        %7248 = vmatmul.mubr.bf16.gmra.mrb[0].mxu0 %v7038
        %v7249 = vpop.f32.mrb[0].mxu0
        %v7250 = vadd.f32 0.0, %v7249
        %v7251 = vpop.f32.mrb[0].mxu0
        %v7252 = vpop.f32.mrb[0].mxu0
        %v7253 = vadd.f32 0.0, %v7252
        %v7254 = vpop.f32.mrb[0].mxu0
        %7255 = vmatprep.mubr.bf16.mxu0 0
        %7256 = vmatmul.mubr.bf16.gmra.mrb[0].mxu0 %v7039
        %v7257 = vpop.f32.mrb[0].mxu0
        %v7258 = vadd.f32 0.0, %v7257
        %v7259 = vpop.f32.mrb[0].mxu0
        %v7260 = vpop.f32.mrb[0].mxu0
        %v7261 = vadd.f32 0.0, %v7260
        %v7262 = vpop.f32.mrb[0].mxu0
        %7263 = vmatprep.mubr.bf16.mxu0 0
        %7264 = vmatmul.mubr.bf16.gmra.mrb[0].mxu0 %v7040
        %v7265 = vpop.f32.mrb[0].mxu0
        %v7266 = vadd.f32 0.0, %v7265
        %v7267 = vpop.f32.mrb[0].mxu0
        %v7268 = vpop.f32.mrb[0].mxu0
        %v7269 = vadd.f32 0.0, %v7268
        %v7270 = vpop.f32.mrb[0].mxu0
        %7271 = vmatprep.mubr.bf16.mxu0 0
        %7272 = vmatmul.mubr.bf16.gmra.mrb[0].mxu0 %v7041
        %v7273 = vpop.f32.mrb[0].mxu0
        %v7274 = vadd.f32 0.0, %v7273
        %v7275 = vpop.f32.mrb[0].mxu0
        %v7276 = vpop.f32.mrb[0].mxu0
        %v7277 = vadd.f32 0.0, %v7276
        %v7278 = vpop.f32.mrb[0].mxu0
        %7279 = vmatprep.mubr.bf16.mxu0 0
        %7280 = vmatmul.mubr.bf16.gmra.mrb[0].mxu0 %v7042
        %v7281 = vpop.f32.mrb[0].mxu0
        %v7282 = vadd.f32 0.0, %v7281
        %v7283 = vpop.f32.mrb[0].mxu0
        %v7284 = vpop.f32.mrb[0].mxu0
        %v7285 = vadd.f32 0.0, %v7284
        %v7286 = vpop.f32.mrb[0].mxu0
        %7287 = vmatprep.mubr.bf16.mxu0 0
        %7288 = vmatmul.mubr.bf16.gmra.mrb[0].mxu0 %v7043
        %v7289 = vpop.f32.mrb[0].mxu0
        %v7290 = vadd.f32 0.0, %v7289
        %v7291 = vpop.f32.mrb[0].mxu0
        %v7292 = vpop.f32.mrb[0].mxu0
        %v7293 = vadd.f32 0.0, %v7292
        %v7294 = vpop.f32.mrb[0].mxu0
        %7295 = vmatprep.mubr.bf16.mxu0 0
        %7296 = vmatmul.mubr.bf16.gmra.mrb[0].mxu0 %v7044
        %v7297 = vpop.f32.mrb[0].mxu0
        %v7298 = vadd.f32 0.0, %v7297
        %v7299 = vpop.f32.mrb[0].mxu0
        %v7300 = vpop.f32.mrb[0].mxu0
        %v7301 = vadd.f32 0.0, %v7300
        %v7302 = vpop.f32.mrb[0].mxu0
        %7303 = vmatprep.mubr.bf16.mxu0 0
        %7304 = vmatmul.mubr.bf16.gmra.mrb[0].mxu0 %v7045
        %v7305 = vpop.f32.mrb[0].mxu0
        %v7306 = vadd.f32 0.0, %v7305
        %v7307 = vpop.f32.mrb[0].mxu0
        %v7308 = vpop.f32.mrb[0].mxu0
        %v7309 = vadd.f32 0.0, %v7308
        %v7310 = vpop.f32.mrb[0].mxu0
        %7311 = vmatprep.mubr.bf16.mxu0 0
        %7312 = vmatmul.mubr.bf16.gmra.mrb[0].mxu0 %v7046
        %v7313 = vpop.f32.mrb[0].mxu0
        %v7314 = vadd.f32 0.0, %v7313
        %v7315 = vpop.f32.mrb[0].mxu0
        %v7316 = vpop.f32.mrb[0].mxu0
        %v7317 = vadd.f32 0.0, %v7316
        %v7318 = vpop.f32.mrb[0].mxu0
        %7319 = vdwg.mxu0
        %v7320 = vadd.f32 %v6565, %v7130
        %v7321 = vadd.f32 %v6566, %v7133
        %v7322 = vadd.f32 %v6567, %v7138
        %v7323 = vadd.f32 %v6568, %v7141
        %v7324 = vadd.f32 %v6569, %v7146
        %v7325 = vadd.f32 %v6570, %v7149
        %v7326 = vadd.f32 %v6571, %v7154
        %v7327 = vadd.f32 %v6572, %v7157
        %v7328 = vadd.f32 %v6573, %v7162
        %v7329 = vadd.f32 %v6574, %v7165
        %v7330 = vadd.f32 %v6575, %v7170
        %v7331 = vadd.f32 %v6576, %v7173
        %v7332 = vadd.f32 %v6577, %v7178
        %v7333 = vadd.f32 %v6578, %v7181
        %v7334 = vadd.f32 %v6579, %v7186
        %v7335 = vadd.f32 %v6580, %v7189
        %v7336 = vadd.f32 %v6581, %v7194
        %v7337 = vadd.f32 %v6582, %v7197
        %v7338 = vadd.f32 %v6583, %v7202
        %v7339 = vadd.f32 %v6584, %v7205
        %v7340 = vadd.f32 %v6585, %v7210
        %v7341 = vadd.f32 %v6586, %v7213
        %v7342 = vadd.f32 %v6587, %v7218
        %v7343 = vadd.f32 %v6588, %v7221
        %v7344 = vadd.f32 %v6589, %v7226
        %v7345 = vadd.f32 %v6590, %v7229
        %v7346 = vadd.f32 %v6591, %v7234
        %v7347 = vadd.f32 %v6592, %v7237
        %v7348 = vadd.f32 %v6593, %v7242
        %v7349 = vadd.f32 %v6594, %v7245
        %v7350 = vadd.f32 %v6595, %v7250
        %v7351 = vadd.f32 %v6596, %v7253
        %v7352 = vadd.f32 %v6597, %v7258
        %v7353 = vadd.f32 %v6598, %v7261
        %v7354 = vadd.f32 %v6599, %v7266
        %v7355 = vadd.f32 %v6600, %v7269
        %v7356 = vadd.f32 %v6601, %v7274
        %v7357 = vadd.f32 %v6602, %v7277
        %v7358 = vadd.f32 %v6603, %v7282
        %v7359 = vadd.f32 %v6604, %v7285
        %v7360 = vadd.f32 %v6605, %v7290
        %v7361 = vadd.f32 %v6606, %v7293
        %v7362 = vadd.f32 %v6607, %v7298
        %v7363 = vadd.f32 %v6608, %v7301
        %v7364 = vadd.f32 %v6609, %v7306
        %v7365 = vadd.f32 %v6610, %v7309
        %v7366 = vadd.f32 %v6611, %v7314
        %v7367 = vadd.f32 %v6612, %v7317
        %v7368 = vld [vmem:[%s3267 + $0x21] sm:$0xff]
        %v7369 = vld [vmem:[%s3267 + $0x29] sm:$0xff]
        %v7370 = vld [vmem:[%s3267 + $0x31] sm:$0xff]
        %v7371 = vld [vmem:[%s3267 + $0x39] sm:$0xff]
        %v7372 = vld [vmem:[%s3267 + $0x41] sm:$0xff]
        %v7373 = vld [vmem:[%s3267 + $0x49] sm:$0xff]
        %v7374 = vld [vmem:[%s3267 + $0x51] sm:$0xff]
        %v7375 = vld [vmem:[%s3267 + $0x59] sm:$0xff]
        %v7376 = vld [vmem:[%s3267 + $0x61] sm:$0xff]
        %v7377 = vld [vmem:[%s3267 + $0x69] sm:$0xff]
        %v7378 = vld [vmem:[%s3267 + $0x71] sm:$0xff]
        %v7379 = vld [vmem:[%s3267 + $0x79] sm:$0xff]
        %v7380 = vld [vmem:[%s3267 + $0x81] sm:$0xff]
        %v7381 = vld [vmem:[%s3267 + $0x89] sm:$0xff]
        %v7382 = vld [vmem:[%s3267 + $0x91] sm:$0xff]
        %v7383 = vld [vmem:[%s3267 + $0x99] sm:$0xff]
        %v7384 = vld [vmem:[%s3267 + $0xa1] sm:$0xff]
        %v7385 = vld [vmem:[%s3267 + $0xa9] sm:$0xff]
        %v7386 = vld [vmem:[%s3267 + $0xb1] sm:$0xff]
        %v7387 = vld [vmem:[%s3267 + $0xb9] sm:$0xff]
        %v7388 = vld [vmem:[%s3267 + $0xc1] sm:$0xff]
        %v7389 = vld [vmem:[%s3267 + $0xc9] sm:$0xff]
        %v7390 = vld [vmem:[%s3267 + $0xd1] sm:$0xff]
        %v7391 = vld [vmem:[%s3267 + $0xd9] sm:$0xff]
        %v7392 = vld [vmem:[%s3267 + $0xe1] sm:$0xff]
        %v7393 = vld [vmem:[%s3267 + $0xe9] sm:$0xff]
        %v7394 = vld [vmem:[%s3267 + $0xf1] sm:$0xff]
        %v7395 = vld [vmem:[%s3267 + $0xf9] sm:$0xff]
        %v7396 = vld [vmem:[%s3267 + $0x101] sm:$0xff]
        %v7397 = vld [vmem:[%s3267 + $0x109] sm:$0xff]
        %v7398 = vld [vmem:[%s3267 + $0x111] sm:$0xff]
        %v7399 = vld [vmem:[%s3267 + $0x119] sm:$0xff]
        %v7400 = vld [vmem:[%s3267 + $0x121] sm:$0xff]
        %v7401 = vld [vmem:[%s3267 + $0x129] sm:$0xff]
        %v7402 = vld [vmem:[%s3267 + $0x131] sm:$0xff]
        %v7403 = vld [vmem:[%s3267 + $0x139] sm:$0xff]
        %v7404 = vld [vmem:[%s3267 + $0x141] sm:$0xff]
        %v7405 = vld [vmem:[%s3267 + $0x149] sm:$0xff]
        %v7406 = vld [vmem:[%s3267 + $0x151] sm:$0xff]
        %v7407 = vld [vmem:[%s3267 + $0x159] sm:$0xff]
        %v7408 = vld [vmem:[%s3267 + $0x161] sm:$0xff]
        %v7409 = vld [vmem:[%s3267 + $0x169] sm:$0xff]
        %v7410 = vld [vmem:[%s3267 + $0x171] sm:$0xff]
        %v7411 = vld [vmem:[%s3267 + $0x179] sm:$0xff]
        %v7412 = vld [vmem:[%s3267 + $0x181] sm:$0xff]
        %v7413 = vld [vmem:[%s3267 + $0x189] sm:$0xff]
        %v7414 = vld [vmem:[%s3267 + $0x191] sm:$0xff]
        %v7415 = vld [vmem:[%s3267 + $0x199] sm:$0xff]
        %v7416 = vpack.c.bf16 %v7369, %v7368
        %v7417 = vpack.c.bf16 %v7371, %v7370
        %v7418 = vpack.c.bf16 %v7373, %v7372
        %v7419 = vpack.c.bf16 %v7375, %v7374
        %v7420 = vpack.c.bf16 %v7377, %v7376
        %v7421 = vpack.c.bf16 %v7379, %v7378
        %v7422 = vpack.c.bf16 %v7381, %v7380
        %v7423 = vpack.c.bf16 %v7383, %v7382
        %v7424 = vpack.c.bf16 %v7385, %v7384
        %v7425 = vpack.c.bf16 %v7387, %v7386
        %v7426 = vpack.c.bf16 %v7389, %v7388
        %v7427 = vpack.c.bf16 %v7391, %v7390
        %v7428 = vpack.c.bf16 %v7393, %v7392
        %v7429 = vpack.c.bf16 %v7395, %v7394
        %v7430 = vpack.c.bf16 %v7397, %v7396
        %v7431 = vpack.c.bf16 %v7399, %v7398
        %v7432 = vpack.c.bf16 %v7401, %v7400
        %v7433 = vpack.c.bf16 %v7403, %v7402
        %v7434 = vpack.c.bf16 %v7405, %v7404
        %v7435 = vpack.c.bf16 %v7407, %v7406
        %v7436 = vpack.c.bf16 %v7409, %v7408
        %v7437 = vpack.c.bf16 %v7411, %v7410
        %v7438 = vpack.c.bf16 %v7413, %v7412
        %v7439 = vpack.c.bf16 %v7415, %v7414
        %7440 = vmatprep.subr.bf16.mxu0 0
        %7441 = vmatpush1.bf16.msra.mxu0 %v7079
        %7442 = vmatprep.subr.bf16.mxu0 0
        %7443 = vmatpush1.bf16.msra.mxu0 %v7080
        %7444 = vmatprep.subr.bf16.mxu0 0
        %7445 = vmatpush1.bf16.msra.mxu0 %v7081
        %7446 = vmatprep.subr.bf16.mxu0 0
        %7447 = vmatpush1.bf16.msra.mxu0 %v7082
        %7448 = vmatprep.subr.bf16.mxu0 0
        %7449 = vmatpush1.bf16.msra.mxu0 %v7083
        %7450 = vmatprep.subr.bf16.mxu0 0
        %7451 = vmatpush1.bf16.msra.mxu0 %v7084
        %7452 = vmatprep.subr.bf16.mxu0 0
        %7453 = vmatpush1.bf16.msra.mxu0 %v7085
        %7454 = vmatprep.subr.bf16.mxu0 0
        %7455 = vmatpush1.bf16.msra.mxu0 %v7086
        %7456 = vmatprep.subr.bf16.mxu0 0
        %7457 = vmatpush1.bf16.msra.mxu0 0
        %7458 = vmatprep.subr.bf16.mxu0 0
        %7459 = vmatpush1.bf16.msra.mxu0 0
        %7460 = vmatprep.subr.bf16.mxu0 0
        %7461 = vmatpush1.bf16.msra.mxu0 0
        %7462 = vmatprep.subr.bf16.mxu0 0
        %7463 = vmatpush1.bf16.msra.mxu0 0
        %7464 = vmatprep.subr.bf16.mxu0 0
        %7465 = vmatpush1.bf16.msra.mxu0 0
        %7466 = vmatprep.subr.bf16.mxu0 0
        %7467 = vmatpush1.bf16.msra.mxu0 0
        %7468 = vmatprep.subr.bf16.mxu0 0
        %7469 = vmatpush1.bf16.msra.mxu0 0
        %7470 = vmatprep.subr.bf16.mxu0 0
        %7471 = vmatpush1.bf16.msra.mxu0 0
        %7472 = vmatprep.mubr.bf16.mxu0 0
        %7473 = vmatmul.mubr.bf16.gmra.mrb[0].mxu0 %v7416
        %v7474 = vpop.f32.mrb[0].mxu0
        %v7475 = vadd.f32 0.0, %v7474
        %v7476 = vpop.f32.mrb[0].mxu0
        %v7477 = vpop.f32.mrb[0].mxu0
        %v7478 = vadd.f32 0.0, %v7477
        %v7479 = vpop.f32.mrb[0].mxu0
        %7480 = vmatprep.mubr.bf16.mxu0 0
        %7481 = vmatmul.mubr.bf16.gmra.mrb[0].mxu0 %v7417
        %v7482 = vpop.f32.mrb[0].mxu0
        %v7483 = vadd.f32 0.0, %v7482
        %v7484 = vpop.f32.mrb[0].mxu0
        %v7485 = vpop.f32.mrb[0].mxu0
        %v7486 = vadd.f32 0.0, %v7485
        %v7487 = vpop.f32.mrb[0].mxu0
        %7488 = vmatprep.mubr.bf16.mxu0 0
        %7489 = vmatmul.mubr.bf16.gmra.mrb[0].mxu0 %v7418
        %v7490 = vpop.f32.mrb[0].mxu0
        %v7491 = vadd.f32 0.0, %v7490
        %v7492 = vpop.f32.mrb[0].mxu0
        %v7493 = vpop.f32.mrb[0].mxu0
        %v7494 = vadd.f32 0.0, %v7493
        %v7495 = vpop.f32.mrb[0].mxu0
        %7496 = vmatprep.mubr.bf16.mxu0 0
        %7497 = vmatmul.mubr.bf16.gmra.mrb[0].mxu0 %v7419
        %v7498 = vpop.f32.mrb[0].mxu0
        %v7499 = vadd.f32 0.0, %v7498
        %v7500 = vpop.f32.mrb[0].mxu0
        %v7501 = vpop.f32.mrb[0].mxu0
        %v7502 = vadd.f32 0.0, %v7501
        %v7503 = vpop.f32.mrb[0].mxu0
        %7504 = vmatprep.mubr.bf16.mxu0 0
        %7505 = vmatmul.mubr.bf16.gmra.mrb[0].mxu0 %v7420
        %v7506 = vpop.f32.mrb[0].mxu0
        %v7507 = vadd.f32 0.0, %v7506
        %v7508 = vpop.f32.mrb[0].mxu0
        %v7509 = vpop.f32.mrb[0].mxu0
        %v7510 = vadd.f32 0.0, %v7509
        %v7511 = vpop.f32.mrb[0].mxu0
        %7512 = vmatprep.mubr.bf16.mxu0 0
        %7513 = vmatmul.mubr.bf16.gmra.mrb[0].mxu0 %v7421
        %v7514 = vpop.f32.mrb[0].mxu0
        %v7515 = vadd.f32 0.0, %v7514
        %v7516 = vpop.f32.mrb[0].mxu0
        %v7517 = vpop.f32.mrb[0].mxu0
        %v7518 = vadd.f32 0.0, %v7517
        %v7519 = vpop.f32.mrb[0].mxu0
        %7520 = vmatprep.mubr.bf16.mxu0 0
        %7521 = vmatmul.mubr.bf16.gmra.mrb[0].mxu0 %v7422
        %v7522 = vpop.f32.mrb[0].mxu0
        %v7523 = vadd.f32 0.0, %v7522
        %v7524 = vpop.f32.mrb[0].mxu0
        %v7525 = vpop.f32.mrb[0].mxu0
        %v7526 = vadd.f32 0.0, %v7525
        %v7527 = vpop.f32.mrb[0].mxu0
        %7528 = vmatprep.mubr.bf16.mxu0 0
        %7529 = vmatmul.mubr.bf16.gmra.mrb[0].mxu0 %v7423
        %v7530 = vpop.f32.mrb[0].mxu0
        %v7531 = vadd.f32 0.0, %v7530
        %v7532 = vpop.f32.mrb[0].mxu0
        %v7533 = vpop.f32.mrb[0].mxu0
        %v7534 = vadd.f32 0.0, %v7533
        %v7535 = vpop.f32.mrb[0].mxu0
        %7536 = vmatprep.mubr.bf16.mxu0 0
        %7537 = vmatmul.mubr.bf16.gmra.mrb[0].mxu0 %v7424
        %v7538 = vpop.f32.mrb[0].mxu0
        %v7539 = vadd.f32 0.0, %v7538
        %v7540 = vpop.f32.mrb[0].mxu0
        %v7541 = vpop.f32.mrb[0].mxu0
        %v7542 = vadd.f32 0.0, %v7541
        %v7543 = vpop.f32.mrb[0].mxu0
        %7544 = vmatprep.mubr.bf16.mxu0 0
        %7545 = vmatmul.mubr.bf16.gmra.mrb[0].mxu0 %v7425
        %v7546 = vpop.f32.mrb[0].mxu0
        %v7547 = vadd.f32 0.0, %v7546
        %v7548 = vpop.f32.mrb[0].mxu0
        %v7549 = vpop.f32.mrb[0].mxu0
        %v7550 = vadd.f32 0.0, %v7549
        %v7551 = vpop.f32.mrb[0].mxu0
        %7552 = vmatprep.mubr.bf16.mxu0 0
        %7553 = vmatmul.mubr.bf16.gmra.mrb[0].mxu0 %v7426
        %v7554 = vpop.f32.mrb[0].mxu0
        %v7555 = vadd.f32 0.0, %v7554
        %v7556 = vpop.f32.mrb[0].mxu0
        %v7557 = vpop.f32.mrb[0].mxu0
        %v7558 = vadd.f32 0.0, %v7557
        %v7559 = vpop.f32.mrb[0].mxu0
        %7560 = vmatprep.mubr.bf16.mxu0 0
        %7561 = vmatmul.mubr.bf16.gmra.mrb[0].mxu0 %v7427
        %v7562 = vpop.f32.mrb[0].mxu0
        %v7563 = vadd.f32 0.0, %v7562
        %v7564 = vpop.f32.mrb[0].mxu0
        %v7565 = vpop.f32.mrb[0].mxu0
        %v7566 = vadd.f32 0.0, %v7565
        %v7567 = vpop.f32.mrb[0].mxu0
        %7568 = vmatprep.mubr.bf16.mxu0 0
        %7569 = vmatmul.mubr.bf16.gmra.mrb[0].mxu0 %v7428
        %v7570 = vpop.f32.mrb[0].mxu0
        %v7571 = vadd.f32 0.0, %v7570
        %v7572 = vpop.f32.mrb[0].mxu0
        %v7573 = vpop.f32.mrb[0].mxu0
        %v7574 = vadd.f32 0.0, %v7573
        %v7575 = vpop.f32.mrb[0].mxu0
        %7576 = vmatprep.mubr.bf16.mxu0 0
        %7577 = vmatmul.mubr.bf16.gmra.mrb[0].mxu0 %v7429
        %v7578 = vpop.f32.mrb[0].mxu0
        %v7579 = vadd.f32 0.0, %v7578
        %v7580 = vpop.f32.mrb[0].mxu0
        %v7581 = vpop.f32.mrb[0].mxu0
        %v7582 = vadd.f32 0.0, %v7581
        %v7583 = vpop.f32.mrb[0].mxu0
        %7584 = vmatprep.mubr.bf16.mxu0 0
        %7585 = vmatmul.mubr.bf16.gmra.mrb[0].mxu0 %v7430
        %v7586 = vpop.f32.mrb[0].mxu0
        %v7587 = vadd.f32 0.0, %v7586
        %v7588 = vpop.f32.mrb[0].mxu0
        %v7589 = vpop.f32.mrb[0].mxu0
        %v7590 = vadd.f32 0.0, %v7589
        %v7591 = vpop.f32.mrb[0].mxu0
        %7592 = vmatprep.mubr.bf16.mxu0 0
        %7593 = vmatmul.mubr.bf16.gmra.mrb[0].mxu0 %v7431
        %v7594 = vpop.f32.mrb[0].mxu0
        %v7595 = vadd.f32 0.0, %v7594
        %v7596 = vpop.f32.mrb[0].mxu0
        %v7597 = vpop.f32.mrb[0].mxu0
        %v7598 = vadd.f32 0.0, %v7597
        %v7599 = vpop.f32.mrb[0].mxu0
        %7600 = vmatprep.mubr.bf16.mxu0 0
        %7601 = vmatmul.mubr.bf16.gmra.mrb[0].mxu0 %v7432
        %v7602 = vpop.f32.mrb[0].mxu0
        %v7603 = vadd.f32 0.0, %v7602
        %v7604 = vpop.f32.mrb[0].mxu0
        %v7605 = vpop.f32.mrb[0].mxu0
        %v7606 = vadd.f32 0.0, %v7605
        %v7607 = vpop.f32.mrb[0].mxu0
        %7608 = vmatprep.mubr.bf16.mxu0 0
        %7609 = vmatmul.mubr.bf16.gmra.mrb[0].mxu0 %v7433
        %v7610 = vpop.f32.mrb[0].mxu0
        %v7611 = vadd.f32 0.0, %v7610
        %v7612 = vpop.f32.mrb[0].mxu0
        %v7613 = vpop.f32.mrb[0].mxu0
        %v7614 = vadd.f32 0.0, %v7613
        %v7615 = vpop.f32.mrb[0].mxu0
        %7616 = vmatprep.mubr.bf16.mxu0 0
        %7617 = vmatmul.mubr.bf16.gmra.mrb[0].mxu0 %v7434
        %v7618 = vpop.f32.mrb[0].mxu0
        %v7619 = vadd.f32 0.0, %v7618
        %v7620 = vpop.f32.mrb[0].mxu0
        %v7621 = vpop.f32.mrb[0].mxu0
        %v7622 = vadd.f32 0.0, %v7621
        %v7623 = vpop.f32.mrb[0].mxu0
        %7624 = vmatprep.mubr.bf16.mxu0 0
        %7625 = vmatmul.mubr.bf16.gmra.mrb[0].mxu0 %v7435
        %v7626 = vpop.f32.mrb[0].mxu0
        %v7627 = vadd.f32 0.0, %v7626
        %v7628 = vpop.f32.mrb[0].mxu0
        %v7629 = vpop.f32.mrb[0].mxu0
        %v7630 = vadd.f32 0.0, %v7629
        %v7631 = vpop.f32.mrb[0].mxu0
        %7632 = vmatprep.mubr.bf16.mxu0 0
        %7633 = vmatmul.mubr.bf16.gmra.mrb[0].mxu0 %v7436
        %v7634 = vpop.f32.mrb[0].mxu0
        %v7635 = vadd.f32 0.0, %v7634
        %v7636 = vpop.f32.mrb[0].mxu0
        %v7637 = vpop.f32.mrb[0].mxu0
        %v7638 = vadd.f32 0.0, %v7637
        %v7639 = vpop.f32.mrb[0].mxu0
        %7640 = vmatprep.mubr.bf16.mxu0 0
        %7641 = vmatmul.mubr.bf16.gmra.mrb[0].mxu0 %v7437
        %v7642 = vpop.f32.mrb[0].mxu0
        %v7643 = vadd.f32 0.0, %v7642
        %v7644 = vpop.f32.mrb[0].mxu0
        %v7645 = vpop.f32.mrb[0].mxu0
        %v7646 = vadd.f32 0.0, %v7645
        %v7647 = vpop.f32.mrb[0].mxu0
        %7648 = vmatprep.mubr.bf16.mxu0 0
        %7649 = vmatmul.mubr.bf16.gmra.mrb[0].mxu0 %v7438
        %v7650 = vpop.f32.mrb[0].mxu0
        %v7651 = vadd.f32 0.0, %v7650
        %v7652 = vpop.f32.mrb[0].mxu0
        %v7653 = vpop.f32.mrb[0].mxu0
        %v7654 = vadd.f32 0.0, %v7653
        %v7655 = vpop.f32.mrb[0].mxu0
        %7656 = vmatprep.mubr.bf16.mxu0 0
        %7657 = vmatmul.mubr.bf16.gmra.mrb[0].mxu0 %v7439
        %v7658 = vpop.f32.mrb[0].mxu0
        %v7659 = vadd.f32 0.0, %v7658
        %v7660 = vpop.f32.mrb[0].mxu0
        %v7661 = vpop.f32.mrb[0].mxu0
        %v7662 = vadd.f32 0.0, %v7661
        %v7663 = vpop.f32.mrb[0].mxu0
        %7664 = vdwg.mxu0
        %v7665 = vadd.f32 %v6910, %v7475
        %v7666 = vadd.f32 %v6911, %v7478
        %v7667 = vadd.f32 %v6912, %v7483
        %v7668 = vadd.f32 %v6913, %v7486
        %v7669 = vadd.f32 %v6914, %v7491
        %v7670 = vadd.f32 %v6915, %v7494
        %v7671 = vadd.f32 %v6916, %v7499
        %v7672 = vadd.f32 %v6917, %v7502
        %v7673 = vadd.f32 %v6918, %v7507
        %v7674 = vadd.f32 %v6919, %v7510
        %v7675 = vadd.f32 %v6920, %v7515
        %v7676 = vadd.f32 %v6921, %v7518
        %v7677 = vadd.f32 %v6922, %v7523
        %v7678 = vadd.f32 %v6923, %v7526
        %v7679 = vadd.f32 %v6924, %v7531
        %v7680 = vadd.f32 %v6925, %v7534
        %v7681 = vadd.f32 %v6926, %v7539
        %v7682 = vadd.f32 %v6927, %v7542
        %v7683 = vadd.f32 %v6928, %v7547
        %v7684 = vadd.f32 %v6929, %v7550
        %v7685 = vadd.f32 %v6930, %v7555
        %v7686 = vadd.f32 %v6931, %v7558
        %v7687 = vadd.f32 %v6932, %v7563
        %v7688 = vadd.f32 %v6933, %v7566
        %v7689 = vadd.f32 %v6934, %v7571
        %v7690 = vadd.f32 %v6935, %v7574
        %v7691 = vadd.f32 %v6936, %v7579
        %v7692 = vadd.f32 %v6937, %v7582
        %v7693 = vadd.f32 %v6938, %v7587
        %v7694 = vadd.f32 %v6939, %v7590
        %v7695 = vadd.f32 %v6940, %v7595
        %v7696 = vadd.f32 %v6941, %v7598
        %v7697 = vadd.f32 %v6942, %v7603
        %v7698 = vadd.f32 %v6943, %v7606
        %v7699 = vadd.f32 %v6944, %v7611
        %v7700 = vadd.f32 %v6945, %v7614
        %v7701 = vadd.f32 %v6946, %v7619
        %v7702 = vadd.f32 %v6947, %v7622
        %v7703 = vadd.f32 %v6948, %v7627
        %v7704 = vadd.f32 %v6949, %v7630
        %v7705 = vadd.f32 %v6950, %v7635
        %v7706 = vadd.f32 %v6951, %v7638
        %v7707 = vadd.f32 %v6952, %v7643
        %v7708 = vadd.f32 %v6953, %v7646
        %v7709 = vadd.f32 %v6954, %v7651
        %v7710 = vadd.f32 %v6955, %v7654
        %v7711 = vadd.f32 %v6956, %v7659
        %v7712 = vadd.f32 %v6957, %v7662
        %s7713 = scalar_lea.vmem %s3, 384
        %v7714 = vld [vmem:[%s7713] sm:$0xf]
        %v7715 = vld [vmem:[%s7713 + $0x4] sm:$0xf]
        %v7716 = vld [vmem:[%s7713 + $0x8] sm:$0xf]
        %v7717 = vld [vmem:[%s7713 + $0xc] sm:$0xf]
        %v7718 = vld [vmem:[%s7713 + $0x10] sm:$0xf]
        %v7719 = vld [vmem:[%s7713 + $0x14] sm:$0xf]
        %v7720 = vld [vmem:[%s7713 + $0x18] sm:$0xf]
        %v7721 = vld [vmem:[%s7713 + $0x1c] sm:$0xf]
        %v7722 = vld [vmem:[%s7713 + $0x20] sm:$0xf]
        %v7723 = vld [vmem:[%s7713 + $0x24] sm:$0xf]
        %v7724 = vld [vmem:[%s7713 + $0x28] sm:$0xf]
        %v7725 = vld [vmem:[%s7713 + $0x2c] sm:$0xf]
        %v7726 = vld [vmem:[%s7713 + $0x30] sm:$0xf]
        %v7727 = vld [vmem:[%s7713 + $0x34] sm:$0xf]
        %v7728 = vld [vmem:[%s7713 + $0x38] sm:$0xf]
        %v7729 = vld [vmem:[%s7713 + $0x3c] sm:$0xf]
        %v7730 = vld [vmem:[#allocation2 + $0x37] sm:$0xff]
        %v7731 = vld [vmem:[#allocation2 + $0x3f] sm:$0xff]
        %v7732 = vld [vmem:[#allocation2 + $0x47] sm:$0xff]
        %v7733 = vld [vmem:[#allocation2 + $0x4f] sm:$0xff]
        %v7734 = vld [vmem:[#allocation2 + $0x57] sm:$0xff]
        %v7735 = vld [vmem:[#allocation2 + $0x5f] sm:$0xff]
        %v7736 = vld [vmem:[#allocation2 + $0x67] sm:$0xff]
        %v7737 = vld [vmem:[#allocation2 + $0x6f] sm:$0xff]
        %v7738 = vld [vmem:[#allocation2 + $0x77] sm:$0xff]
        %v7739 = vld [vmem:[#allocation2 + $0x7f] sm:$0xff]
        %v7740 = vld [vmem:[#allocation2 + $0x87] sm:$0xff]
        %v7741 = vld [vmem:[#allocation2 + $0x8f] sm:$0xff]
        %v7742 = vld [vmem:[#allocation2 + $0x97] sm:$0xff]
        %v7743 = vld [vmem:[#allocation2 + $0x9f] sm:$0xff]
        %v7744 = vld [vmem:[#allocation2 + $0xa7] sm:$0xff]
        %v7745 = vld [vmem:[#allocation2 + $0xaf] sm:$0xff]
        %v7746 = vld [vmem:[#allocation2 + $0xb7] sm:$0xff]
        %v7747 = vld [vmem:[#allocation2 + $0xbf] sm:$0xff]
        %v7748 = vld [vmem:[#allocation2 + $0xc7] sm:$0xff]
        %v7749 = vld [vmem:[#allocation2 + $0xcf] sm:$0xff]
        %v7750 = vld [vmem:[#allocation2 + $0xd7] sm:$0xff]
        %v7751 = vld [vmem:[#allocation2 + $0xdf] sm:$0xff]
        %v7752 = vld [vmem:[#allocation2 + $0xe7] sm:$0xff]
        %v7753 = vld [vmem:[#allocation2 + $0xef] sm:$0xff]
        %v7754 = vld [vmem:[#allocation2 + $0xf7] sm:$0xff]
        %v7755 = vld [vmem:[#allocation2 + $0xff] sm:$0xff]
        %v7756 = vld [vmem:[#allocation2 + $0x107] sm:$0xff]
        %v7757 = vld [vmem:[#allocation2 + $0x10f] sm:$0xff]
        %v7758 = vld [vmem:[#allocation2 + $0x117] sm:$0xff]
        %v7759 = vld [vmem:[#allocation2 + $0x11f] sm:$0xff]
        %v7760 = vld [vmem:[#allocation2 + $0x127] sm:$0xff]
        %v7761 = vld [vmem:[#allocation2 + $0x12f] sm:$0xff]
        %v7762 = vld [vmem:[#allocation2 + $0x137] sm:$0xff]
        %v7763 = vld [vmem:[#allocation2 + $0x13f] sm:$0xff]
        %v7764 = vld [vmem:[#allocation2 + $0x147] sm:$0xff]
        %v7765 = vld [vmem:[#allocation2 + $0x14f] sm:$0xff]
        %v7766 = vld [vmem:[#allocation2 + $0x157] sm:$0xff]
        %v7767 = vld [vmem:[#allocation2 + $0x15f] sm:$0xff]
        %v7768 = vld [vmem:[#allocation2 + $0x167] sm:$0xff]
        %v7769 = vld [vmem:[#allocation2 + $0x16f] sm:$0xff]
        %v7770 = vld [vmem:[#allocation2 + $0x177] sm:$0xff]
        %v7771 = vld [vmem:[#allocation2 + $0x17f] sm:$0xff]
        %v7772 = vld [vmem:[#allocation2 + $0x187] sm:$0xff]
        %v7773 = vld [vmem:[#allocation2 + $0x18f] sm:$0xff]
        %v7774 = vld [vmem:[#allocation2 + $0x197] sm:$0xff]
        %v7775 = vld [vmem:[#allocation2 + $0x19f] sm:$0xff]
        %v7776 = vld [vmem:[#allocation2 + $0x1a7] sm:$0xff]
        %v7777 = vld [vmem:[#allocation2 + $0x1af] sm:$0xff]
        %v7778 = vpack.c.bf16 %v7731, %v7730
        %v7779 = vpack.c.bf16 %v7733, %v7732
        %v7780 = vpack.c.bf16 %v7735, %v7734
        %v7781 = vpack.c.bf16 %v7737, %v7736
        %v7782 = vpack.c.bf16 %v7739, %v7738
        %v7783 = vpack.c.bf16 %v7741, %v7740
        %v7784 = vpack.c.bf16 %v7743, %v7742
        %v7785 = vpack.c.bf16 %v7745, %v7744
        %v7786 = vpack.c.bf16 %v7747, %v7746
        %v7787 = vpack.c.bf16 %v7749, %v7748
        %v7788 = vpack.c.bf16 %v7751, %v7750
        %v7789 = vpack.c.bf16 %v7753, %v7752
        %v7790 = vpack.c.bf16 %v7755, %v7754
        %v7791 = vpack.c.bf16 %v7757, %v7756
        %v7792 = vpack.c.bf16 %v7759, %v7758
        %v7793 = vpack.c.bf16 %v7761, %v7760
        %v7794 = vpack.c.bf16 %v7763, %v7762
        %v7795 = vpack.c.bf16 %v7765, %v7764
        %v7796 = vpack.c.bf16 %v7767, %v7766
        %v7797 = vpack.c.bf16 %v7769, %v7768
        %v7798 = vpack.c.bf16 %v7771, %v7770
        %v7799 = vpack.c.bf16 %v7773, %v7772
        %v7800 = vpack.c.bf16 %v7775, %v7774
        %v7801 = vpack.c.bf16 %v7777, %v7776
        %v7818 = vunpack.c.l.b16 %v7714
        %v7819 = vunpack.c.l.b16 %v7715
        %v7820 = vunpack.c.l.b16 %v7716
        %v7821 = vunpack.c.l.b16 %v7717
        %v7822 = vunpack.c.l.b16 %v7718
        %v7823 = vunpack.c.l.b16 %v7719
        %v7824 = vunpack.c.l.b16 %v7720
        %v7825 = vunpack.c.l.b16 %v7721
        %v7826 = vunpack.c.l.b16 %v7722
        %v7827 = vunpack.c.l.b16 %v7723
        %v7828 = vunpack.c.l.b16 %v7724
        %v7829 = vunpack.c.l.b16 %v7725
        %v7830 = vunpack.c.l.b16 %v7726
        %v7831 = vunpack.c.l.b16 %v7727
        %v7832 = vunpack.c.l.b16 %v7728
        %v7833 = vunpack.c.l.b16 %v7729
        %v7834 = vpack.c.b16 %v7819, %v7818
        %v7835 = vpack.c.b16 %v7821, %v7820
        %v7836 = vpack.c.b16 %v7823, %v7822
        %v7837 = vpack.c.b16 %v7825, %v7824
        %v7838 = vpack.c.b16 %v7827, %v7826
        %v7839 = vpack.c.b16 %v7829, %v7828
        %v7840 = vpack.c.b16 %v7831, %v7830
        %v7841 = vpack.c.b16 %v7833, %v7832
        %7850 = vmatprep.subr.bf16.mxu0 0
        %7851 = vmatpush1.bf16.msra.mxu0 %v7834
        %7852 = vmatprep.subr.bf16.mxu0 0
        %7853 = vmatpush1.bf16.msra.mxu0 %v7835
        %7854 = vmatprep.subr.bf16.mxu0 0
        %7855 = vmatpush1.bf16.msra.mxu0 %v7836
        %7856 = vmatprep.subr.bf16.mxu0 0
        %7857 = vmatpush1.bf16.msra.mxu0 %v7837
        %7858 = vmatprep.subr.bf16.mxu0 0
        %7859 = vmatpush1.bf16.msra.mxu0 %v7838
        %7860 = vmatprep.subr.bf16.mxu0 0
        %7861 = vmatpush1.bf16.msra.mxu0 %v7839
        %7862 = vmatprep.subr.bf16.mxu0 0
        %7863 = vmatpush1.bf16.msra.mxu0 %v7840
        %7864 = vmatprep.subr.bf16.mxu0 0
        %7865 = vmatpush1.bf16.msra.mxu0 %v7841
        %7866 = vmatprep.subr.bf16.mxu0 0
        %7867 = vmatpush1.bf16.msra.mxu0 0
        %7868 = vmatprep.subr.bf16.mxu0 0
        %7869 = vmatpush1.bf16.msra.mxu0 0
        %7870 = vmatprep.subr.bf16.mxu0 0
        %7871 = vmatpush1.bf16.msra.mxu0 0
        %7872 = vmatprep.subr.bf16.mxu0 0
        %7873 = vmatpush1.bf16.msra.mxu0 0
        %7874 = vmatprep.subr.bf16.mxu0 0
        %7875 = vmatpush1.bf16.msra.mxu0 0
        %7876 = vmatprep.subr.bf16.mxu0 0
        %7877 = vmatpush1.bf16.msra.mxu0 0
        %7878 = vmatprep.subr.bf16.mxu0 0
        %7879 = vmatpush1.bf16.msra.mxu0 0
        %7880 = vmatprep.subr.bf16.mxu0 0
        %7881 = vmatpush1.bf16.msra.mxu0 0
        %7882 = vmatprep.mubr.bf16.mxu0 0
        %7883 = vmatmul.mubr.bf16.gmra.mrb[0].mxu0 %v7778
        %v7884 = vpop.f32.mrb[0].mxu0
        %v7885 = vadd.f32 0.0, %v7884
        %v7886 = vpop.f32.mrb[0].mxu0
        %v7887 = vpop.f32.mrb[0].mxu0
        %v7888 = vadd.f32 0.0, %v7887
        %v7889 = vpop.f32.mrb[0].mxu0
        %7890 = vmatprep.mubr.bf16.mxu0 0
        %7891 = vmatmul.mubr.bf16.gmra.mrb[0].mxu0 %v7779
        %v7892 = vpop.f32.mrb[0].mxu0
        %v7893 = vadd.f32 0.0, %v7892
        %v7894 = vpop.f32.mrb[0].mxu0
        %v7895 = vpop.f32.mrb[0].mxu0
        %v7896 = vadd.f32 0.0, %v7895
        %v7897 = vpop.f32.mrb[0].mxu0
        %7898 = vmatprep.mubr.bf16.mxu0 0
        %7899 = vmatmul.mubr.bf16.gmra.mrb[0].mxu0 %v7780
        %v7900 = vpop.f32.mrb[0].mxu0
        %v7901 = vadd.f32 0.0, %v7900
        %v7902 = vpop.f32.mrb[0].mxu0
        %v7903 = vpop.f32.mrb[0].mxu0
        %v7904 = vadd.f32 0.0, %v7903
        %v7905 = vpop.f32.mrb[0].mxu0
        %7906 = vmatprep.mubr.bf16.mxu0 0
        %7907 = vmatmul.mubr.bf16.gmra.mrb[0].mxu0 %v7781
        %v7908 = vpop.f32.mrb[0].mxu0
        %v7909 = vadd.f32 0.0, %v7908
        %v7910 = vpop.f32.mrb[0].mxu0
        %v7911 = vpop.f32.mrb[0].mxu0
        %v7912 = vadd.f32 0.0, %v7911
        %v7913 = vpop.f32.mrb[0].mxu0
        %7914 = vmatprep.mubr.bf16.mxu0 0
        %7915 = vmatmul.mubr.bf16.gmra.mrb[0].mxu0 %v7782
        %v7916 = vpop.f32.mrb[0].mxu0
        %v7917 = vadd.f32 0.0, %v7916
        %v7918 = vpop.f32.mrb[0].mxu0
        %v7919 = vpop.f32.mrb[0].mxu0
        %v7920 = vadd.f32 0.0, %v7919
        %v7921 = vpop.f32.mrb[0].mxu0
        %7922 = vmatprep.mubr.bf16.mxu0 0
        %7923 = vmatmul.mubr.bf16.gmra.mrb[0].mxu0 %v7783
        %v7924 = vpop.f32.mrb[0].mxu0
        %v7925 = vadd.f32 0.0, %v7924
        %v7926 = vpop.f32.mrb[0].mxu0
        %v7927 = vpop.f32.mrb[0].mxu0
        %v7928 = vadd.f32 0.0, %v7927
        %v7929 = vpop.f32.mrb[0].mxu0
        %7930 = vmatprep.mubr.bf16.mxu0 0
        %7931 = vmatmul.mubr.bf16.gmra.mrb[0].mxu0 %v7784
        %v7932 = vpop.f32.mrb[0].mxu0
        %v7933 = vadd.f32 0.0, %v7932
        %v7934 = vpop.f32.mrb[0].mxu0
        %v7935 = vpop.f32.mrb[0].mxu0
        %v7936 = vadd.f32 0.0, %v7935
        %v7937 = vpop.f32.mrb[0].mxu0
        %7938 = vmatprep.mubr.bf16.mxu0 0
        %7939 = vmatmul.mubr.bf16.gmra.mrb[0].mxu0 %v7785
        %v7940 = vpop.f32.mrb[0].mxu0
        %v7941 = vadd.f32 0.0, %v7940
        %v7942 = vpop.f32.mrb[0].mxu0
        %v7943 = vpop.f32.mrb[0].mxu0
        %v7944 = vadd.f32 0.0, %v7943
        %v7945 = vpop.f32.mrb[0].mxu0
        %7946 = vmatprep.mubr.bf16.mxu0 0
        %7947 = vmatmul.mubr.bf16.gmra.mrb[0].mxu0 %v7786
        %v7948 = vpop.f32.mrb[0].mxu0
        %v7949 = vadd.f32 0.0, %v7948
        %v7950 = vpop.f32.mrb[0].mxu0
        %v7951 = vpop.f32.mrb[0].mxu0
        %v7952 = vadd.f32 0.0, %v7951
        %v7953 = vpop.f32.mrb[0].mxu0
        %7954 = vmatprep.mubr.bf16.mxu0 0
        %7955 = vmatmul.mubr.bf16.gmra.mrb[0].mxu0 %v7787
        %v7956 = vpop.f32.mrb[0].mxu0
        %v7957 = vadd.f32 0.0, %v7956
        %v7958 = vpop.f32.mrb[0].mxu0
        %v7959 = vpop.f32.mrb[0].mxu0
        %v7960 = vadd.f32 0.0, %v7959
        %v7961 = vpop.f32.mrb[0].mxu0
        %7962 = vmatprep.mubr.bf16.mxu0 0
        %7963 = vmatmul.mubr.bf16.gmra.mrb[0].mxu0 %v7788
        %v7964 = vpop.f32.mrb[0].mxu0
        %v7965 = vadd.f32 0.0, %v7964
        %v7966 = vpop.f32.mrb[0].mxu0
        %v7967 = vpop.f32.mrb[0].mxu0
        %v7968 = vadd.f32 0.0, %v7967
        %v7969 = vpop.f32.mrb[0].mxu0
        %7970 = vmatprep.mubr.bf16.mxu0 0
        %7971 = vmatmul.mubr.bf16.gmra.mrb[0].mxu0 %v7789
        %v7972 = vpop.f32.mrb[0].mxu0
        %v7973 = vadd.f32 0.0, %v7972
        %v7974 = vpop.f32.mrb[0].mxu0
        %v7975 = vpop.f32.mrb[0].mxu0
        %v7976 = vadd.f32 0.0, %v7975
        %v7977 = vpop.f32.mrb[0].mxu0
        %7978 = vmatprep.mubr.bf16.mxu0 0
        %7979 = vmatmul.mubr.bf16.gmra.mrb[0].mxu0 %v7790
        %v7980 = vpop.f32.mrb[0].mxu0
        %v7981 = vadd.f32 0.0, %v7980
        %v7982 = vpop.f32.mrb[0].mxu0
        %v7983 = vpop.f32.mrb[0].mxu0
        %v7984 = vadd.f32 0.0, %v7983
        %v7985 = vpop.f32.mrb[0].mxu0
        %7986 = vmatprep.mubr.bf16.mxu0 0
        %7987 = vmatmul.mubr.bf16.gmra.mrb[0].mxu0 %v7791
        %v7988 = vpop.f32.mrb[0].mxu0
        %v7989 = vadd.f32 0.0, %v7988
        %v7990 = vpop.f32.mrb[0].mxu0
        %v7991 = vpop.f32.mrb[0].mxu0
        %v7992 = vadd.f32 0.0, %v7991
        %v7993 = vpop.f32.mrb[0].mxu0
        %7994 = vmatprep.mubr.bf16.mxu0 0
        %7995 = vmatmul.mubr.bf16.gmra.mrb[0].mxu0 %v7792
        %v7996 = vpop.f32.mrb[0].mxu0
        %v7997 = vadd.f32 0.0, %v7996
        %v7998 = vpop.f32.mrb[0].mxu0
        %v7999 = vpop.f32.mrb[0].mxu0
        %v8000 = vadd.f32 0.0, %v7999
        %v8001 = vpop.f32.mrb[0].mxu0
        %8002 = vmatprep.mubr.bf16.mxu0 0
        %8003 = vmatmul.mubr.bf16.gmra.mrb[0].mxu0 %v7793
        %v8004 = vpop.f32.mrb[0].mxu0
        %v8005 = vadd.f32 0.0, %v8004
        %v8006 = vpop.f32.mrb[0].mxu0
        %v8007 = vpop.f32.mrb[0].mxu0
        %v8008 = vadd.f32 0.0, %v8007
        %v8009 = vpop.f32.mrb[0].mxu0
        %8010 = vmatprep.mubr.bf16.mxu0 0
        %8011 = vmatmul.mubr.bf16.gmra.mrb[0].mxu0 %v7794
        %v8012 = vpop.f32.mrb[0].mxu0
        %v8013 = vadd.f32 0.0, %v8012
        %v8014 = vpop.f32.mrb[0].mxu0
        %v8015 = vpop.f32.mrb[0].mxu0
        %v8016 = vadd.f32 0.0, %v8015
        %v8017 = vpop.f32.mrb[0].mxu0
        %8018 = vmatprep.mubr.bf16.mxu0 0
        %8019 = vmatmul.mubr.bf16.gmra.mrb[0].mxu0 %v7795
        %v8020 = vpop.f32.mrb[0].mxu0
        %v8021 = vadd.f32 0.0, %v8020
        %v8022 = vpop.f32.mrb[0].mxu0
        %v8023 = vpop.f32.mrb[0].mxu0
        %v8024 = vadd.f32 0.0, %v8023
        %v8025 = vpop.f32.mrb[0].mxu0
        %8026 = vmatprep.mubr.bf16.mxu0 0
        %8027 = vmatmul.mubr.bf16.gmra.mrb[0].mxu0 %v7796
        %v8028 = vpop.f32.mrb[0].mxu0
        %v8029 = vadd.f32 0.0, %v8028
        %v8030 = vpop.f32.mrb[0].mxu0
        %v8031 = vpop.f32.mrb[0].mxu0
        %v8032 = vadd.f32 0.0, %v8031
        %v8033 = vpop.f32.mrb[0].mxu0
        %8034 = vmatprep.mubr.bf16.mxu0 0
        %8035 = vmatmul.mubr.bf16.gmra.mrb[0].mxu0 %v7797
        %v8036 = vpop.f32.mrb[0].mxu0
        %v8037 = vadd.f32 0.0, %v8036
        %v8038 = vpop.f32.mrb[0].mxu0
        %v8039 = vpop.f32.mrb[0].mxu0
        %v8040 = vadd.f32 0.0, %v8039
        %v8041 = vpop.f32.mrb[0].mxu0
        %8042 = vmatprep.mubr.bf16.mxu0 0
        %8043 = vmatmul.mubr.bf16.gmra.mrb[0].mxu0 %v7798
        %v8044 = vpop.f32.mrb[0].mxu0
        %v8045 = vadd.f32 0.0, %v8044
        %v8046 = vpop.f32.mrb[0].mxu0
        %v8047 = vpop.f32.mrb[0].mxu0
        %v8048 = vadd.f32 0.0, %v8047
        %v8049 = vpop.f32.mrb[0].mxu0
        %8050 = vmatprep.mubr.bf16.mxu0 0
        %8051 = vmatmul.mubr.bf16.gmra.mrb[0].mxu0 %v7799
        %v8052 = vpop.f32.mrb[0].mxu0
        %v8053 = vadd.f32 0.0, %v8052
        %v8054 = vpop.f32.mrb[0].mxu0
        %v8055 = vpop.f32.mrb[0].mxu0
        %v8056 = vadd.f32 0.0, %v8055
        %v8057 = vpop.f32.mrb[0].mxu0
        %8058 = vmatprep.mubr.bf16.mxu0 0
        %8059 = vmatmul.mubr.bf16.gmra.mrb[0].mxu0 %v7800
        %v8060 = vpop.f32.mrb[0].mxu0
        %v8061 = vadd.f32 0.0, %v8060
        %v8062 = vpop.f32.mrb[0].mxu0
        %v8063 = vpop.f32.mrb[0].mxu0
        %v8064 = vadd.f32 0.0, %v8063
        %v8065 = vpop.f32.mrb[0].mxu0
        %8066 = vmatprep.mubr.bf16.mxu0 0
        %8067 = vmatmul.mubr.bf16.gmra.mrb[0].mxu0 %v7801
        %v8068 = vpop.f32.mrb[0].mxu0
        %v8069 = vadd.f32 0.0, %v8068
        %v8070 = vpop.f32.mrb[0].mxu0
        %v8071 = vpop.f32.mrb[0].mxu0
        %v8072 = vadd.f32 0.0, %v8071
        %v8073 = vpop.f32.mrb[0].mxu0
        %8074 = vdwg.mxu0
        %v8075 = vadd.f32 %v7320, %v7885
        %v8076 = vadd.f32 %v7321, %v7888
        %v8077 = vadd.f32 %v7322, %v7893
        %v8078 = vadd.f32 %v7323, %v7896
        %v8079 = vadd.f32 %v7324, %v7901
        %v8080 = vadd.f32 %v7325, %v7904
        %v8081 = vadd.f32 %v7326, %v7909
        %v8082 = vadd.f32 %v7327, %v7912
        %v8083 = vadd.f32 %v7328, %v7917
        %v8084 = vadd.f32 %v7329, %v7920
        %v8085 = vadd.f32 %v7330, %v7925
        %v8086 = vadd.f32 %v7331, %v7928
        %v8087 = vadd.f32 %v7332, %v7933
        %v8088 = vadd.f32 %v7333, %v7936
        %v8089 = vadd.f32 %v7334, %v7941
        %v8090 = vadd.f32 %v7335, %v7944
        %v8091 = vadd.f32 %v7336, %v7949
        %v8092 = vadd.f32 %v7337, %v7952
        %v8093 = vadd.f32 %v7338, %v7957
        %v8094 = vadd.f32 %v7339, %v7960
        %v8095 = vadd.f32 %v7340, %v7965
        %v8096 = vadd.f32 %v7341, %v7968
        %v8097 = vadd.f32 %v7342, %v7973
        %v8098 = vadd.f32 %v7343, %v7976
        %v8099 = vadd.f32 %v7344, %v7981
        %v8100 = vadd.f32 %v7345, %v7984
        %v8101 = vadd.f32 %v7346, %v7989
        %v8102 = vadd.f32 %v7347, %v7992
        %v8103 = vadd.f32 %v7348, %v7997
        %v8104 = vadd.f32 %v7349, %v8000
        %v8105 = vadd.f32 %v7350, %v8005
        %v8106 = vadd.f32 %v7351, %v8008
        %v8107 = vadd.f32 %v7352, %v8013
        %v8108 = vadd.f32 %v7353, %v8016
        %v8109 = vadd.f32 %v7354, %v8021
        %v8110 = vadd.f32 %v7355, %v8024
        %v8111 = vadd.f32 %v7356, %v8029
        %v8112 = vadd.f32 %v7357, %v8032
        %v8113 = vadd.f32 %v7358, %v8037
        %v8114 = vadd.f32 %v7359, %v8040
        %v8115 = vadd.f32 %v7360, %v8045
        %v8116 = vadd.f32 %v7361, %v8048
        %v8117 = vadd.f32 %v7362, %v8053
        %v8118 = vadd.f32 %v7363, %v8056
        %v8119 = vadd.f32 %v7364, %v8061
        %v8120 = vadd.f32 %v7365, %v8064
        %v8121 = vadd.f32 %v7366, %v8069
        %v8122 = vadd.f32 %v7367, %v8072
        %v8123 = vld [vmem:[%s3267 + $0x37] sm:$0xff]
        %v8124 = vld [vmem:[%s3267 + $0x3f] sm:$0xff]
        %v8125 = vld [vmem:[%s3267 + $0x47] sm:$0xff]
        %v8126 = vld [vmem:[%s3267 + $0x4f] sm:$0xff]
        %v8127 = vld [vmem:[%s3267 + $0x57] sm:$0xff]
        %v8128 = vld [vmem:[%s3267 + $0x5f] sm:$0xff]
        %v8129 = vld [vmem:[%s3267 + $0x67] sm:$0xff]
        %v8130 = vld [vmem:[%s3267 + $0x6f] sm:$0xff]
        %v8131 = vld [vmem:[%s3267 + $0x77] sm:$0xff]
        %v8132 = vld [vmem:[%s3267 + $0x7f] sm:$0xff]
        %v8133 = vld [vmem:[%s3267 + $0x87] sm:$0xff]
        %v8134 = vld [vmem:[%s3267 + $0x8f] sm:$0xff]
        %v8135 = vld [vmem:[%s3267 + $0x97] sm:$0xff]
        %v8136 = vld [vmem:[%s3267 + $0x9f] sm:$0xff]
        %v8137 = vld [vmem:[%s3267 + $0xa7] sm:$0xff]
        %v8138 = vld [vmem:[%s3267 + $0xaf] sm:$0xff]
        %v8139 = vld [vmem:[%s3267 + $0xb7] sm:$0xff]
        %v8140 = vld [vmem:[%s3267 + $0xbf] sm:$0xff]
        %v8141 = vld [vmem:[%s3267 + $0xc7] sm:$0xff]
        %v8142 = vld [vmem:[%s3267 + $0xcf] sm:$0xff]
        %v8143 = vld [vmem:[%s3267 + $0xd7] sm:$0xff]
        %v8144 = vld [vmem:[%s3267 + $0xdf] sm:$0xff]
        %v8145 = vld [vmem:[%s3267 + $0xe7] sm:$0xff]
        %v8146 = vld [vmem:[%s3267 + $0xef] sm:$0xff]
        %v8147 = vld [vmem:[%s3267 + $0xf7] sm:$0xff]
        %v8148 = vld [vmem:[%s3267 + $0xff] sm:$0xff]
        %v8149 = vld [vmem:[%s3267 + $0x107] sm:$0xff]
        %v8150 = vld [vmem:[%s3267 + $0x10f] sm:$0xff]
        %v8151 = vld [vmem:[%s3267 + $0x117] sm:$0xff]
        %v8152 = vld [vmem:[%s3267 + $0x11f] sm:$0xff]
        %v8153 = vld [vmem:[%s3267 + $0x127] sm:$0xff]
        %v8154 = vld [vmem:[%s3267 + $0x12f] sm:$0xff]
        %v8155 = vld [vmem:[%s3267 + $0x137] sm:$0xff]
        %v8156 = vld [vmem:[%s3267 + $0x13f] sm:$0xff]
        %v8157 = vld [vmem:[%s3267 + $0x147] sm:$0xff]
        %v8158 = vld [vmem:[%s3267 + $0x14f] sm:$0xff]
        %v8159 = vld [vmem:[%s3267 + $0x157] sm:$0xff]
        %v8160 = vld [vmem:[%s3267 + $0x15f] sm:$0xff]
        %v8161 = vld [vmem:[%s3267 + $0x167] sm:$0xff]
        %v8162 = vld [vmem:[%s3267 + $0x16f] sm:$0xff]
        %v8163 = vld [vmem:[%s3267 + $0x177] sm:$0xff]
        %v8164 = vld [vmem:[%s3267 + $0x17f] sm:$0xff]
        %v8165 = vld [vmem:[%s3267 + $0x187] sm:$0xff]
        %v8166 = vld [vmem:[%s3267 + $0x18f] sm:$0xff]
        %v8167 = vld [vmem:[%s3267 + $0x197] sm:$0xff]
        %v8168 = vld [vmem:[%s3267 + $0x19f] sm:$0xff]
        %v8169 = vld [vmem:[%s3267 + $0x1a7] sm:$0xff]
        %v8170 = vld [vmem:[%s3267 + $0x1af] sm:$0xff]
        %v8171 = vpack.c.bf16 %v8124, %v8123
        %v8172 = vpack.c.bf16 %v8126, %v8125
        %v8173 = vpack.c.bf16 %v8128, %v8127
        %v8174 = vpack.c.bf16 %v8130, %v8129
        %v8175 = vpack.c.bf16 %v8132, %v8131
        %v8176 = vpack.c.bf16 %v8134, %v8133
        %v8177 = vpack.c.bf16 %v8136, %v8135
        %v8178 = vpack.c.bf16 %v8138, %v8137
        %v8179 = vpack.c.bf16 %v8140, %v8139
        %v8180 = vpack.c.bf16 %v8142, %v8141
        %v8181 = vpack.c.bf16 %v8144, %v8143
        %v8182 = vpack.c.bf16 %v8146, %v8145
        %v8183 = vpack.c.bf16 %v8148, %v8147
        %v8184 = vpack.c.bf16 %v8150, %v8149
        %v8185 = vpack.c.bf16 %v8152, %v8151
        %v8186 = vpack.c.bf16 %v8154, %v8153
        %v8187 = vpack.c.bf16 %v8156, %v8155
        %v8188 = vpack.c.bf16 %v8158, %v8157
        %v8189 = vpack.c.bf16 %v8160, %v8159
        %v8190 = vpack.c.bf16 %v8162, %v8161
        %v8191 = vpack.c.bf16 %v8164, %v8163
        %v8192 = vpack.c.bf16 %v8166, %v8165
        %v8193 = vpack.c.bf16 %v8168, %v8167
        %v8194 = vpack.c.bf16 %v8170, %v8169
        %8195 = vmatprep.subr.bf16.mxu0 0
        %8196 = vmatpush1.bf16.msra.mxu0 %v7834
        %8197 = vmatprep.subr.bf16.mxu0 0
        %8198 = vmatpush1.bf16.msra.mxu0 %v7835
        %8199 = vmatprep.subr.bf16.mxu0 0
        %8200 = vmatpush1.bf16.msra.mxu0 %v7836
        %8201 = vmatprep.subr.bf16.mxu0 0
        %8202 = vmatpush1.bf16.msra.mxu0 %v7837
        %8203 = vmatprep.subr.bf16.mxu0 0
        %8204 = vmatpush1.bf16.msra.mxu0 %v7838
        %8205 = vmatprep.subr.bf16.mxu0 0
        %8206 = vmatpush1.bf16.msra.mxu0 %v7839
        %8207 = vmatprep.subr.bf16.mxu0 0
        %8208 = vmatpush1.bf16.msra.mxu0 %v7840
        %8209 = vmatprep.subr.bf16.mxu0 0
        %8210 = vmatpush1.bf16.msra.mxu0 %v7841
        %8211 = vmatprep.subr.bf16.mxu0 0
        %8212 = vmatpush1.bf16.msra.mxu0 0
        %8213 = vmatprep.subr.bf16.mxu0 0
        %8214 = vmatpush1.bf16.msra.mxu0 0
        %8215 = vmatprep.subr.bf16.mxu0 0
        %8216 = vmatpush1.bf16.msra.mxu0 0
        %8217 = vmatprep.subr.bf16.mxu0 0
        %8218 = vmatpush1.bf16.msra.mxu0 0
        %8219 = vmatprep.subr.bf16.mxu0 0
        %8220 = vmatpush1.bf16.msra.mxu0 0
        %8221 = vmatprep.subr.bf16.mxu0 0
        %8222 = vmatpush1.bf16.msra.mxu0 0
        %8223 = vmatprep.subr.bf16.mxu0 0
        %8224 = vmatpush1.bf16.msra.mxu0 0
        %8225 = vmatprep.subr.bf16.mxu0 0
        %8226 = vmatpush1.bf16.msra.mxu0 0
        %8227 = vmatprep.mubr.bf16.mxu0 0
        %8228 = vmatmul.mubr.bf16.gmra.mrb[0].mxu0 %v8171
        %v8229 = vpop.f32.mrb[0].mxu0
        %v8230 = vadd.f32 0.0, %v8229
        %v8231 = vpop.f32.mrb[0].mxu0
        %v8232 = vpop.f32.mrb[0].mxu0
        %v8233 = vadd.f32 0.0, %v8232
        %v8234 = vpop.f32.mrb[0].mxu0
        %8235 = vmatprep.mubr.bf16.mxu0 0
        %8236 = vmatmul.mubr.bf16.gmra.mrb[0].mxu0 %v8172
        %v8237 = vpop.f32.mrb[0].mxu0
        %v8238 = vadd.f32 0.0, %v8237
        %v8239 = vpop.f32.mrb[0].mxu0
        %v8240 = vpop.f32.mrb[0].mxu0
        %v8241 = vadd.f32 0.0, %v8240
        %v8242 = vpop.f32.mrb[0].mxu0
        %8243 = vmatprep.mubr.bf16.mxu0 0
        %8244 = vmatmul.mubr.bf16.gmra.mrb[0].mxu0 %v8173
        %v8245 = vpop.f32.mrb[0].mxu0
        %v8246 = vadd.f32 0.0, %v8245
        %v8247 = vpop.f32.mrb[0].mxu0
        %v8248 = vpop.f32.mrb[0].mxu0
        %v8249 = vadd.f32 0.0, %v8248
        %v8250 = vpop.f32.mrb[0].mxu0
        %8251 = vmatprep.mubr.bf16.mxu0 0
        %8252 = vmatmul.mubr.bf16.gmra.mrb[0].mxu0 %v8174
        %v8253 = vpop.f32.mrb[0].mxu0
        %v8254 = vadd.f32 0.0, %v8253
        %v8255 = vpop.f32.mrb[0].mxu0
        %v8256 = vpop.f32.mrb[0].mxu0
        %v8257 = vadd.f32 0.0, %v8256
        %v8258 = vpop.f32.mrb[0].mxu0
        %8259 = vmatprep.mubr.bf16.mxu0 0
        %8260 = vmatmul.mubr.bf16.gmra.mrb[0].mxu0 %v8175
        %v8261 = vpop.f32.mrb[0].mxu0
        %v8262 = vadd.f32 0.0, %v8261
        %v8263 = vpop.f32.mrb[0].mxu0
        %v8264 = vpop.f32.mrb[0].mxu0
        %v8265 = vadd.f32 0.0, %v8264
        %v8266 = vpop.f32.mrb[0].mxu0
        %8267 = vmatprep.mubr.bf16.mxu0 0
        %8268 = vmatmul.mubr.bf16.gmra.mrb[0].mxu0 %v8176
        %v8269 = vpop.f32.mrb[0].mxu0
        %v8270 = vadd.f32 0.0, %v8269
        %v8271 = vpop.f32.mrb[0].mxu0
        %v8272 = vpop.f32.mrb[0].mxu0
        %v8273 = vadd.f32 0.0, %v8272
        %v8274 = vpop.f32.mrb[0].mxu0
        %8275 = vmatprep.mubr.bf16.mxu0 0
        %8276 = vmatmul.mubr.bf16.gmra.mrb[0].mxu0 %v8177
        %v8277 = vpop.f32.mrb[0].mxu0
        %v8278 = vadd.f32 0.0, %v8277
        %v8279 = vpop.f32.mrb[0].mxu0
        %v8280 = vpop.f32.mrb[0].mxu0
        %v8281 = vadd.f32 0.0, %v8280
        %v8282 = vpop.f32.mrb[0].mxu0
        %8283 = vmatprep.mubr.bf16.mxu0 0
        %8284 = vmatmul.mubr.bf16.gmra.mrb[0].mxu0 %v8178
        %v8285 = vpop.f32.mrb[0].mxu0
        %v8286 = vadd.f32 0.0, %v8285
        %v8287 = vpop.f32.mrb[0].mxu0
        %v8288 = vpop.f32.mrb[0].mxu0
        %v8289 = vadd.f32 0.0, %v8288
        %v8290 = vpop.f32.mrb[0].mxu0
        %8291 = vmatprep.mubr.bf16.mxu0 0
        %8292 = vmatmul.mubr.bf16.gmra.mrb[0].mxu0 %v8179
        %v8293 = vpop.f32.mrb[0].mxu0
        %v8294 = vadd.f32 0.0, %v8293
        %v8295 = vpop.f32.mrb[0].mxu0
        %v8296 = vpop.f32.mrb[0].mxu0
        %v8297 = vadd.f32 0.0, %v8296
        %v8298 = vpop.f32.mrb[0].mxu0
        %8299 = vmatprep.mubr.bf16.mxu0 0
        %8300 = vmatmul.mubr.bf16.gmra.mrb[0].mxu0 %v8180
        %v8301 = vpop.f32.mrb[0].mxu0
        %v8302 = vadd.f32 0.0, %v8301
        %v8303 = vpop.f32.mrb[0].mxu0
        %v8304 = vpop.f32.mrb[0].mxu0
        %v8305 = vadd.f32 0.0, %v8304
        %v8306 = vpop.f32.mrb[0].mxu0
        %8307 = vmatprep.mubr.bf16.mxu0 0
        %8308 = vmatmul.mubr.bf16.gmra.mrb[0].mxu0 %v8181
        %v8309 = vpop.f32.mrb[0].mxu0
        %v8310 = vadd.f32 0.0, %v8309
        %v8311 = vpop.f32.mrb[0].mxu0
        %v8312 = vpop.f32.mrb[0].mxu0
        %v8313 = vadd.f32 0.0, %v8312
        %v8314 = vpop.f32.mrb[0].mxu0
        %8315 = vmatprep.mubr.bf16.mxu0 0
        %8316 = vmatmul.mubr.bf16.gmra.mrb[0].mxu0 %v8182
        %v8317 = vpop.f32.mrb[0].mxu0
        %v8318 = vadd.f32 0.0, %v8317
        %v8319 = vpop.f32.mrb[0].mxu0
        %v8320 = vpop.f32.mrb[0].mxu0
        %v8321 = vadd.f32 0.0, %v8320
        %v8322 = vpop.f32.mrb[0].mxu0
        %8323 = vmatprep.mubr.bf16.mxu0 0
        %8324 = vmatmul.mubr.bf16.gmra.mrb[0].mxu0 %v8183
        %v8325 = vpop.f32.mrb[0].mxu0
        %v8326 = vadd.f32 0.0, %v8325
        %v8327 = vpop.f32.mrb[0].mxu0
        %v8328 = vpop.f32.mrb[0].mxu0
        %v8329 = vadd.f32 0.0, %v8328
        %v8330 = vpop.f32.mrb[0].mxu0
        %8331 = vmatprep.mubr.bf16.mxu0 0
        %8332 = vmatmul.mubr.bf16.gmra.mrb[0].mxu0 %v8184
        %v8333 = vpop.f32.mrb[0].mxu0
        %v8334 = vadd.f32 0.0, %v8333
        %v8335 = vpop.f32.mrb[0].mxu0
        %v8336 = vpop.f32.mrb[0].mxu0
        %v8337 = vadd.f32 0.0, %v8336
        %v8338 = vpop.f32.mrb[0].mxu0
        %8339 = vmatprep.mubr.bf16.mxu0 0
        %8340 = vmatmul.mubr.bf16.gmra.mrb[0].mxu0 %v8185
        %v8341 = vpop.f32.mrb[0].mxu0
        %v8342 = vadd.f32 0.0, %v8341
        %v8343 = vpop.f32.mrb[0].mxu0
        %v8344 = vpop.f32.mrb[0].mxu0
        %v8345 = vadd.f32 0.0, %v8344
        %v8346 = vpop.f32.mrb[0].mxu0
        %8347 = vmatprep.mubr.bf16.mxu0 0
        %8348 = vmatmul.mubr.bf16.gmra.mrb[0].mxu0 %v8186
        %v8349 = vpop.f32.mrb[0].mxu0
        %v8350 = vadd.f32 0.0, %v8349
        %v8351 = vpop.f32.mrb[0].mxu0
        %v8352 = vpop.f32.mrb[0].mxu0
        %v8353 = vadd.f32 0.0, %v8352
        %v8354 = vpop.f32.mrb[0].mxu0
        %8355 = vmatprep.mubr.bf16.mxu0 0
        %8356 = vmatmul.mubr.bf16.gmra.mrb[0].mxu0 %v8187
        %v8357 = vpop.f32.mrb[0].mxu0
        %v8358 = vadd.f32 0.0, %v8357
        %v8359 = vpop.f32.mrb[0].mxu0
        %v8360 = vpop.f32.mrb[0].mxu0
        %v8361 = vadd.f32 0.0, %v8360
        %v8362 = vpop.f32.mrb[0].mxu0
        %8363 = vmatprep.mubr.bf16.mxu0 0
        %8364 = vmatmul.mubr.bf16.gmra.mrb[0].mxu0 %v8188
        %v8365 = vpop.f32.mrb[0].mxu0
        %v8366 = vadd.f32 0.0, %v8365
        %v8367 = vpop.f32.mrb[0].mxu0
        %v8368 = vpop.f32.mrb[0].mxu0
        %v8369 = vadd.f32 0.0, %v8368
        %v8370 = vpop.f32.mrb[0].mxu0
        %8371 = vmatprep.mubr.bf16.mxu0 0
        %8372 = vmatmul.mubr.bf16.gmra.mrb[0].mxu0 %v8189
        %v8373 = vpop.f32.mrb[0].mxu0
        %v8374 = vadd.f32 0.0, %v8373
        %v8375 = vpop.f32.mrb[0].mxu0
        %v8376 = vpop.f32.mrb[0].mxu0
        %v8377 = vadd.f32 0.0, %v8376
        %v8378 = vpop.f32.mrb[0].mxu0
        %8379 = vmatprep.mubr.bf16.mxu0 0
        %8380 = vmatmul.mubr.bf16.gmra.mrb[0].mxu0 %v8190
        %v8381 = vpop.f32.mrb[0].mxu0
        %v8382 = vadd.f32 0.0, %v8381
        %v8383 = vpop.f32.mrb[0].mxu0
        %v8384 = vpop.f32.mrb[0].mxu0
        %v8385 = vadd.f32 0.0, %v8384
        %v8386 = vpop.f32.mrb[0].mxu0
        %8387 = vmatprep.mubr.bf16.mxu0 0
        %8388 = vmatmul.mubr.bf16.gmra.mrb[0].mxu0 %v8191
        %v8389 = vpop.f32.mrb[0].mxu0
        %v8390 = vadd.f32 0.0, %v8389
        %v8391 = vpop.f32.mrb[0].mxu0
        %v8392 = vpop.f32.mrb[0].mxu0
        %v8393 = vadd.f32 0.0, %v8392
        %v8394 = vpop.f32.mrb[0].mxu0
        %8395 = vmatprep.mubr.bf16.mxu0 0
        %8396 = vmatmul.mubr.bf16.gmra.mrb[0].mxu0 %v8192
        %v8397 = vpop.f32.mrb[0].mxu0
        %v8398 = vadd.f32 0.0, %v8397
        %v8399 = vpop.f32.mrb[0].mxu0
        %v8400 = vpop.f32.mrb[0].mxu0
        %v8401 = vadd.f32 0.0, %v8400
        %v8402 = vpop.f32.mrb[0].mxu0
        %8403 = vmatprep.mubr.bf16.mxu0 0
        %8404 = vmatmul.mubr.bf16.gmra.mrb[0].mxu0 %v8193
        %v8405 = vpop.f32.mrb[0].mxu0
        %v8406 = vadd.f32 0.0, %v8405
        %v8407 = vpop.f32.mrb[0].mxu0
        %v8408 = vpop.f32.mrb[0].mxu0
        %v8409 = vadd.f32 0.0, %v8408
        %v8410 = vpop.f32.mrb[0].mxu0
        %8411 = vmatprep.mubr.bf16.mxu0 0
        %8412 = vmatmul.mubr.bf16.gmra.mrb[0].mxu0 %v8194
        %v8413 = vpop.f32.mrb[0].mxu0
        %v8414 = vadd.f32 0.0, %v8413
        %v8415 = vpop.f32.mrb[0].mxu0
        %v8416 = vpop.f32.mrb[0].mxu0
        %v8417 = vadd.f32 0.0, %v8416
        %v8418 = vpop.f32.mrb[0].mxu0
        %8419 = vdwg.mxu0
        %v8420 = vadd.f32 %v7665, %v8230
        %v8421 = vadd.f32 %v7666, %v8233
        %v8422 = vadd.f32 %v7667, %v8238
        %v8423 = vadd.f32 %v7668, %v8241
        %v8424 = vadd.f32 %v7669, %v8246
        %v8425 = vadd.f32 %v7670, %v8249
        %v8426 = vadd.f32 %v7671, %v8254
        %v8427 = vadd.f32 %v7672, %v8257
        %v8428 = vadd.f32 %v7673, %v8262
        %v8429 = vadd.f32 %v7674, %v8265
        %v8430 = vadd.f32 %v7675, %v8270
        %v8431 = vadd.f32 %v7676, %v8273
        %v8432 = vadd.f32 %v7677, %v8278
        %v8433 = vadd.f32 %v7678, %v8281
        %v8434 = vadd.f32 %v7679, %v8286
        %v8435 = vadd.f32 %v7680, %v8289
        %v8436 = vadd.f32 %v7681, %v8294
        %v8437 = vadd.f32 %v7682, %v8297
        %v8438 = vadd.f32 %v7683, %v8302
        %v8439 = vadd.f32 %v7684, %v8305
        %v8440 = vadd.f32 %v7685, %v8310
        %v8441 = vadd.f32 %v7686, %v8313
        %v8442 = vadd.f32 %v7687, %v8318
        %v8443 = vadd.f32 %v7688, %v8321
        %v8444 = vadd.f32 %v7689, %v8326
        %v8445 = vadd.f32 %v7690, %v8329
        %v8446 = vadd.f32 %v7691, %v8334
        %v8447 = vadd.f32 %v7692, %v8337
        %v8448 = vadd.f32 %v7693, %v8342
        %v8449 = vadd.f32 %v7694, %v8345
        %v8450 = vadd.f32 %v7695, %v8350
        %v8451 = vadd.f32 %v7696, %v8353
        %v8452 = vadd.f32 %v7697, %v8358
        %v8453 = vadd.f32 %v7698, %v8361
        %v8454 = vadd.f32 %v7699, %v8366
        %v8455 = vadd.f32 %v7700, %v8369
        %v8456 = vadd.f32 %v7701, %v8374
        %v8457 = vadd.f32 %v7702, %v8377
        %v8458 = vadd.f32 %v7703, %v8382
        %v8459 = vadd.f32 %v7704, %v8385
        %v8460 = vadd.f32 %v7705, %v8390
        %v8461 = vadd.f32 %v7706, %v8393
        %v8462 = vadd.f32 %v7707, %v8398
        %v8463 = vadd.f32 %v7708, %v8401
        %v8464 = vadd.f32 %v7709, %v8406
        %v8465 = vadd.f32 %v7710, %v8409
        %v8466 = vadd.f32 %v7711, %v8414
        %v8467 = vadd.f32 %v7712, %v8417
        %s8468 = scalar_lea.vmem %s3, 448
        %v8469 = vld [vmem:[%s8468] sm:$0xf]
        %v8470 = vld [vmem:[%s8468 + $0x4] sm:$0xf]
        %v8471 = vld [vmem:[%s8468 + $0x8] sm:$0xf]
        %v8472 = vld [vmem:[%s8468 + $0xc] sm:$0xf]
        %v8473 = vld [vmem:[%s8468 + $0x10] sm:$0xf]
        %v8474 = vld [vmem:[%s8468 + $0x14] sm:$0xf]
        %v8475 = vld [vmem:[%s8468 + $0x18] sm:$0xf]
        %v8476 = vld [vmem:[%s8468 + $0x1c] sm:$0xf]
        %v8477 = vld [vmem:[%s8468 + $0x20] sm:$0xf]
        %v8478 = vld [vmem:[%s8468 + $0x24] sm:$0xf]
        %v8479 = vld [vmem:[%s8468 + $0x28] sm:$0xf]
        %v8480 = vld [vmem:[%s8468 + $0x2c] sm:$0xf]
        %v8481 = vld [vmem:[%s8468 + $0x30] sm:$0xf]
        %v8482 = vld [vmem:[%s8468 + $0x34] sm:$0xf]
        %v8483 = vld [vmem:[%s8468 + $0x38] sm:$0xf]
        %v8484 = vld [vmem:[%s8468 + $0x3c] sm:$0xf]
        %v8485 = vld [vmem:[#allocation2 + $0x38] sm:$0xff]
        %v8486 = vld [vmem:[#allocation2 + $0x40] sm:$0xff]
        %v8487 = vld [vmem:[#allocation2 + $0x48] sm:$0xff]
        %v8488 = vld [vmem:[#allocation2 + $0x50] sm:$0xff]
        %v8489 = vld [vmem:[#allocation2 + $0x58] sm:$0xff]
        %v8490 = vld [vmem:[#allocation2 + $0x60] sm:$0xff]
        %v8491 = vld [vmem:[#allocation2 + $0x68] sm:$0xff]
        %v8492 = vld [vmem:[#allocation2 + $0x70] sm:$0xff]
        %v8493 = vld [vmem:[#allocation2 + $0x78] sm:$0xff]
        %v8494 = vld [vmem:[#allocation2 + $0x80] sm:$0xff]
        %v8495 = vld [vmem:[#allocation2 + $0x88] sm:$0xff]
        %v8496 = vld [vmem:[#allocation2 + $0x90] sm:$0xff]
        %v8497 = vld [vmem:[#allocation2 + $0x98] sm:$0xff]
        %v8498 = vld [vmem:[#allocation2 + $0xa0] sm:$0xff]
        %v8499 = vld [vmem:[#allocation2 + $0xa8] sm:$0xff]
        %v8500 = vld [vmem:[#allocation2 + $0xb0] sm:$0xff]
        %v8501 = vld [vmem:[#allocation2 + $0xb8] sm:$0xff]
        %v8502 = vld [vmem:[#allocation2 + $0xc0] sm:$0xff]
        %v8503 = vld [vmem:[#allocation2 + $0xc8] sm:$0xff]
        %v8504 = vld [vmem:[#allocation2 + $0xd0] sm:$0xff]
        %v8505 = vld [vmem:[#allocation2 + $0xd8] sm:$0xff]
        %v8506 = vld [vmem:[#allocation2 + $0xe0] sm:$0xff]
        %v8507 = vld [vmem:[#allocation2 + $0xe8] sm:$0xff]
        %v8508 = vld [vmem:[#allocation2 + $0xf0] sm:$0xff]
        %v8509 = vld [vmem:[#allocation2 + $0xf8] sm:$0xff]
        %v8510 = vld [vmem:[#allocation2 + $0x100] sm:$0xff]
        %v8511 = vld [vmem:[#allocation2 + $0x108] sm:$0xff]
        %v8512 = vld [vmem:[#allocation2 + $0x110] sm:$0xff]
        %v8513 = vld [vmem:[#allocation2 + $0x118] sm:$0xff]
        %v8514 = vld [vmem:[#allocation2 + $0x120] sm:$0xff]
        %v8515 = vld [vmem:[#allocation2 + $0x128] sm:$0xff]
        %v8516 = vld [vmem:[#allocation2 + $0x130] sm:$0xff]
        %v8517 = vld [vmem:[#allocation2 + $0x138] sm:$0xff]
        %v8518 = vld [vmem:[#allocation2 + $0x140] sm:$0xff]
        %v8519 = vld [vmem:[#allocation2 + $0x148] sm:$0xff]
        %v8520 = vld [vmem:[#allocation2 + $0x150] sm:$0xff]
        %v8521 = vld [vmem:[#allocation2 + $0x158] sm:$0xff]
        %v8522 = vld [vmem:[#allocation2 + $0x160] sm:$0xff]
        %v8523 = vld [vmem:[#allocation2 + $0x168] sm:$0xff]
        %v8524 = vld [vmem:[#allocation2 + $0x170] sm:$0xff]
        %v8525 = vld [vmem:[#allocation2 + $0x178] sm:$0xff]
        %v8526 = vld [vmem:[#allocation2 + $0x180] sm:$0xff]
        %v8527 = vld [vmem:[#allocation2 + $0x188] sm:$0xff]
        %v8528 = vld [vmem:[#allocation2 + $0x190] sm:$0xff]
        %v8529 = vld [vmem:[#allocation2 + $0x198] sm:$0xff]
        %v8530 = vld [vmem:[#allocation2 + $0x1a0] sm:$0xff]
        %v8531 = vld [vmem:[#allocation2 + $0x1a8] sm:$0xff]
        %v8532 = vld [vmem:[#allocation2 + $0x1b0] sm:$0xff]
        %v8533 = vpack.c.bf16 %v8486, %v8485
        %v8534 = vpack.c.bf16 %v8488, %v8487
        %v8535 = vpack.c.bf16 %v8490, %v8489
        %v8536 = vpack.c.bf16 %v8492, %v8491
        %v8537 = vpack.c.bf16 %v8494, %v8493
        %v8538 = vpack.c.bf16 %v8496, %v8495
        %v8539 = vpack.c.bf16 %v8498, %v8497
        %v8540 = vpack.c.bf16 %v8500, %v8499
        %v8541 = vpack.c.bf16 %v8502, %v8501
        %v8542 = vpack.c.bf16 %v8504, %v8503
        %v8543 = vpack.c.bf16 %v8506, %v8505
        %v8544 = vpack.c.bf16 %v8508, %v8507
        %v8545 = vpack.c.bf16 %v8510, %v8509
        %v8546 = vpack.c.bf16 %v8512, %v8511
        %v8547 = vpack.c.bf16 %v8514, %v8513
        %v8548 = vpack.c.bf16 %v8516, %v8515
        %v8549 = vpack.c.bf16 %v8518, %v8517
        %v8550 = vpack.c.bf16 %v8520, %v8519
        %v8551 = vpack.c.bf16 %v8522, %v8521
        %v8552 = vpack.c.bf16 %v8524, %v8523
        %v8553 = vpack.c.bf16 %v8526, %v8525
        %v8554 = vpack.c.bf16 %v8528, %v8527
        %v8555 = vpack.c.bf16 %v8530, %v8529
        %v8556 = vpack.c.bf16 %v8532, %v8531
        %v8573 = vunpack.c.l.b16 %v8469
        %v8574 = vunpack.c.l.b16 %v8470
        %v8575 = vunpack.c.l.b16 %v8471
        %v8576 = vunpack.c.l.b16 %v8472
        %v8577 = vunpack.c.l.b16 %v8473
        %v8578 = vunpack.c.l.b16 %v8474
        %v8579 = vunpack.c.l.b16 %v8475
        %v8580 = vunpack.c.l.b16 %v8476
        %v8581 = vunpack.c.l.b16 %v8477
        %v8582 = vunpack.c.l.b16 %v8478
        %v8583 = vunpack.c.l.b16 %v8479
        %v8584 = vunpack.c.l.b16 %v8480
        %v8585 = vunpack.c.l.b16 %v8481
        %v8586 = vunpack.c.l.b16 %v8482
        %v8587 = vunpack.c.l.b16 %v8483
        %v8588 = vunpack.c.l.b16 %v8484
        %v8589 = vpack.c.b16 %v8574, %v8573
        %v8590 = vpack.c.b16 %v8576, %v8575
        %v8591 = vpack.c.b16 %v8578, %v8577
        %v8592 = vpack.c.b16 %v8580, %v8579
        %v8593 = vpack.c.b16 %v8582, %v8581
        %v8594 = vpack.c.b16 %v8584, %v8583
        %v8595 = vpack.c.b16 %v8586, %v8585
        %v8596 = vpack.c.b16 %v8588, %v8587
        %8605 = vmatprep.subr.bf16.mxu0 0
        %8606 = vmatpush1.bf16.msra.mxu0 %v8589
        %8607 = vmatprep.subr.bf16.mxu0 0
        %8608 = vmatpush1.bf16.msra.mxu0 %v8590
        %8609 = vmatprep.subr.bf16.mxu0 0
        %8610 = vmatpush1.bf16.msra.mxu0 %v8591
        %8611 = vmatprep.subr.bf16.mxu0 0
        %8612 = vmatpush1.bf16.msra.mxu0 %v8592
        %8613 = vmatprep.subr.bf16.mxu0 0
        %8614 = vmatpush1.bf16.msra.mxu0 %v8593
        %8615 = vmatprep.subr.bf16.mxu0 0
        %8616 = vmatpush1.bf16.msra.mxu0 %v8594
        %8617 = vmatprep.subr.bf16.mxu0 0
        %8618 = vmatpush1.bf16.msra.mxu0 %v8595
        %8619 = vmatprep.subr.bf16.mxu0 0
        %8620 = vmatpush1.bf16.msra.mxu0 %v8596
        %8621 = vmatprep.subr.bf16.mxu0 0
        %8622 = vmatpush1.bf16.msra.mxu0 0
        %8623 = vmatprep.subr.bf16.mxu0 0
        %8624 = vmatpush1.bf16.msra.mxu0 0
        %8625 = vmatprep.subr.bf16.mxu0 0
        %8626 = vmatpush1.bf16.msra.mxu0 0
        %8627 = vmatprep.subr.bf16.mxu0 0
        %8628 = vmatpush1.bf16.msra.mxu0 0
        %8629 = vmatprep.subr.bf16.mxu0 0
        %8630 = vmatpush1.bf16.msra.mxu0 0
        %8631 = vmatprep.subr.bf16.mxu0 0
        %8632 = vmatpush1.bf16.msra.mxu0 0
        %8633 = vmatprep.subr.bf16.mxu0 0
        %8634 = vmatpush1.bf16.msra.mxu0 0
        %8635 = vmatprep.subr.bf16.mxu0 0
        %8636 = vmatpush1.bf16.msra.mxu0 0
        %8637 = vmatprep.mubr.bf16.mxu0 0
        %8638 = vmatmul.mubr.bf16.gmra.mrb[0].mxu0 %v8533
        %v8639 = vpop.f32.mrb[0].mxu0
        %v8640 = vadd.f32 0.0, %v8639
        %v8641 = vpop.f32.mrb[0].mxu0
        %v8642 = vpop.f32.mrb[0].mxu0
        %v8643 = vadd.f32 0.0, %v8642
        %v8644 = vpop.f32.mrb[0].mxu0
        %8645 = vmatprep.mubr.bf16.mxu0 0
        %8646 = vmatmul.mubr.bf16.gmra.mrb[0].mxu0 %v8534
        %v8647 = vpop.f32.mrb[0].mxu0
        %v8648 = vadd.f32 0.0, %v8647
        %v8649 = vpop.f32.mrb[0].mxu0
        %v8650 = vpop.f32.mrb[0].mxu0
        %v8651 = vadd.f32 0.0, %v8650
        %v8652 = vpop.f32.mrb[0].mxu0
        %8653 = vmatprep.mubr.bf16.mxu0 0
        %8654 = vmatmul.mubr.bf16.gmra.mrb[0].mxu0 %v8535
        %v8655 = vpop.f32.mrb[0].mxu0
        %v8656 = vadd.f32 0.0, %v8655
        %v8657 = vpop.f32.mrb[0].mxu0
        %v8658 = vpop.f32.mrb[0].mxu0
        %v8659 = vadd.f32 0.0, %v8658
        %v8660 = vpop.f32.mrb[0].mxu0
        %8661 = vmatprep.mubr.bf16.mxu0 0
        %8662 = vmatmul.mubr.bf16.gmra.mrb[0].mxu0 %v8536
        %v8663 = vpop.f32.mrb[0].mxu0
        %v8664 = vadd.f32 0.0, %v8663
        %v8665 = vpop.f32.mrb[0].mxu0
        %v8666 = vpop.f32.mrb[0].mxu0
        %v8667 = vadd.f32 0.0, %v8666
        %v8668 = vpop.f32.mrb[0].mxu0
        %8669 = vmatprep.mubr.bf16.mxu0 0
        %8670 = vmatmul.mubr.bf16.gmra.mrb[0].mxu0 %v8537
        %v8671 = vpop.f32.mrb[0].mxu0
        %v8672 = vadd.f32 0.0, %v8671
        %v8673 = vpop.f32.mrb[0].mxu0
        %v8674 = vpop.f32.mrb[0].mxu0
        %v8675 = vadd.f32 0.0, %v8674
        %v8676 = vpop.f32.mrb[0].mxu0
        %8677 = vmatprep.mubr.bf16.mxu0 0
        %8678 = vmatmul.mubr.bf16.gmra.mrb[0].mxu0 %v8538
        %v8679 = vpop.f32.mrb[0].mxu0
        %v8680 = vadd.f32 0.0, %v8679
        %v8681 = vpop.f32.mrb[0].mxu0
        %v8682 = vpop.f32.mrb[0].mxu0
        %v8683 = vadd.f32 0.0, %v8682
        %v8684 = vpop.f32.mrb[0].mxu0
        %8685 = vmatprep.mubr.bf16.mxu0 0
        %8686 = vmatmul.mubr.bf16.gmra.mrb[0].mxu0 %v8539
        %v8687 = vpop.f32.mrb[0].mxu0
        %v8688 = vadd.f32 0.0, %v8687
        %v8689 = vpop.f32.mrb[0].mxu0
        %v8690 = vpop.f32.mrb[0].mxu0
        %v8691 = vadd.f32 0.0, %v8690
        %v8692 = vpop.f32.mrb[0].mxu0
        %8693 = vmatprep.mubr.bf16.mxu0 0
        %8694 = vmatmul.mubr.bf16.gmra.mrb[0].mxu0 %v8540
        %v8695 = vpop.f32.mrb[0].mxu0
        %v8696 = vadd.f32 0.0, %v8695
        %v8697 = vpop.f32.mrb[0].mxu0
        %v8698 = vpop.f32.mrb[0].mxu0
        %v8699 = vadd.f32 0.0, %v8698
        %v8700 = vpop.f32.mrb[0].mxu0
        %8701 = vmatprep.mubr.bf16.mxu0 0
        %8702 = vmatmul.mubr.bf16.gmra.mrb[0].mxu0 %v8541
        %v8703 = vpop.f32.mrb[0].mxu0
        %v8704 = vadd.f32 0.0, %v8703
        %v8705 = vpop.f32.mrb[0].mxu0
        %v8706 = vpop.f32.mrb[0].mxu0
        %v8707 = vadd.f32 0.0, %v8706
        %v8708 = vpop.f32.mrb[0].mxu0
        %8709 = vmatprep.mubr.bf16.mxu0 0
        %8710 = vmatmul.mubr.bf16.gmra.mrb[0].mxu0 %v8542
        %v8711 = vpop.f32.mrb[0].mxu0
        %v8712 = vadd.f32 0.0, %v8711
        %v8713 = vpop.f32.mrb[0].mxu0
        %v8714 = vpop.f32.mrb[0].mxu0
        %v8715 = vadd.f32 0.0, %v8714
        %v8716 = vpop.f32.mrb[0].mxu0
        %8717 = vmatprep.mubr.bf16.mxu0 0
        %8718 = vmatmul.mubr.bf16.gmra.mrb[0].mxu0 %v8543
        %v8719 = vpop.f32.mrb[0].mxu0
        %v8720 = vadd.f32 0.0, %v8719
        %v8721 = vpop.f32.mrb[0].mxu0
        %v8722 = vpop.f32.mrb[0].mxu0
        %v8723 = vadd.f32 0.0, %v8722
        %v8724 = vpop.f32.mrb[0].mxu0
        %8725 = vmatprep.mubr.bf16.mxu0 0
        %8726 = vmatmul.mubr.bf16.gmra.mrb[0].mxu0 %v8544
        %v8727 = vpop.f32.mrb[0].mxu0
        %v8728 = vadd.f32 0.0, %v8727
        %v8729 = vpop.f32.mrb[0].mxu0
        %v8730 = vpop.f32.mrb[0].mxu0
        %v8731 = vadd.f32 0.0, %v8730
        %v8732 = vpop.f32.mrb[0].mxu0
        %8733 = vmatprep.mubr.bf16.mxu0 0
        %8734 = vmatmul.mubr.bf16.gmra.mrb[0].mxu0 %v8545
        %v8735 = vpop.f32.mrb[0].mxu0
        %v8736 = vadd.f32 0.0, %v8735
        %v8737 = vpop.f32.mrb[0].mxu0
        %v8738 = vpop.f32.mrb[0].mxu0
        %v8739 = vadd.f32 0.0, %v8738
        %v8740 = vpop.f32.mrb[0].mxu0
        %8741 = vmatprep.mubr.bf16.mxu0 0
        %8742 = vmatmul.mubr.bf16.gmra.mrb[0].mxu0 %v8546
        %v8743 = vpop.f32.mrb[0].mxu0
        %v8744 = vadd.f32 0.0, %v8743
        %v8745 = vpop.f32.mrb[0].mxu0
        %v8746 = vpop.f32.mrb[0].mxu0
        %v8747 = vadd.f32 0.0, %v8746
        %v8748 = vpop.f32.mrb[0].mxu0
        %8749 = vmatprep.mubr.bf16.mxu0 0
        %8750 = vmatmul.mubr.bf16.gmra.mrb[0].mxu0 %v8547
        %v8751 = vpop.f32.mrb[0].mxu0
        %v8752 = vadd.f32 0.0, %v8751
        %v8753 = vpop.f32.mrb[0].mxu0
        %v8754 = vpop.f32.mrb[0].mxu0
        %v8755 = vadd.f32 0.0, %v8754
        %v8756 = vpop.f32.mrb[0].mxu0
        %8757 = vmatprep.mubr.bf16.mxu0 0
        %8758 = vmatmul.mubr.bf16.gmra.mrb[0].mxu0 %v8548
        %v8759 = vpop.f32.mrb[0].mxu0
        %v8760 = vadd.f32 0.0, %v8759
        %v8761 = vpop.f32.mrb[0].mxu0
        %v8762 = vpop.f32.mrb[0].mxu0
        %v8763 = vadd.f32 0.0, %v8762
        %v8764 = vpop.f32.mrb[0].mxu0
        %8765 = vmatprep.mubr.bf16.mxu0 0
        %8766 = vmatmul.mubr.bf16.gmra.mrb[0].mxu0 %v8549
        %v8767 = vpop.f32.mrb[0].mxu0
        %v8768 = vadd.f32 0.0, %v8767
        %v8769 = vpop.f32.mrb[0].mxu0
        %v8770 = vpop.f32.mrb[0].mxu0
        %v8771 = vadd.f32 0.0, %v8770
        %v8772 = vpop.f32.mrb[0].mxu0
        %8773 = vmatprep.mubr.bf16.mxu0 0
        %8774 = vmatmul.mubr.bf16.gmra.mrb[0].mxu0 %v8550
        %v8775 = vpop.f32.mrb[0].mxu0
        %v8776 = vadd.f32 0.0, %v8775
        %v8777 = vpop.f32.mrb[0].mxu0
        %v8778 = vpop.f32.mrb[0].mxu0
        %v8779 = vadd.f32 0.0, %v8778
        %v8780 = vpop.f32.mrb[0].mxu0
        %8781 = vmatprep.mubr.bf16.mxu0 0
        %8782 = vmatmul.mubr.bf16.gmra.mrb[0].mxu0 %v8551
        %v8783 = vpop.f32.mrb[0].mxu0
        %v8784 = vadd.f32 0.0, %v8783
        %v8785 = vpop.f32.mrb[0].mxu0
        %v8786 = vpop.f32.mrb[0].mxu0
        %v8787 = vadd.f32 0.0, %v8786
        %v8788 = vpop.f32.mrb[0].mxu0
        %8789 = vmatprep.mubr.bf16.mxu0 0
        %8790 = vmatmul.mubr.bf16.gmra.mrb[0].mxu0 %v8552
        %v8791 = vpop.f32.mrb[0].mxu0
        %v8792 = vadd.f32 0.0, %v8791
        %v8793 = vpop.f32.mrb[0].mxu0
        %v8794 = vpop.f32.mrb[0].mxu0
        %v8795 = vadd.f32 0.0, %v8794
        %v8796 = vpop.f32.mrb[0].mxu0
        %8797 = vmatprep.mubr.bf16.mxu0 0
        %8798 = vmatmul.mubr.bf16.gmra.mrb[0].mxu0 %v8553
        %v8799 = vpop.f32.mrb[0].mxu0
        %v8800 = vadd.f32 0.0, %v8799
        %v8801 = vpop.f32.mrb[0].mxu0
        %v8802 = vpop.f32.mrb[0].mxu0
        %v8803 = vadd.f32 0.0, %v8802
        %v8804 = vpop.f32.mrb[0].mxu0
        %8805 = vmatprep.mubr.bf16.mxu0 0
        %8806 = vmatmul.mubr.bf16.gmra.mrb[0].mxu0 %v8554
        %v8807 = vpop.f32.mrb[0].mxu0
        %v8808 = vadd.f32 0.0, %v8807
        %v8809 = vpop.f32.mrb[0].mxu0
        %v8810 = vpop.f32.mrb[0].mxu0
        %v8811 = vadd.f32 0.0, %v8810
        %v8812 = vpop.f32.mrb[0].mxu0
        %8813 = vmatprep.mubr.bf16.mxu0 0
        %8814 = vmatmul.mubr.bf16.gmra.mrb[0].mxu0 %v8555
        %v8815 = vpop.f32.mrb[0].mxu0
        %v8816 = vadd.f32 0.0, %v8815
        %v8817 = vpop.f32.mrb[0].mxu0
        %v8818 = vpop.f32.mrb[0].mxu0
        %v8819 = vadd.f32 0.0, %v8818
        %v8820 = vpop.f32.mrb[0].mxu0
        %8821 = vmatprep.mubr.bf16.mxu0 0
        %8822 = vmatmul.mubr.bf16.gmra.mrb[0].mxu0 %v8556
        %v8823 = vpop.f32.mrb[0].mxu0
        %v8824 = vadd.f32 0.0, %v8823
        %v8825 = vpop.f32.mrb[0].mxu0
        %v8826 = vpop.f32.mrb[0].mxu0
        %v8827 = vadd.f32 0.0, %v8826
        %v8828 = vpop.f32.mrb[0].mxu0
        %8829 = vdwg.mxu0
        %v8830 = vadd.f32 %v8075, %v8640
        %v8831 = vadd.f32 %v8076, %v8643
        %v8832 = vadd.f32 %v8077, %v8648
        %v8833 = vadd.f32 %v8078, %v8651
        %v8834 = vadd.f32 %v8079, %v8656
        %v8835 = vadd.f32 %v8080, %v8659
        %v8836 = vadd.f32 %v8081, %v8664
        %v8837 = vadd.f32 %v8082, %v8667
        %v8838 = vadd.f32 %v8083, %v8672
        %v8839 = vadd.f32 %v8084, %v8675
        %v8840 = vadd.f32 %v8085, %v8680
        %v8841 = vadd.f32 %v8086, %v8683
        %v8842 = vadd.f32 %v8087, %v8688
        %v8843 = vadd.f32 %v8088, %v8691
        %v8844 = vadd.f32 %v8089, %v8696
        %v8845 = vadd.f32 %v8090, %v8699
        %v8846 = vadd.f32 %v8091, %v8704
        %v8847 = vadd.f32 %v8092, %v8707
        %v8848 = vadd.f32 %v8093, %v8712
        %v8849 = vadd.f32 %v8094, %v8715
        %v8850 = vadd.f32 %v8095, %v8720
        %v8851 = vadd.f32 %v8096, %v8723
        %v8852 = vadd.f32 %v8097, %v8728
        %v8853 = vadd.f32 %v8098, %v8731
        %v8854 = vadd.f32 %v8099, %v8736
        %v8855 = vadd.f32 %v8100, %v8739
        %v8856 = vadd.f32 %v8101, %v8744
        %v8857 = vadd.f32 %v8102, %v8747
        %v8858 = vadd.f32 %v8103, %v8752
        %v8859 = vadd.f32 %v8104, %v8755
        %v8860 = vadd.f32 %v8105, %v8760
        %v8861 = vadd.f32 %v8106, %v8763
        %v8862 = vadd.f32 %v8107, %v8768
        %v8863 = vadd.f32 %v8108, %v8771
        %v8864 = vadd.f32 %v8109, %v8776
        %v8865 = vadd.f32 %v8110, %v8779
        %v8866 = vadd.f32 %v8111, %v8784
        %v8867 = vadd.f32 %v8112, %v8787
        %v8868 = vadd.f32 %v8113, %v8792
        %v8869 = vadd.f32 %v8114, %v8795
        %v8870 = vadd.f32 %v8115, %v8800
        %v8871 = vadd.f32 %v8116, %v8803
        %v8872 = vadd.f32 %v8117, %v8808
        %v8873 = vadd.f32 %v8118, %v8811
        %v8874 = vadd.f32 %v8119, %v8816
        %v8875 = vadd.f32 %v8120, %v8819
        %v8876 = vadd.f32 %v8121, %v8824
        %v8877 = vadd.f32 %v8122, %v8827
        %v8878 = vld [vmem:[%s3267 + $0x38] sm:$0xff]
        %v8879 = vld [vmem:[%s3267 + $0x40] sm:$0xff]
        %v8880 = vld [vmem:[%s3267 + $0x48] sm:$0xff]
        %v8881 = vld [vmem:[%s3267 + $0x50] sm:$0xff]
        %v8882 = vld [vmem:[%s3267 + $0x58] sm:$0xff]
        %v8883 = vld [vmem:[%s3267 + $0x60] sm:$0xff]
        %v8884 = vld [vmem:[%s3267 + $0x68] sm:$0xff]
        %v8885 = vld [vmem:[%s3267 + $0x70] sm:$0xff]
        %v8886 = vld [vmem:[%s3267 + $0x78] sm:$0xff]
        %v8887 = vld [vmem:[%s3267 + $0x80] sm:$0xff]
        %v8888 = vld [vmem:[%s3267 + $0x88] sm:$0xff]
        %v8889 = vld [vmem:[%s3267 + $0x90] sm:$0xff]
        %v8890 = vld [vmem:[%s3267 + $0x98] sm:$0xff]
        %v8891 = vld [vmem:[%s3267 + $0xa0] sm:$0xff]
        %v8892 = vld [vmem:[%s3267 + $0xa8] sm:$0xff]
        %v8893 = vld [vmem:[%s3267 + $0xb0] sm:$0xff]
        %v8894 = vld [vmem:[%s3267 + $0xb8] sm:$0xff]
        %v8895 = vld [vmem:[%s3267 + $0xc0] sm:$0xff]
        %v8896 = vld [vmem:[%s3267 + $0xc8] sm:$0xff]
        %v8897 = vld [vmem:[%s3267 + $0xd0] sm:$0xff]
        %v8898 = vld [vmem:[%s3267 + $0xd8] sm:$0xff]
        %v8899 = vld [vmem:[%s3267 + $0xe0] sm:$0xff]
        %v8900 = vld [vmem:[%s3267 + $0xe8] sm:$0xff]
        %v8901 = vld [vmem:[%s3267 + $0xf0] sm:$0xff]
        %v8902 = vld [vmem:[%s3267 + $0xf8] sm:$0xff]
        %v8903 = vld [vmem:[%s3267 + $0x100] sm:$0xff]
        %v8904 = vld [vmem:[%s3267 + $0x108] sm:$0xff]
        %v8905 = vld [vmem:[%s3267 + $0x110] sm:$0xff]
        %v8906 = vld [vmem:[%s3267 + $0x118] sm:$0xff]
        %v8907 = vld [vmem:[%s3267 + $0x120] sm:$0xff]
        %v8908 = vld [vmem:[%s3267 + $0x128] sm:$0xff]
        %v8909 = vld [vmem:[%s3267 + $0x130] sm:$0xff]
        %v8910 = vld [vmem:[%s3267 + $0x138] sm:$0xff]
        %v8911 = vld [vmem:[%s3267 + $0x140] sm:$0xff]
        %v8912 = vld [vmem:[%s3267 + $0x148] sm:$0xff]
        %v8913 = vld [vmem:[%s3267 + $0x150] sm:$0xff]
        %v8914 = vld [vmem:[%s3267 + $0x158] sm:$0xff]
        %v8915 = vld [vmem:[%s3267 + $0x160] sm:$0xff]
        %v8916 = vld [vmem:[%s3267 + $0x168] sm:$0xff]
        %v8917 = vld [vmem:[%s3267 + $0x170] sm:$0xff]
        %v8918 = vld [vmem:[%s3267 + $0x178] sm:$0xff]
        %v8919 = vld [vmem:[%s3267 + $0x180] sm:$0xff]
        %v8920 = vld [vmem:[%s3267 + $0x188] sm:$0xff]
        %v8921 = vld [vmem:[%s3267 + $0x190] sm:$0xff]
        %v8922 = vld [vmem:[%s3267 + $0x198] sm:$0xff]
        %v8923 = vld [vmem:[%s3267 + $0x1a0] sm:$0xff]
        %v8924 = vld [vmem:[%s3267 + $0x1a8] sm:$0xff]
        %v8925 = vld [vmem:[%s3267 + $0x1b0] sm:$0xff]
        %v8926 = vpack.c.bf16 %v8879, %v8878
        %v8927 = vpack.c.bf16 %v8881, %v8880
        %v8928 = vpack.c.bf16 %v8883, %v8882
        %v8929 = vpack.c.bf16 %v8885, %v8884
        %v8930 = vpack.c.bf16 %v8887, %v8886
        %v8931 = vpack.c.bf16 %v8889, %v8888
        %v8932 = vpack.c.bf16 %v8891, %v8890
        %v8933 = vpack.c.bf16 %v8893, %v8892
        %v8934 = vpack.c.bf16 %v8895, %v8894
        %v8935 = vpack.c.bf16 %v8897, %v8896
        %v8936 = vpack.c.bf16 %v8899, %v8898
        %v8937 = vpack.c.bf16 %v8901, %v8900
        %v8938 = vpack.c.bf16 %v8903, %v8902
        %v8939 = vpack.c.bf16 %v8905, %v8904
        %v8940 = vpack.c.bf16 %v8907, %v8906
        %v8941 = vpack.c.bf16 %v8909, %v8908
        %v8942 = vpack.c.bf16 %v8911, %v8910
        %v8943 = vpack.c.bf16 %v8913, %v8912
        %v8944 = vpack.c.bf16 %v8915, %v8914
        %v8945 = vpack.c.bf16 %v8917, %v8916
        %v8946 = vpack.c.bf16 %v8919, %v8918
        %v8947 = vpack.c.bf16 %v8921, %v8920
        %v8948 = vpack.c.bf16 %v8923, %v8922
        %v8949 = vpack.c.bf16 %v8925, %v8924
        %8950 = vmatprep.subr.bf16.mxu0 0
        %8951 = vmatpush1.bf16.msra.mxu0 %v8589
        %8952 = vmatprep.subr.bf16.mxu0 0
        %8953 = vmatpush1.bf16.msra.mxu0 %v8590
        %8954 = vmatprep.subr.bf16.mxu0 0
        %8955 = vmatpush1.bf16.msra.mxu0 %v8591
        %8956 = vmatprep.subr.bf16.mxu0 0
        %8957 = vmatpush1.bf16.msra.mxu0 %v8592
        %8958 = vmatprep.subr.bf16.mxu0 0
        %8959 = vmatpush1.bf16.msra.mxu0 %v8593
        %8960 = vmatprep.subr.bf16.mxu0 0
        %8961 = vmatpush1.bf16.msra.mxu0 %v8594
        %8962 = vmatprep.subr.bf16.mxu0 0
        %8963 = vmatpush1.bf16.msra.mxu0 %v8595
        %8964 = vmatprep.subr.bf16.mxu0 0
        %8965 = vmatpush1.bf16.msra.mxu0 %v8596
        %8966 = vmatprep.subr.bf16.mxu0 0
        %8967 = vmatpush1.bf16.msra.mxu0 0
        %8968 = vmatprep.subr.bf16.mxu0 0
        %8969 = vmatpush1.bf16.msra.mxu0 0
        %8970 = vmatprep.subr.bf16.mxu0 0
        %8971 = vmatpush1.bf16.msra.mxu0 0
        %8972 = vmatprep.subr.bf16.mxu0 0
        %8973 = vmatpush1.bf16.msra.mxu0 0
        %8974 = vmatprep.subr.bf16.mxu0 0
        %8975 = vmatpush1.bf16.msra.mxu0 0
        %8976 = vmatprep.subr.bf16.mxu0 0
        %8977 = vmatpush1.bf16.msra.mxu0 0
        %8978 = vmatprep.subr.bf16.mxu0 0
        %8979 = vmatpush1.bf16.msra.mxu0 0
        %8980 = vmatprep.subr.bf16.mxu0 0
        %8981 = vmatpush1.bf16.msra.mxu0 0
        %8982 = vmatprep.mubr.bf16.mxu0 0
        %8983 = vmatmul.mubr.bf16.gmra.mrb[0].mxu0 %v8926
        %v8984 = vpop.f32.mrb[0].mxu0
        %v8985 = vadd.f32 0.0, %v8984
        %v8986 = vpop.f32.mrb[0].mxu0
        %v8987 = vpop.f32.mrb[0].mxu0
        %v8988 = vadd.f32 0.0, %v8987
        %v8989 = vpop.f32.mrb[0].mxu0
        %8990 = vmatprep.mubr.bf16.mxu0 0
        %8991 = vmatmul.mubr.bf16.gmra.mrb[0].mxu0 %v8927
        %v8992 = vpop.f32.mrb[0].mxu0
        %v8993 = vadd.f32 0.0, %v8992
        %v8994 = vpop.f32.mrb[0].mxu0
        %v8995 = vpop.f32.mrb[0].mxu0
        %v8996 = vadd.f32 0.0, %v8995
        %v8997 = vpop.f32.mrb[0].mxu0
        %8998 = vmatprep.mubr.bf16.mxu0 0
        %8999 = vmatmul.mubr.bf16.gmra.mrb[0].mxu0 %v8928
        %v9000 = vpop.f32.mrb[0].mxu0
        %v9001 = vadd.f32 0.0, %v9000
        %v9002 = vpop.f32.mrb[0].mxu0
        %v9003 = vpop.f32.mrb[0].mxu0
        %v9004 = vadd.f32 0.0, %v9003
        %v9005 = vpop.f32.mrb[0].mxu0
        %9006 = vmatprep.mubr.bf16.mxu0 0
        %9007 = vmatmul.mubr.bf16.gmra.mrb[0].mxu0 %v8929
        %v9008 = vpop.f32.mrb[0].mxu0
        %v9009 = vadd.f32 0.0, %v9008
        %v9010 = vpop.f32.mrb[0].mxu0
        %v9011 = vpop.f32.mrb[0].mxu0
        %v9012 = vadd.f32 0.0, %v9011
        %v9013 = vpop.f32.mrb[0].mxu0
        %9014 = vmatprep.mubr.bf16.mxu0 0
        %9015 = vmatmul.mubr.bf16.gmra.mrb[0].mxu0 %v8930
        %v9016 = vpop.f32.mrb[0].mxu0
        %v9017 = vadd.f32 0.0, %v9016
        %v9018 = vpop.f32.mrb[0].mxu0
        %v9019 = vpop.f32.mrb[0].mxu0
        %v9020 = vadd.f32 0.0, %v9019
        %v9021 = vpop.f32.mrb[0].mxu0
        %9022 = vmatprep.mubr.bf16.mxu0 0
        %9023 = vmatmul.mubr.bf16.gmra.mrb[0].mxu0 %v8931
        %v9024 = vpop.f32.mrb[0].mxu0
        %v9025 = vadd.f32 0.0, %v9024
        %v9026 = vpop.f32.mrb[0].mxu0
        %v9027 = vpop.f32.mrb[0].mxu0
        %v9028 = vadd.f32 0.0, %v9027
        %v9029 = vpop.f32.mrb[0].mxu0
        %9030 = vmatprep.mubr.bf16.mxu0 0
        %9031 = vmatmul.mubr.bf16.gmra.mrb[0].mxu0 %v8932
        %v9032 = vpop.f32.mrb[0].mxu0
        %v9033 = vadd.f32 0.0, %v9032
        %v9034 = vpop.f32.mrb[0].mxu0
        %v9035 = vpop.f32.mrb[0].mxu0
        %v9036 = vadd.f32 0.0, %v9035
        %v9037 = vpop.f32.mrb[0].mxu0
        %9038 = vmatprep.mubr.bf16.mxu0 0
        %9039 = vmatmul.mubr.bf16.gmra.mrb[0].mxu0 %v8933
        %v9040 = vpop.f32.mrb[0].mxu0
        %v9041 = vadd.f32 0.0, %v9040
        %v9042 = vpop.f32.mrb[0].mxu0
        %v9043 = vpop.f32.mrb[0].mxu0
        %v9044 = vadd.f32 0.0, %v9043
        %v9045 = vpop.f32.mrb[0].mxu0
        %9046 = vmatprep.mubr.bf16.mxu0 0
        %9047 = vmatmul.mubr.bf16.gmra.mrb[0].mxu0 %v8934
        %v9048 = vpop.f32.mrb[0].mxu0
        %v9049 = vadd.f32 0.0, %v9048
        %v9050 = vpop.f32.mrb[0].mxu0
        %v9051 = vpop.f32.mrb[0].mxu0
        %v9052 = vadd.f32 0.0, %v9051
        %v9053 = vpop.f32.mrb[0].mxu0
        %9054 = vmatprep.mubr.bf16.mxu0 0
        %9055 = vmatmul.mubr.bf16.gmra.mrb[0].mxu0 %v8935
        %v9056 = vpop.f32.mrb[0].mxu0
        %v9057 = vadd.f32 0.0, %v9056
        %v9058 = vpop.f32.mrb[0].mxu0
        %v9059 = vpop.f32.mrb[0].mxu0
        %v9060 = vadd.f32 0.0, %v9059
        %v9061 = vpop.f32.mrb[0].mxu0
        %9062 = vmatprep.mubr.bf16.mxu0 0
        %9063 = vmatmul.mubr.bf16.gmra.mrb[0].mxu0 %v8936
        %v9064 = vpop.f32.mrb[0].mxu0
        %v9065 = vadd.f32 0.0, %v9064
        %v9066 = vpop.f32.mrb[0].mxu0
        %v9067 = vpop.f32.mrb[0].mxu0
        %v9068 = vadd.f32 0.0, %v9067
        %v9069 = vpop.f32.mrb[0].mxu0
        %9070 = vmatprep.mubr.bf16.mxu0 0
        %9071 = vmatmul.mubr.bf16.gmra.mrb[0].mxu0 %v8937
        %v9072 = vpop.f32.mrb[0].mxu0
        %v9073 = vadd.f32 0.0, %v9072
        %v9074 = vpop.f32.mrb[0].mxu0
        %v9075 = vpop.f32.mrb[0].mxu0
        %v9076 = vadd.f32 0.0, %v9075
        %v9077 = vpop.f32.mrb[0].mxu0
        %9078 = vmatprep.mubr.bf16.mxu0 0
        %9079 = vmatmul.mubr.bf16.gmra.mrb[0].mxu0 %v8938
        %v9080 = vpop.f32.mrb[0].mxu0
        %v9081 = vadd.f32 0.0, %v9080
        %v9082 = vpop.f32.mrb[0].mxu0
        %v9083 = vpop.f32.mrb[0].mxu0
        %v9084 = vadd.f32 0.0, %v9083
        %v9085 = vpop.f32.mrb[0].mxu0
        %9086 = vmatprep.mubr.bf16.mxu0 0
        %9087 = vmatmul.mubr.bf16.gmra.mrb[0].mxu0 %v8939
        %v9088 = vpop.f32.mrb[0].mxu0
        %v9089 = vadd.f32 0.0, %v9088
        %v9090 = vpop.f32.mrb[0].mxu0
        %v9091 = vpop.f32.mrb[0].mxu0
        %v9092 = vadd.f32 0.0, %v9091
        %v9093 = vpop.f32.mrb[0].mxu0
        %9094 = vmatprep.mubr.bf16.mxu0 0
        %9095 = vmatmul.mubr.bf16.gmra.mrb[0].mxu0 %v8940
        %v9096 = vpop.f32.mrb[0].mxu0
        %v9097 = vadd.f32 0.0, %v9096
        %v9098 = vpop.f32.mrb[0].mxu0
        %v9099 = vpop.f32.mrb[0].mxu0
        %v9100 = vadd.f32 0.0, %v9099
        %v9101 = vpop.f32.mrb[0].mxu0
        %9102 = vmatprep.mubr.bf16.mxu0 0
        %9103 = vmatmul.mubr.bf16.gmra.mrb[0].mxu0 %v8941
        %v9104 = vpop.f32.mrb[0].mxu0
        %v9105 = vadd.f32 0.0, %v9104
        %v9106 = vpop.f32.mrb[0].mxu0
        %v9107 = vpop.f32.mrb[0].mxu0
        %v9108 = vadd.f32 0.0, %v9107
        %v9109 = vpop.f32.mrb[0].mxu0
        %9110 = vmatprep.mubr.bf16.mxu0 0
        %9111 = vmatmul.mubr.bf16.gmra.mrb[0].mxu0 %v8942
        %v9112 = vpop.f32.mrb[0].mxu0
        %v9113 = vadd.f32 0.0, %v9112
        %v9114 = vpop.f32.mrb[0].mxu0
        %v9115 = vpop.f32.mrb[0].mxu0
        %v9116 = vadd.f32 0.0, %v9115
        %v9117 = vpop.f32.mrb[0].mxu0
        %9118 = vmatprep.mubr.bf16.mxu0 0
        %9119 = vmatmul.mubr.bf16.gmra.mrb[0].mxu0 %v8943
        %v9120 = vpop.f32.mrb[0].mxu0
        %v9121 = vadd.f32 0.0, %v9120
        %v9122 = vpop.f32.mrb[0].mxu0
        %v9123 = vpop.f32.mrb[0].mxu0
        %v9124 = vadd.f32 0.0, %v9123
        %v9125 = vpop.f32.mrb[0].mxu0
        %9126 = vmatprep.mubr.bf16.mxu0 0
        %9127 = vmatmul.mubr.bf16.gmra.mrb[0].mxu0 %v8944
        %v9128 = vpop.f32.mrb[0].mxu0
        %v9129 = vadd.f32 0.0, %v9128
        %v9130 = vpop.f32.mrb[0].mxu0
        %v9131 = vpop.f32.mrb[0].mxu0
        %v9132 = vadd.f32 0.0, %v9131
        %v9133 = vpop.f32.mrb[0].mxu0
        %9134 = vmatprep.mubr.bf16.mxu0 0
        %9135 = vmatmul.mubr.bf16.gmra.mrb[0].mxu0 %v8945
        %v9136 = vpop.f32.mrb[0].mxu0
        %v9137 = vadd.f32 0.0, %v9136
        %v9138 = vpop.f32.mrb[0].mxu0
        %v9139 = vpop.f32.mrb[0].mxu0
        %v9140 = vadd.f32 0.0, %v9139
        %v9141 = vpop.f32.mrb[0].mxu0
        %9142 = vmatprep.mubr.bf16.mxu0 0
        %9143 = vmatmul.mubr.bf16.gmra.mrb[0].mxu0 %v8946
        %v9144 = vpop.f32.mrb[0].mxu0
        %v9145 = vadd.f32 0.0, %v9144
        %v9146 = vpop.f32.mrb[0].mxu0
        %v9147 = vpop.f32.mrb[0].mxu0
        %v9148 = vadd.f32 0.0, %v9147
        %v9149 = vpop.f32.mrb[0].mxu0
        %9150 = vmatprep.mubr.bf16.mxu0 0
        %9151 = vmatmul.mubr.bf16.gmra.mrb[0].mxu0 %v8947
        %v9152 = vpop.f32.mrb[0].mxu0
        %v9153 = vadd.f32 0.0, %v9152
        %v9154 = vpop.f32.mrb[0].mxu0
        %v9155 = vpop.f32.mrb[0].mxu0
        %v9156 = vadd.f32 0.0, %v9155
        %v9157 = vpop.f32.mrb[0].mxu0
        %9158 = vmatprep.mubr.bf16.mxu0 0
        %9159 = vmatmul.mubr.bf16.gmra.mrb[0].mxu0 %v8948
        %v9160 = vpop.f32.mrb[0].mxu0
        %v9161 = vadd.f32 0.0, %v9160
        %v9162 = vpop.f32.mrb[0].mxu0
        %v9163 = vpop.f32.mrb[0].mxu0
        %v9164 = vadd.f32 0.0, %v9163
        %v9165 = vpop.f32.mrb[0].mxu0
        %9166 = vmatprep.mubr.bf16.mxu0 0
        %9167 = vmatmul.mubr.bf16.gmra.mrb[0].mxu0 %v8949
        %v9168 = vpop.f32.mrb[0].mxu0
        %v9169 = vadd.f32 0.0, %v9168
        %v9170 = vpop.f32.mrb[0].mxu0
        %v9171 = vpop.f32.mrb[0].mxu0
        %v9172 = vadd.f32 0.0, %v9171
        %v9173 = vpop.f32.mrb[0].mxu0
        %9174 = vdwg.mxu0
        %v9175 = vadd.f32 %v8420, %v8985
        %v9176 = vadd.f32 %v8421, %v8988
        %v9177 = vadd.f32 %v8422, %v8993
        %v9178 = vadd.f32 %v8423, %v8996
        %v9179 = vadd.f32 %v8424, %v9001
        %v9180 = vadd.f32 %v8425, %v9004
        %v9181 = vadd.f32 %v8426, %v9009
        %v9182 = vadd.f32 %v8427, %v9012
        %v9183 = vadd.f32 %v8428, %v9017
        %v9184 = vadd.f32 %v8429, %v9020
        %v9185 = vadd.f32 %v8430, %v9025
        %v9186 = vadd.f32 %v8431, %v9028
        %v9187 = vadd.f32 %v8432, %v9033
        %v9188 = vadd.f32 %v8433, %v9036
        %v9189 = vadd.f32 %v8434, %v9041
        %v9190 = vadd.f32 %v8435, %v9044
        %v9191 = vadd.f32 %v8436, %v9049
        %v9192 = vadd.f32 %v8437, %v9052
        %v9193 = vadd.f32 %v8438, %v9057
        %v9194 = vadd.f32 %v8439, %v9060
        %v9195 = vadd.f32 %v8440, %v9065
        %v9196 = vadd.f32 %v8441, %v9068
        %v9197 = vadd.f32 %v8442, %v9073
        %v9198 = vadd.f32 %v8443, %v9076
        %v9199 = vadd.f32 %v8444, %v9081
        %v9200 = vadd.f32 %v8445, %v9084
        %v9201 = vadd.f32 %v8446, %v9089
        %v9202 = vadd.f32 %v8447, %v9092
        %v9203 = vadd.f32 %v8448, %v9097
        %v9204 = vadd.f32 %v8449, %v9100
        %v9205 = vadd.f32 %v8450, %v9105
        %v9206 = vadd.f32 %v8451, %v9108
        %v9207 = vadd.f32 %v8452, %v9113
        %v9208 = vadd.f32 %v8453, %v9116
        %v9209 = vadd.f32 %v8454, %v9121
        %v9210 = vadd.f32 %v8455, %v9124
        %v9211 = vadd.f32 %v8456, %v9129
        %v9212 = vadd.f32 %v8457, %v9132
        %v9213 = vadd.f32 %v8458, %v9137
        %v9214 = vadd.f32 %v8459, %v9140
        %v9215 = vadd.f32 %v8460, %v9145
        %v9216 = vadd.f32 %v8461, %v9148
        %v9217 = vadd.f32 %v8462, %v9153
        %v9218 = vadd.f32 %v8463, %v9156
        %v9219 = vadd.f32 %v8464, %v9161
        %v9220 = vadd.f32 %v8465, %v9164
        %v9221 = vadd.f32 %v8466, %v9169
        %v9222 = vadd.f32 %v8467, %v9172
        %s9223 = scalar_lea.vmem %s3, 512
        %v9224 = vld [vmem:[%s9223] sm:$0xf]
        %v9225 = vld [vmem:[%s9223 + $0x4] sm:$0xf]
        %v9226 = vld [vmem:[%s9223 + $0x8] sm:$0xf]
        %v9227 = vld [vmem:[%s9223 + $0xc] sm:$0xf]
        %v9228 = vld [vmem:[%s9223 + $0x10] sm:$0xf]
        %v9229 = vld [vmem:[%s9223 + $0x14] sm:$0xf]
        %v9230 = vld [vmem:[%s9223 + $0x18] sm:$0xf]
        %v9231 = vld [vmem:[%s9223 + $0x1c] sm:$0xf]
        %v9232 = vld [vmem:[%s9223 + $0x20] sm:$0xf]
        %v9233 = vld [vmem:[%s9223 + $0x24] sm:$0xf]
        %v9234 = vld [vmem:[%s9223 + $0x28] sm:$0xf]
        %v9235 = vld [vmem:[%s9223 + $0x2c] sm:$0xf]
        %v9236 = vld [vmem:[%s9223 + $0x30] sm:$0xf]
        %v9237 = vld [vmem:[%s9223 + $0x34] sm:$0xf]
        %v9238 = vld [vmem:[%s9223 + $0x38] sm:$0xf]
        %v9239 = vld [vmem:[%s9223 + $0x3c] sm:$0xf]
        %v9240 = vld [vmem:[#allocation2 + $0x39] sm:$0xff]
        %v9241 = vld [vmem:[#allocation2 + $0x41] sm:$0xff]
        %v9242 = vld [vmem:[#allocation2 + $0x49] sm:$0xff]
        %v9243 = vld [vmem:[#allocation2 + $0x51] sm:$0xff]
        %v9244 = vld [vmem:[#allocation2 + $0x59] sm:$0xff]
        %v9245 = vld [vmem:[#allocation2 + $0x61] sm:$0xff]
        %v9246 = vld [vmem:[#allocation2 + $0x69] sm:$0xff]
        %v9247 = vld [vmem:[#allocation2 + $0x71] sm:$0xff]
        %v9248 = vld [vmem:[#allocation2 + $0x79] sm:$0xff]
        %v9249 = vld [vmem:[#allocation2 + $0x81] sm:$0xff]
        %v9250 = vld [vmem:[#allocation2 + $0x89] sm:$0xff]
        %v9251 = vld [vmem:[#allocation2 + $0x91] sm:$0xff]
        %v9252 = vld [vmem:[#allocation2 + $0x99] sm:$0xff]
        %v9253 = vld [vmem:[#allocation2 + $0xa1] sm:$0xff]
        %v9254 = vld [vmem:[#allocation2 + $0xa9] sm:$0xff]
        %v9255 = vld [vmem:[#allocation2 + $0xb1] sm:$0xff]
        %v9256 = vld [vmem:[#allocation2 + $0xb9] sm:$0xff]
        %v9257 = vld [vmem:[#allocation2 + $0xc1] sm:$0xff]
        %v9258 = vld [vmem:[#allocation2 + $0xc9] sm:$0xff]
        %v9259 = vld [vmem:[#allocation2 + $0xd1] sm:$0xff]
        %v9260 = vld [vmem:[#allocation2 + $0xd9] sm:$0xff]
        %v9261 = vld [vmem:[#allocation2 + $0xe1] sm:$0xff]
        %v9262 = vld [vmem:[#allocation2 + $0xe9] sm:$0xff]
        %v9263 = vld [vmem:[#allocation2 + $0xf1] sm:$0xff]
        %v9264 = vld [vmem:[#allocation2 + $0xf9] sm:$0xff]
        %v9265 = vld [vmem:[#allocation2 + $0x101] sm:$0xff]
        %v9266 = vld [vmem:[#allocation2 + $0x109] sm:$0xff]
        %v9267 = vld [vmem:[#allocation2 + $0x111] sm:$0xff]
        %v9268 = vld [vmem:[#allocation2 + $0x119] sm:$0xff]
        %v9269 = vld [vmem:[#allocation2 + $0x121] sm:$0xff]
        %v9270 = vld [vmem:[#allocation2 + $0x129] sm:$0xff]
        %v9271 = vld [vmem:[#allocation2 + $0x131] sm:$0xff]
        %v9272 = vld [vmem:[#allocation2 + $0x139] sm:$0xff]
        %v9273 = vld [vmem:[#allocation2 + $0x141] sm:$0xff]
        %v9274 = vld [vmem:[#allocation2 + $0x149] sm:$0xff]
        %v9275 = vld [vmem:[#allocation2 + $0x151] sm:$0xff]
        %v9276 = vld [vmem:[#allocation2 + $0x159] sm:$0xff]
        %v9277 = vld [vmem:[#allocation2 + $0x161] sm:$0xff]
        %v9278 = vld [vmem:[#allocation2 + $0x169] sm:$0xff]
        %v9279 = vld [vmem:[#allocation2 + $0x171] sm:$0xff]
        %v9280 = vld [vmem:[#allocation2 + $0x179] sm:$0xff]
        %v9281 = vld [vmem:[#allocation2 + $0x181] sm:$0xff]
        %v9282 = vld [vmem:[#allocation2 + $0x189] sm:$0xff]
        %v9283 = vld [vmem:[#allocation2 + $0x191] sm:$0xff]
        %v9284 = vld [vmem:[#allocation2 + $0x199] sm:$0xff]
        %v9285 = vld [vmem:[#allocation2 + $0x1a1] sm:$0xff]
        %v9286 = vld [vmem:[#allocation2 + $0x1a9] sm:$0xff]
        %v9287 = vld [vmem:[#allocation2 + $0x1b1] sm:$0xff]
        %v9288 = vpack.c.bf16 %v9241, %v9240
        %v9289 = vpack.c.bf16 %v9243, %v9242
        %v9290 = vpack.c.bf16 %v9245, %v9244
        %v9291 = vpack.c.bf16 %v9247, %v9246
        %v9292 = vpack.c.bf16 %v9249, %v9248
        %v9293 = vpack.c.bf16 %v9251, %v9250
        %v9294 = vpack.c.bf16 %v9253, %v9252
        %v9295 = vpack.c.bf16 %v9255, %v9254
        %v9296 = vpack.c.bf16 %v9257, %v9256
        %v9297 = vpack.c.bf16 %v9259, %v9258
        %v9298 = vpack.c.bf16 %v9261, %v9260
        %v9299 = vpack.c.bf16 %v9263, %v9262
        %v9300 = vpack.c.bf16 %v9265, %v9264
        %v9301 = vpack.c.bf16 %v9267, %v9266
        %v9302 = vpack.c.bf16 %v9269, %v9268
        %v9303 = vpack.c.bf16 %v9271, %v9270
        %v9304 = vpack.c.bf16 %v9273, %v9272
        %v9305 = vpack.c.bf16 %v9275, %v9274
        %v9306 = vpack.c.bf16 %v9277, %v9276
        %v9307 = vpack.c.bf16 %v9279, %v9278
        %v9308 = vpack.c.bf16 %v9281, %v9280
        %v9309 = vpack.c.bf16 %v9283, %v9282
        %v9310 = vpack.c.bf16 %v9285, %v9284
        %v9311 = vpack.c.bf16 %v9287, %v9286
        %v9328 = vunpack.c.l.b16 %v9224
        %v9329 = vunpack.c.l.b16 %v9225
        %v9330 = vunpack.c.l.b16 %v9226
        %v9331 = vunpack.c.l.b16 %v9227
        %v9332 = vunpack.c.l.b16 %v9228
        %v9333 = vunpack.c.l.b16 %v9229
        %v9334 = vunpack.c.l.b16 %v9230
        %v9335 = vunpack.c.l.b16 %v9231
        %v9336 = vunpack.c.l.b16 %v9232
        %v9337 = vunpack.c.l.b16 %v9233
        %v9338 = vunpack.c.l.b16 %v9234
        %v9339 = vunpack.c.l.b16 %v9235
        %v9340 = vunpack.c.l.b16 %v9236
        %v9341 = vunpack.c.l.b16 %v9237
        %v9342 = vunpack.c.l.b16 %v9238
        %v9343 = vunpack.c.l.b16 %v9239
        %v9344 = vpack.c.b16 %v9329, %v9328
        %v9345 = vpack.c.b16 %v9331, %v9330
        %v9346 = vpack.c.b16 %v9333, %v9332
        %v9347 = vpack.c.b16 %v9335, %v9334
        %v9348 = vpack.c.b16 %v9337, %v9336
        %v9349 = vpack.c.b16 %v9339, %v9338
        %v9350 = vpack.c.b16 %v9341, %v9340
        %v9351 = vpack.c.b16 %v9343, %v9342
        %9360 = vmatprep.subr.bf16.mxu0 0
        %9361 = vmatpush1.bf16.msra.mxu0 %v9344
        %9362 = vmatprep.subr.bf16.mxu0 0
        %9363 = vmatpush1.bf16.msra.mxu0 %v9345
        %9364 = vmatprep.subr.bf16.mxu0 0
        %9365 = vmatpush1.bf16.msra.mxu0 %v9346
        %9366 = vmatprep.subr.bf16.mxu0 0
        %9367 = vmatpush1.bf16.msra.mxu0 %v9347
        %9368 = vmatprep.subr.bf16.mxu0 0
        %9369 = vmatpush1.bf16.msra.mxu0 %v9348
        %9370 = vmatprep.subr.bf16.mxu0 0
        %9371 = vmatpush1.bf16.msra.mxu0 %v9349
        %9372 = vmatprep.subr.bf16.mxu0 0
        %9373 = vmatpush1.bf16.msra.mxu0 %v9350
        %9374 = vmatprep.subr.bf16.mxu0 0
        %9375 = vmatpush1.bf16.msra.mxu0 %v9351
        %9376 = vmatprep.subr.bf16.mxu0 0
        %9377 = vmatpush1.bf16.msra.mxu0 0
        %9378 = vmatprep.subr.bf16.mxu0 0
        %9379 = vmatpush1.bf16.msra.mxu0 0
        %9380 = vmatprep.subr.bf16.mxu0 0
        %9381 = vmatpush1.bf16.msra.mxu0 0
        %9382 = vmatprep.subr.bf16.mxu0 0
        %9383 = vmatpush1.bf16.msra.mxu0 0
        %9384 = vmatprep.subr.bf16.mxu0 0
        %9385 = vmatpush1.bf16.msra.mxu0 0
        %9386 = vmatprep.subr.bf16.mxu0 0
        %9387 = vmatpush1.bf16.msra.mxu0 0
        %9388 = vmatprep.subr.bf16.mxu0 0
        %9389 = vmatpush1.bf16.msra.mxu0 0
        %9390 = vmatprep.subr.bf16.mxu0 0
        %9391 = vmatpush1.bf16.msra.mxu0 0
        %9392 = vmatprep.mubr.bf16.mxu0 0
        %9393 = vmatmul.mubr.bf16.gmra.mrb[0].mxu0 %v9288
        %v9394 = vpop.f32.mrb[0].mxu0
        %v9395 = vadd.f32 0.0, %v9394
        %v9396 = vpop.f32.mrb[0].mxu0
        %v9397 = vpop.f32.mrb[0].mxu0
        %v9398 = vadd.f32 0.0, %v9397
        %v9399 = vpop.f32.mrb[0].mxu0
        %9400 = vmatprep.mubr.bf16.mxu0 0
        %9401 = vmatmul.mubr.bf16.gmra.mrb[0].mxu0 %v9289
        %v9402 = vpop.f32.mrb[0].mxu0
        %v9403 = vadd.f32 0.0, %v9402
        %v9404 = vpop.f32.mrb[0].mxu0
        %v9405 = vpop.f32.mrb[0].mxu0
        %v9406 = vadd.f32 0.0, %v9405
        %v9407 = vpop.f32.mrb[0].mxu0
        %9408 = vmatprep.mubr.bf16.mxu0 0
        %9409 = vmatmul.mubr.bf16.gmra.mrb[0].mxu0 %v9290
        %v9410 = vpop.f32.mrb[0].mxu0
        %v9411 = vadd.f32 0.0, %v9410
        %v9412 = vpop.f32.mrb[0].mxu0
        %v9413 = vpop.f32.mrb[0].mxu0
        %v9414 = vadd.f32 0.0, %v9413
        %v9415 = vpop.f32.mrb[0].mxu0
        %9416 = vmatprep.mubr.bf16.mxu0 0
        %9417 = vmatmul.mubr.bf16.gmra.mrb[0].mxu0 %v9291
        %v9418 = vpop.f32.mrb[0].mxu0
        %v9419 = vadd.f32 0.0, %v9418
        %v9420 = vpop.f32.mrb[0].mxu0
        %v9421 = vpop.f32.mrb[0].mxu0
        %v9422 = vadd.f32 0.0, %v9421
        %v9423 = vpop.f32.mrb[0].mxu0
        %9424 = vmatprep.mubr.bf16.mxu0 0
        %9425 = vmatmul.mubr.bf16.gmra.mrb[0].mxu0 %v9292
        %v9426 = vpop.f32.mrb[0].mxu0
        %v9427 = vadd.f32 0.0, %v9426
        %v9428 = vpop.f32.mrb[0].mxu0
        %v9429 = vpop.f32.mrb[0].mxu0
        %v9430 = vadd.f32 0.0, %v9429
        %v9431 = vpop.f32.mrb[0].mxu0
        %9432 = vmatprep.mubr.bf16.mxu0 0
        %9433 = vmatmul.mubr.bf16.gmra.mrb[0].mxu0 %v9293
        %v9434 = vpop.f32.mrb[0].mxu0
        %v9435 = vadd.f32 0.0, %v9434
        %v9436 = vpop.f32.mrb[0].mxu0
        %v9437 = vpop.f32.mrb[0].mxu0
        %v9438 = vadd.f32 0.0, %v9437
        %v9439 = vpop.f32.mrb[0].mxu0
        %9440 = vmatprep.mubr.bf16.mxu0 0
        %9441 = vmatmul.mubr.bf16.gmra.mrb[0].mxu0 %v9294
        %v9442 = vpop.f32.mrb[0].mxu0
        %v9443 = vadd.f32 0.0, %v9442
        %v9444 = vpop.f32.mrb[0].mxu0
        %v9445 = vpop.f32.mrb[0].mxu0
        %v9446 = vadd.f32 0.0, %v9445
        %v9447 = vpop.f32.mrb[0].mxu0
        %9448 = vmatprep.mubr.bf16.mxu0 0
        %9449 = vmatmul.mubr.bf16.gmra.mrb[0].mxu0 %v9295
        %v9450 = vpop.f32.mrb[0].mxu0
        %v9451 = vadd.f32 0.0, %v9450
        %v9452 = vpop.f32.mrb[0].mxu0
        %v9453 = vpop.f32.mrb[0].mxu0
        %v9454 = vadd.f32 0.0, %v9453
        %v9455 = vpop.f32.mrb[0].mxu0
        %9456 = vmatprep.mubr.bf16.mxu0 0
        %9457 = vmatmul.mubr.bf16.gmra.mrb[0].mxu0 %v9296
        %v9458 = vpop.f32.mrb[0].mxu0
        %v9459 = vadd.f32 0.0, %v9458
        %v9460 = vpop.f32.mrb[0].mxu0
        %v9461 = vpop.f32.mrb[0].mxu0
        %v9462 = vadd.f32 0.0, %v9461
        %v9463 = vpop.f32.mrb[0].mxu0
        %9464 = vmatprep.mubr.bf16.mxu0 0
        %9465 = vmatmul.mubr.bf16.gmra.mrb[0].mxu0 %v9297
        %v9466 = vpop.f32.mrb[0].mxu0
        %v9467 = vadd.f32 0.0, %v9466
        %v9468 = vpop.f32.mrb[0].mxu0
        %v9469 = vpop.f32.mrb[0].mxu0
        %v9470 = vadd.f32 0.0, %v9469
        %v9471 = vpop.f32.mrb[0].mxu0
        %9472 = vmatprep.mubr.bf16.mxu0 0
        %9473 = vmatmul.mubr.bf16.gmra.mrb[0].mxu0 %v9298
        %v9474 = vpop.f32.mrb[0].mxu0
        %v9475 = vadd.f32 0.0, %v9474
        %v9476 = vpop.f32.mrb[0].mxu0
        %v9477 = vpop.f32.mrb[0].mxu0
        %v9478 = vadd.f32 0.0, %v9477
        %v9479 = vpop.f32.mrb[0].mxu0
        %9480 = vmatprep.mubr.bf16.mxu0 0
        %9481 = vmatmul.mubr.bf16.gmra.mrb[0].mxu0 %v9299
        %v9482 = vpop.f32.mrb[0].mxu0
        %v9483 = vadd.f32 0.0, %v9482
        %v9484 = vpop.f32.mrb[0].mxu0
        %v9485 = vpop.f32.mrb[0].mxu0
        %v9486 = vadd.f32 0.0, %v9485
        %v9487 = vpop.f32.mrb[0].mxu0
        %9488 = vmatprep.mubr.bf16.mxu0 0
        %9489 = vmatmul.mubr.bf16.gmra.mrb[0].mxu0 %v9300
        %v9490 = vpop.f32.mrb[0].mxu0
        %v9491 = vadd.f32 0.0, %v9490
        %v9492 = vpop.f32.mrb[0].mxu0
        %v9493 = vpop.f32.mrb[0].mxu0
        %v9494 = vadd.f32 0.0, %v9493
        %v9495 = vpop.f32.mrb[0].mxu0
        %9496 = vmatprep.mubr.bf16.mxu0 0
        %9497 = vmatmul.mubr.bf16.gmra.mrb[0].mxu0 %v9301
        %v9498 = vpop.f32.mrb[0].mxu0
        %v9499 = vadd.f32 0.0, %v9498
        %v9500 = vpop.f32.mrb[0].mxu0
        %v9501 = vpop.f32.mrb[0].mxu0
        %v9502 = vadd.f32 0.0, %v9501
        %v9503 = vpop.f32.mrb[0].mxu0
        %9504 = vmatprep.mubr.bf16.mxu0 0
        %9505 = vmatmul.mubr.bf16.gmra.mrb[0].mxu0 %v9302
        %v9506 = vpop.f32.mrb[0].mxu0
        %v9507 = vadd.f32 0.0, %v9506
        %v9508 = vpop.f32.mrb[0].mxu0
        %v9509 = vpop.f32.mrb[0].mxu0
        %v9510 = vadd.f32 0.0, %v9509
        %v9511 = vpop.f32.mrb[0].mxu0
        %9512 = vmatprep.mubr.bf16.mxu0 0
        %9513 = vmatmul.mubr.bf16.gmra.mrb[0].mxu0 %v9303
        %v9514 = vpop.f32.mrb[0].mxu0
        %v9515 = vadd.f32 0.0, %v9514
        %v9516 = vpop.f32.mrb[0].mxu0
        %v9517 = vpop.f32.mrb[0].mxu0
        %v9518 = vadd.f32 0.0, %v9517
        %v9519 = vpop.f32.mrb[0].mxu0
        %9520 = vmatprep.mubr.bf16.mxu0 0
        %9521 = vmatmul.mubr.bf16.gmra.mrb[0].mxu0 %v9304
        %v9522 = vpop.f32.mrb[0].mxu0
        %v9523 = vadd.f32 0.0, %v9522
        %v9524 = vpop.f32.mrb[0].mxu0
        %v9525 = vpop.f32.mrb[0].mxu0
        %v9526 = vadd.f32 0.0, %v9525
        %v9527 = vpop.f32.mrb[0].mxu0
        %9528 = vmatprep.mubr.bf16.mxu0 0
        %9529 = vmatmul.mubr.bf16.gmra.mrb[0].mxu0 %v9305
        %v9530 = vpop.f32.mrb[0].mxu0
        %v9531 = vadd.f32 0.0, %v9530
        %v9532 = vpop.f32.mrb[0].mxu0
        %v9533 = vpop.f32.mrb[0].mxu0
        %v9534 = vadd.f32 0.0, %v9533
        %v9535 = vpop.f32.mrb[0].mxu0
        %9536 = vmatprep.mubr.bf16.mxu0 0
        %9537 = vmatmul.mubr.bf16.gmra.mrb[0].mxu0 %v9306
        %v9538 = vpop.f32.mrb[0].mxu0
        %v9539 = vadd.f32 0.0, %v9538
        %v9540 = vpop.f32.mrb[0].mxu0
        %v9541 = vpop.f32.mrb[0].mxu0
        %v9542 = vadd.f32 0.0, %v9541
        %v9543 = vpop.f32.mrb[0].mxu0
        %9544 = vmatprep.mubr.bf16.mxu0 0
        %9545 = vmatmul.mubr.bf16.gmra.mrb[0].mxu0 %v9307
        %v9546 = vpop.f32.mrb[0].mxu0
        %v9547 = vadd.f32 0.0, %v9546
        %v9548 = vpop.f32.mrb[0].mxu0
        %v9549 = vpop.f32.mrb[0].mxu0
        %v9550 = vadd.f32 0.0, %v9549
        %v9551 = vpop.f32.mrb[0].mxu0
        %9552 = vmatprep.mubr.bf16.mxu0 0
        %9553 = vmatmul.mubr.bf16.gmra.mrb[0].mxu0 %v9308
        %v9554 = vpop.f32.mrb[0].mxu0
        %v9555 = vadd.f32 0.0, %v9554
        %v9556 = vpop.f32.mrb[0].mxu0
        %v9557 = vpop.f32.mrb[0].mxu0
        %v9558 = vadd.f32 0.0, %v9557
        %v9559 = vpop.f32.mrb[0].mxu0
        %9560 = vmatprep.mubr.bf16.mxu0 0
        %9561 = vmatmul.mubr.bf16.gmra.mrb[0].mxu0 %v9309
        %v9562 = vpop.f32.mrb[0].mxu0
        %v9563 = vadd.f32 0.0, %v9562
        %v9564 = vpop.f32.mrb[0].mxu0
        %v9565 = vpop.f32.mrb[0].mxu0
        %v9566 = vadd.f32 0.0, %v9565
        %v9567 = vpop.f32.mrb[0].mxu0
        %9568 = vmatprep.mubr.bf16.mxu0 0
        %9569 = vmatmul.mubr.bf16.gmra.mrb[0].mxu0 %v9310
        %v9570 = vpop.f32.mrb[0].mxu0
        %v9571 = vadd.f32 0.0, %v9570
        %v9572 = vpop.f32.mrb[0].mxu0
        %v9573 = vpop.f32.mrb[0].mxu0
        %v9574 = vadd.f32 0.0, %v9573
        %v9575 = vpop.f32.mrb[0].mxu0
        %9576 = vmatprep.mubr.bf16.mxu0 0
        %9577 = vmatmul.mubr.bf16.gmra.mrb[0].mxu0 %v9311
        %v9578 = vpop.f32.mrb[0].mxu0
        %v9579 = vadd.f32 0.0, %v9578
        %v9580 = vpop.f32.mrb[0].mxu0
        %v9581 = vpop.f32.mrb[0].mxu0
        %v9582 = vadd.f32 0.0, %v9581
        %v9583 = vpop.f32.mrb[0].mxu0
        %9584 = vdwg.mxu0
        %v9585 = vadd.f32 %v8830, %v9395
        %v9586 = vadd.f32 %v8831, %v9398
        %v9587 = vadd.f32 %v8832, %v9403
        %v9588 = vadd.f32 %v8833, %v9406
        %v9589 = vadd.f32 %v8834, %v9411
        %v9590 = vadd.f32 %v8835, %v9414
        %v9591 = vadd.f32 %v8836, %v9419
        %v9592 = vadd.f32 %v8837, %v9422
        %v9593 = vadd.f32 %v8838, %v9427
        %v9594 = vadd.f32 %v8839, %v9430
        %v9595 = vadd.f32 %v8840, %v9435
        %v9596 = vadd.f32 %v8841, %v9438
        %v9597 = vadd.f32 %v8842, %v9443
        %v9598 = vadd.f32 %v8843, %v9446
        %v9599 = vadd.f32 %v8844, %v9451
        %v9600 = vadd.f32 %v8845, %v9454
        %v9601 = vadd.f32 %v8846, %v9459
        %v9602 = vadd.f32 %v8847, %v9462
        %v9603 = vadd.f32 %v8848, %v9467
        %v9604 = vadd.f32 %v8849, %v9470
        %v9605 = vadd.f32 %v8850, %v9475
        %v9606 = vadd.f32 %v8851, %v9478
        %v9607 = vadd.f32 %v8852, %v9483
        %v9608 = vadd.f32 %v8853, %v9486
        %v9609 = vadd.f32 %v8854, %v9491
        %v9610 = vadd.f32 %v8855, %v9494
        %v9611 = vadd.f32 %v8856, %v9499
        %v9612 = vadd.f32 %v8857, %v9502
        %v9613 = vadd.f32 %v8858, %v9507
        %v9614 = vadd.f32 %v8859, %v9510
        %v9615 = vadd.f32 %v8860, %v9515
        %v9616 = vadd.f32 %v8861, %v9518
        %v9617 = vadd.f32 %v8862, %v9523
        %v9618 = vadd.f32 %v8863, %v9526
        %v9619 = vadd.f32 %v8864, %v9531
        %v9620 = vadd.f32 %v8865, %v9534
        %v9621 = vadd.f32 %v8866, %v9539
        %v9622 = vadd.f32 %v8867, %v9542
        %v9623 = vadd.f32 %v8868, %v9547
        %v9624 = vadd.f32 %v8869, %v9550
        %v9625 = vadd.f32 %v8870, %v9555
        %v9626 = vadd.f32 %v8871, %v9558
        %v9627 = vadd.f32 %v8872, %v9563
        %v9628 = vadd.f32 %v8873, %v9566
        %v9629 = vadd.f32 %v8874, %v9571
        %v9630 = vadd.f32 %v8875, %v9574
        %v9631 = vadd.f32 %v8876, %v9579
        %v9632 = vadd.f32 %v8877, %v9582
        %v9633 = vld [vmem:[%s3267 + $0x39] sm:$0xff]
        %v9634 = vld [vmem:[%s3267 + $0x41] sm:$0xff]
        %v9635 = vld [vmem:[%s3267 + $0x49] sm:$0xff]
        %v9636 = vld [vmem:[%s3267 + $0x51] sm:$0xff]
        %v9637 = vld [vmem:[%s3267 + $0x59] sm:$0xff]
        %v9638 = vld [vmem:[%s3267 + $0x61] sm:$0xff]
        %v9639 = vld [vmem:[%s3267 + $0x69] sm:$0xff]
        %v9640 = vld [vmem:[%s3267 + $0x71] sm:$0xff]
        %v9641 = vld [vmem:[%s3267 + $0x79] sm:$0xff]
        %v9642 = vld [vmem:[%s3267 + $0x81] sm:$0xff]
        %v9643 = vld [vmem:[%s3267 + $0x89] sm:$0xff]
        %v9644 = vld [vmem:[%s3267 + $0x91] sm:$0xff]
        %v9645 = vld [vmem:[%s3267 + $0x99] sm:$0xff]
        %v9646 = vld [vmem:[%s3267 + $0xa1] sm:$0xff]
        %v9647 = vld [vmem:[%s3267 + $0xa9] sm:$0xff]
        %v9648 = vld [vmem:[%s3267 + $0xb1] sm:$0xff]
        %v9649 = vld [vmem:[%s3267 + $0xb9] sm:$0xff]
        %v9650 = vld [vmem:[%s3267 + $0xc1] sm:$0xff]
        %v9651 = vld [vmem:[%s3267 + $0xc9] sm:$0xff]
        %v9652 = vld [vmem:[%s3267 + $0xd1] sm:$0xff]
        %v9653 = vld [vmem:[%s3267 + $0xd9] sm:$0xff]
        %v9654 = vld [vmem:[%s3267 + $0xe1] sm:$0xff]
        %v9655 = vld [vmem:[%s3267 + $0xe9] sm:$0xff]
        %v9656 = vld [vmem:[%s3267 + $0xf1] sm:$0xff]
        %v9657 = vld [vmem:[%s3267 + $0xf9] sm:$0xff]
        %v9658 = vld [vmem:[%s3267 + $0x101] sm:$0xff]
        %v9659 = vld [vmem:[%s3267 + $0x109] sm:$0xff]
        %v9660 = vld [vmem:[%s3267 + $0x111] sm:$0xff]
        %v9661 = vld [vmem:[%s3267 + $0x119] sm:$0xff]
        %v9662 = vld [vmem:[%s3267 + $0x121] sm:$0xff]
        %v9663 = vld [vmem:[%s3267 + $0x129] sm:$0xff]
        %v9664 = vld [vmem:[%s3267 + $0x131] sm:$0xff]
        %v9665 = vld [vmem:[%s3267 + $0x139] sm:$0xff]
        %v9666 = vld [vmem:[%s3267 + $0x141] sm:$0xff]
        %v9667 = vld [vmem:[%s3267 + $0x149] sm:$0xff]
        %v9668 = vld [vmem:[%s3267 + $0x151] sm:$0xff]
        %v9669 = vld [vmem:[%s3267 + $0x159] sm:$0xff]
        %v9670 = vld [vmem:[%s3267 + $0x161] sm:$0xff]
        %v9671 = vld [vmem:[%s3267 + $0x169] sm:$0xff]
        %v9672 = vld [vmem:[%s3267 + $0x171] sm:$0xff]
        %v9673 = vld [vmem:[%s3267 + $0x179] sm:$0xff]
        %v9674 = vld [vmem:[%s3267 + $0x181] sm:$0xff]
        %v9675 = vld [vmem:[%s3267 + $0x189] sm:$0xff]
        %v9676 = vld [vmem:[%s3267 + $0x191] sm:$0xff]
        %v9677 = vld [vmem:[%s3267 + $0x199] sm:$0xff]
        %v9678 = vld [vmem:[%s3267 + $0x1a1] sm:$0xff]
        %v9679 = vld [vmem:[%s3267 + $0x1a9] sm:$0xff]
        %v9680 = vld [vmem:[%s3267 + $0x1b1] sm:$0xff]
        %v9681 = vpack.c.bf16 %v9634, %v9633
        %v9682 = vpack.c.bf16 %v9636, %v9635
        %v9683 = vpack.c.bf16 %v9638, %v9637
        %v9684 = vpack.c.bf16 %v9640, %v9639
        %v9685 = vpack.c.bf16 %v9642, %v9641
        %v9686 = vpack.c.bf16 %v9644, %v9643
        %v9687 = vpack.c.bf16 %v9646, %v9645
        %v9688 = vpack.c.bf16 %v9648, %v9647
        %v9689 = vpack.c.bf16 %v9650, %v9649
        %v9690 = vpack.c.bf16 %v9652, %v9651
        %v9691 = vpack.c.bf16 %v9654, %v9653
        %v9692 = vpack.c.bf16 %v9656, %v9655
        %v9693 = vpack.c.bf16 %v9658, %v9657
        %v9694 = vpack.c.bf16 %v9660, %v9659
        %v9695 = vpack.c.bf16 %v9662, %v9661
        %v9696 = vpack.c.bf16 %v9664, %v9663
        %v9697 = vpack.c.bf16 %v9666, %v9665
        %v9698 = vpack.c.bf16 %v9668, %v9667
        %v9699 = vpack.c.bf16 %v9670, %v9669
        %v9700 = vpack.c.bf16 %v9672, %v9671
        %v9701 = vpack.c.bf16 %v9674, %v9673
        %v9702 = vpack.c.bf16 %v9676, %v9675
        %v9703 = vpack.c.bf16 %v9678, %v9677
        %v9704 = vpack.c.bf16 %v9680, %v9679
        %9705 = vmatprep.subr.bf16.mxu0 0
        %9706 = vmatpush1.bf16.msra.mxu0 %v9344
        %9707 = vmatprep.subr.bf16.mxu0 0
        %9708 = vmatpush1.bf16.msra.mxu0 %v9345
        %9709 = vmatprep.subr.bf16.mxu0 0
        %9710 = vmatpush1.bf16.msra.mxu0 %v9346
        %9711 = vmatprep.subr.bf16.mxu0 0
        %9712 = vmatpush1.bf16.msra.mxu0 %v9347
        %9713 = vmatprep.subr.bf16.mxu0 0
        %9714 = vmatpush1.bf16.msra.mxu0 %v9348
        %9715 = vmatprep.subr.bf16.mxu0 0
        %9716 = vmatpush1.bf16.msra.mxu0 %v9349
        %9717 = vmatprep.subr.bf16.mxu0 0
        %9718 = vmatpush1.bf16.msra.mxu0 %v9350
        %9719 = vmatprep.subr.bf16.mxu0 0
        %9720 = vmatpush1.bf16.msra.mxu0 %v9351
        %9721 = vmatprep.subr.bf16.mxu0 0
        %9722 = vmatpush1.bf16.msra.mxu0 0
        %9723 = vmatprep.subr.bf16.mxu0 0
        %9724 = vmatpush1.bf16.msra.mxu0 0
        %9725 = vmatprep.subr.bf16.mxu0 0
        %9726 = vmatpush1.bf16.msra.mxu0 0
        %9727 = vmatprep.subr.bf16.mxu0 0
        %9728 = vmatpush1.bf16.msra.mxu0 0
        %9729 = vmatprep.subr.bf16.mxu0 0
        %9730 = vmatpush1.bf16.msra.mxu0 0
        %9731 = vmatprep.subr.bf16.mxu0 0
        %9732 = vmatpush1.bf16.msra.mxu0 0
        %9733 = vmatprep.subr.bf16.mxu0 0
        %9734 = vmatpush1.bf16.msra.mxu0 0
        %9735 = vmatprep.subr.bf16.mxu0 0
        %9736 = vmatpush1.bf16.msra.mxu0 0
        %9737 = vmatprep.mubr.bf16.mxu0 0
        %9738 = vmatmul.mubr.bf16.gmra.mrb[0].mxu0 %v9681
        %v9739 = vpop.f32.mrb[0].mxu0
        %v9740 = vadd.f32 0.0, %v9739
        %v9741 = vpop.f32.mrb[0].mxu0
        %v9742 = vpop.f32.mrb[0].mxu0
        %v9743 = vadd.f32 0.0, %v9742
        %v9744 = vpop.f32.mrb[0].mxu0
        %9745 = vmatprep.mubr.bf16.mxu0 0
        %9746 = vmatmul.mubr.bf16.gmra.mrb[0].mxu0 %v9682
        %v9747 = vpop.f32.mrb[0].mxu0
        %v9748 = vadd.f32 0.0, %v9747
        %v9749 = vpop.f32.mrb[0].mxu0
        %v9750 = vpop.f32.mrb[0].mxu0
        %v9751 = vadd.f32 0.0, %v9750
        %v9752 = vpop.f32.mrb[0].mxu0
        %9753 = vmatprep.mubr.bf16.mxu0 0
        %9754 = vmatmul.mubr.bf16.gmra.mrb[0].mxu0 %v9683
        %v9755 = vpop.f32.mrb[0].mxu0
        %v9756 = vadd.f32 0.0, %v9755
        %v9757 = vpop.f32.mrb[0].mxu0
        %v9758 = vpop.f32.mrb[0].mxu0
        %v9759 = vadd.f32 0.0, %v9758
        %v9760 = vpop.f32.mrb[0].mxu0
        %9761 = vmatprep.mubr.bf16.mxu0 0
        %9762 = vmatmul.mubr.bf16.gmra.mrb[0].mxu0 %v9684
        %v9763 = vpop.f32.mrb[0].mxu0
        %v9764 = vadd.f32 0.0, %v9763
        %v9765 = vpop.f32.mrb[0].mxu0
        %v9766 = vpop.f32.mrb[0].mxu0
        %v9767 = vadd.f32 0.0, %v9766
        %v9768 = vpop.f32.mrb[0].mxu0
        %9769 = vmatprep.mubr.bf16.mxu0 0
        %9770 = vmatmul.mubr.bf16.gmra.mrb[0].mxu0 %v9685
        %v9771 = vpop.f32.mrb[0].mxu0
        %v9772 = vadd.f32 0.0, %v9771
        %v9773 = vpop.f32.mrb[0].mxu0
        %v9774 = vpop.f32.mrb[0].mxu0
        %v9775 = vadd.f32 0.0, %v9774
        %v9776 = vpop.f32.mrb[0].mxu0
        %9777 = vmatprep.mubr.bf16.mxu0 0
        %9778 = vmatmul.mubr.bf16.gmra.mrb[0].mxu0 %v9686
        %v9779 = vpop.f32.mrb[0].mxu0
        %v9780 = vadd.f32 0.0, %v9779
        %v9781 = vpop.f32.mrb[0].mxu0
        %v9782 = vpop.f32.mrb[0].mxu0
        %v9783 = vadd.f32 0.0, %v9782
        %v9784 = vpop.f32.mrb[0].mxu0
        %9785 = vmatprep.mubr.bf16.mxu0 0
        %9786 = vmatmul.mubr.bf16.gmra.mrb[0].mxu0 %v9687
        %v9787 = vpop.f32.mrb[0].mxu0
        %v9788 = vadd.f32 0.0, %v9787
        %v9789 = vpop.f32.mrb[0].mxu0
        %v9790 = vpop.f32.mrb[0].mxu0
        %v9791 = vadd.f32 0.0, %v9790
        %v9792 = vpop.f32.mrb[0].mxu0
        %9793 = vmatprep.mubr.bf16.mxu0 0
        %9794 = vmatmul.mubr.bf16.gmra.mrb[0].mxu0 %v9688
        %v9795 = vpop.f32.mrb[0].mxu0
        %v9796 = vadd.f32 0.0, %v9795
        %v9797 = vpop.f32.mrb[0].mxu0
        %v9798 = vpop.f32.mrb[0].mxu0
        %v9799 = vadd.f32 0.0, %v9798
        %v9800 = vpop.f32.mrb[0].mxu0
        %9801 = vmatprep.mubr.bf16.mxu0 0
        %9802 = vmatmul.mubr.bf16.gmra.mrb[0].mxu0 %v9689
        %v9803 = vpop.f32.mrb[0].mxu0
        %v9804 = vadd.f32 0.0, %v9803
        %v9805 = vpop.f32.mrb[0].mxu0
        %v9806 = vpop.f32.mrb[0].mxu0
        %v9807 = vadd.f32 0.0, %v9806
        %v9808 = vpop.f32.mrb[0].mxu0
        %9809 = vmatprep.mubr.bf16.mxu0 0
        %9810 = vmatmul.mubr.bf16.gmra.mrb[0].mxu0 %v9690
        %v9811 = vpop.f32.mrb[0].mxu0
        %v9812 = vadd.f32 0.0, %v9811
        %v9813 = vpop.f32.mrb[0].mxu0
        %v9814 = vpop.f32.mrb[0].mxu0
        %v9815 = vadd.f32 0.0, %v9814
        %v9816 = vpop.f32.mrb[0].mxu0
        %9817 = vmatprep.mubr.bf16.mxu0 0
        %9818 = vmatmul.mubr.bf16.gmra.mrb[0].mxu0 %v9691
        %v9819 = vpop.f32.mrb[0].mxu0
        %v9820 = vadd.f32 0.0, %v9819
        %v9821 = vpop.f32.mrb[0].mxu0
        %v9822 = vpop.f32.mrb[0].mxu0
        %v9823 = vadd.f32 0.0, %v9822
        %v9824 = vpop.f32.mrb[0].mxu0
        %9825 = vmatprep.mubr.bf16.mxu0 0
        %9826 = vmatmul.mubr.bf16.gmra.mrb[0].mxu0 %v9692
        %v9827 = vpop.f32.mrb[0].mxu0
        %v9828 = vadd.f32 0.0, %v9827
        %v9829 = vpop.f32.mrb[0].mxu0
        %v9830 = vpop.f32.mrb[0].mxu0
        %v9831 = vadd.f32 0.0, %v9830
        %v9832 = vpop.f32.mrb[0].mxu0
        %9833 = vmatprep.mubr.bf16.mxu0 0
        %9834 = vmatmul.mubr.bf16.gmra.mrb[0].mxu0 %v9693
        %v9835 = vpop.f32.mrb[0].mxu0
        %v9836 = vadd.f32 0.0, %v9835
        %v9837 = vpop.f32.mrb[0].mxu0
        %v9838 = vpop.f32.mrb[0].mxu0
        %v9839 = vadd.f32 0.0, %v9838
        %v9840 = vpop.f32.mrb[0].mxu0
        %9841 = vmatprep.mubr.bf16.mxu0 0
        %9842 = vmatmul.mubr.bf16.gmra.mrb[0].mxu0 %v9694
        %v9843 = vpop.f32.mrb[0].mxu0
        %v9844 = vadd.f32 0.0, %v9843
        %v9845 = vpop.f32.mrb[0].mxu0
        %v9846 = vpop.f32.mrb[0].mxu0
        %v9847 = vadd.f32 0.0, %v9846
        %v9848 = vpop.f32.mrb[0].mxu0
        %9849 = vmatprep.mubr.bf16.mxu0 0
        %9850 = vmatmul.mubr.bf16.gmra.mrb[0].mxu0 %v9695
        %v9851 = vpop.f32.mrb[0].mxu0
        %v9852 = vadd.f32 0.0, %v9851
        %v9853 = vpop.f32.mrb[0].mxu0
        %v9854 = vpop.f32.mrb[0].mxu0
        %v9855 = vadd.f32 0.0, %v9854
        %v9856 = vpop.f32.mrb[0].mxu0
        %9857 = vmatprep.mubr.bf16.mxu0 0
        %9858 = vmatmul.mubr.bf16.gmra.mrb[0].mxu0 %v9696
        %v9859 = vpop.f32.mrb[0].mxu0
        %v9860 = vadd.f32 0.0, %v9859
        %v9861 = vpop.f32.mrb[0].mxu0
        %v9862 = vpop.f32.mrb[0].mxu0
        %v9863 = vadd.f32 0.0, %v9862
        %v9864 = vpop.f32.mrb[0].mxu0
        %9865 = vmatprep.mubr.bf16.mxu0 0
        %9866 = vmatmul.mubr.bf16.gmra.mrb[0].mxu0 %v9697
        %v9867 = vpop.f32.mrb[0].mxu0
        %v9868 = vadd.f32 0.0, %v9867
        %v9869 = vpop.f32.mrb[0].mxu0
        %v9870 = vpop.f32.mrb[0].mxu0
        %v9871 = vadd.f32 0.0, %v9870
        %v9872 = vpop.f32.mrb[0].mxu0
        %9873 = vmatprep.mubr.bf16.mxu0 0
        %9874 = vmatmul.mubr.bf16.gmra.mrb[0].mxu0 %v9698
        %v9875 = vpop.f32.mrb[0].mxu0
        %v9876 = vadd.f32 0.0, %v9875
        %v9877 = vpop.f32.mrb[0].mxu0
        %v9878 = vpop.f32.mrb[0].mxu0
        %v9879 = vadd.f32 0.0, %v9878
        %v9880 = vpop.f32.mrb[0].mxu0
        %9881 = vmatprep.mubr.bf16.mxu0 0
        %9882 = vmatmul.mubr.bf16.gmra.mrb[0].mxu0 %v9699
        %v9883 = vpop.f32.mrb[0].mxu0
        %v9884 = vadd.f32 0.0, %v9883
        %v9885 = vpop.f32.mrb[0].mxu0
        %v9886 = vpop.f32.mrb[0].mxu0
        %v9887 = vadd.f32 0.0, %v9886
        %v9888 = vpop.f32.mrb[0].mxu0
        %9889 = vmatprep.mubr.bf16.mxu0 0
        %9890 = vmatmul.mubr.bf16.gmra.mrb[0].mxu0 %v9700
        %v9891 = vpop.f32.mrb[0].mxu0
        %v9892 = vadd.f32 0.0, %v9891
        %v9893 = vpop.f32.mrb[0].mxu0
        %v9894 = vpop.f32.mrb[0].mxu0
        %v9895 = vadd.f32 0.0, %v9894
        %v9896 = vpop.f32.mrb[0].mxu0
        %9897 = vmatprep.mubr.bf16.mxu0 0
        %9898 = vmatmul.mubr.bf16.gmra.mrb[0].mxu0 %v9701
        %v9899 = vpop.f32.mrb[0].mxu0
        %v9900 = vadd.f32 0.0, %v9899
        %v9901 = vpop.f32.mrb[0].mxu0
        %v9902 = vpop.f32.mrb[0].mxu0
        %v9903 = vadd.f32 0.0, %v9902
        %v9904 = vpop.f32.mrb[0].mxu0
        %9905 = vmatprep.mubr.bf16.mxu0 0
        %9906 = vmatmul.mubr.bf16.gmra.mrb[0].mxu0 %v9702
        %v9907 = vpop.f32.mrb[0].mxu0
        %v9908 = vadd.f32 0.0, %v9907
        %v9909 = vpop.f32.mrb[0].mxu0
        %v9910 = vpop.f32.mrb[0].mxu0
        %v9911 = vadd.f32 0.0, %v9910
        %v9912 = vpop.f32.mrb[0].mxu0
        %9913 = vmatprep.mubr.bf16.mxu0 0
        %9914 = vmatmul.mubr.bf16.gmra.mrb[0].mxu0 %v9703
        %v9915 = vpop.f32.mrb[0].mxu0
        %v9916 = vadd.f32 0.0, %v9915
        %v9917 = vpop.f32.mrb[0].mxu0
        %v9918 = vpop.f32.mrb[0].mxu0
        %v9919 = vadd.f32 0.0, %v9918
        %v9920 = vpop.f32.mrb[0].mxu0
        %9921 = vmatprep.mubr.bf16.mxu0 0
        %9922 = vmatmul.mubr.bf16.gmra.mrb[0].mxu0 %v9704
        %v9923 = vpop.f32.mrb[0].mxu0
        %v9924 = vadd.f32 0.0, %v9923
        %v9925 = vpop.f32.mrb[0].mxu0
        %v9926 = vpop.f32.mrb[0].mxu0
        %v9927 = vadd.f32 0.0, %v9926
        %v9928 = vpop.f32.mrb[0].mxu0
        %9929 = vdwg.mxu0
        %v9930 = vadd.f32 %v9175, %v9740
        %v9931 = vadd.f32 %v9176, %v9743
        %v9932 = vadd.f32 %v9177, %v9748
        %v9933 = vadd.f32 %v9178, %v9751
        %v9934 = vadd.f32 %v9179, %v9756
        %v9935 = vadd.f32 %v9180, %v9759
        %v9936 = vadd.f32 %v9181, %v9764
        %v9937 = vadd.f32 %v9182, %v9767
        %v9938 = vadd.f32 %v9183, %v9772
        %v9939 = vadd.f32 %v9184, %v9775
        %v9940 = vadd.f32 %v9185, %v9780
        %v9941 = vadd.f32 %v9186, %v9783
        %v9942 = vadd.f32 %v9187, %v9788
        %v9943 = vadd.f32 %v9188, %v9791
        %v9944 = vadd.f32 %v9189, %v9796
        %v9945 = vadd.f32 %v9190, %v9799
        %v9946 = vadd.f32 %v9191, %v9804
        %v9947 = vadd.f32 %v9192, %v9807
        %v9948 = vadd.f32 %v9193, %v9812
        %v9949 = vadd.f32 %v9194, %v9815
        %v9950 = vadd.f32 %v9195, %v9820
        %v9951 = vadd.f32 %v9196, %v9823
        %v9952 = vadd.f32 %v9197, %v9828
        %v9953 = vadd.f32 %v9198, %v9831
        %v9954 = vadd.f32 %v9199, %v9836
        %v9955 = vadd.f32 %v9200, %v9839
        %v9956 = vadd.f32 %v9201, %v9844
        %v9957 = vadd.f32 %v9202, %v9847
        %v9958 = vadd.f32 %v9203, %v9852
        %v9959 = vadd.f32 %v9204, %v9855
        %v9960 = vadd.f32 %v9205, %v9860
        %v9961 = vadd.f32 %v9206, %v9863
        %v9962 = vadd.f32 %v9207, %v9868
        %v9963 = vadd.f32 %v9208, %v9871
        %v9964 = vadd.f32 %v9209, %v9876
        %v9965 = vadd.f32 %v9210, %v9879
        %v9966 = vadd.f32 %v9211, %v9884
        %v9967 = vadd.f32 %v9212, %v9887
        %v9968 = vadd.f32 %v9213, %v9892
        %v9969 = vadd.f32 %v9214, %v9895
        %v9970 = vadd.f32 %v9215, %v9900
        %v9971 = vadd.f32 %v9216, %v9903
        %v9972 = vadd.f32 %v9217, %v9908
        %v9973 = vadd.f32 %v9218, %v9911
        %v9974 = vadd.f32 %v9219, %v9916
        %v9975 = vadd.f32 %v9220, %v9919
        %v9976 = vadd.f32 %v9221, %v9924
        %v9977 = vadd.f32 %v9222, %v9927
        %v9978 = vld [vmem:[%s4] sm:$0x1]
        %v9980 = vlaneseq
        %v9981 = vshrl.u32 %v9980, 7
        %v9982 = vsub.s32 0, %v9981
        %v9983 = vrot.slane %v9978, %v9982
        %v9985 = vadd.f32 %v9585, %v9983
        %v9986 = vadd.f32 %v9586, %v9983
        %v9987 = vadd.f32 %v9587, %v9983
        %v9988 = vadd.f32 %v9588, %v9983
        %v9989 = vadd.f32 %v9589, %v9983
        %v9990 = vadd.f32 %v9590, %v9983
        %v9991 = vadd.f32 %v9591, %v9983
        %v9992 = vadd.f32 %v9592, %v9983
        %v9993 = vadd.f32 %v9593, %v9983
        %v9994 = vadd.f32 %v9594, %v9983
        %v9995 = vadd.f32 %v9595, %v9983
        %v9996 = vadd.f32 %v9596, %v9983
        %v9997 = vadd.f32 %v9597, %v9983
        %v9998 = vadd.f32 %v9598, %v9983
        %v9999 = vadd.f32 %v9599, %v9983
        %v10000 = vadd.f32 %v9600, %v9983
        %v10001 = vadd.f32 %v9601, %v9983
        %v10002 = vadd.f32 %v9602, %v9983
        %v10003 = vadd.f32 %v9603, %v9983
        %v10004 = vadd.f32 %v9604, %v9983
        %v10005 = vadd.f32 %v9605, %v9983
        %v10006 = vadd.f32 %v9606, %v9983
        %v10007 = vadd.f32 %v9607, %v9983
        %v10008 = vadd.f32 %v9608, %v9983
        %v10009 = vadd.f32 %v9609, %v9983
        %v10010 = vadd.f32 %v9610, %v9983
        %v10011 = vadd.f32 %v9611, %v9983
        %v10012 = vadd.f32 %v9612, %v9983
        %v10013 = vadd.f32 %v9613, %v9983
        %v10014 = vadd.f32 %v9614, %v9983
        %v10015 = vadd.f32 %v9615, %v9983
        %v10016 = vadd.f32 %v9616, %v9983
        %v10017 = vadd.f32 %v9617, %v9983
        %v10018 = vadd.f32 %v9618, %v9983
        %v10019 = vadd.f32 %v9619, %v9983
        %v10020 = vadd.f32 %v9620, %v9983
        %v10021 = vadd.f32 %v9621, %v9983
        %v10022 = vadd.f32 %v9622, %v9983
        %v10023 = vadd.f32 %v9623, %v9983
        %v10024 = vadd.f32 %v9624, %v9983
        %v10025 = vadd.f32 %v9625, %v9983
        %v10026 = vadd.f32 %v9626, %v9983
        %v10027 = vadd.f32 %v9627, %v9983
        %v10028 = vadd.f32 %v9628, %v9983
        %v10029 = vadd.f32 %v9629, %v9983
        %v10030 = vadd.f32 %v9630, %v9983
        %v10031 = vadd.f32 %v9631, %v9983
        %v10032 = vadd.f32 %v9632, %v9983
        %v10033 = vmax.f32 %v9985, 0.0
        %v10034 = vmax.f32 %v9986, 0.0
        %v10035 = vmax.f32 %v9987, 0.0
        %v10036 = vmax.f32 %v9988, 0.0
        %v10037 = vmax.f32 %v9989, 0.0
        %v10038 = vmax.f32 %v9990, 0.0
        %v10039 = vmax.f32 %v9991, 0.0
        %v10040 = vmax.f32 %v9992, 0.0
        %v10041 = vmax.f32 %v9993, 0.0
        %v10042 = vmax.f32 %v9994, 0.0
        %v10043 = vmax.f32 %v9995, 0.0
        %v10044 = vmax.f32 %v9996, 0.0
        %v10045 = vmax.f32 %v9997, 0.0
        %v10046 = vmax.f32 %v9998, 0.0
        %v10047 = vmax.f32 %v9999, 0.0
        %v10048 = vmax.f32 %v10000, 0.0
        %v10049 = vmax.f32 %v10001, 0.0
        %v10050 = vmax.f32 %v10002, 0.0
        %v10051 = vmax.f32 %v10003, 0.0
        %v10052 = vmax.f32 %v10004, 0.0
        %v10053 = vmax.f32 %v10005, 0.0
        %v10054 = vmax.f32 %v10006, 0.0
        %v10055 = vmax.f32 %v10007, 0.0
        %v10056 = vmax.f32 %v10008, 0.0
        %v10057 = vmax.f32 %v10009, 0.0
        %v10058 = vmax.f32 %v10010, 0.0
        %v10059 = vmax.f32 %v10011, 0.0
        %v10060 = vmax.f32 %v10012, 0.0
        %v10061 = vmax.f32 %v10013, 0.0
        %v10062 = vmax.f32 %v10014, 0.0
        %v10063 = vmax.f32 %v10015, 0.0
        %v10064 = vmax.f32 %v10016, 0.0
        %v10065 = vmax.f32 %v10017, 0.0
        %v10066 = vmax.f32 %v10018, 0.0
        %v10067 = vmax.f32 %v10019, 0.0
        %v10068 = vmax.f32 %v10020, 0.0
        %v10069 = vmax.f32 %v10021, 0.0
        %v10070 = vmax.f32 %v10022, 0.0
        %v10071 = vmax.f32 %v10023, 0.0
        %v10072 = vmax.f32 %v10024, 0.0
        %v10073 = vmax.f32 %v10025, 0.0
        %v10074 = vmax.f32 %v10026, 0.0
        %v10075 = vmax.f32 %v10027, 0.0
        %v10076 = vmax.f32 %v10028, 0.0
        %v10077 = vmax.f32 %v10029, 0.0
        %v10078 = vmax.f32 %v10030, 0.0
        %v10079 = vmax.f32 %v10031, 0.0
        %v10080 = vmax.f32 %v10032, 0.0
        %v10081 = vadd.f32 %v9930, %v9983
        %v10082 = vadd.f32 %v9931, %v9983
        %v10083 = vadd.f32 %v9932, %v9983
        %v10084 = vadd.f32 %v9933, %v9983
        %v10085 = vadd.f32 %v9934, %v9983
        %v10086 = vadd.f32 %v9935, %v9983
        %v10087 = vadd.f32 %v9936, %v9983
        %v10088 = vadd.f32 %v9937, %v9983
        %v10089 = vadd.f32 %v9938, %v9983
        %v10090 = vadd.f32 %v9939, %v9983
        %v10091 = vadd.f32 %v9940, %v9983
        %v10092 = vadd.f32 %v9941, %v9983
        %v10093 = vadd.f32 %v9942, %v9983
        %v10094 = vadd.f32 %v9943, %v9983
        %v10095 = vadd.f32 %v9944, %v9983
        %v10096 = vadd.f32 %v9945, %v9983
        %v10097 = vadd.f32 %v9946, %v9983
        %v10098 = vadd.f32 %v9947, %v9983
        %v10099 = vadd.f32 %v9948, %v9983
        %v10100 = vadd.f32 %v9949, %v9983
        %v10101 = vadd.f32 %v9950, %v9983
        %v10102 = vadd.f32 %v9951, %v9983
        %v10103 = vadd.f32 %v9952, %v9983
        %v10104 = vadd.f32 %v9953, %v9983
        %v10105 = vadd.f32 %v9954, %v9983
        %v10106 = vadd.f32 %v9955, %v9983
        %v10107 = vadd.f32 %v9956, %v9983
        %v10108 = vadd.f32 %v9957, %v9983
        %v10109 = vadd.f32 %v9958, %v9983
        %v10110 = vadd.f32 %v9959, %v9983
        %v10111 = vadd.f32 %v9960, %v9983
        %v10112 = vadd.f32 %v9961, %v9983
        %v10113 = vadd.f32 %v9962, %v9983
        %v10114 = vadd.f32 %v9963, %v9983
        %v10115 = vadd.f32 %v9964, %v9983
        %v10116 = vadd.f32 %v9965, %v9983
        %v10117 = vadd.f32 %v9966, %v9983
        %v10118 = vadd.f32 %v9967, %v9983
        %v10119 = vadd.f32 %v9968, %v9983
        %v10120 = vadd.f32 %v9969, %v9983
        %v10121 = vadd.f32 %v9970, %v9983
        %v10122 = vadd.f32 %v9971, %v9983
        %v10123 = vadd.f32 %v9972, %v9983
        %v10124 = vadd.f32 %v9973, %v9983
        %v10125 = vadd.f32 %v9974, %v9983
        %v10126 = vadd.f32 %v9975, %v9983
        %v10127 = vadd.f32 %v9976, %v9983
        %v10128 = vadd.f32 %v9977, %v9983
        %v10129 = vmax.f32 %v10081, 0.0
        %v10130 = vmax.f32 %v10082, 0.0
        %v10131 = vmax.f32 %v10083, 0.0
        %v10132 = vmax.f32 %v10084, 0.0
        %v10133 = vmax.f32 %v10085, 0.0
        %v10134 = vmax.f32 %v10086, 0.0
        %v10135 = vmax.f32 %v10087, 0.0
        %v10136 = vmax.f32 %v10088, 0.0
        %v10137 = vmax.f32 %v10089, 0.0
        %v10138 = vmax.f32 %v10090, 0.0
        %v10139 = vmax.f32 %v10091, 0.0
        %v10140 = vmax.f32 %v10092, 0.0
        %v10141 = vmax.f32 %v10093, 0.0
        %v10142 = vmax.f32 %v10094, 0.0
        %v10143 = vmax.f32 %v10095, 0.0
        %v10144 = vmax.f32 %v10096, 0.0
        %v10145 = vmax.f32 %v10097, 0.0
        %v10146 = vmax.f32 %v10098, 0.0
        %v10147 = vmax.f32 %v10099, 0.0
        %v10148 = vmax.f32 %v10100, 0.0
        %v10149 = vmax.f32 %v10101, 0.0
        %v10150 = vmax.f32 %v10102, 0.0
        %v10151 = vmax.f32 %v10103, 0.0
        %v10152 = vmax.f32 %v10104, 0.0
        %v10153 = vmax.f32 %v10105, 0.0
        %v10154 = vmax.f32 %v10106, 0.0
        %v10155 = vmax.f32 %v10107, 0.0
        %v10156 = vmax.f32 %v10108, 0.0
        %v10157 = vmax.f32 %v10109, 0.0
        %v10158 = vmax.f32 %v10110, 0.0
        %v10159 = vmax.f32 %v10111, 0.0
        %v10160 = vmax.f32 %v10112, 0.0
        %v10161 = vmax.f32 %v10113, 0.0
        %v10162 = vmax.f32 %v10114, 0.0
        %v10163 = vmax.f32 %v10115, 0.0
        %v10164 = vmax.f32 %v10116, 0.0
        %v10165 = vmax.f32 %v10117, 0.0
        %v10166 = vmax.f32 %v10118, 0.0
        %v10167 = vmax.f32 %v10119, 0.0
        %v10168 = vmax.f32 %v10120, 0.0
        %v10169 = vmax.f32 %v10121, 0.0
        %v10170 = vmax.f32 %v10122, 0.0
        %v10171 = vmax.f32 %v10123, 0.0
        %v10172 = vmax.f32 %v10124, 0.0
        %v10173 = vmax.f32 %v10125, 0.0
        %v10174 = vmax.f32 %v10126, 0.0
        %v10175 = vmax.f32 %v10127, 0.0
        %v10176 = vmax.f32 %v10128, 0.0
        %v10177 = vsub.f32 %v10033, %v10129
        %v10178 = vsub.f32 %v10034, %v10130
        %v10179 = vsub.f32 %v10035, %v10131
        %v10180 = vsub.f32 %v10036, %v10132
        %v10181 = vsub.f32 %v10037, %v10133
        %v10182 = vsub.f32 %v10038, %v10134
        %v10183 = vsub.f32 %v10039, %v10135
        %v10184 = vsub.f32 %v10040, %v10136
        %v10185 = vsub.f32 %v10041, %v10137
        %v10186 = vsub.f32 %v10042, %v10138
        %v10187 = vsub.f32 %v10043, %v10139
        %v10188 = vsub.f32 %v10044, %v10140
        %v10189 = vsub.f32 %v10045, %v10141
        %v10190 = vsub.f32 %v10046, %v10142
        %v10191 = vsub.f32 %v10047, %v10143
        %v10192 = vsub.f32 %v10048, %v10144
        %v10193 = vsub.f32 %v10049, %v10145
        %v10194 = vsub.f32 %v10050, %v10146
        %v10195 = vsub.f32 %v10051, %v10147
        %v10196 = vsub.f32 %v10052, %v10148
        %v10197 = vsub.f32 %v10053, %v10149
        %v10198 = vsub.f32 %v10054, %v10150
        %v10199 = vsub.f32 %v10055, %v10151
        %v10200 = vsub.f32 %v10056, %v10152
        %v10201 = vsub.f32 %v10057, %v10153
        %v10202 = vsub.f32 %v10058, %v10154
        %v10203 = vsub.f32 %v10059, %v10155
        %v10204 = vsub.f32 %v10060, %v10156
        %v10205 = vsub.f32 %v10061, %v10157
        %v10206 = vsub.f32 %v10062, %v10158
        %v10207 = vsub.f32 %v10063, %v10159
        %v10208 = vsub.f32 %v10064, %v10160
        %v10209 = vsub.f32 %v10065, %v10161
        %v10210 = vsub.f32 %v10066, %v10162
        %v10211 = vsub.f32 %v10067, %v10163
        %v10212 = vsub.f32 %v10068, %v10164
        %v10213 = vsub.f32 %v10069, %v10165
        %v10214 = vsub.f32 %v10070, %v10166
        %v10215 = vsub.f32 %v10071, %v10167
        %v10216 = vsub.f32 %v10072, %v10168
        %v10217 = vsub.f32 %v10073, %v10169
        %v10218 = vsub.f32 %v10074, %v10170
        %v10219 = vsub.f32 %v10075, %v10171
        %v10220 = vsub.f32 %v10076, %v10172
        %v10221 = vsub.f32 %v10077, %v10173
        %v10222 = vsub.f32 %v10078, %v10174
        %v10223 = vsub.f32 %v10079, %v10175
        %v10224 = vsub.f32 %v10080, %v10176
        %v10225 = vmul.f32 %v10177, %v2048
        %v10226 = vmul.f32 %v10178, %v2049
        %v10227 = vmul.f32 %v10179, %v2050
        %v10228 = vmul.f32 %v10180, %v2051
        %v10229 = vmul.f32 %v10181, %v2052
        %v10230 = vmul.f32 %v10182, %v2053
        %v10231 = vmul.f32 %v10183, %v2054
        %v10232 = vmul.f32 %v10184, %v2055
        %v10233 = vmul.f32 %v10185, %v2056
        %v10234 = vmul.f32 %v10186, %v2057
        %v10235 = vmul.f32 %v10187, %v2058
        %v10236 = vmul.f32 %v10188, %v2059
        %v10237 = vmul.f32 %v10189, %v2060
        %v10238 = vmul.f32 %v10190, %v2061
        %v10239 = vmul.f32 %v10191, %v2062
        %v10240 = vmul.f32 %v10192, %v2063
        %v10241 = vmul.f32 %v10193, %v2064
        %v10242 = vmul.f32 %v10194, %v2065
        %v10243 = vmul.f32 %v10195, %v2066
        %v10244 = vmul.f32 %v10196, %v2067
        %v10245 = vmul.f32 %v10197, %v2068
        %v10246 = vmul.f32 %v10198, %v2069
        %v10247 = vmul.f32 %v10199, %v2070
        %v10248 = vmul.f32 %v10200, %v2071
        %v10249 = vmul.f32 %v10201, %v2072
        %v10250 = vmul.f32 %v10202, %v2073
        %v10251 = vmul.f32 %v10203, %v2074
        %v10252 = vmul.f32 %v10204, %v2075
        %v10253 = vmul.f32 %v10205, %v2076
        %v10254 = vmul.f32 %v10206, %v2077
        %v10255 = vmul.f32 %v10207, %v2078
        %v10256 = vmul.f32 %v10208, %v2079
        %v10257 = vmul.f32 %v10209, %v2080
        %v10258 = vmul.f32 %v10210, %v2081
        %v10259 = vmul.f32 %v10211, %v2082
        %v10260 = vmul.f32 %v10212, %v2083
        %v10261 = vmul.f32 %v10213, %v2084
        %v10262 = vmul.f32 %v10214, %v2085
        %v10263 = vmul.f32 %v10215, %v2086
        %v10264 = vmul.f32 %v10216, %v2087
        %v10265 = vmul.f32 %v10217, %v2088
        %v10266 = vmul.f32 %v10218, %v2089
        %v10267 = vmul.f32 %v10219, %v2090
        %v10268 = vmul.f32 %v10220, %v2091
        %v10269 = vmul.f32 %v10221, %v2092
        %v10270 = vmul.f32 %v10222, %v2093
        %v10271 = vmul.f32 %v10223, %v2094
        %v10272 = vmul.f32 %v10224, %v2095
        %v10273 = vmul.f32 %v10225, %v10225
        %v10274 = vmul.f32 %v10226, %v10226
        %v10275 = vmul.f32 %v10227, %v10227
        %v10276 = vmul.f32 %v10228, %v10228
        %v10277 = vmul.f32 %v10229, %v10229
        %v10278 = vmul.f32 %v10230, %v10230
        %v10279 = vmul.f32 %v10231, %v10231
        %v10280 = vmul.f32 %v10232, %v10232
        %v10281 = vmul.f32 %v10233, %v10233
        %v10282 = vmul.f32 %v10234, %v10234
        %v10283 = vmul.f32 %v10235, %v10235
        %v10284 = vmul.f32 %v10236, %v10236
        %v10285 = vmul.f32 %v10237, %v10237
        %v10286 = vmul.f32 %v10238, %v10238
        %v10287 = vmul.f32 %v10239, %v10239
        %v10288 = vmul.f32 %v10240, %v10240
        %v10289 = vmul.f32 %v10241, %v10241
        %v10290 = vmul.f32 %v10242, %v10242
        %v10291 = vmul.f32 %v10243, %v10243
        %v10292 = vmul.f32 %v10244, %v10244
        %v10293 = vmul.f32 %v10245, %v10245
        %v10294 = vmul.f32 %v10246, %v10246
        %v10295 = vmul.f32 %v10247, %v10247
        %v10296 = vmul.f32 %v10248, %v10248
        %v10297 = vmul.f32 %v10249, %v10249
        %v10298 = vmul.f32 %v10250, %v10250
        %v10299 = vmul.f32 %v10251, %v10251
        %v10300 = vmul.f32 %v10252, %v10252
        %v10301 = vmul.f32 %v10253, %v10253
        %v10302 = vmul.f32 %v10254, %v10254
        %v10303 = vmul.f32 %v10255, %v10255
        %v10304 = vmul.f32 %v10256, %v10256
        %v10305 = vmul.f32 %v10257, %v10257
        %v10306 = vmul.f32 %v10258, %v10258
        %v10307 = vmul.f32 %v10259, %v10259
        %v10308 = vmul.f32 %v10260, %v10260
        %v10309 = vmul.f32 %v10261, %v10261
        %v10310 = vmul.f32 %v10262, %v10262
        %v10311 = vmul.f32 %v10263, %v10263
        %v10312 = vmul.f32 %v10264, %v10264
        %v10313 = vmul.f32 %v10265, %v10265
        %v10314 = vmul.f32 %v10266, %v10266
        %v10315 = vmul.f32 %v10267, %v10267
        %v10316 = vmul.f32 %v10268, %v10268
        %v10317 = vmul.f32 %v10269, %v10269
        %v10318 = vmul.f32 %v10270, %v10270
        %v10319 = vmul.f32 %v10271, %v10271
        %v10320 = vmul.f32 %v10272, %v10272
        %v10321 = vadd.f32 %v10273, %v10274
        %v10322 = vadd.f32 %v10321, %v10275
        %v10323 = vadd.f32 %v10322, %v10276
        %v10324 = vadd.f32 %v10323, %v10277
        %v10325 = vadd.f32 %v10324, %v10278
        %v10326 = vadd.f32 %v10325, %v10279
        %v10327 = vadd.f32 %v10326, %v10280
        %v10328 = vadd.f32 %v10327, %v10281
        %v10329 = vadd.f32 %v10328, %v10282
        %v10330 = vadd.f32 %v10329, %v10283
        %v10331 = vadd.f32 %v10330, %v10284
        %v10332 = vadd.f32 %v10331, %v10285
        %v10333 = vadd.f32 %v10332, %v10286
        %v10334 = vadd.f32 %v10333, %v10287
        %v10335 = vadd.f32 %v10334, %v10288
        %v10336 = vadd.f32 %v10335, %v10289
        %v10337 = vadd.f32 %v10336, %v10290
        %v10338 = vadd.f32 %v10337, %v10291
        %v10339 = vadd.f32 %v10338, %v10292
        %v10340 = vadd.f32 %v10339, %v10293
        %v10341 = vadd.f32 %v10340, %v10294
        %v10342 = vadd.f32 %v10341, %v10295
        %v10343 = vadd.f32 %v10342, %v10296
        %v10344 = vadd.f32 %v10343, %v10297
        %v10345 = vadd.f32 %v10344, %v10298
        %v10346 = vadd.f32 %v10345, %v10299
        %v10347 = vadd.f32 %v10346, %v10300
        %v10348 = vadd.f32 %v10347, %v10301
        %v10349 = vadd.f32 %v10348, %v10302
        %v10350 = vadd.f32 %v10349, %v10303
        %v10351 = vadd.f32 %v10350, %v10304
        %v10352 = vadd.f32 %v10351, %v10305
        %v10353 = vadd.f32 %v10352, %v10306
        %v10354 = vadd.f32 %v10353, %v10307
        %v10355 = vadd.f32 %v10354, %v10308
        %v10356 = vadd.f32 %v10355, %v10309
        %v10357 = vadd.f32 %v10356, %v10310
        %v10358 = vadd.f32 %v10357, %v10311
        %v10359 = vadd.f32 %v10358, %v10312
        %v10360 = vadd.f32 %v10359, %v10313
        %v10361 = vadd.f32 %v10360, %v10314
        %v10362 = vadd.f32 %v10361, %v10315
        %v10363 = vadd.f32 %v10362, %v10316
        %v10364 = vadd.f32 %v10363, %v10317
        %v10365 = vadd.f32 %v10364, %v10318
        %v10366 = vadd.f32 %v10365, %v10319
        %v10367 = vadd.f32 %v10366, %v10320
        %v10368 = vrot.slane %v10367, 4
        %v10369 = vadd.f32 %v10367, %v10368
        %v10370 = vrot.slane %v10369, 2
        %v10371 = vadd.f32 %v10369, %v10370
        %v10372 = vrot.slane %v10371, 1
        %v10373 = vadd.f32 %v10371, %v10372
        %10374 = vst [vmem:[%s216] sm:$0x1] %v10373
        %s10375 = sand.u32 %s137, 1
        %s10376 = scalar_lea.sflag [#allocation4], %s10375
        %s10377 = sand.u32 %s137, 1
        %s10378 = scalar_lea.vmem [#allocation3], %s10377
        // Predicated region
        $region41: #{tpu_custom_call.1} parent=39 // pred_check
          %p10379 = pneg %p147
        $region42: #{tpu_custom_call.1} parent=39 // pred_check_branch
          %10381 = sbr.rel (%p10379) target = $region44
        $region43: #{tpu_custom_call.1} parent=39 // pred_region
          %s10383 = ssub.s32 16, 16
          %10384 = vsyncadd %s10376, %s10383
          %s10385 = smul.addr %s19, 16
          %s10386 = scalar_lea.hbm %s5, %s10385
          %s10388 = sshll.u32 %s10378, 4
          %s10389 = int_to_ptr.vmem [resolvable:$true] %s10388
          %10391 = dma.vmem_to_hbm [thread:$0]  %s10389, 16, %s10386, %s10376
        $region44: #{tpu_custom_call.1} parent=39 // pred_fallthru
          _
      $region40: #{tpu_custom_call.1} parent=5 // pred_fallthru
        _
      %p10392 = scmp.le.s32.totalorder 2, %s14
      // Predicated region
      $region45: #{tpu_custom_call.1} parent=5 // pred_check
        %p10393 = pneg %p10392
      $region46: #{tpu_custom_call.1} parent=5 // pred_check_branch
        %10395 = sbr.rel (%p10393) target = $region48
      $region47: #{tpu_custom_call.1} parent=5 // pred_region
        %s10396 = ssub.s32 %s14, 2
        // Predicated region
        $region49: #{tpu_custom_call.1} parent=47 // pred_check
          %p10397 = pneg %p153
        $region50: #{tpu_custom_call.1} parent=47 // pred_check_branch
          %10399 = sbr.rel (%p10397) target = $region52
        $region51: #{tpu_custom_call.1} parent=47 // pred_region
          %s10400 = sand.u32 %s138, 1
          %s10401 = scalar_lea.sflag [#allocation4], %s10400
          %s10402 = sand.u32 %s138, 1
          %s10403 = scalar_lea.vmem [#allocation3], %s10402
          %10404 = dma.done %s10401, 16
        $region52: #{tpu_custom_call.1} parent=47 // pred_fallthru
          _
      $region48: #{tpu_custom_call.1} parent=5 // pred_fallthru
        _
    $region6: #{tpu_custom_call.1} parent=1 // loop_footer
      %s18 = sadd.s32 1, %s14
    $region7: #{tpu_custom_call.1} parent=1 // loop_footer_branch
      %13 = sbr.rel target = $region3
    $region8: #{tpu_custom_call.1} parent=1 // loop_exit
      _
    %10405 = vsyncpa [#allocation4], 1
    %s10406 = scalar_lea.sflag [#allocation4], 1
    %10407 = vsyncpa %s10406, 1

</llo_original>
